<compile_context>
chip_gen: v6e
topology: v6e:2x2x1
jax: 0.10.0
libtpu: 0.0.40
codegen_flags: <defaults>
</compile_context>

<pallas_src>
import jax
import jax.numpy as jnp
from jax.experimental import pallas as pl
from jax.experimental.pallas import tpu as pltpu

# ----------------------------- problem sizes -----------------------------
B  = 2      # batch
CX = 4      # last_channels : channels of x (fed to ConvTranspose2d)
CU = 8      # in_channels   : channels produced by the transposed conv ("up")
CS = 8      # skip_channels
CO = 16     # out_channels
HI = 16     # x spatial; output spatial is (2*HI, 2*WI)
WI = 16
HO, WO = 2 * HI, 2 * WI

C1 = CU + CS                    # conv1 input channels (after concat) = 16
PH, PW = HI + 2, WI + 2         # zero-padded parity-plane spatial dims (18, 18)
NPLANE = PH * PW                # rows of one padded parity plane = 324
LZ = 4 * B * C1                 # zbuf lanes : [parity][batch][C1] = 128
LO = 4 * B * CO                 # out  lanes : [parity][batch][CO] = 128
LX = B * CX                     # x    lanes : [batch][CX]         = 8

MARGIN = 32                     # zero margin rows around the plane
assert MARGIN >= PW + 1, "shifted reads need MARGIN >= PW + 1 (VMEM OOB is unchecked)"
NROWS = NPLANE + 2 * MARGIN
TAIL_START = (MARGIN + NPLANE) // 8 * 8   # 8-aligned start of tail-margin zeroing

BN_EPS = 1e-5

# 3x3 pad=1 conv expressed on 2x2 parity planes.  For the row direction, kernel
# tap ky of output row-parity pr reads input row-parity pri at block shift di;
# identical mapping holds for columns.
#   combos: (pri, di)             users: (pr, ky) pairs reading that combo
ROW_COMBOS = [(1, -1), (0, 0), (1, 0), (0, 1)]
ROW_USERS  = [[(0, 0)], [(0, 1), (1, 0)], [(0, 2), (1, 1)], [(1, 2)]]
COL_COMBOS = ROW_COMBOS
COL_USERS  = ROW_USERS

# 16 distinct shifted input slices: (input parity band, flattened row offset)
SLICES = [(2 * pri + pci, di * PW + dj)
          for (pri, di) in ROW_COMBOS for (pci, dj) in COL_COMBOS]
NSLICE = len(SLICES)            # 16


# ----------------------------- Pallas kernel ------------------------------
def _decoder_block_kernel(mask_ref, xpf_ref, skpf_ref, wup_ref, bup_ref,
                          w1_ref, s1_ref, b1_ref, w2_ref, s2_ref, b2_ref,
                          o_ref, zbuf, c1buf):
    """Fused DecoderBlock forward.  All refs are whole arrays in VMEM.

    mask_ref : (NPLANE, 1)   1.0 at interior (non-padding) plane rows, else 0.0
    xpf_ref  : (NPLANE, LX)  x, padded plane, lanes [batch][CX]
    skpf_ref : (NPLANE, LZ)  skip, nonzero only at skip-channel lanes
    wup_ref  : (LX, LZ)      fused ConvTranspose2d weight (all 4 parities)
    bup_ref  : (1, LZ)       fused ConvTranspose2d bias (zero at skip lanes)
    w1_ref   : (NSLICE*B*C1, LO) bf16  conv1 fused per-slice weights
    s1/b1    : (1, LO)       conv1 folded BN scale / shift (eval mode)
    w2_ref   : (NSLICE*B*CO, LO) bf16  conv2 fused per-slice weights
    s2/b2    : (1, LO)       conv2 folded BN scale / shift
    o_ref    : (NPLANE, LO)  output, lanes [parity][batch][CO]
    zbuf     : (NROWS, LZ)   scratch: [up | skip] with zero margins
    c1buf    : (NROWS, LO)   scratch: conv1 output with zero margins
    """
    mask = mask_ref[...]                                   # (NPLANE, 1)

    # zero only the margin rows (interiors are fully overwritten below; the
    # tail zeroing starts at an 8-aligned row and its small overlap with the
    # interior is rewritten by the interior store that follows)
    zbuf[0:MARGIN, :] = jnp.zeros((MARGIN, LZ), zbuf.dtype)
    zbuf[TAIL_START:NROWS, :] = jnp.zeros((NROWS - TAIL_START, LZ), zbuf.dtype)
    c1buf[0:MARGIN, :] = jnp.zeros((MARGIN, LO), c1buf.dtype)
    c1buf[TAIL_START:NROWS, :] = jnp.zeros((NROWS - TAIL_START, LO), c1buf.dtype)

    # ---- stage 1: ConvTranspose2d(k=2, s=2), all parities in ONE matmul,
    #      plus channel-concat with skip, one unmasked 128-lane store ----
    up = jnp.dot(xpf_ref[...], wup_ref[...], preferred_element_type=jnp.float32)
    z = (up + bup_ref[...]) * mask + skpf_ref[...]
    zbuf[MARGIN:MARGIN + NPLANE, :] = z

    # ---- stage 2: conv1 = Conv3x3(pad=1, no bias) + BN(eval) + ReLU ----
    acc = jnp.zeros((NPLANE, LO), jnp.float32)
    for s, (pin, roff) in enumerate(SLICES):
        lhs = zbuf[MARGIN + roff:MARGIN + roff + NPLANE,
                   pin * (B * C1):(pin + 1) * (B * C1)].astype(jnp.bfloat16)
        acc = acc + jnp.dot(lhs, w1_ref[s * (B * C1):(s + 1) * (B * C1), :],
                            preferred_element_type=jnp.float32)
    h = jnp.maximum(acc * s1_ref[...] + b1_ref[...], 0.0) * mask
    c1buf[MARGIN:MARGIN + NPLANE, :] = h

    # ---- stage 3: conv2 = Conv3x3(pad=1, no bias) + BN(eval) + ReLU ----
    acc = jnp.zeros((NPLANE, LO), jnp.float32)
    for s, (pin, roff) in enumerate(SLICES):
        lhs = c1buf[MARGIN + roff:MARGIN + roff + NPLANE,
                    pin * (B * CO):(pin + 1) * (B * CO)].astype(jnp.bfloat16)
        acc = acc + jnp.dot(lhs, w2_ref[s * (B * CO):(s + 1) * (B * CO), :],
                            preferred_element_type=jnp.float32)
    o_ref[...] = jnp.maximum(acc * s2_ref[...] + b2_ref[...], 0.0) * mask


# --------------------------- layout plumbing -------------------------------
def _plane_pad_flat(t_nchw):
    """(B, C, HI, WI) -> (NPLANE, B*C): HWBC, spatial zero-pad 1, rows flattened;
    batch folded into the lane axis."""
    p = jnp.transpose(t_nchw, (2, 3, 0, 1))                # (HI, WI, B, C)
    p = jnp.pad(p, ((1, 1), (1, 1), (0, 0), (0, 0)))
    return p.reshape(NPLANE, -1)


def _skip_lanes(skip):
    """(B, CS, HO, WO) -> (NPLANE, LZ): skip values placed at the skip-channel
    lanes of each [parity][batch][C1] band, zeros elsewhere (incl. pad rows)."""
    out = jnp.zeros((NPLANE, LZ), jnp.float32)
    for pr in range(2):
        for pc in range(2):
            p = 2 * pr + pc
            plane = _plane_pad_flat(skip[:, :, pr::2, pc::2])   # (NPLANE, B*CS)
            for b in range(B):
                c0 = p * (B * C1) + b * C1 + CU
                out = out.at[:, c0:c0 + CS].set(plane[:, b * CS:(b + 1) * CS])
    return out


def _interior_mask():
    r = (jnp.arange(PH) >= 1) & (jnp.arange(PH) <= HI)
    c = (jnp.arange(PW) >= 1) & (jnp.arange(PW) <= WI)
    return (r[:, None] & c[None, :]).astype(jnp.float32).reshape(NPLANE, 1)


def _fused_up_weight(up_w, up_b):
    """ConvTranspose2d weight (CX, CU, 2, 2) -> (LX, LZ) fused over the 4
    output parities and batch-block-diagonal; bias (1, LZ).  Nonzero only at
    the up-channel lanes of each [parity][batch][C1] band."""
    wf = jnp.zeros((LX, LZ), jnp.float32)
    bf = jnp.zeros((1, LZ), jnp.float32)
    for pr in range(2):
        for pc in range(2):
            p = 2 * pr + pc
            blk = up_w[:, :, pr, pc]                       # (CX, CU)
            for b in range(B):
                c0 = p * (B * C1) + b * C1
                wf = wf.at[b * CX:(b + 1) * CX, c0:c0 + CU].set(blk)
                bf = bf.at[0, c0:c0 + CU].set(up_b)
    return wf, bf


def _fused_conv_weight(w):
    """OIHW (Cout, Cin, 3, 3) -> (NSLICE * B*Cin, LO) bf16.

    One (B*Cin, LO) block per distinct shifted input slice; within a block the
    weight is batch-block-diagonal and the output-lane band of every output
    parity that uses this slice carries the corresponding 3x3 tap."""
    cout, cin = w.shape[0], w.shape[1]
    blocks = []
    for (_pri, _di), rusers in zip(ROW_COMBOS, ROW_USERS):
        for (_pci, _dj), cusers in zip(COL_COMBOS, COL_USERS):
            ws = jnp.zeros((B * cin, LO), jnp.float32)
            for (pr, ky) in rusers:
                for (pc, kx) in cusers:
                    p_out = 2 * pr + pc
                    tap = w[:, :, ky, kx].T                # (Cin, Cout)
                    for b in range(B):
                        c0 = (p_out * B + b) * cout
                        ws = ws.at[b * cin:(b + 1) * cin, c0:c0 + cout].set(tap)
            blocks.append(ws)
    return jnp.concatenate(blocks, axis=0).astype(jnp.bfloat16)


def _fold_bn(gamma, beta, mean, var):
    # TODO(synk): BatchNorm2d is applied in inference (eval) mode, folded into a
    # per-channel scale/shift from running stats; train-mode batch statistics
    # are not computed inside the kernel.
    scale = gamma * jax.lax.rsqrt(var + BN_EPS)
    shift = beta - mean * scale
    return scale, shift


def _bn_lane_affine(gamma, beta, mean, var):
    scale, shift = _fold_bn(gamma, beta, mean, var)
    return (jnp.tile(scale, 4 * B).reshape(1, LO),
            jnp.tile(shift, 4 * B).reshape(1, LO))


# ------------------------------- forward -----------------------------------
@jax.jit
def decoder_block_forward(x, skip, params):
    xpf = _plane_pad_flat(x)                               # (NPLANE, LX)
    skpf = _skip_lanes(skip)                               # (NPLANE, LZ)
    mask = _interior_mask()                                # (NPLANE, 1)
    wupf, bupf = _fused_up_weight(params["up_w"], params["up_b"])
    w1f = _fused_conv_weight(params["w1"])                 # (512, 128) bf16
    w2f = _fused_conv_weight(params["w2"])                 # (512, 128) bf16
    s1, b1 = _bn_lane_affine(params["bn1_gamma"], params["bn1_beta"],
                             params["bn1_mean"], params["bn1_var"])
    s2, b2 = _bn_lane_affine(params["bn2_gamma"], params["bn2_beta"],
                             params["bn2_mean"], params["bn2_var"])

    def full(shape):
        return pl.BlockSpec(shape, lambda i: (0, 0))

    out_pf = pl.pallas_call(
        _decoder_block_kernel,
        out_shape=jax.ShapeDtypeStruct((NPLANE, LO), jnp.float32),
        grid=(1,),
        in_specs=[full((NPLANE, 1)), full((NPLANE, LX)), full((NPLANE, LZ)),
                  full((LX, LZ)), full((1, LZ)),
                  full((NSLICE * B * C1, LO)), full((1, LO)), full((1, LO)),
                  full((NSLICE * B * CO, LO)), full((1, LO)), full((1, LO))],
        out_specs=full((NPLANE, LO)),
        scratch_shapes=[pltpu.VMEM((NROWS, LZ), jnp.float32),
                        pltpu.VMEM((NROWS, LO), jnp.float32)],
        compiler_params=pltpu.CompilerParams(
            dimension_semantics=("arbitrary",)),
    )(mask, xpf, skpf, wupf, bupf, w1f, s1, b1, w2f, s2, b2)

    # parity planes -> full-resolution NCHW output
    t = out_pf.reshape(PH, PW, 2, 2, B, CO)[1:1 + HI, 1:1 + WI]
    t = jnp.transpose(t, (4, 5, 0, 2, 1, 3))               # (B, CO, HI, pr, WI, pc)
    return t.reshape(B, CO, HO, WO)


# ------------------------------ parameters ----------------------------------
def init_params(key):
    ks = jax.random.split(key, 12)
    return dict(
        up_w=0.2 * jax.random.normal(ks[0], (CX, CU, 2, 2), jnp.float32),
        up_b=0.2 * jax.random.normal(ks[1], (CU,), jnp.float32),
        w1=0.1 * jax.random.normal(ks[2], (CO, C1, 3, 3), jnp.float32),
        bn1_gamma=1.0 + 0.1 * jax.random.normal(ks[3], (CO,), jnp.float32),
        bn1_beta=0.1 * jax.random.normal(ks[4], (CO,), jnp.float32),
        bn1_mean=0.1 * jax.random.normal(ks[5], (CO,), jnp.float32),
        bn1_var=0.5 + jax.random.uniform(ks[6], (CO,), jnp.float32),
        w2=0.1 * jax.random.normal(ks[7], (CO, CO, 3, 3), jnp.float32),
        bn2_gamma=1.0 + 0.1 * jax.random.normal(ks[8], (CO,), jnp.float32),
        bn2_beta=0.1 * jax.random.normal(ks[9], (CO,), jnp.float32),
        bn2_mean=0.1 * jax.random.normal(ks[10], (CO,), jnp.float32),
        bn2_var=0.5 + jax.random.uniform(ks[11], (CO,), jnp.float32),
    )


# --------------------------- pure-JAX reference -----------------------------
def decoder_block_reference(x, skip, params):
    # ConvTranspose2d(CX -> CU, k=2, s=2), PyTorch semantics
    up = jnp.einsum('bcij,cokl->boikjl', x, params["up_w"],
                    precision=jax.lax.Precision.HIGHEST)
    up = up.reshape(B, CU, HO, WO) + params["up_b"][None, :, None, None]
    z = jnp.concatenate([up, skip], axis=1)

    def conv_bn_relu(t, w, gamma, beta, mean, var):
        y = jax.lax.conv_general_dilated(
            t, w, window_strides=(1, 1), padding=((1, 1), (1, 1)),
            dimension_numbers=('NCHW', 'OIHW', 'NCHW'),
            precision=jax.lax.Precision.HIGHEST)
        scale, shift = _fold_bn(gamma, beta, mean, var)
        y = y * scale[None, :, None, None] + shift[None, :, None, None]
        return jnp.maximum(y, 0.0)

    z = conv_bn_relu(z, params["w1"], params["bn1_gamma"], params["bn1_beta"],
                     params["bn1_mean"], params["bn1_var"])
    z = conv_bn_relu(z, params["w2"], params["bn2_gamma"], params["bn2_beta"],
                     params["bn2_mean"], params["bn2_var"])
    return z


# ---------------------------------- main ------------------------------------
if __name__ == "__main__":
    key = jax.random.PRNGKey(0)
    kx, ks, kp = jax.random.split(key, 3)
    x = jax.random.normal(kx, (B, CX, HI, WI), jnp.float32)
    skip = jax.random.normal(ks, (B, CS, HO, WO), jnp.float32)
    params = init_params(kp)

    out = decoder_block_forward(x, skip, params)
    out = jax.block_until_ready(out)

    ref = decoder_block_reference(x, skip, params)
    assert out.shape == (B, CO, HO, WO)
    err = float(jnp.max(jnp.abs(out - ref)))
    # conv1/conv2 use bf16 MXU operands with f32 accumulation -> slightly looser
    # tolerance than the pure-f32 HIGHEST-precision reference.
    assert jnp.allclose(out, ref, atol=3e-2, rtol=3e-2), f"max abs err {err}"

    print("KERNEL_OK")
</pallas_src>

<mosaic_0001>
module attributes {stable_mosaic.version = 11 : i64} {
  func.func @_decoder_block_kernel(%arg0: i32, %arg1: memref<324x1xf32, #tpu.memory_space<vmem>>, %arg2: memref<324x8xf32, #tpu.memory_space<vmem>>, %arg3: memref<324x128xf32, #tpu.memory_space<vmem>>, %arg4: memref<8x128xf32, #tpu.memory_space<vmem>>, %arg5: memref<1x128xf32, #tpu.memory_space<vmem>>, %arg6: memref<512x128xbf16, #tpu.memory_space<vmem>>, %arg7: memref<1x128xf32, #tpu.memory_space<vmem>>, %arg8: memref<1x128xf32, #tpu.memory_space<vmem>>, %arg9: memref<512x128xbf16, #tpu.memory_space<vmem>>, %arg10: memref<1x128xf32, #tpu.memory_space<vmem>>, %arg11: memref<1x128xf32, #tpu.memory_space<vmem>>, %arg12: memref<324x128xf32, #tpu.memory_space<vmem>>, %arg13: memref<388x128xf32, #tpu.memory_space<vmem>>, %arg14: memref<388x128xf32, #tpu.memory_space<vmem>>) attributes {dimension_semantics = [#tpu.dimension_semantics<arbitrary>], iteration_bounds = array<i64: 1>, scalar_prefetch = 0 : i64, scratch_operands = 2 : i64, tpu.core_type = #tpu.core_type<tc>, window_params = [{pipeline_mode = #tpu.pipeline_mode<synchronous>, transform_indices = @transform_0, window_bounds = array<i64: 324, 1>}, {pipeline_mode = #tpu.pipeline_mode<synchronous>, transform_indices = @transform_1, window_bounds = array<i64: 324, 8>}, {pipeline_mode = #tpu.pipeline_mode<synchronous>, transform_indices = @transform_2, window_bounds = array<i64: 324, 128>}, {pipeline_mode = #tpu.pipeline_mode<synchronous>, transform_indices = @transform_3, window_bounds = array<i64: 8, 128>}, {pipeline_mode = #tpu.pipeline_mode<synchronous>, transform_indices = @transform_4, window_bounds = array<i64: 1, 128>}, {pipeline_mode = #tpu.pipeline_mode<synchronous>, transform_indices = @transform_5, window_bounds = array<i64: 512, 128>}, {pipeline_mode = #tpu.pipeline_mode<synchronous>, transform_indices = @transform_6, window_bounds = array<i64: 1, 128>}, {pipeline_mode = #tpu.pipeline_mode<synchronous>, transform_indices = @transform_7, window_bounds = array<i64: 1, 128>}, {pipeline_mode = #tpu.pipeline_mode<synchronous>, transform_indices = @transform_8, window_bounds = array<i64: 512, 128>}, {pipeline_mode = #tpu.pipeline_mode<synchronous>, transform_indices = @transform_9, window_bounds = array<i64: 1, 128>}, {pipeline_mode = #tpu.pipeline_mode<synchronous>, transform_indices = @transform_10, window_bounds = array<i64: 1, 128>}, {pipeline_mode = #tpu.pipeline_mode<synchronous>, transform_indices = @transform_11, window_bounds = array<i64: 324, 128>}]} {
    %c0 = arith.constant 0 : index
    %c0_0 = arith.constant 0 : index
    %0 = vector.load %arg1[%c0, %c0_0] : memref<324x1xf32, #tpu.memory_space<vmem>>, vector<324x1xf32>
    %cst = arith.constant 0.000000e+00 : f32
    %1 = vector.broadcast %cst : f32 to vector<32x128xf32>
    %c0_1 = arith.constant 0 : index
    %c0_2 = arith.constant 0 : index
    %2 = vector.load %arg13[%c0_1, %c0_2] : memref<388x128xf32, #tpu.memory_space<vmem>>, vector<32x128xf32>
    tpu.vector_store %arg13[%c0_1, %c0_2], %1 {strides = array<i32>} : memref<388x128xf32, #tpu.memory_space<vmem>>, vector<32x128xf32>,
    %cst_3 = arith.constant 0.000000e+00 : f32
    %3 = vector.broadcast %cst_3 : f32 to vector<36x128xf32>
    %c352 = arith.constant 352 : index
    %c0_4 = arith.constant 0 : index
    %4 = vector.load %arg13[%c352, %c0_4] : memref<388x128xf32, #tpu.memory_space<vmem>>, vector<36x128xf32>
    tpu.vector_store %arg13[%c352, %c0_4], %3 {strides = array<i32>} : memref<388x128xf32, #tpu.memory_space<vmem>>, vector<36x128xf32>,
    %cst_5 = arith.constant 0.000000e+00 : f32
    %5 = vector.broadcast %cst_5 : f32 to vector<32x128xf32>
    %c0_6 = arith.constant 0 : index
    %c0_7 = arith.constant 0 : index
    %6 = vector.load %arg14[%c0_6, %c0_7] : memref<388x128xf32, #tpu.memory_space<vmem>>, vector<32x128xf32>
    tpu.vector_store %arg14[%c0_6, %c0_7], %5 {strides = array<i32>} : memref<388x128xf32, #tpu.memory_space<vmem>>, vector<32x128xf32>,
    %cst_8 = arith.constant 0.000000e+00 : f32
    %7 = vector.broadcast %cst_8 : f32 to vector<36x128xf32>
    %c352_9 = arith.constant 352 : index
    %c0_10 = arith.constant 0 : index
    %8 = vector.load %arg14[%c352_9, %c0_10] : memref<388x128xf32, #tpu.memory_space<vmem>>, vector<36x128xf32>
    tpu.vector_store %arg14[%c352_9, %c0_10], %7 {strides = array<i32>} : memref<388x128xf32, #tpu.memory_space<vmem>>, vector<36x128xf32>,
    %c0_11 = arith.constant 0 : index
    %c0_12 = arith.constant 0 : index
    %9 = vector.load %arg2[%c0_11, %c0_12] : memref<324x8xf32, #tpu.memory_space<vmem>>, vector<324x8xf32>
    %c0_13 = arith.constant 0 : index
    %c0_14 = arith.constant 0 : index
    %10 = vector.load %arg4[%c0_13, %c0_14] : memref<8x128xf32, #tpu.memory_space<vmem>>, vector<8x128xf32>
    %cst_15 = arith.constant dense<0.000000e+00> : vector<324x128xf32>
    %11 = tpu.matmul %9, %10, %cst_15 {dimension_numbers = #tpu.dot_dimension_numbers<[1], [0], [0], [1], [0, 0, 1, 1], [], []>} : vector<324x8xf32>, vector<8x128xf32>, vector<324x128xf32> -> vector<324x128xf32>
    %c0_16 = arith.constant 0 : index
    %c0_17 = arith.constant 0 : index
    %12 = vector.load %arg5[%c0_16, %c0_17] : memref<1x128xf32, #tpu.memory_space<vmem>>, vector<1x128xf32>
    %13 = vector.broadcast %12 : vector<1x128xf32> to vector<324x128xf32>
    %14 = arith.addf %11, %13 : vector<324x128xf32>
    %15 = vector.broadcast %0 : vector<324x1xf32> to vector<324x128xf32>
    %16 = arith.mulf %14, %15 : vector<324x128xf32>
    %c0_18 = arith.constant 0 : index
    %c0_19 = arith.constant 0 : index
    %17 = vector.load %arg3[%c0_18, %c0_19] : memref<324x128xf32, #tpu.memory_space<vmem>>, vector<324x128xf32>
    %18 = arith.addf %16, %17 : vector<324x128xf32>
    %c32 = arith.constant 32 : index
    %c0_20 = arith.constant 0 : index
    %19 = vector.load %arg13[%c32, %c0_20] : memref<388x128xf32, #tpu.memory_space<vmem>>, vector<324x128xf32>
    tpu.vector_store %arg13[%c32, %c0_20], %18 {strides = array<i32>} : memref<388x128xf32, #tpu.memory_space<vmem>>, vector<324x128xf32>,
    %cst_21 = arith.constant 0.000000e+00 : f32
    %20 = vector.broadcast %cst_21 : f32 to vector<324x128xf32>
    %c13 = arith.constant 13 : index
    %c96 = arith.constant 96 : index
    %21 = vector.load %arg13[%c13, %c96] : memref<388x128xf32, #tpu.memory_space<vmem>>, vector<324x32xf32>
    %22 = arith.truncf %21 : vector<324x32xf32> to vector<324x32xbf16>
    %c0_22 = arith.constant 0 : index
    %c0_23 = arith.constant 0 : index
    %23 = vector.load %arg6[%c0_22, %c0_23] : memref<512x128xbf16, #tpu.memory_space<vmem>>, vector<32x128xbf16>
    %cst_24 = arith.constant dense<0.000000e+00> : vector<324x128xf32>
    %24 = tpu.matmul %22, %23, %cst_24 {dimension_numbers = #tpu.dot_dimension_numbers<[1], [0], [0], [1], [0, 0, 1, 1], [], []>} : vector<324x32xbf16>, vector<32x128xbf16>, vector<324x128xf32> -> vector<324x128xf32>
    %25 = arith.addf %20, %24 : vector<324x128xf32>
    %c14 = arith.constant 14 : index
    %c64 = arith.constant 64 : index
    %26 = vector.load %arg13[%c14, %c64] : memref<388x128xf32, #tpu.memory_space<vmem>>, vector<324x32xf32>
    %27 = arith.truncf %26 : vector<324x32xf32> to vector<324x32xbf16>
    %c32_25 = arith.constant 32 : index
    %c0_26 = arith.constant 0 : index
    %28 = vector.load %arg6[%c32_25, %c0_26] : memref<512x128xbf16, #tpu.memory_space<vmem>>, vector<32x128xbf16>
    %cst_27 = arith.constant dense<0.000000e+00> : vector<324x128xf32>
    %29 = tpu.matmul %27, %28, %cst_27 {dimension_numbers = #tpu.dot_dimension_numbers<[1], [0], [0], [1], [0, 0, 1, 1], [], []>} : vector<324x32xbf16>, vector<32x128xbf16>, vector<324x128xf32> -> vector<324x128xf32>
    %30 = arith.addf %25, %29 : vector<324x128xf32>
    %c14_28 = arith.constant 14 : index
    %c96_29 = arith.constant 96 : index
    %31 = vector.load %arg13[%c14_28, %c96_29] : memref<388x128xf32, #tpu.memory_space<vmem>>, vector<324x32xf32>
    %32 = arith.truncf %31 : vector<324x32xf32> to vector<324x32xbf16>
    %c64_30 = arith.constant 64 : index
    %c0_31 = arith.constant 0 : index
    %33 = vector.load %arg6[%c64_30, %c0_31] : memref<512x128xbf16, #tpu.memory_space<vmem>>, vector<32x128xbf16>
    %cst_32 = arith.constant dense<0.000000e+00> : vector<324x128xf32>
    %34 = tpu.matmul %32, %33, %cst_32 {dimension_numbers = #tpu.dot_dimension_numbers<[1], [0], [0], [1], [0, 0, 1, 1], [], []>} : vector<324x32xbf16>, vector<32x128xbf16>, vector<324x128xf32> -> vector<324x128xf32>
    %35 = arith.addf %30, %34 : vector<324x128xf32>
    %c15 = arith.constant 15 : index
    %c64_33 = arith.constant 64 : index
    %36 = vector.load %arg13[%c15, %c64_33] : memref<388x128xf32, #tpu.memory_space<vmem>>, vector<324x32xf32>
    %37 = arith.truncf %36 : vector<324x32xf32> to vector<324x32xbf16>
    %c96_34 = arith.constant 96 : index
    %c0_35 = arith.constant 0 : index
    %38 = vector.load %arg6[%c96_34, %c0_35] : memref<512x128xbf16, #tpu.memory_space<vmem>>, vector<32x128xbf16>
    %cst_36 = arith.constant dense<0.000000e+00> : vector<324x128xf32>
    %39 = tpu.matmul %37, %38, %cst_36 {dimension_numbers = #tpu.dot_dimension_numbers<[1], [0], [0], [1], [0, 0, 1, 1], [], []>} : vector<324x32xbf16>, vector<32x128xbf16>, vector<324x128xf32> -> vector<324x128xf32>
    %40 = arith.addf %35, %39 : vector<324x128xf32>
    %c31 = arith.constant 31 : index
    %c32_37 = arith.constant 32 : index
    %41 = vector.load %arg13[%c31, %c32_37] : memref<388x128xf32, #tpu.memory_space<vmem>>, vector<324x32xf32>
    %42 = arith.truncf %41 : vector<324x32xf32> to vector<324x32xbf16>
    %c128 = arith.constant 128 : index
    %c0_38 = arith.constant 0 : index
    %43 = vector.load %arg6[%c128, %c0_38] : memref<512x128xbf16, #tpu.memory_space<vmem>>, vector<32x128xbf16>
    %cst_39 = arith.constant dense<0.000000e+00> : vector<324x128xf32>
    %44 = tpu.matmul %42, %43, %cst_39 {dimension_numbers = #tpu.dot_dimension_numbers<[1], [0], [0], [1], [0, 0, 1, 1], [], []>} : vector<324x32xbf16>, vector<32x128xbf16>, vector<324x128xf32> -> vector<324x128xf32>
    %45 = arith.addf %40, %44 : vector<324x128xf32>
    %c32_40 = arith.constant 32 : index
    %c0_41 = arith.constant 0 : index
    %46 = vector.load %arg13[%c32_40, %c0_41] : memref<388x128xf32, #tpu.memory_space<vmem>>, vector<324x32xf32>
    %47 = arith.truncf %46 : vector<324x32xf32> to vector<324x32xbf16>
    %c160 = arith.constant 160 : index
    %c0_42 = arith.constant 0 : index
    %48 = vector.load %arg6[%c160, %c0_42] : memref<512x128xbf16, #tpu.memory_space<vmem>>, vector<32x128xbf16>
    %cst_43 = arith.constant dense<0.000000e+00> : vector<324x128xf32>
    %49 = tpu.matmul %47, %48, %cst_43 {dimension_numbers = #tpu.dot_dimension_numbers<[1], [0], [0], [1], [0, 0, 1, 1], [], []>} : vector<324x32xbf16>, vector<32x128xbf16>, vector<324x128xf32> -> vector<324x128xf32>
    %50 = arith.addf %45, %49 : vector<324x128xf32>
    %c32_44 = arith.constant 32 : index
    %c32_45 = arith.constant 32 : index
    %51 = vector.load %arg13[%c32_44, %c32_45] : memref<388x128xf32, #tpu.memory_space<vmem>>, vector<324x32xf32>
    %52 = arith.truncf %51 : vector<324x32xf32> to vector<324x32xbf16>
    %c192 = arith.constant 192 : index
    %c0_46 = arith.constant 0 : index
    %53 = vector.load %arg6[%c192, %c0_46] : memref<512x128xbf16, #tpu.memory_space<vmem>>, vector<32x128xbf16>
    %cst_47 = arith.constant dense<0.000000e+00> : vector<324x128xf32>
    %54 = tpu.matmul %52, %53, %cst_47 {dimension_numbers = #tpu.dot_dimension_numbers<[1], [0], [0], [1], [0, 0, 1, 1], [], []>} : vector<324x32xbf16>, vector<32x128xbf16>, vector<324x128xf32> -> vector<324x128xf32>
    %55 = arith.addf %50, %54 : vector<324x128xf32>
    %c33 = arith.constant 33 : index
    %c0_48 = arith.constant 0 : index
    %56 = vector.load %arg13[%c33, %c0_48] : memref<388x128xf32, #tpu.memory_space<vmem>>, vector<324x32xf32>
    %57 = arith.truncf %56 : vector<324x32xf32> to vector<324x32xbf16>
    %c224 = arith.constant 224 : index
    %c0_49 = arith.constant 0 : index
    %58 = vector.load %arg6[%c224, %c0_49] : memref<512x128xbf16, #tpu.memory_space<vmem>>, vector<32x128xbf16>
    %cst_50 = arith.constant dense<0.000000e+00> : vector<324x128xf32>
    %59 = tpu.matmul %57, %58, %cst_50 {dimension_numbers = #tpu.dot_dimension_numbers<[1], [0], [0], [1], [0, 0, 1, 1], [], []>} : vector<324x32xbf16>, vector<32x128xbf16>, vector<324x128xf32> -> vector<324x128xf32>
    %60 = arith.addf %55, %59 : vector<324x128xf32>
    %c31_51 = arith.constant 31 : index
    %c96_52 = arith.constant 96 : index
    %61 = vector.load %arg13[%c31_51, %c96_52] : memref<388x128xf32, #tpu.memory_space<vmem>>, vector<324x32xf32>
    %62 = arith.truncf %61 : vector<324x32xf32> to vector<324x32xbf16>
    %c256 = arith.constant 256 : index
    %c0_53 = arith.constant 0 : index
    %63 = vector.load %arg6[%c256, %c0_53] : memref<512x128xbf16, #tpu.memory_space<vmem>>, vector<32x128xbf16>
    %cst_54 = arith.constant dense<0.000000e+00> : vector<324x128xf32>
    %64 = tpu.matmul %62, %63, %cst_54 {dimension_numbers = #tpu.dot_dimension_numbers<[1], [0], [0], [1], [0, 0, 1, 1], [], []>} : vector<324x32xbf16>, vector<32x128xbf16>, vector<324x128xf32> -> vector<324x128xf32>
    %65 = arith.addf %60, %64 : vector<324x128xf32>
    %c32_55 = arith.constant 32 : index
    %c64_56 = arith.constant 64 : index
    %66 = vector.load %arg13[%c32_55, %c64_56] : memref<388x128xf32, #tpu.memory_space<vmem>>, vector<324x32xf32>
    %67 = arith.truncf %66 : vector<324x32xf32> to vector<324x32xbf16>
    %c288 = arith.constant 288 : index
    %c0_57 = arith.constant 0 : index
    %68 = vector.load %arg6[%c288, %c0_57] : memref<512x128xbf16, #tpu.memory_space<vmem>>, vector<32x128xbf16>
    %cst_58 = arith.constant dense<0.000000e+00> : vector<324x128xf32>
    %69 = tpu.matmul %67, %68, %cst_58 {dimension_numbers = #tpu.dot_dimension_numbers<[1], [0], [0], [1], [0, 0, 1, 1], [], []>} : vector<324x32xbf16>, vector<32x128xbf16>, vector<324x128xf32> -> vector<324x128xf32>
    %70 = arith.addf %65, %69 : vector<324x128xf32>
    %c32_59 = arith.constant 32 : index
    %c96_60 = arith.constant 96 : index
    %71 = vector.load %arg13[%c32_59, %c96_60] : memref<388x128xf32, #tpu.memory_space<vmem>>, vector<324x32xf32>
    %72 = arith.truncf %71 : vector<324x32xf32> to vector<324x32xbf16>
    %c320 = arith.constant 320 : index
    %c0_61 = arith.constant 0 : index
    %73 = vector.load %arg6[%c320, %c0_61] : memref<512x128xbf16, #tpu.memory_space<vmem>>, vector<32x128xbf16>
    %cst_62 = arith.constant dense<0.000000e+00> : vector<324x128xf32>
    %74 = tpu.matmul %72, %73, %cst_62 {dimension_numbers = #tpu.dot_dimension_numbers<[1], [0], [0], [1], [0, 0, 1, 1], [], []>} : vector<324x32xbf16>, vector<32x128xbf16>, vector<324x128xf32> -> vector<324x128xf32>
    %75 = arith.addf %70, %74 : vector<324x128xf32>
    %c33_63 = arith.constant 33 : index
    %c64_64 = arith.constant 64 : index
    %76 = vector.load %arg13[%c33_63, %c64_64] : memref<388x128xf32, #tpu.memory_space<vmem>>, vector<324x32xf32>
    %77 = arith.truncf %76 : vector<324x32xf32> to vector<324x32xbf16>
    %c352_65 = arith.constant 352 : index
    %c0_66 = arith.constant 0 : index
    %78 = vector.load %arg6[%c352_65, %c0_66] : memref<512x128xbf16, #tpu.memory_space<vmem>>, vector<32x128xbf16>
    %cst_67 = arith.constant dense<0.000000e+00> : vector<324x128xf32>
    %79 = tpu.matmul %77, %78, %cst_67 {dimension_numbers = #tpu.dot_dimension_numbers<[1], [0], [0], [1], [0, 0, 1, 1], [], []>} : vector<324x32xbf16>, vector<32x128xbf16>, vector<324x128xf32> -> vector<324x128xf32>
    %80 = arith.addf %75, %79 : vector<324x128xf32>
    %c49 = arith.constant 49 : index
    %c32_68 = arith.constant 32 : index
    %81 = vector.load %arg13[%c49, %c32_68] : memref<388x128xf32, #tpu.memory_space<vmem>>, vector<324x32xf32>
    %82 = arith.truncf %81 : vector<324x32xf32> to vector<324x32xbf16>
    %c384 = arith.constant 384 : index
    %c0_69 = arith.constant 0 : index
    %83 = vector.load %arg6[%c384, %c0_69] : memref<512x128xbf16, #tpu.memory_space<vmem>>, vector<32x128xbf16>
    %cst_70 = arith.constant dense<0.000000e+00> : vector<324x128xf32>
    %84 = tpu.matmul %82, %83, %cst_70 {dimension_numbers = #tpu.dot_dimension_numbers<[1], [0], [0], [1], [0, 0, 1, 1], [], []>} : vector<324x32xbf16>, vector<32x128xbf16>, vector<324x128xf32> -> vector<324x128xf32>
    %85 = arith.addf %80, %84 : vector<324x128xf32>
    %c50 = arith.constant 50 : index
    %c0_71 = arith.constant 0 : index
    %86 = vector.load %arg13[%c50, %c0_71] : memref<388x128xf32, #tpu.memory_space<vmem>>, vector<324x32xf32>
    %87 = arith.truncf %86 : vector<324x32xf32> to vector<324x32xbf16>
    %c416 = arith.constant 416 : index
    %c0_72 = arith.constant 0 : index
    %88 = vector.load %arg6[%c416, %c0_72] : memref<512x128xbf16, #tpu.memory_space<vmem>>, vector<32x128xbf16>
    %cst_73 = arith.constant dense<0.000000e+00> : vector<324x128xf32>
    %89 = tpu.matmul %87, %88, %cst_73 {dimension_numbers = #tpu.dot_dimension_numbers<[1], [0], [0], [1], [0, 0, 1, 1], [], []>} : vector<324x32xbf16>, vector<32x128xbf16>, vector<324x128xf32> -> vector<324x128xf32>
    %90 = arith.addf %85, %89 : vector<324x128xf32>
    %c50_74 = arith.constant 50 : index
    %c32_75 = arith.constant 32 : index
    %91 = vector.load %arg13[%c50_74, %c32_75] : memref<388x128xf32, #tpu.memory_space<vmem>>, vector<324x32xf32>
    %92 = arith.truncf %91 : vector<324x32xf32> to vector<324x32xbf16>
    %c448 = arith.constant 448 : index
    %c0_76 = arith.constant 0 : index
    %93 = vector.load %arg6[%c448, %c0_76] : memref<512x128xbf16, #tpu.memory_space<vmem>>, vector<32x128xbf16>
    %cst_77 = arith.constant dense<0.000000e+00> : vector<324x128xf32>
    %94 = tpu.matmul %92, %93, %cst_77 {dimension_numbers = #tpu.dot_dimension_numbers<[1], [0], [0], [1], [0, 0, 1, 1], [], []>} : vector<324x32xbf16>, vector<32x128xbf16>, vector<324x128xf32> -> vector<324x128xf32>
    %95 = arith.addf %90, %94 : vector<324x128xf32>
    %c51 = arith.constant 51 : index
    %c0_78 = arith.constant 0 : index
    %96 = vector.load %arg13[%c51, %c0_78] : memref<388x128xf32, #tpu.memory_space<vmem>>, vector<324x32xf32>
    %97 = arith.truncf %96 : vector<324x32xf32> to vector<324x32xbf16>
    %c480 = arith.constant 480 : index
    %c0_79 = arith.constant 0 : index
    %98 = vector.load %arg6[%c480, %c0_79] : memref<512x128xbf16, #tpu.memory_space<vmem>>, vector<32x128xbf16>
    %cst_80 = arith.constant dense<0.000000e+00> : vector<324x128xf32>
    %99 = tpu.matmul %97, %98, %cst_80 {dimension_numbers = #tpu.dot_dimension_numbers<[1], [0], [0], [1], [0, 0, 1, 1], [], []>} : vector<324x32xbf16>, vector<32x128xbf16>, vector<324x128xf32> -> vector<324x128xf32>
    %100 = arith.addf %95, %99 : vector<324x128xf32>
    %c0_81 = arith.constant 0 : index
    %c0_82 = arith.constant 0 : index
    %101 = vector.load %arg7[%c0_81, %c0_82] : memref<1x128xf32, #tpu.memory_space<vmem>>, vector<1x128xf32>
    %102 = vector.broadcast %101 : vector<1x128xf32> to vector<324x128xf32>
    %103 = arith.mulf %100, %102 : vector<324x128xf32>
    %c0_83 = arith.constant 0 : index
    %c0_84 = arith.constant 0 : index
    %104 = vector.load %arg8[%c0_83, %c0_84] : memref<1x128xf32, #tpu.memory_space<vmem>>, vector<1x128xf32>
    %105 = vector.broadcast %104 : vector<1x128xf32> to vector<324x128xf32>
    %106 = arith.addf %103, %105 : vector<324x128xf32>
    %cst_85 = arith.constant 0.000000e+00 : f32
    %107 = vector.broadcast %cst_85 : f32 to vector<324x128xf32>
    %108 = arith.maximumf %106, %107 : vector<324x128xf32>
    %109 = vector.broadcast %0 : vector<324x1xf32> to vector<324x128xf32>
    %110 = arith.mulf %108, %109 : vector<324x128xf32>
    %c32_86 = arith.constant 32 : index
    %c0_87 = arith.constant 0 : index
    %111 = vector.load %arg14[%c32_86, %c0_87] : memref<388x128xf32, #tpu.memory_space<vmem>>, vector<324x128xf32>
    tpu.vector_store %arg14[%c32_86, %c0_87], %110 {strides = array<i32>} : memref<388x128xf32, #tpu.memory_space<vmem>>, vector<324x128xf32>,
    %cst_88 = arith.constant 0.000000e+00 : f32
    %112 = vector.broadcast %cst_88 : f32 to vector<324x128xf32>
    %c13_89 = arith.constant 13 : index
    %c96_90 = arith.constant 96 : index
    %113 = vector.load %arg14[%c13_89, %c96_90] : memref<388x128xf32, #tpu.memory_space<vmem>>, vector<324x32xf32>
    %114 = arith.truncf %113 : vector<324x32xf32> to vector<324x32xbf16>
    %c0_91 = arith.constant 0 : index
    %c0_92 = arith.constant 0 : index
    %115 = vector.load %arg9[%c0_91, %c0_92] : memref<512x128xbf16, #tpu.memory_space<vmem>>, vector<32x128xbf16>
    %cst_93 = arith.constant dense<0.000000e+00> : vector<324x128xf32>
    %116 = tpu.matmul %114, %115, %cst_93 {dimension_numbers = #tpu.dot_dimension_numbers<[1], [0], [0], [1], [0, 0, 1, 1], [], []>} : vector<324x32xbf16>, vector<32x128xbf16>, vector<324x128xf32> -> vector<324x128xf32>
    %117 = arith.addf %112, %116 : vector<324x128xf32>
    %c14_94 = arith.constant 14 : index
    %c64_95 = arith.constant 64 : index
    %118 = vector.load %arg14[%c14_94, %c64_95] : memref<388x128xf32, #tpu.memory_space<vmem>>, vector<324x32xf32>
    %119 = arith.truncf %118 : vector<324x32xf32> to vector<324x32xbf16>
    %c32_96 = arith.constant 32 : index
    %c0_97 = arith.constant 0 : index
    %120 = vector.load %arg9[%c32_96, %c0_97] : memref<512x128xbf16, #tpu.memory_space<vmem>>, vector<32x128xbf16>
    %cst_98 = arith.constant dense<0.000000e+00> : vector<324x128xf32>
    %121 = tpu.matmul %119, %120, %cst_98 {dimension_numbers = #tpu.dot_dimension_numbers<[1], [0], [0], [1], [0, 0, 1, 1], [], []>} : vector<324x32xbf16>, vector<32x128xbf16>, vector<324x128xf32> -> vector<324x128xf32>
    %122 = arith.addf %117, %121 : vector<324x128xf32>
    %c14_99 = arith.constant 14 : index
    %c96_100 = arith.constant 96 : index
    %123 = vector.load %arg14[%c14_99, %c96_100] : memref<388x128xf32, #tpu.memory_space<vmem>>, vector<324x32xf32>
    %124 = arith.truncf %123 : vector<324x32xf32> to vector<324x32xbf16>
    %c64_101 = arith.constant 64 : index
    %c0_102 = arith.constant 0 : index
    %125 = vector.load %arg9[%c64_101, %c0_102] : memref<512x128xbf16, #tpu.memory_space<vmem>>, vector<32x128xbf16>
    %cst_103 = arith.constant dense<0.000000e+00> : vector<324x128xf32>
    %126 = tpu.matmul %124, %125, %cst_103 {dimension_numbers = #tpu.dot_dimension_numbers<[1], [0], [0], [1], [0, 0, 1, 1], [], []>} : vector<324x32xbf16>, vector<32x128xbf16>, vector<324x128xf32> -> vector<324x128xf32>
    %127 = arith.addf %122, %126 : vector<324x128xf32>
    %c15_104 = arith.constant 15 : index
    %c64_105 = arith.constant 64 : index
    %128 = vector.load %arg14[%c15_104, %c64_105] : memref<388x128xf32, #tpu.memory_space<vmem>>, vector<324x32xf32>
    %129 = arith.truncf %128 : vector<324x32xf32> to vector<324x32xbf16>
    %c96_106 = arith.constant 96 : index
    %c0_107 = arith.constant 0 : index
    %130 = vector.load %arg9[%c96_106, %c0_107] : memref<512x128xbf16, #tpu.memory_space<vmem>>, vector<32x128xbf16>
    %cst_108 = arith.constant dense<0.000000e+00> : vector<324x128xf32>
    %131 = tpu.matmul %129, %130, %cst_108 {dimension_numbers = #tpu.dot_dimension_numbers<[1], [0], [0], [1], [0, 0, 1, 1], [], []>} : vector<324x32xbf16>, vector<32x128xbf16>, vector<324x128xf32> -> vector<324x128xf32>
    %132 = arith.addf %127, %131 : vector<324x128xf32>
    %c31_109 = arith.constant 31 : index
    %c32_110 = arith.constant 32 : index
    %133 = vector.load %arg14[%c31_109, %c32_110] : memref<388x128xf32, #tpu.memory_space<vmem>>, vector<324x32xf32>
    %134 = arith.truncf %133 : vector<324x32xf32> to vector<324x32xbf16>
    %c128_111 = arith.constant 128 : index
    %c0_112 = arith.constant 0 : index
    %135 = vector.load %arg9[%c128_111, %c0_112] : memref<512x128xbf16, #tpu.memory_space<vmem>>, vector<32x128xbf16>
    %cst_113 = arith.constant dense<0.000000e+00> : vector<324x128xf32>
    %136 = tpu.matmul %134, %135, %cst_113 {dimension_numbers = #tpu.dot_dimension_numbers<[1], [0], [0], [1], [0, 0, 1, 1], [], []>} : vector<324x32xbf16>, vector<32x128xbf16>, vector<324x128xf32> -> vector<324x128xf32>
    %137 = arith.addf %132, %136 : vector<324x128xf32>
    %c32_114 = arith.constant 32 : index
    %c0_115 = arith.constant 0 : index
    %138 = vector.load %arg14[%c32_114, %c0_115] : memref<388x128xf32, #tpu.memory_space<vmem>>, vector<324x32xf32>
    %139 = arith.truncf %138 : vector<324x32xf32> to vector<324x32xbf16>
    %c160_116 = arith.constant 160 : index
    %c0_117 = arith.constant 0 : index
    %140 = vector.load %arg9[%c160_116, %c0_117] : memref<512x128xbf16, #tpu.memory_space<vmem>>, vector<32x128xbf16>
    %cst_118 = arith.constant dense<0.000000e+00> : vector<324x128xf32>
    %141 = tpu.matmul %139, %140, %cst_118 {dimension_numbers = #tpu.dot_dimension_numbers<[1], [0], [0], [1], [0, 0, 1, 1], [], []>} : vector<324x32xbf16>, vector<32x128xbf16>, vector<324x128xf32> -> vector<324x128xf32>
    %142 = arith.addf %137, %141 : vector<324x128xf32>
    %c32_119 = arith.constant 32 : index
    %c32_120 = arith.constant 32 : index
    %143 = vector.load %arg14[%c32_119, %c32_120] : memref<388x128xf32, #tpu.memory_space<vmem>>, vector<324x32xf32>
    %144 = arith.truncf %143 : vector<324x32xf32> to vector<324x32xbf16>
    %c192_121 = arith.constant 192 : index
    %c0_122 = arith.constant 0 : index
    %145 = vector.load %arg9[%c192_121, %c0_122] : memref<512x128xbf16, #tpu.memory_space<vmem>>, vector<32x128xbf16>
    %cst_123 = arith.constant dense<0.000000e+00> : vector<324x128xf32>
    %146 = tpu.matmul %144, %145, %cst_123 {dimension_numbers = #tpu.dot_dimension_numbers<[1], [0], [0], [1], [0, 0, 1, 1], [], []>} : vector<324x32xbf16>, vector<32x128xbf16>, vector<324x128xf32> -> vector<324x128xf32>
    %147 = arith.addf %142, %146 : vector<324x128xf32>
    %c33_124 = arith.constant 33 : index
    %c0_125 = arith.constant 0 : index
    %148 = vector.load %arg14[%c33_124, %c0_125] : memref<388x128xf32, #tpu.memory_space<vmem>>, vector<324x32xf32>
    %149 = arith.truncf %148 : vector<324x32xf32> to vector<324x32xbf16>
    %c224_126 = arith.constant 224 : index
    %c0_127 = arith.constant 0 : index
    %150 = vector.load %arg9[%c224_126, %c0_127] : memref<512x128xbf16, #tpu.memory_space<vmem>>, vector<32x128xbf16>
    %cst_128 = arith.constant dense<0.000000e+00> : vector<324x128xf32>
    %151 = tpu.matmul %149, %150, %cst_128 {dimension_numbers = #tpu.dot_dimension_numbers<[1], [0], [0], [1], [0, 0, 1, 1], [], []>} : vector<324x32xbf16>, vector<32x128xbf16>, vector<324x128xf32> -> vector<324x128xf32>
    %152 = arith.addf %147, %151 : vector<324x128xf32>
    %c31_129 = arith.constant 31 : index
    %c96_130 = arith.constant 96 : index
    %153 = vector.load %arg14[%c31_129, %c96_130] : memref<388x128xf32, #tpu.memory_space<vmem>>, vector<324x32xf32>
    %154 = arith.truncf %153 : vector<324x32xf32> to vector<324x32xbf16>
    %c256_131 = arith.constant 256 : index
    %c0_132 = arith.constant 0 : index
    %155 = vector.load %arg9[%c256_131, %c0_132] : memref<512x128xbf16, #tpu.memory_space<vmem>>, vector<32x128xbf16>
    %cst_133 = arith.constant dense<0.000000e+00> : vector<324x128xf32>
    %156 = tpu.matmul %154, %155, %cst_133 {dimension_numbers = #tpu.dot_dimension_numbers<[1], [0], [0], [1], [0, 0, 1, 1], [], []>} : vector<324x32xbf16>, vector<32x128xbf16>, vector<324x128xf32> -> vector<324x128xf32>
    %157 = arith.addf %152, %156 : vector<324x128xf32>
    %c32_134 = arith.constant 32 : index
    %c64_135 = arith.constant 64 : index
    %158 = vector.load %arg14[%c32_134, %c64_135] : memref<388x128xf32, #tpu.memory_space<vmem>>, vector<324x32xf32>
    %159 = arith.truncf %158 : vector<324x32xf32> to vector<324x32xbf16>
    %c288_136 = arith.constant 288 : index
    %c0_137 = arith.constant 0 : index
    %160 = vector.load %arg9[%c288_136, %c0_137] : memref<512x128xbf16, #tpu.memory_space<vmem>>, vector<32x128xbf16>
    %cst_138 = arith.constant dense<0.000000e+00> : vector<324x128xf32>
    %161 = tpu.matmul %159, %160, %cst_138 {dimension_numbers = #tpu.dot_dimension_numbers<[1], [0], [0], [1], [0, 0, 1, 1], [], []>} : vector<324x32xbf16>, vector<32x128xbf16>, vector<324x128xf32> -> vector<324x128xf32>
    %162 = arith.addf %157, %161 : vector<324x128xf32>
    %c32_139 = arith.constant 32 : index
    %c96_140 = arith.constant 96 : index
    %163 = vector.load %arg14[%c32_139, %c96_140] : memref<388x128xf32, #tpu.memory_space<vmem>>, vector<324x32xf32>
    %164 = arith.truncf %163 : vector<324x32xf32> to vector<324x32xbf16>
    %c320_141 = arith.constant 320 : index
    %c0_142 = arith.constant 0 : index
    %165 = vector.load %arg9[%c320_141, %c0_142] : memref<512x128xbf16, #tpu.memory_space<vmem>>, vector<32x128xbf16>
    %cst_143 = arith.constant dense<0.000000e+00> : vector<324x128xf32>
    %166 = tpu.matmul %164, %165, %cst_143 {dimension_numbers = #tpu.dot_dimension_numbers<[1], [0], [0], [1], [0, 0, 1, 1], [], []>} : vector<324x32xbf16>, vector<32x128xbf16>, vector<324x128xf32> -> vector<324x128xf32>
    %167 = arith.addf %162, %166 : vector<324x128xf32>
    %c33_144 = arith.constant 33 : index
    %c64_145 = arith.constant 64 : index
    %168 = vector.load %arg14[%c33_144, %c64_145] : memref<388x128xf32, #tpu.memory_space<vmem>>, vector<324x32xf32>
    %169 = arith.truncf %168 : vector<324x32xf32> to vector<324x32xbf16>
    %c352_146 = arith.constant 352 : index
    %c0_147 = arith.constant 0 : index
    %170 = vector.load %arg9[%c352_146, %c0_147] : memref<512x128xbf16, #tpu.memory_space<vmem>>, vector<32x128xbf16>
    %cst_148 = arith.constant dense<0.000000e+00> : vector<324x128xf32>
    %171 = tpu.matmul %169, %170, %cst_148 {dimension_numbers = #tpu.dot_dimension_numbers<[1], [0], [0], [1], [0, 0, 1, 1], [], []>} : vector<324x32xbf16>, vector<32x128xbf16>, vector<324x128xf32> -> vector<324x128xf32>
    %172 = arith.addf %167, %171 : vector<324x128xf32>
    %c49_149 = arith.constant 49 : index
    %c32_150 = arith.constant 32 : index
    %173 = vector.load %arg14[%c49_149, %c32_150] : memref<388x128xf32, #tpu.memory_space<vmem>>, vector<324x32xf32>
    %174 = arith.truncf %173 : vector<324x32xf32> to vector<324x32xbf16>
    %c384_151 = arith.constant 384 : index
    %c0_152 = arith.constant 0 : index
    %175 = vector.load %arg9[%c384_151, %c0_152] : memref<512x128xbf16, #tpu.memory_space<vmem>>, vector<32x128xbf16>
    %cst_153 = arith.constant dense<0.000000e+00> : vector<324x128xf32>
    %176 = tpu.matmul %174, %175, %cst_153 {dimension_numbers = #tpu.dot_dimension_numbers<[1], [0], [0], [1], [0, 0, 1, 1], [], []>} : vector<324x32xbf16>, vector<32x128xbf16>, vector<324x128xf32> -> vector<324x128xf32>
    %177 = arith.addf %172, %176 : vector<324x128xf32>
    %c50_154 = arith.constant 50 : index
    %c0_155 = arith.constant 0 : index
    %178 = vector.load %arg14[%c50_154, %c0_155] : memref<388x128xf32, #tpu.memory_space<vmem>>, vector<324x32xf32>
    %179 = arith.truncf %178 : vector<324x32xf32> to vector<324x32xbf16>
    %c416_156 = arith.constant 416 : index
    %c0_157 = arith.constant 0 : index
    %180 = vector.load %arg9[%c416_156, %c0_157] : memref<512x128xbf16, #tpu.memory_space<vmem>>, vector<32x128xbf16>
    %cst_158 = arith.constant dense<0.000000e+00> : vector<324x128xf32>
    %181 = tpu.matmul %179, %180, %cst_158 {dimension_numbers = #tpu.dot_dimension_numbers<[1], [0], [0], [1], [0, 0, 1, 1], [], []>} : vector<324x32xbf16>, vector<32x128xbf16>, vector<324x128xf32> -> vector<324x128xf32>
    %182 = arith.addf %177, %181 : vector<324x128xf32>
    %c50_159 = arith.constant 50 : index
    %c32_160 = arith.constant 32 : index
    %183 = vector.load %arg14[%c50_159, %c32_160] : memref<388x128xf32, #tpu.memory_space<vmem>>, vector<324x32xf32>
    %184 = arith.truncf %183 : vector<324x32xf32> to vector<324x32xbf16>
    %c448_161 = arith.constant 448 : index
    %c0_162 = arith.constant 0 : index
    %185 = vector.load %arg9[%c448_161, %c0_162] : memref<512x128xbf16, #tpu.memory_space<vmem>>, vector<32x128xbf16>
    %cst_163 = arith.constant dense<0.000000e+00> : vector<324x128xf32>
    %186 = tpu.matmul %184, %185, %cst_163 {dimension_numbers = #tpu.dot_dimension_numbers<[1], [0], [0], [1], [0, 0, 1, 1], [], []>} : vector<324x32xbf16>, vector<32x128xbf16>, vector<324x128xf32> -> vector<324x128xf32>
    %187 = arith.addf %182, %186 : vector<324x128xf32>
    %c51_164 = arith.constant 51 : index
    %c0_165 = arith.constant 0 : index
    %188 = vector.load %arg14[%c51_164, %c0_165] : memref<388x128xf32, #tpu.memory_space<vmem>>, vector<324x32xf32>
    %189 = arith.truncf %188 : vector<324x32xf32> to vector<324x32xbf16>
    %c480_166 = arith.constant 480 : index
    %c0_167 = arith.constant 0 : index
    %190 = vector.load %arg9[%c480_166, %c0_167] : memref<512x128xbf16, #tpu.memory_space<vmem>>, vector<32x128xbf16>
    %cst_168 = arith.constant dense<0.000000e+00> : vector<324x128xf32>
    %191 = tpu.matmul %189, %190, %cst_168 {dimension_numbers = #tpu.dot_dimension_numbers<[1], [0], [0], [1], [0, 0, 1, 1], [], []>} : vector<324x32xbf16>, vector<32x128xbf16>, vector<324x128xf32> -> vector<324x128xf32>
    %192 = arith.addf %187, %191 : vector<324x128xf32>
    %c0_169 = arith.constant 0 : index
    %c0_170 = arith.constant 0 : index
    %193 = vector.load %arg10[%c0_169, %c0_170] : memref<1x128xf32, #tpu.memory_space<vmem>>, vector<1x128xf32>
    %194 = vector.broadcast %193 : vector<1x128xf32> to vector<324x128xf32>
    %195 = arith.mulf %192, %194 : vector<324x128xf32>
    %c0_171 = arith.constant 0 : index
    %c0_172 = arith.constant 0 : index
    %196 = vector.load %arg11[%c0_171, %c0_172] : memref<1x128xf32, #tpu.memory_space<vmem>>, vector<1x128xf32>
    %197 = vector.broadcast %196 : vector<1x128xf32> to vector<324x128xf32>
    %198 = arith.addf %195, %197 : vector<324x128xf32>
    %cst_173 = arith.constant 0.000000e+00 : f32
    %199 = vector.broadcast %cst_173 : f32 to vector<324x128xf32>
    %200 = arith.maximumf %198, %199 : vector<324x128xf32>
    %201 = vector.broadcast %0 : vector<324x1xf32> to vector<324x128xf32>
    %202 = arith.mulf %200, %201 : vector<324x128xf32>
    %c0_174 = arith.constant 0 : index
    %c0_175 = arith.constant 0 : index
    %203 = vector.load %arg12[%c0_174, %c0_175] : memref<324x128xf32, #tpu.memory_space<vmem>>, vector<324x128xf32>
    tpu.vector_store %arg12[%c0_174, %c0_175], %202 {strides = array<i32>} : memref<324x128xf32, #tpu.memory_space<vmem>>, vector<324x128xf32>,
    return
  }
  func.func @transform_0(%arg0: i32) -> (i32, i32) {
    %c0_i32 = arith.constant 0 : i32
    %c0_i32_0 = arith.constant 0 : i32
    %c0_i32_1 = arith.constant 0 : i32
    return %c0_i32, %c0_i32_0 : i32, i32
  }
  func.func @transform_1(%arg0: i32) -> (i32, i32) {
    %c0_i32 = arith.constant 0 : i32
    %c0_i32_0 = arith.constant 0 : i32
    %c0_i32_1 = arith.constant 0 : i32
    return %c0_i32, %c0_i32_0 : i32, i32
  }
  func.func @transform_2(%arg0: i32) -> (i32, i32) {
    %c0_i32 = arith.constant 0 : i32
    %c0_i32_0 = arith.constant 0 : i32
    %c0_i32_1 = arith.constant 0 : i32
    return %c0_i32, %c0_i32_0 : i32, i32
  }
  func.func @transform_3(%arg0: i32) -> (i32, i32) {
    %c0_i32 = arith.constant 0 : i32
    %c0_i32_0 = arith.constant 0 : i32
    %c0_i32_1 = arith.constant 0 : i32
    return %c0_i32, %c0_i32_0 : i32, i32
  }
  func.func @transform_4(%arg0: i32) -> (i32, i32) {
    %c0_i32 = arith.constant 0 : i32
    %c0_i32_0 = arith.constant 0 : i32
    %c0_i32_1 = arith.constant 0 : i32
    return %c0_i32, %c0_i32_0 : i32, i32
  }
  func.func @transform_5(%arg0: i32) -> (i32, i32) {
    %c0_i32 = arith.constant 0 : i32
    %c0_i32_0 = arith.constant 0 : i32
    %c0_i32_1 = arith.constant 0 : i32
    return %c0_i32, %c0_i32_0 : i32, i32
  }
  func.func @transform_6(%arg0: i32) -> (i32, i32) {
    %c0_i32 = arith.constant 0 : i32
    %c0_i32_0 = arith.constant 0 : i32
    %c0_i32_1 = arith.constant 0 : i32
    return %c0_i32, %c0_i32_0 : i32, i32
  }
  func.func @transform_7(%arg0: i32) -> (i32, i32) {
    %c0_i32 = arith.constant 0 : i32
    %c0_i32_0 = arith.constant 0 : i32
    %c0_i32_1 = arith.constant 0 : i32
    return %c0_i32, %c0_i32_0 : i32, i32
  }
  func.func @transform_8(%arg0: i32) -> (i32, i32) {
    %c0_i32 = arith.constant 0 : i32
    %c0_i32_0 = arith.constant 0 : i32
    %c0_i32_1 = arith.constant 0 : i32
    return %c0_i32, %c0_i32_0 : i32, i32
  }
  func.func @transform_9(%arg0: i32) -> (i32, i32) {
    %c0_i32 = arith.constant 0 : i32
    %c0_i32_0 = arith.constant 0 : i32
    %c0_i32_1 = arith.constant 0 : i32
    return %c0_i32, %c0_i32_0 : i32, i32
  }
  func.func @transform_10(%arg0: i32) -> (i32, i32) {
    %c0_i32 = arith.constant 0 : i32
    %c0_i32_0 = arith.constant 0 : i32
    %c0_i32_1 = arith.constant 0 : i32
    return %c0_i32, %c0_i32_0 : i32, i32
  }
  func.func @transform_11(%arg0: i32) -> (i32, i32) {
    %c0_i32 = arith.constant 0 : i32
    %c0_i32_0 = arith.constant 0 : i32
    %c0_i32_1 = arith.constant 0 : i32
    return %c0_i32, %c0_i32_0 : i32, i32
  }
}

</mosaic_0001>

<llo_original>
// kernel: tile.38
$region0: #{tile.38}
  #allocation0 [shape = 's32[1]{0}', space=sflag, size = 0x4, scoped, tag = 'scoped memory for tile.38']
  %s0 = inlined_call_operand.vmem [shape: f32[16], index: 0, kind: input, shape index: {}]
  %s1 = inlined_call_operand.vmem [shape: f32[8,16], index: 1, kind: output, shape index: {}]
  // Predicated region
  $region2: #{tile.38} parent=0 // pred_check
    _
  $region3: #{tile.38} parent=0 // pred_check_branch
    %3 = sbr.rel (0) target = $region5
  $region4: #{tile.38} parent=0 // pred_region
    _
  $region5: #{tile.38} parent=0 // pred_fallthru
    _
  %v4 = vld [vmem:[%s0] ss:$0 sm:$0xff]
  %5 = vst [vmem:[%s1] sm:$0xff] %v4

// kernel: tile.39
$region0: #{tile.39}
  %s0 = inlined_call_operand.vmem [shape: f32[8,16], index: 0, kind: input, shape index: {}]
  %s1 = inlined_call_operand.vmem [shape: f32[1,128], index: 1, kind: output, shape index: {}]
  $region1: #{tile.39} parent=0
    #allocation0 [shape = 'u8[4096]{0}', space=vmem, size = 0x1000, scoped, tag = 'scoped mem for output reshape']
    %v2 = vld [vmem:[%s0] sm:$0x1]
    %vm3 = vcmask 130048
    %4 = vst.msk [vmem:[#allocation0] sm:$0x1] %vm3, %v2
    %s5 = scalar_lea.vmem %s0, 7
    %v6 = vld [vmem:[%s5] sm:$0x1]
    %7 = vrot.lane.b32.xlu0 %v6, 112
    %v8 = vpop.permute.xlu0 %7
    %vm9 = vcmask 1048448
    %10 = vst.msk [vmem:[#allocation0] sm:$0x1] %vm9, %v8
    %s11 = scalar_lea.vmem %s0, 6
    %v12 = vld [vmem:[%s11] sm:$0x1]
    %13 = vrot.lane.b32.xlu0 %v12, 96
    %v14 = vpop.permute.xlu0 %13
    %vm15 = vcmask 917248
    %16 = vst.msk [vmem:[#allocation0] sm:$0x1] %vm15, %v14
    %s17 = scalar_lea.vmem %s0, 5
    %v18 = vld [vmem:[%s17] sm:$0x1]
    %19 = vrot.lane.b32.xlu0 %v18, 80
    %v20 = vpop.permute.xlu0 %19
    %vm21 = vcmask 786048
    %22 = vst.msk [vmem:[#allocation0] sm:$0x1] %vm21, %v20
    %s23 = scalar_lea.vmem %s0, 4
    %v24 = vld [vmem:[%s23] sm:$0x1]
    %25 = vrot.lane.b32.xlu0 %v24, 64
    %v26 = vpop.permute.xlu0 %25
    %vm27 = vcmask 654848
    %28 = vst.msk [vmem:[#allocation0] sm:$0x1] %vm27, %v26
    %s29 = scalar_lea.vmem %s0, 3
    %v30 = vld [vmem:[%s29] sm:$0x1]
    %31 = vrot.lane.b32.xlu0 %v30, 48
    %v32 = vpop.permute.xlu0 %31
    %vm33 = vcmask 523648
    %34 = vst.msk [vmem:[#allocation0] sm:$0x1] %vm33, %v32
    %s35 = scalar_lea.vmem %s0, 2
    %v36 = vld [vmem:[%s35] sm:$0x1]
    %37 = vrot.lane.b32.xlu0 %v36, 32
    %v38 = vpop.permute.xlu0 %37
    %vm39 = vcmask 392448
    %40 = vst.msk [vmem:[#allocation0] sm:$0x1] %vm39, %v38
    %s41 = scalar_lea.vmem %s0, 1
    %v42 = vld [vmem:[%s41] sm:$0x1]
    %43 = vrot.lane.b32.xlu0 %v42, 16
    %v44 = vpop.permute.xlu0 %43
    %vm45 = vcmask 261248
    %46 = vst.msk [vmem:[#allocation0] sm:$0x1] %vm45, %v44
    %s48 = sshll.u32 1, 1
    %s49 = ssub.s32 %s48, 1
    %v51 = vld [vmem:[#allocation0] sm:%s49]
    %s52 = sshll.u32 1, 1
    %s53 = ssub.s32 %s52, 1
    %54 = vst [vmem:[%s1] sm:%s53] %v51

// kernel: decoder_block_forward.1
$region0: #{decoder_block_forward.1}
  #allocation0 [shape = 'u32[]', space=smem, size = 0x4, offset = 0x4, fixed_abs, tag = 'smem constant byte address 0x4 - core index']
  #allocation1 [shape = 'u32[144,128]{1,0:T(1,128)}', space=vmem, size = 0x12000, scoped, tag = 'internal scratch']
  #allocation2 [shape = 'f32[388,128]{1,0:T(8,128)}', space=vmem, size = 0x31000, scoped, tag = 'scratch operand']
  #allocation3 [shape = 'f32[388,128]{1,0:T(8,128)}', space=vmem, size = 0x31000, scoped, tag = 'scratch operand']
  %s0 = inlined_call_operand.vmem [shape: f32[324,1], index: 0, kind: input, shape index: {}]
  %s1 = inlined_call_operand.vmem [shape: f32[324,8], index: 1, kind: input, shape index: {}]
  %s2 = inlined_call_operand.vmem [shape: f32[324,128], index: 2, kind: input, shape index: {}]
  %s3 = inlined_call_operand.vmem [shape: f32[8,128], index: 3, kind: input, shape index: {}]
  %s4 = inlined_call_operand.vmem [shape: f32[1,128], index: 4, kind: input, shape index: {}]
  %s5 = inlined_call_operand.vmem [shape: bf16[512,128], index: 5, kind: input, shape index: {}]
  %s6 = inlined_call_operand.vmem [shape: f32[1,128], index: 6, kind: input, shape index: {}]
  %s7 = inlined_call_operand.vmem [shape: f32[1,128], index: 7, kind: input, shape index: {}]
  %s8 = inlined_call_operand.vmem [shape: bf16[512,128], index: 8, kind: input, shape index: {}]
  %s9 = inlined_call_operand.vmem [shape: f32[1,128], index: 9, kind: input, shape index: {}]
  %s10 = inlined_call_operand.vmem [shape: f32[1,128], index: 10, kind: input, shape index: {}]
  %s11 = inlined_call_operand.vmem [shape: f32[324,128], index: 11, kind: output, shape index: {}]
  %s12 = sld [smem:[#allocation0]]
  $region54: #{decoder_block_forward.1} parent=0
    _
  %s14 = ssub.s32 1, %s12
  %s15 = scalar_select 0, %s14, %s12
  // Predicated region
  $region2: #{decoder_block_forward.1} parent=0 // pred_check
    _
  $region3: #{decoder_block_forward.1} parent=0 // pred_check_branch
    %17 = sbr.rel (0) target = $region5
  $region4: #{decoder_block_forward.1} parent=0 // pred_region
    _
  $region5: #{decoder_block_forward.1} parent=0 // pred_fallthru
    _
  // Predicated region
  $region6: #{decoder_block_forward.1} parent=0 // pred_check
    _
  $region7: #{decoder_block_forward.1} parent=0 // pred_check_branch
    %19 = sbr.rel (0) target = $region9
  $region8: #{decoder_block_forward.1} parent=0 // pred_region
    _
  $region9: #{decoder_block_forward.1} parent=0 // pred_fallthru
    _
  // Predicated region
  $region10: #{decoder_block_forward.1} parent=0 // pred_check
    _
  $region11: #{decoder_block_forward.1} parent=0 // pred_check_branch
    %21 = sbr.rel (0) target = $region13
  $region12: #{decoder_block_forward.1} parent=0 // pred_region
    _
  $region13: #{decoder_block_forward.1} parent=0 // pred_fallthru
    _
  // Predicated region
  $region14: #{decoder_block_forward.1} parent=0 // pred_check
    _
  $region15: #{decoder_block_forward.1} parent=0 // pred_check_branch
    %23 = sbr.rel (0) target = $region17
  $region16: #{decoder_block_forward.1} parent=0 // pred_region
    _
  $region17: #{decoder_block_forward.1} parent=0 // pred_fallthru
    _
  // Predicated region
  $region18: #{decoder_block_forward.1} parent=0 // pred_check
    _
  $region19: #{decoder_block_forward.1} parent=0 // pred_check_branch
    %25 = sbr.rel (0) target = $region21
  $region20: #{decoder_block_forward.1} parent=0 // pred_region
    _
  $region21: #{decoder_block_forward.1} parent=0 // pred_fallthru
    _
  // Predicated region
  $region22: #{decoder_block_forward.1} parent=0 // pred_check
    _
  $region23: #{decoder_block_forward.1} parent=0 // pred_check_branch
    %27 = sbr.rel (0) target = $region25
  $region24: #{decoder_block_forward.1} parent=0 // pred_region
    _
  $region25: #{decoder_block_forward.1} parent=0 // pred_fallthru
    _
  // Predicated region
  $region26: #{decoder_block_forward.1} parent=0 // pred_check
    _
  $region27: #{decoder_block_forward.1} parent=0 // pred_check_branch
    %29 = sbr.rel (0) target = $region29
  $region28: #{decoder_block_forward.1} parent=0 // pred_region
    _
  $region29: #{decoder_block_forward.1} parent=0 // pred_fallthru
    _
  // Predicated region
  $region30: #{decoder_block_forward.1} parent=0 // pred_check
    _
  $region31: #{decoder_block_forward.1} parent=0 // pred_check_branch
    %31 = sbr.rel (0) target = $region33
  $region32: #{decoder_block_forward.1} parent=0 // pred_region
    _
  $region33: #{decoder_block_forward.1} parent=0 // pred_fallthru
    _
  // Predicated region
  $region34: #{decoder_block_forward.1} parent=0 // pred_check
    _
  $region35: #{decoder_block_forward.1} parent=0 // pred_check_branch
    %33 = sbr.rel (0) target = $region37
  $region36: #{decoder_block_forward.1} parent=0 // pred_region
    _
  $region37: #{decoder_block_forward.1} parent=0 // pred_fallthru
    _
  // Predicated region
  $region38: #{decoder_block_forward.1} parent=0 // pred_check
    _
  $region39: #{decoder_block_forward.1} parent=0 // pred_check_branch
    %35 = sbr.rel (0) target = $region41
  $region40: #{decoder_block_forward.1} parent=0 // pred_region
    _
  $region41: #{decoder_block_forward.1} parent=0 // pred_fallthru
    _
  // Predicated region
  $region42: #{decoder_block_forward.1} parent=0 // pred_check
    _
  $region43: #{decoder_block_forward.1} parent=0 // pred_check_branch
    %37 = sbr.rel (0) target = $region45
  $region44: #{decoder_block_forward.1} parent=0 // pred_region
    _
  $region45: #{decoder_block_forward.1} parent=0 // pred_fallthru
    _
  %v39 = vld [vmem:[%s0] sm:$0xff]
  %v40 = vld [vmem:[%s0 + $0x8] sm:$0xff]
  %v41 = vld [vmem:[%s0 + $0x10] sm:$0xff]
  %v42 = vld [vmem:[%s0 + $0x18] sm:$0xff]
  %v43 = vld [vmem:[%s0 + $0x20] sm:$0xff]
  %v44 = vld [vmem:[%s0 + $0x28] sm:$0xff]
  %v45 = vld [vmem:[%s0 + $0x30] sm:$0xff]
  %v46 = vld [vmem:[%s0 + $0x38] sm:$0xff]
  %v47 = vld [vmem:[%s0 + $0x40] sm:$0xff]
  %v48 = vld [vmem:[%s0 + $0x48] sm:$0xff]
  %v49 = vld [vmem:[%s0 + $0x50] sm:$0xff]
  %v50 = vld [vmem:[%s0 + $0x58] sm:$0xff]
  %v51 = vld [vmem:[%s0 + $0x60] sm:$0xff]
  %v52 = vld [vmem:[%s0 + $0x68] sm:$0xff]
  %v53 = vld [vmem:[%s0 + $0x70] sm:$0xff]
  %v54 = vld [vmem:[%s0 + $0x78] sm:$0xff]
  %v55 = vld [vmem:[%s0 + $0x80] sm:$0xff]
  %v56 = vld [vmem:[%s0 + $0x88] sm:$0xff]
  %v57 = vld [vmem:[%s0 + $0x90] sm:$0xff]
  %v58 = vld [vmem:[%s0 + $0x98] sm:$0xff]
  %v59 = vld [vmem:[%s0 + $0xa0] sm:$0xff]
  %v60 = vld [vmem:[%s0 + $0xa8] sm:$0xff]
  %v61 = vld [vmem:[%s0 + $0xb0] sm:$0xff]
  %v62 = vld [vmem:[%s0 + $0xb8] sm:$0xff]
  %v63 = vld [vmem:[%s0 + $0xc0] sm:$0xff]
  %v64 = vld [vmem:[%s0 + $0xc8] sm:$0xff]
  %v65 = vld [vmem:[%s0 + $0xd0] sm:$0xff]
  %v66 = vld [vmem:[%s0 + $0xd8] sm:$0xff]
  %v67 = vld [vmem:[%s0 + $0xe0] sm:$0xff]
  %v68 = vld [vmem:[%s0 + $0xe8] sm:$0xff]
  %v69 = vld [vmem:[%s0 + $0xf0] sm:$0xff]
  %v70 = vld [vmem:[%s0 + $0xf8] sm:$0xff]
  %v71 = vld [vmem:[%s0 + $0x100] sm:$0xff]
  %v72 = vld [vmem:[%s0 + $0x108] sm:$0xff]
  %v73 = vld [vmem:[%s0 + $0x110] sm:$0xff]
  %v74 = vld [vmem:[%s0 + $0x118] sm:$0xff]
  %v75 = vld [vmem:[%s0 + $0x120] sm:$0xff]
  %v76 = vld [vmem:[%s0 + $0x128] sm:$0xff]
  %v77 = vld [vmem:[%s0 + $0x130] sm:$0xff]
  %v78 = vld [vmem:[%s0 + $0x138] sm:$0xff]
  %v79 = vld [vmem:[%s0 + $0x140] sm:$0xf]
  %80 = vst [vmem:[#allocation2] sm:$0xff] 0.0
  %81 = vst [vmem:[#allocation2 + $0x8] sm:$0xff] 0.0
  %82 = vst [vmem:[#allocation2 + $0x10] sm:$0xff] 0.0
  %83 = vst [vmem:[#allocation2 + $0x18] sm:$0xff] 0.0
  %84 = vst [vmem:[#allocation2 + $0x160] sm:$0xff] 0.0
  %85 = vst [vmem:[#allocation2 + $0x168] sm:$0xff] 0.0
  %86 = vst [vmem:[#allocation2 + $0x170] sm:$0xff] 0.0
  %87 = vst [vmem:[#allocation2 + $0x178] sm:$0xff] 0.0
  %88 = vst [vmem:[#allocation2 + $0x180] sm:$0xf] 0.0
  %89 = vst [vmem:[#allocation3] sm:$0xff] 0.0
  %90 = vst [vmem:[#allocation3 + $0x8] sm:$0xff] 0.0
  %91 = vst [vmem:[#allocation3 + $0x10] sm:$0xff] 0.0
  %92 = vst [vmem:[#allocation3 + $0x18] sm:$0xff] 0.0
  %93 = vst [vmem:[#allocation3 + $0x160] sm:$0xff] 0.0
  %94 = vst [vmem:[#allocation3 + $0x168] sm:$0xff] 0.0
  %95 = vst [vmem:[#allocation3 + $0x170] sm:$0xff] 0.0
  %96 = vst [vmem:[#allocation3 + $0x178] sm:$0xff] 0.0
  %97 = vst [vmem:[#allocation3 + $0x180] sm:$0xf] 0.0
  %v98 = vld [vmem:[%s1] sm:$0xff]
  %v99 = vld [vmem:[%s1 + $0x8] sm:$0xff]
  %v100 = vld [vmem:[%s1 + $0x10] sm:$0xff]
  %v101 = vld [vmem:[%s1 + $0x18] sm:$0xff]
  %v102 = vld [vmem:[%s1 + $0x20] sm:$0xff]
  %v103 = vld [vmem:[%s1 + $0x28] sm:$0xff]
  %v104 = vld [vmem:[%s1 + $0x30] sm:$0xff]
  %v105 = vld [vmem:[%s1 + $0x38] sm:$0xff]
  %v106 = vld [vmem:[%s1 + $0x40] sm:$0xff]
  %v107 = vld [vmem:[%s1 + $0x48] sm:$0xff]
  %v108 = vld [vmem:[%s1 + $0x50] sm:$0xff]
  %v109 = vld [vmem:[%s1 + $0x58] sm:$0xff]
  %v110 = vld [vmem:[%s1 + $0x60] sm:$0xff]
  %v111 = vld [vmem:[%s1 + $0x68] sm:$0xff]
  %v112 = vld [vmem:[%s1 + $0x70] sm:$0xff]
  %v113 = vld [vmem:[%s1 + $0x78] sm:$0xff]
  %v114 = vld [vmem:[%s1 + $0x80] sm:$0xff]
  %v115 = vld [vmem:[%s1 + $0x88] sm:$0xff]
  %v116 = vld [vmem:[%s1 + $0x90] sm:$0xff]
  %v117 = vld [vmem:[%s1 + $0x98] sm:$0xff]
  %v118 = vld [vmem:[%s1 + $0xa0] sm:$0xff]
  %v119 = vld [vmem:[%s1 + $0xa8] sm:$0xff]
  %v120 = vld [vmem:[%s1 + $0xb0] sm:$0xff]
  %v121 = vld [vmem:[%s1 + $0xb8] sm:$0xff]
  %v122 = vld [vmem:[%s1 + $0xc0] sm:$0xff]
  %v123 = vld [vmem:[%s1 + $0xc8] sm:$0xff]
  %v124 = vld [vmem:[%s1 + $0xd0] sm:$0xff]
  %v125 = vld [vmem:[%s1 + $0xd8] sm:$0xff]
  %v126 = vld [vmem:[%s1 + $0xe0] sm:$0xff]
  %v127 = vld [vmem:[%s1 + $0xe8] sm:$0xff]
  %v128 = vld [vmem:[%s1 + $0xf0] sm:$0xff]
  %v129 = vld [vmem:[%s1 + $0xf8] sm:$0xff]
  %v130 = vld [vmem:[%s1 + $0x100] sm:$0xff]
  %v131 = vld [vmem:[%s1 + $0x108] sm:$0xff]
  %v132 = vld [vmem:[%s1 + $0x110] sm:$0xff]
  %v133 = vld [vmem:[%s1 + $0x118] sm:$0xff]
  %v134 = vld [vmem:[%s1 + $0x120] sm:$0xff]
  %v135 = vld [vmem:[%s1 + $0x128] sm:$0xff]
  %v136 = vld [vmem:[%s1 + $0x130] sm:$0xff]
  %v137 = vld [vmem:[%s1 + $0x138] sm:$0xff]
  %v138 = vld [vmem:[%s1 + $0x140] sm:$0xf]
  %v139 = vld [vmem:[%s3] sm:$0xff]
  %v140 = vld [vmem:[%s4] sm:$0x1]
  %v142 = vlaneseq
  %v143 = vshrl.u32 %v142, 7
  %v144 = vsub.s32 0, %v143
  %v145 = vrot.slane %v140, %v144
  %vm147 = vcmask 64512
  %v149 = vsel %vm147, %v98, 0
  %v152 = vsel %vm147, %v99, 0
  %v155 = vsel %vm147, %v100, 0
  %v158 = vsel %vm147, %v101, 0
  %v161 = vsel %vm147, %v102, 0
  %v164 = vsel %vm147, %v103, 0
  %v167 = vsel %vm147, %v104, 0
  %v170 = vsel %vm147, %v105, 0
  %v173 = vsel %vm147, %v106, 0
  %v176 = vsel %vm147, %v107, 0
  %v179 = vsel %vm147, %v108, 0
  %v182 = vsel %vm147, %v109, 0
  %v185 = vsel %vm147, %v110, 0
  %v188 = vsel %vm147, %v111, 0
  %v191 = vsel %vm147, %v112, 0
  %v194 = vsel %vm147, %v113, 0
  %v197 = vsel %vm147, %v114, 0
  %v200 = vsel %vm147, %v115, 0
  %v203 = vsel %vm147, %v116, 0
  %v206 = vsel %vm147, %v117, 0
  %v209 = vsel %vm147, %v118, 0
  %v212 = vsel %vm147, %v119, 0
  %v215 = vsel %vm147, %v120, 0
  %v218 = vsel %vm147, %v121, 0
  %v221 = vsel %vm147, %v122, 0
  %v224 = vsel %vm147, %v123, 0
  %v227 = vsel %vm147, %v124, 0
  %v230 = vsel %vm147, %v125, 0
  %v233 = vsel %vm147, %v126, 0
  %v236 = vsel %vm147, %v127, 0
  %v239 = vsel %vm147, %v128, 0
  %v242 = vsel %vm147, %v129, 0
  %v245 = vsel %vm147, %v130, 0
  %v248 = vsel %vm147, %v131, 0
  %v251 = vsel %vm147, %v132, 0
  %v254 = vsel %vm147, %v133, 0
  %v257 = vsel %vm147, %v134, 0
  %v260 = vsel %vm147, %v135, 0
  %v263 = vsel %vm147, %v136, 0
  %v266 = vsel %vm147, %v137, 0
  %v269 = vsel %vm147, %v138, 0
  %271 = vmatprep.subr.mxu0 0.0
  %272 = vmatpush1.msra.mxu0 0.0
  %273 = vmatprep.subr.mxu0 0.0
  %274 = vmatpush1.msra.mxu0 0.0
  %275 = vmatprep.subr.mxu0 0.0
  %276 = vmatpush1.msra.mxu0 0.0
  %277 = vmatprep.subr.mxu0 0.0
  %278 = vmatpush1.msra.mxu0 0.0
  %279 = vmatprep.subr.mxu0 0.0
  %280 = vmatpush1.msra.mxu0 0.0
  %281 = vmatprep.subr.mxu0 0.0
  %282 = vmatpush1.msra.mxu0 0.0
  %283 = vmatprep.subr.mxu0 0.0
  %284 = vmatpush1.msra.mxu0 0.0
  %285 = vmatprep.subr.mxu0 0.0
  %286 = vmatpush1.msra.mxu0 0.0
  %287 = vmatprep.subr.mxu0 0.0
  %288 = vmatpush1.msra.mxu0 0.0
  %289 = vmatprep.subr.mxu0 0.0
  %290 = vmatpush1.msra.mxu0 0.0
  %291 = vmatprep.subr.mxu0 0.0
  %292 = vmatpush1.msra.mxu0 0.0
  %293 = vmatprep.subr.mxu0 0.0
  %294 = vmatpush1.msra.mxu0 0.0
  %295 = vmatprep.subr.mxu0 0.0
  %296 = vmatpush1.msra.mxu0 0.0
  %297 = vmatprep.subr.mxu0 0.0
  %298 = vmatpush1.msra.mxu0 0.0
  %299 = vmatprep.subr.mxu0 0.0
  %300 = vmatpush1.msra.mxu0 0.0
  %301 = vmatprep.subr.mxu0 0.0
  %302 = vmatpush1.msra.mxu0 %v139
  %303 = vmatprep.subr.mxu0 0.0
  %304 = vmatpush2.msra.mxu0 0.0
  %305 = vmatprep.subr.mxu0 0.0
  %306 = vmatpush2.msra.mxu0 0.0
  %307 = vmatprep.subr.mxu0 0.0
  %308 = vmatpush2.msra.mxu0 0.0
  %309 = vmatprep.subr.mxu0 0.0
  %310 = vmatpush2.msra.mxu0 0.0
  %311 = vmatprep.subr.mxu0 0.0
  %312 = vmatpush2.msra.mxu0 0.0
  %313 = vmatprep.subr.mxu0 0.0
  %314 = vmatpush2.msra.mxu0 0.0
  %315 = vmatprep.subr.mxu0 0.0
  %316 = vmatpush2.msra.mxu0 0.0
  %317 = vmatprep.subr.mxu0 0.0
  %318 = vmatpush2.msra.mxu0 0.0
  %319 = vmatprep.subr.mxu0 0.0
  %320 = vmatpush2.msra.mxu0 0.0
  %321 = vmatprep.subr.mxu0 0.0
  %322 = vmatpush2.msra.mxu0 0.0
  %323 = vmatprep.subr.mxu0 0.0
  %324 = vmatpush2.msra.mxu0 0.0
  %325 = vmatprep.subr.mxu0 0.0
  %326 = vmatpush2.msra.mxu0 0.0
  %327 = vmatprep.subr.mxu0 0.0
  %328 = vmatpush2.msra.mxu0 0.0
  %329 = vmatprep.subr.mxu0 0.0
  %330 = vmatpush2.msra.mxu0 0.0
  %331 = vmatprep.subr.mxu0 0.0
  %332 = vmatpush2.msra.mxu0 0.0
  %333 = vmatprep.subr.mxu0 0.0
  %334 = vmatpush2.msra.mxu0 0.0
  %335 = vmatprep.mubr.f32.mxu0 0.0
  %336 = vmatmul.mubr.f32.gmra.mxu0 %v149
  %v337 = vpop.f32.mrf.mxu0
  %v338 = vadd.f32 %v145, %v337
  %v339 = vpop.f32.mrf.mxu0
  %340 = vmatprep.mubr.f32.mxu0 0.0
  %341 = vmatmul.mubr.f32.gmra.mxu0 %v152
  %v342 = vpop.f32.mrf.mxu0
  %v343 = vadd.f32 %v145, %v342
  %v344 = vpop.f32.mrf.mxu0
  %345 = vmatprep.mubr.f32.mxu0 0.0
  %346 = vmatmul.mubr.f32.gmra.mxu0 %v155
  %v347 = vpop.f32.mrf.mxu0
  %v348 = vadd.f32 %v145, %v347
  %v349 = vpop.f32.mrf.mxu0
  %350 = vmatprep.mubr.f32.mxu0 0.0
  %351 = vmatmul.mubr.f32.gmra.mxu0 %v158
  %v352 = vpop.f32.mrf.mxu0
  %v353 = vadd.f32 %v145, %v352
  %v354 = vpop.f32.mrf.mxu0
  %355 = vmatprep.mubr.f32.mxu0 0.0
  %356 = vmatmul.mubr.f32.gmra.mxu0 %v161
  %v357 = vpop.f32.mrf.mxu0
  %v358 = vadd.f32 %v145, %v357
  %v359 = vpop.f32.mrf.mxu0
  %360 = vmatprep.mubr.f32.mxu0 0.0
  %361 = vmatmul.mubr.f32.gmra.mxu0 %v164
  %v362 = vpop.f32.mrf.mxu0
  %v363 = vadd.f32 %v145, %v362
  %v364 = vpop.f32.mrf.mxu0
  %365 = vmatprep.mubr.f32.mxu0 0.0
  %366 = vmatmul.mubr.f32.gmra.mxu0 %v167
  %v367 = vpop.f32.mrf.mxu0
  %v368 = vadd.f32 %v145, %v367
  %v369 = vpop.f32.mrf.mxu0
  %370 = vmatprep.mubr.f32.mxu0 0.0
  %371 = vmatmul.mubr.f32.gmra.mxu0 %v170
  %v372 = vpop.f32.mrf.mxu0
  %v373 = vadd.f32 %v145, %v372
  %v374 = vpop.f32.mrf.mxu0
  %375 = vmatprep.mubr.f32.mxu0 0.0
  %376 = vmatmul.mubr.f32.gmra.mxu0 %v173
  %v377 = vpop.f32.mrf.mxu0
  %v378 = vadd.f32 %v145, %v377
  %v379 = vpop.f32.mrf.mxu0
  %380 = vmatprep.mubr.f32.mxu0 0.0
  %381 = vmatmul.mubr.f32.gmra.mxu0 %v176
  %v382 = vpop.f32.mrf.mxu0
  %v383 = vadd.f32 %v145, %v382
  %v384 = vpop.f32.mrf.mxu0
  %385 = vmatprep.mubr.f32.mxu0 0.0
  %386 = vmatmul.mubr.f32.gmra.mxu0 %v179
  %v387 = vpop.f32.mrf.mxu0
  %v388 = vadd.f32 %v145, %v387
  %v389 = vpop.f32.mrf.mxu0
  %390 = vmatprep.mubr.f32.mxu0 0.0
  %391 = vmatmul.mubr.f32.gmra.mxu0 %v182
  %v392 = vpop.f32.mrf.mxu0
  %v393 = vadd.f32 %v145, %v392
  %v394 = vpop.f32.mrf.mxu0
  %395 = vmatprep.mubr.f32.mxu0 0.0
  %396 = vmatmul.mubr.f32.gmra.mxu0 %v185
  %v397 = vpop.f32.mrf.mxu0
  %v398 = vadd.f32 %v145, %v397
  %v399 = vpop.f32.mrf.mxu0
  %400 = vmatprep.mubr.f32.mxu0 0.0
  %401 = vmatmul.mubr.f32.gmra.mxu0 %v188
  %v402 = vpop.f32.mrf.mxu0
  %v403 = vadd.f32 %v145, %v402
  %v404 = vpop.f32.mrf.mxu0
  %405 = vmatprep.mubr.f32.mxu0 0.0
  %406 = vmatmul.mubr.f32.gmra.mxu0 %v191
  %v407 = vpop.f32.mrf.mxu0
  %v408 = vadd.f32 %v145, %v407
  %v409 = vpop.f32.mrf.mxu0
  %410 = vmatprep.mubr.f32.mxu0 0.0
  %411 = vmatmul.mubr.f32.gmra.mxu0 %v194
  %v412 = vpop.f32.mrf.mxu0
  %v413 = vadd.f32 %v145, %v412
  %v414 = vpop.f32.mrf.mxu0
  %415 = vmatprep.mubr.f32.mxu0 0.0
  %416 = vmatmul.mubr.f32.gmra.mxu0 %v197
  %v417 = vpop.f32.mrf.mxu0
  %v418 = vadd.f32 %v145, %v417
  %v419 = vpop.f32.mrf.mxu0
  %420 = vmatprep.mubr.f32.mxu0 0.0
  %421 = vmatmul.mubr.f32.gmra.mxu0 %v200
  %v422 = vpop.f32.mrf.mxu0
  %v423 = vadd.f32 %v145, %v422
  %v424 = vpop.f32.mrf.mxu0
  %425 = vmatprep.mubr.f32.mxu0 0.0
  %426 = vmatmul.mubr.f32.gmra.mxu0 %v203
  %v427 = vpop.f32.mrf.mxu0
  %v428 = vadd.f32 %v145, %v427
  %v429 = vpop.f32.mrf.mxu0
  %430 = vmatprep.mubr.f32.mxu0 0.0
  %431 = vmatmul.mubr.f32.gmra.mxu0 %v206
  %v432 = vpop.f32.mrf.mxu0
  %v433 = vadd.f32 %v145, %v432
  %v434 = vpop.f32.mrf.mxu0
  %435 = vmatprep.mubr.f32.mxu0 0.0
  %436 = vmatmul.mubr.f32.gmra.mxu0 %v209
  %v437 = vpop.f32.mrf.mxu0
  %v438 = vadd.f32 %v145, %v437
  %v439 = vpop.f32.mrf.mxu0
  %440 = vmatprep.mubr.f32.mxu0 0.0
  %441 = vmatmul.mubr.f32.gmra.mxu0 %v212
  %v442 = vpop.f32.mrf.mxu0
  %v443 = vadd.f32 %v145, %v442
  %v444 = vpop.f32.mrf.mxu0
  %445 = vmatprep.mubr.f32.mxu0 0.0
  %446 = vmatmul.mubr.f32.gmra.mxu0 %v215
  %v447 = vpop.f32.mrf.mxu0
  %v448 = vadd.f32 %v145, %v447
  %v449 = vpop.f32.mrf.mxu0
  %450 = vmatprep.mubr.f32.mxu0 0.0
  %451 = vmatmul.mubr.f32.gmra.mxu0 %v218
  %v452 = vpop.f32.mrf.mxu0
  %v453 = vadd.f32 %v145, %v452
  %v454 = vpop.f32.mrf.mxu0
  %455 = vmatprep.mubr.f32.mxu0 0.0
  %456 = vmatmul.mubr.f32.gmra.mxu0 %v221
  %v457 = vpop.f32.mrf.mxu0
  %v458 = vadd.f32 %v145, %v457
  %v459 = vpop.f32.mrf.mxu0
  %460 = vmatprep.mubr.f32.mxu0 0.0
  %461 = vmatmul.mubr.f32.gmra.mxu0 %v224
  %v462 = vpop.f32.mrf.mxu0
  %v463 = vadd.f32 %v145, %v462
  %v464 = vpop.f32.mrf.mxu0
  %465 = vmatprep.mubr.f32.mxu0 0.0
  %466 = vmatmul.mubr.f32.gmra.mxu0 %v227
  %v467 = vpop.f32.mrf.mxu0
  %v468 = vadd.f32 %v145, %v467
  %v469 = vpop.f32.mrf.mxu0
  %470 = vmatprep.mubr.f32.mxu0 0.0
  %471 = vmatmul.mubr.f32.gmra.mxu0 %v230
  %v472 = vpop.f32.mrf.mxu0
  %v473 = vadd.f32 %v145, %v472
  %v474 = vpop.f32.mrf.mxu0
  %475 = vmatprep.mubr.f32.mxu0 0.0
  %476 = vmatmul.mubr.f32.gmra.mxu0 %v233
  %v477 = vpop.f32.mrf.mxu0
  %v478 = vadd.f32 %v145, %v477
  %v479 = vpop.f32.mrf.mxu0
  %480 = vmatprep.mubr.f32.mxu0 0.0
  %481 = vmatmul.mubr.f32.gmra.mxu0 %v236
  %v482 = vpop.f32.mrf.mxu0
  %v483 = vadd.f32 %v145, %v482
  %v484 = vpop.f32.mrf.mxu0
  %485 = vmatprep.mubr.f32.mxu0 0.0
  %486 = vmatmul.mubr.f32.gmra.mxu0 %v239
  %v487 = vpop.f32.mrf.mxu0
  %v488 = vadd.f32 %v145, %v487
  %v489 = vpop.f32.mrf.mxu0
  %490 = vmatprep.mubr.f32.mxu0 0.0
  %491 = vmatmul.mubr.f32.gmra.mxu0 %v242
  %v492 = vpop.f32.mrf.mxu0
  %v493 = vadd.f32 %v145, %v492
  %v494 = vpop.f32.mrf.mxu0
  %495 = vmatprep.mubr.f32.mxu0 0.0
  %496 = vmatmul.mubr.f32.gmra.mxu0 %v245
  %v497 = vpop.f32.mrf.mxu0
  %v498 = vadd.f32 %v145, %v497
  %v499 = vpop.f32.mrf.mxu0
  %500 = vmatprep.mubr.f32.mxu0 0.0
  %501 = vmatmul.mubr.f32.gmra.mxu0 %v248
  %v502 = vpop.f32.mrf.mxu0
  %v503 = vadd.f32 %v145, %v502
  %v504 = vpop.f32.mrf.mxu0
  %505 = vmatprep.mubr.f32.mxu0 0.0
  %506 = vmatmul.mubr.f32.gmra.mxu0 %v251
  %v507 = vpop.f32.mrf.mxu0
  %v508 = vadd.f32 %v145, %v507
  %v509 = vpop.f32.mrf.mxu0
  %510 = vmatprep.mubr.f32.mxu0 0.0
  %511 = vmatmul.mubr.f32.gmra.mxu0 %v254
  %v512 = vpop.f32.mrf.mxu0
  %v513 = vadd.f32 %v145, %v512
  %v514 = vpop.f32.mrf.mxu0
  %515 = vmatprep.mubr.f32.mxu0 0.0
  %516 = vmatmul.mubr.f32.gmra.mxu0 %v257
  %v517 = vpop.f32.mrf.mxu0
  %v518 = vadd.f32 %v145, %v517
  %v519 = vpop.f32.mrf.mxu0
  %520 = vmatprep.mubr.f32.mxu0 0.0
  %521 = vmatmul.mubr.f32.gmra.mxu0 %v260
  %v522 = vpop.f32.mrf.mxu0
  %v523 = vadd.f32 %v145, %v522
  %v524 = vpop.f32.mrf.mxu0
  %525 = vmatprep.mubr.f32.mxu0 0.0
  %526 = vmatmul.mubr.f32.gmra.mxu0 %v263
  %v527 = vpop.f32.mrf.mxu0
  %v528 = vadd.f32 %v145, %v527
  %v529 = vpop.f32.mrf.mxu0
  %530 = vmatprep.mubr.f32.mxu0 0.0
  %531 = vmatmul.mubr.f32.gmra.mxu0 %v266
  %v532 = vpop.f32.mrf.mxu0
  %v533 = vadd.f32 %v145, %v532
  %v534 = vpop.f32.mrf.mxu0
  %535 = vmatprep.mubr.f32.mxu0 0.0
  %536 = vmatmul.mubr.f32.gmra.mxu0 %v269
  %v537 = vpop.f32.mrf.mxu0
  %v538 = vadd.f32 %v145, %v537
  %v539 = vpop.f32.mrf.mxu0
  %540 = vdwg.mxu0
  %542 = vset.pattern.permute.xlu0 0
  %543 = vperm.xlu0 %542, %v39
  %v544 = vpop.permute.xlu0 %543
  %547 = vset.pattern.permute.xlu0 0
  %548 = vperm.xlu0 %547, %v40
  %v549 = vpop.permute.xlu0 %548
  %552 = vset.pattern.permute.xlu0 0
  %553 = vperm.xlu0 %552, %v41
  %v554 = vpop.permute.xlu0 %553
  %557 = vset.pattern.permute.xlu0 0
  %558 = vperm.xlu0 %557, %v42
  %v559 = vpop.permute.xlu0 %558
  %562 = vset.pattern.permute.xlu0 0
  %563 = vperm.xlu0 %562, %v43
  %v564 = vpop.permute.xlu0 %563
  %567 = vset.pattern.permute.xlu0 0
  %568 = vperm.xlu0 %567, %v44
  %v569 = vpop.permute.xlu0 %568
  %572 = vset.pattern.permute.xlu0 0
  %573 = vperm.xlu0 %572, %v45
  %v574 = vpop.permute.xlu0 %573
  %577 = vset.pattern.permute.xlu0 0
  %578 = vperm.xlu0 %577, %v46
  %v579 = vpop.permute.xlu0 %578
  %582 = vset.pattern.permute.xlu0 0
  %583 = vperm.xlu0 %582, %v47
  %v584 = vpop.permute.xlu0 %583
  %587 = vset.pattern.permute.xlu0 0
  %588 = vperm.xlu0 %587, %v48
  %v589 = vpop.permute.xlu0 %588
  %592 = vset.pattern.permute.xlu0 0
  %593 = vperm.xlu0 %592, %v49
  %v594 = vpop.permute.xlu0 %593
  %597 = vset.pattern.permute.xlu0 0
  %598 = vperm.xlu0 %597, %v50
  %v599 = vpop.permute.xlu0 %598
  %602 = vset.pattern.permute.xlu0 0
  %603 = vperm.xlu0 %602, %v51
  %v604 = vpop.permute.xlu0 %603
  %607 = vset.pattern.permute.xlu0 0
  %608 = vperm.xlu0 %607, %v52
  %v609 = vpop.permute.xlu0 %608
  %612 = vset.pattern.permute.xlu0 0
  %613 = vperm.xlu0 %612, %v53
  %v614 = vpop.permute.xlu0 %613
  %617 = vset.pattern.permute.xlu0 0
  %618 = vperm.xlu0 %617, %v54
  %v619 = vpop.permute.xlu0 %618
  %622 = vset.pattern.permute.xlu0 0
  %623 = vperm.xlu0 %622, %v55
  %v624 = vpop.permute.xlu0 %623
  %627 = vset.pattern.permute.xlu0 0
  %628 = vperm.xlu0 %627, %v56
  %v629 = vpop.permute.xlu0 %628
  %632 = vset.pattern.permute.xlu0 0
  %633 = vperm.xlu0 %632, %v57
  %v634 = vpop.permute.xlu0 %633
  %637 = vset.pattern.permute.xlu0 0
  %638 = vperm.xlu0 %637, %v58
  %v639 = vpop.permute.xlu0 %638
  %642 = vset.pattern.permute.xlu0 0
  %643 = vperm.xlu0 %642, %v59
  %v644 = vpop.permute.xlu0 %643
  %647 = vset.pattern.permute.xlu0 0
  %648 = vperm.xlu0 %647, %v60
  %v649 = vpop.permute.xlu0 %648
  %652 = vset.pattern.permute.xlu0 0
  %653 = vperm.xlu0 %652, %v61
  %v654 = vpop.permute.xlu0 %653
  %657 = vset.pattern.permute.xlu0 0
  %658 = vperm.xlu0 %657, %v62
  %v659 = vpop.permute.xlu0 %658
  %662 = vset.pattern.permute.xlu0 0
  %663 = vperm.xlu0 %662, %v63
  %v664 = vpop.permute.xlu0 %663
  %667 = vset.pattern.permute.xlu0 0
  %668 = vperm.xlu0 %667, %v64
  %v669 = vpop.permute.xlu0 %668
  %672 = vset.pattern.permute.xlu0 0
  %673 = vperm.xlu0 %672, %v65
  %v674 = vpop.permute.xlu0 %673
  %677 = vset.pattern.permute.xlu0 0
  %678 = vperm.xlu0 %677, %v66
  %v679 = vpop.permute.xlu0 %678
  %682 = vset.pattern.permute.xlu0 0
  %683 = vperm.xlu0 %682, %v67
  %v684 = vpop.permute.xlu0 %683
  %687 = vset.pattern.permute.xlu0 0
  %688 = vperm.xlu0 %687, %v68
  %v689 = vpop.permute.xlu0 %688
  %692 = vset.pattern.permute.xlu0 0
  %693 = vperm.xlu0 %692, %v69
  %v694 = vpop.permute.xlu0 %693
  %697 = vset.pattern.permute.xlu0 0
  %698 = vperm.xlu0 %697, %v70
  %v699 = vpop.permute.xlu0 %698
  %702 = vset.pattern.permute.xlu0 0
  %703 = vperm.xlu0 %702, %v71
  %v704 = vpop.permute.xlu0 %703
  %707 = vset.pattern.permute.xlu0 0
  %708 = vperm.xlu0 %707, %v72
  %v709 = vpop.permute.xlu0 %708
  %712 = vset.pattern.permute.xlu0 0
  %713 = vperm.xlu0 %712, %v73
  %v714 = vpop.permute.xlu0 %713
  %717 = vset.pattern.permute.xlu0 0
  %718 = vperm.xlu0 %717, %v74
  %v719 = vpop.permute.xlu0 %718
  %722 = vset.pattern.permute.xlu0 0
  %723 = vperm.xlu0 %722, %v75
  %v724 = vpop.permute.xlu0 %723
  %727 = vset.pattern.permute.xlu0 0
  %728 = vperm.xlu0 %727, %v76
  %v729 = vpop.permute.xlu0 %728
  %732 = vset.pattern.permute.xlu0 0
  %733 = vperm.xlu0 %732, %v77
  %v734 = vpop.permute.xlu0 %733
  %737 = vset.pattern.permute.xlu0 0
  %738 = vperm.xlu0 %737, %v78
  %v739 = vpop.permute.xlu0 %738
  %742 = vset.pattern.permute.xlu0 0
  %743 = vperm.xlu0 %742, %v79
  %v744 = vpop.permute.xlu0 %743
  %v746 = vmul.f32 %v338, %v544
  %v747 = vmul.f32 %v343, %v549
  %v748 = vmul.f32 %v348, %v554
  %v749 = vmul.f32 %v353, %v559
  %v750 = vmul.f32 %v358, %v564
  %v751 = vmul.f32 %v363, %v569
  %v752 = vmul.f32 %v368, %v574
  %v753 = vmul.f32 %v373, %v579
  %v754 = vmul.f32 %v378, %v584
  %v755 = vmul.f32 %v383, %v589
  %v756 = vmul.f32 %v388, %v594
  %v757 = vmul.f32 %v393, %v599
  %v758 = vmul.f32 %v398, %v604
  %v759 = vmul.f32 %v403, %v609
  %v760 = vmul.f32 %v408, %v614
  %v761 = vmul.f32 %v413, %v619
  %v762 = vmul.f32 %v418, %v624
  %v763 = vmul.f32 %v423, %v629
  %v764 = vmul.f32 %v428, %v634
  %v765 = vmul.f32 %v433, %v639
  %v766 = vmul.f32 %v438, %v644
  %v767 = vmul.f32 %v443, %v649
  %v768 = vmul.f32 %v448, %v654
  %v769 = vmul.f32 %v453, %v659
  %v770 = vmul.f32 %v458, %v664
  %v771 = vmul.f32 %v463, %v669
  %v772 = vmul.f32 %v468, %v674
  %v773 = vmul.f32 %v473, %v679
  %v774 = vmul.f32 %v478, %v684
  %v775 = vmul.f32 %v483, %v689
  %v776 = vmul.f32 %v488, %v694
  %v777 = vmul.f32 %v493, %v699
  %v778 = vmul.f32 %v498, %v704
  %v779 = vmul.f32 %v503, %v709
  %v780 = vmul.f32 %v508, %v714
  %v781 = vmul.f32 %v513, %v719
  %v782 = vmul.f32 %v518, %v724
  %v783 = vmul.f32 %v523, %v729
  %v784 = vmul.f32 %v528, %v734
  %v785 = vmul.f32 %v533, %v739
  %v786 = vmul.f32 %v538, %v744
  %v787 = vld [vmem:[%s2] sm:$0xff]
  %v788 = vld [vmem:[%s2 + $0x8] sm:$0xff]
  %v789 = vld [vmem:[%s2 + $0x10] sm:$0xff]
  %v790 = vld [vmem:[%s2 + $0x18] sm:$0xff]
  %v791 = vld [vmem:[%s2 + $0x20] sm:$0xff]
  %v792 = vld [vmem:[%s2 + $0x28] sm:$0xff]
  %v793 = vld [vmem:[%s2 + $0x30] sm:$0xff]
  %v794 = vld [vmem:[%s2 + $0x38] sm:$0xff]
  %v795 = vld [vmem:[%s2 + $0x40] sm:$0xff]
  %v796 = vld [vmem:[%s2 + $0x48] sm:$0xff]
  %v797 = vld [vmem:[%s2 + $0x50] sm:$0xff]
  %v798 = vld [vmem:[%s2 + $0x58] sm:$0xff]
  %v799 = vld [vmem:[%s2 + $0x60] sm:$0xff]
  %v800 = vld [vmem:[%s2 + $0x68] sm:$0xff]
  %v801 = vld [vmem:[%s2 + $0x70] sm:$0xff]
  %v802 = vld [vmem:[%s2 + $0x78] sm:$0xff]
  %v803 = vld [vmem:[%s2 + $0x80] sm:$0xff]
  %v804 = vld [vmem:[%s2 + $0x88] sm:$0xff]
  %v805 = vld [vmem:[%s2 + $0x90] sm:$0xff]
  %v806 = vld [vmem:[%s2 + $0x98] sm:$0xff]
  %v807 = vld [vmem:[%s2 + $0xa0] sm:$0xff]
  %v808 = vld [vmem:[%s2 + $0xa8] sm:$0xff]
  %v809 = vld [vmem:[%s2 + $0xb0] sm:$0xff]
  %v810 = vld [vmem:[%s2 + $0xb8] sm:$0xff]
  %v811 = vld [vmem:[%s2 + $0xc0] sm:$0xff]
  %v812 = vld [vmem:[%s2 + $0xc8] sm:$0xff]
  %v813 = vld [vmem:[%s2 + $0xd0] sm:$0xff]
  %v814 = vld [vmem:[%s2 + $0xd8] sm:$0xff]
  %v815 = vld [vmem:[%s2 + $0xe0] sm:$0xff]
  %v816 = vld [vmem:[%s2 + $0xe8] sm:$0xff]
  %v817 = vld [vmem:[%s2 + $0xf0] sm:$0xff]
  %v818 = vld [vmem:[%s2 + $0xf8] sm:$0xff]
  %v819 = vld [vmem:[%s2 + $0x100] sm:$0xff]
  %v820 = vld [vmem:[%s2 + $0x108] sm:$0xff]
  %v821 = vld [vmem:[%s2 + $0x110] sm:$0xff]
  %v822 = vld [vmem:[%s2 + $0x118] sm:$0xff]
  %v823 = vld [vmem:[%s2 + $0x120] sm:$0xff]
  %v824 = vld [vmem:[%s2 + $0x128] sm:$0xff]
  %v825 = vld [vmem:[%s2 + $0x130] sm:$0xff]
  %v826 = vld [vmem:[%s2 + $0x138] sm:$0xff]
  %v827 = vld [vmem:[%s2 + $0x140] sm:$0xf]
  %v828 = vadd.f32 %v746, %v787
  %v829 = vadd.f32 %v747, %v788
  %v830 = vadd.f32 %v748, %v789
  %v831 = vadd.f32 %v749, %v790
  %v832 = vadd.f32 %v750, %v791
  %v833 = vadd.f32 %v751, %v792
  %v834 = vadd.f32 %v752, %v793
  %v835 = vadd.f32 %v753, %v794
  %v836 = vadd.f32 %v754, %v795
  %v837 = vadd.f32 %v755, %v796
  %v838 = vadd.f32 %v756, %v797
  %v839 = vadd.f32 %v757, %v798
  %v840 = vadd.f32 %v758, %v799
  %v841 = vadd.f32 %v759, %v800
  %v842 = vadd.f32 %v760, %v801
  %v843 = vadd.f32 %v761, %v802
  %v844 = vadd.f32 %v762, %v803
  %v845 = vadd.f32 %v763, %v804
  %v846 = vadd.f32 %v764, %v805
  %v847 = vadd.f32 %v765, %v806
  %v848 = vadd.f32 %v766, %v807
  %v849 = vadd.f32 %v767, %v808
  %v850 = vadd.f32 %v768, %v809
  %v851 = vadd.f32 %v769, %v810
  %v852 = vadd.f32 %v770, %v811
  %v853 = vadd.f32 %v771, %v812
  %v854 = vadd.f32 %v772, %v813
  %v855 = vadd.f32 %v773, %v814
  %v856 = vadd.f32 %v774, %v815
  %v857 = vadd.f32 %v775, %v816
  %v858 = vadd.f32 %v776, %v817
  %v859 = vadd.f32 %v777, %v818
  %v860 = vadd.f32 %v778, %v819
  %v861 = vadd.f32 %v779, %v820
  %v862 = vadd.f32 %v780, %v821
  %v863 = vadd.f32 %v781, %v822
  %v864 = vadd.f32 %v782, %v823
  %v865 = vadd.f32 %v783, %v824
  %v866 = vadd.f32 %v784, %v825
  %v867 = vadd.f32 %v785, %v826
  %v868 = vadd.f32 %v786, %v827
  %869 = vst [vmem:[#allocation2 + $0x20] sm:$0xff] %v828
  %870 = vst [vmem:[#allocation2 + $0x28] sm:$0xff] %v829
  %871 = vst [vmem:[#allocation2 + $0x30] sm:$0xff] %v830
  %872 = vst [vmem:[#allocation2 + $0x38] sm:$0xff] %v831
  %873 = vst [vmem:[#allocation2 + $0x40] sm:$0xff] %v832
  %874 = vst [vmem:[#allocation2 + $0x48] sm:$0xff] %v833
  %875 = vst [vmem:[#allocation2 + $0x50] sm:$0xff] %v834
  %876 = vst [vmem:[#allocation2 + $0x58] sm:$0xff] %v835
  %877 = vst [vmem:[#allocation2 + $0x60] sm:$0xff] %v836
  %878 = vst [vmem:[#allocation2 + $0x68] sm:$0xff] %v837
  %879 = vst [vmem:[#allocation2 + $0x70] sm:$0xff] %v838
  %880 = vst [vmem:[#allocation2 + $0x78] sm:$0xff] %v839
  %881 = vst [vmem:[#allocation2 + $0x80] sm:$0xff] %v840
  %882 = vst [vmem:[#allocation2 + $0x88] sm:$0xff] %v841
  %883 = vst [vmem:[#allocation2 + $0x90] sm:$0xff] %v842
  %884 = vst [vmem:[#allocation2 + $0x98] sm:$0xff] %v843
  %885 = vst [vmem:[#allocation2 + $0xa0] sm:$0xff] %v844
  %886 = vst [vmem:[#allocation2 + $0xa8] sm:$0xff] %v845
  %887 = vst [vmem:[#allocation2 + $0xb0] sm:$0xff] %v846
  %888 = vst [vmem:[#allocation2 + $0xb8] sm:$0xff] %v847
  %889 = vst [vmem:[#allocation2 + $0xc0] sm:$0xff] %v848
  %890 = vst [vmem:[#allocation2 + $0xc8] sm:$0xff] %v849
  %891 = vst [vmem:[#allocation2 + $0xd0] sm:$0xff] %v850
  %892 = vst [vmem:[#allocation2 + $0xd8] sm:$0xff] %v851
  %893 = vst [vmem:[#allocation2 + $0xe0] sm:$0xff] %v852
  %894 = vst [vmem:[#allocation2 + $0xe8] sm:$0xff] %v853
  %895 = vst [vmem:[#allocation2 + $0xf0] sm:$0xff] %v854
  %896 = vst [vmem:[#allocation2 + $0xf8] sm:$0xff] %v855
  %897 = vst [vmem:[#allocation2 + $0x100] sm:$0xff] %v856
  %898 = vst [vmem:[#allocation2 + $0x108] sm:$0xff] %v857
  %899 = vst [vmem:[#allocation2 + $0x110] sm:$0xff] %v858
  %900 = vst [vmem:[#allocation2 + $0x118] sm:$0xff] %v859
  %901 = vst [vmem:[#allocation2 + $0x120] sm:$0xff] %v860
  %902 = vst [vmem:[#allocation2 + $0x128] sm:$0xff] %v861
  %903 = vst [vmem:[#allocation2 + $0x130] sm:$0xff] %v862
  %904 = vst [vmem:[#allocation2 + $0x138] sm:$0xff] %v863
  %905 = vst [vmem:[#allocation2 + $0x140] sm:$0xff] %v864
  %906 = vst [vmem:[#allocation2 + $0x148] sm:$0xff] %v865
  %907 = vst [vmem:[#allocation2 + $0x150] sm:$0xff] %v866
  %908 = vst [vmem:[#allocation2 + $0x158] sm:$0xff] %v867
  %909 = vst [vmem:[#allocation2 + $0x160] sm:$0xf] %v868
  %v910 = vld [vmem:[#allocation2 + $0xd] sm:$0xff]
  %v911 = vld [vmem:[#allocation2 + $0x15] sm:$0xff]
  %v912 = vld [vmem:[#allocation2 + $0x1d] sm:$0xff]
  %v913 = vld [vmem:[#allocation2 + $0x25] sm:$0xff]
  %v914 = vld [vmem:[#allocation2 + $0x2d] sm:$0xff]
  %v915 = vld [vmem:[#allocation2 + $0x35] sm:$0xff]
  %v916 = vld [vmem:[#allocation2 + $0x3d] sm:$0xff]
  %v917 = vld [vmem:[#allocation2 + $0x45] sm:$0xff]
  %v918 = vld [vmem:[#allocation2 + $0x4d] sm:$0xff]
  %v919 = vld [vmem:[#allocation2 + $0x55] sm:$0xff]
  %v920 = vld [vmem:[#allocation2 + $0x5d] sm:$0xff]
  %v921 = vld [vmem:[#allocation2 + $0x65] sm:$0xff]
  %v922 = vld [vmem:[#allocation2 + $0x6d] sm:$0xff]
  %v923 = vld [vmem:[#allocation2 + $0x75] sm:$0xff]
  %v924 = vld [vmem:[#allocation2 + $0x7d] sm:$0xff]
  %v925 = vld [vmem:[#allocation2 + $0x85] sm:$0xff]
  %v926 = vld [vmem:[#allocation2 + $0x8d] sm:$0xff]
  %v927 = vld [vmem:[#allocation2 + $0x95] sm:$0xff]
  %v928 = vld [vmem:[#allocation2 + $0x9d] sm:$0xff]
  %v929 = vld [vmem:[#allocation2 + $0xa5] sm:$0xff]
  %v930 = vld [vmem:[#allocation2 + $0xad] sm:$0xff]
  %v931 = vld [vmem:[#allocation2 + $0xb5] sm:$0xff]
  %v932 = vld [vmem:[#allocation2 + $0xbd] sm:$0xff]
  %v933 = vld [vmem:[#allocation2 + $0xc5] sm:$0xff]
  %v934 = vld [vmem:[#allocation2 + $0xcd] sm:$0xff]
  %v935 = vld [vmem:[#allocation2 + $0xd5] sm:$0xff]
  %v936 = vld [vmem:[#allocation2 + $0xdd] sm:$0xff]
  %v937 = vld [vmem:[#allocation2 + $0xe5] sm:$0xff]
  %v938 = vld [vmem:[#allocation2 + $0xed] sm:$0xff]
  %v939 = vld [vmem:[#allocation2 + $0xf5] sm:$0xff]
  %v940 = vld [vmem:[#allocation2 + $0xfd] sm:$0xff]
  %v941 = vld [vmem:[#allocation2 + $0x105] sm:$0xff]
  %v942 = vld [vmem:[#allocation2 + $0x10d] sm:$0xff]
  %v943 = vld [vmem:[#allocation2 + $0x115] sm:$0xff]
  %v944 = vld [vmem:[#allocation2 + $0x11d] sm:$0xff]
  %v945 = vld [vmem:[#allocation2 + $0x125] sm:$0xff]
  %v946 = vld [vmem:[#allocation2 + $0x12d] sm:$0xff]
  %v947 = vld [vmem:[#allocation2 + $0x135] sm:$0xff]
  %v948 = vld [vmem:[#allocation2 + $0x13d] sm:$0xff]
  %v949 = vld [vmem:[#allocation2 + $0x145] sm:$0xff]
  %v950 = vld [vmem:[#allocation2 + $0x14d] sm:$0xf]
  %v951 = vpack.c.bf16 %v911, %v910
  %v952 = vpack.c.bf16 %v913, %v912
  %v953 = vpack.c.bf16 %v915, %v914
  %v954 = vpack.c.bf16 %v917, %v916
  %v955 = vpack.c.bf16 %v919, %v918
  %v956 = vpack.c.bf16 %v921, %v920
  %v957 = vpack.c.bf16 %v923, %v922
  %v958 = vpack.c.bf16 %v925, %v924
  %v959 = vpack.c.bf16 %v927, %v926
  %v960 = vpack.c.bf16 %v929, %v928
  %v961 = vpack.c.bf16 %v931, %v930
  %v962 = vpack.c.bf16 %v933, %v932
  %v963 = vpack.c.bf16 %v935, %v934
  %v964 = vpack.c.bf16 %v937, %v936
  %v965 = vpack.c.bf16 %v939, %v938
  %v966 = vpack.c.bf16 %v941, %v940
  %v967 = vpack.c.bf16 %v943, %v942
  %v968 = vpack.c.bf16 %v945, %v944
  %v969 = vpack.c.bf16 %v947, %v946
  %v970 = vpack.c.bf16 %v949, %v948
  %v971 = vpack.c.bf16 %v950, %v950
  %v972 = vld [vmem:[%s5] sm:$0xf]
  %v973 = vld [vmem:[%s5 + $0x4] sm:$0xf]
  %v974 = vld [vmem:[%s5 + $0x8] sm:$0xf]
  %v975 = vld [vmem:[%s5 + $0xc] sm:$0xf]
  %v976 = vld [vmem:[#allocation2 + $0xe] sm:$0xff]
  %v977 = vld [vmem:[#allocation2 + $0x16] sm:$0xff]
  %v978 = vld [vmem:[#allocation2 + $0x1e] sm:$0xff]
  %v979 = vld [vmem:[#allocation2 + $0x26] sm:$0xff]
  %v980 = vld [vmem:[#allocation2 + $0x2e] sm:$0xff]
  %v981 = vld [vmem:[#allocation2 + $0x36] sm:$0xff]
  %v982 = vld [vmem:[#allocation2 + $0x3e] sm:$0xff]
  %v983 = vld [vmem:[#allocation2 + $0x46] sm:$0xff]
  %v984 = vld [vmem:[#allocation2 + $0x4e] sm:$0xff]
  %v985 = vld [vmem:[#allocation2 + $0x56] sm:$0xff]
  %v986 = vld [vmem:[#allocation2 + $0x5e] sm:$0xff]
  %v987 = vld [vmem:[#allocation2 + $0x66] sm:$0xff]
  %v988 = vld [vmem:[#allocation2 + $0x6e] sm:$0xff]
  %v989 = vld [vmem:[#allocation2 + $0x76] sm:$0xff]
  %v990 = vld [vmem:[#allocation2 + $0x7e] sm:$0xff]
  %v991 = vld [vmem:[#allocation2 + $0x86] sm:$0xff]
  %v992 = vld [vmem:[#allocation2 + $0x8e] sm:$0xff]
  %v993 = vld [vmem:[#allocation2 + $0x96] sm:$0xff]
  %v994 = vld [vmem:[#allocation2 + $0x9e] sm:$0xff]
  %v995 = vld [vmem:[#allocation2 + $0xa6] sm:$0xff]
  %v996 = vld [vmem:[#allocation2 + $0xae] sm:$0xff]
  %v997 = vld [vmem:[#allocation2 + $0xb6] sm:$0xff]
  %v998 = vld [vmem:[#allocation2 + $0xbe] sm:$0xff]
  %v999 = vld [vmem:[#allocation2 + $0xc6] sm:$0xff]
  %v1000 = vld [vmem:[#allocation2 + $0xce] sm:$0xff]
  %v1001 = vld [vmem:[#allocation2 + $0xd6] sm:$0xff]
  %v1002 = vld [vmem:[#allocation2 + $0xde] sm:$0xff]
  %v1003 = vld [vmem:[#allocation2 + $0xe6] sm:$0xff]
  %v1004 = vld [vmem:[#allocation2 + $0xee] sm:$0xff]
  %v1005 = vld [vmem:[#allocation2 + $0xf6] sm:$0xff]
  %v1006 = vld [vmem:[#allocation2 + $0xfe] sm:$0xff]
  %v1007 = vld [vmem:[#allocation2 + $0x106] sm:$0xff]
  %v1008 = vld [vmem:[#allocation2 + $0x10e] sm:$0xff]
  %v1009 = vld [vmem:[#allocation2 + $0x116] sm:$0xff]
  %v1010 = vld [vmem:[#allocation2 + $0x11e] sm:$0xff]
  %v1011 = vld [vmem:[#allocation2 + $0x126] sm:$0xff]
  %v1012 = vld [vmem:[#allocation2 + $0x12e] sm:$0xff]
  %v1013 = vld [vmem:[#allocation2 + $0x136] sm:$0xff]
  %v1014 = vld [vmem:[#allocation2 + $0x13e] sm:$0xff]
  %v1015 = vld [vmem:[#allocation2 + $0x146] sm:$0xff]
  %v1016 = vld [vmem:[#allocation2 + $0x14e] sm:$0xf]
  %v1017 = vpack.c.bf16 %v977, %v976
  %v1018 = vpack.c.bf16 %v979, %v978
  %v1019 = vpack.c.bf16 %v981, %v980
  %v1020 = vpack.c.bf16 %v983, %v982
  %v1021 = vpack.c.bf16 %v985, %v984
  %v1022 = vpack.c.bf16 %v987, %v986
  %v1023 = vpack.c.bf16 %v989, %v988
  %v1024 = vpack.c.bf16 %v991, %v990
  %v1025 = vpack.c.bf16 %v993, %v992
  %v1026 = vpack.c.bf16 %v995, %v994
  %v1027 = vpack.c.bf16 %v997, %v996
  %v1028 = vpack.c.bf16 %v999, %v998
  %v1029 = vpack.c.bf16 %v1001, %v1000
  %v1030 = vpack.c.bf16 %v1003, %v1002
  %v1031 = vpack.c.bf16 %v1005, %v1004
  %v1032 = vpack.c.bf16 %v1007, %v1006
  %v1033 = vpack.c.bf16 %v1009, %v1008
  %v1034 = vpack.c.bf16 %v1011, %v1010
  %v1035 = vpack.c.bf16 %v1013, %v1012
  %v1036 = vpack.c.bf16 %v1015, %v1014
  %v1037 = vpack.c.bf16 %v1016, %v1016
  %v1038 = vld [vmem:[%s5 + $0x10] sm:$0xf]
  %v1039 = vld [vmem:[%s5 + $0x14] sm:$0xf]
  %v1040 = vld [vmem:[%s5 + $0x18] sm:$0xf]
  %v1041 = vld [vmem:[%s5 + $0x1c] sm:$0xf]
  %1063 = vrot.lane.b32.xlu0 %v1017, 64
  %v1064 = vpop.permute.xlu0 %1063
  %1065 = vrot.lane.b32.xlu0 %v1018, 64
  %v1066 = vpop.permute.xlu0 %1065
  %1067 = vrot.lane.b32.xlu0 %v1019, 64
  %v1068 = vpop.permute.xlu0 %1067
  %1069 = vrot.lane.b32.xlu0 %v1020, 64
  %v1070 = vpop.permute.xlu0 %1069
  %1071 = vrot.lane.b32.xlu0 %v1021, 64
  %v1072 = vpop.permute.xlu0 %1071
  %1073 = vrot.lane.b32.xlu0 %v1022, 64
  %v1074 = vpop.permute.xlu0 %1073
  %1075 = vrot.lane.b32.xlu0 %v1023, 64
  %v1076 = vpop.permute.xlu0 %1075
  %1077 = vrot.lane.b32.xlu0 %v1024, 64
  %v1078 = vpop.permute.xlu0 %1077
  %1079 = vrot.lane.b32.xlu0 %v1025, 64
  %v1080 = vpop.permute.xlu0 %1079
  %1081 = vrot.lane.b32.xlu0 %v1026, 64
  %v1082 = vpop.permute.xlu0 %1081
  %1083 = vrot.lane.b32.xlu0 %v1027, 64
  %v1084 = vpop.permute.xlu0 %1083
  %1085 = vrot.lane.b32.xlu0 %v1028, 64
  %v1086 = vpop.permute.xlu0 %1085
  %1087 = vrot.lane.b32.xlu0 %v1029, 64
  %v1088 = vpop.permute.xlu0 %1087
  %1089 = vrot.lane.b32.xlu0 %v1030, 64
  %v1090 = vpop.permute.xlu0 %1089
  %1091 = vrot.lane.b32.xlu0 %v1031, 64
  %v1092 = vpop.permute.xlu0 %1091
  %1093 = vrot.lane.b32.xlu0 %v1032, 64
  %v1094 = vpop.permute.xlu0 %1093
  %1095 = vrot.lane.b32.xlu0 %v1033, 64
  %v1096 = vpop.permute.xlu0 %1095
  %1097 = vrot.lane.b32.xlu0 %v1034, 64
  %v1098 = vpop.permute.xlu0 %1097
  %1099 = vrot.lane.b32.xlu0 %v1035, 64
  %v1100 = vpop.permute.xlu0 %1099
  %1101 = vrot.lane.b32.xlu0 %v1036, 64
  %v1102 = vpop.permute.xlu0 %1101
  %1103 = vrot.lane.b32.xlu0 %v1037, 64
  %v1104 = vpop.permute.xlu0 %1103
  %v1109 = vunpack.c.l.b16 %v1038
  %v1110 = vunpack.c.l.b16 %v1039
  %v1111 = vunpack.c.l.b16 %v1040
  %v1112 = vunpack.c.l.b16 %v1041
  %v1113 = vpack.c.b16 %v1110, %v1109
  %v1114 = vpack.c.b16 %v1112, %v1111
  %vm1117 = vcmask 261120
  %v1119 = vsel %vm1117, %v1064, 0
  %v1122 = vsel %vm1117, %v1066, 0
  %v1125 = vsel %vm1117, %v1068, 0
  %v1128 = vsel %vm1117, %v1070, 0
  %v1131 = vsel %vm1117, %v1072, 0
  %v1134 = vsel %vm1117, %v1074, 0
  %v1137 = vsel %vm1117, %v1076, 0
  %v1140 = vsel %vm1117, %v1078, 0
  %v1143 = vsel %vm1117, %v1080, 0
  %v1146 = vsel %vm1117, %v1082, 0
  %v1149 = vsel %vm1117, %v1084, 0
  %v1152 = vsel %vm1117, %v1086, 0
  %v1155 = vsel %vm1117, %v1088, 0
  %v1158 = vsel %vm1117, %v1090, 0
  %v1161 = vsel %vm1117, %v1092, 0
  %v1164 = vsel %vm1117, %v1094, 0
  %v1167 = vsel %vm1117, %v1096, 0
  %v1170 = vsel %vm1117, %v1098, 0
  %v1173 = vsel %vm1117, %v1100, 0
  %v1176 = vsel %vm1117, %v1102, 0
  %v1179 = vsel %vm1117, %v1104, 0
  %1181 = vmatprep.subr.bf16.mxu0 0
  %1182 = vmatpush1.bf16.msra.mxu0 0
  %1183 = vmatprep.subr.bf16.mxu0 0
  %1184 = vmatpush1.bf16.msra.mxu0 0
  %1185 = vmatprep.subr.bf16.mxu0 0
  %1186 = vmatpush1.bf16.msra.mxu0 0
  %1187 = vmatprep.subr.bf16.mxu0 0
  %1188 = vmatpush1.bf16.msra.mxu0 0
  %1189 = vmatprep.subr.bf16.mxu0 0
  %1190 = vmatpush1.bf16.msra.mxu0 0
  %1191 = vmatprep.subr.bf16.mxu0 0
  %1192 = vmatpush1.bf16.msra.mxu0 0
  %1193 = vmatprep.subr.bf16.mxu0 0
  %1194 = vmatpush1.bf16.msra.mxu0 %v1114
  %1195 = vmatprep.subr.bf16.mxu0 0
  %1196 = vmatpush1.bf16.msra.mxu0 %v1113
  %1197 = vmatprep.subr.bf16.mxu0 0
  %1198 = vmatpush2.bf16.msra.mxu0 0
  %1199 = vmatprep.subr.bf16.mxu0 0
  %1200 = vmatpush2.bf16.msra.mxu0 0
  %1201 = vmatprep.subr.bf16.mxu0 0
  %1202 = vmatpush2.bf16.msra.mxu0 0
  %1203 = vmatprep.subr.bf16.mxu0 0
  %1204 = vmatpush2.bf16.msra.mxu0 0
  %1205 = vmatprep.subr.bf16.mxu0 0
  %1206 = vmatpush2.bf16.msra.mxu0 0
  %1207 = vmatprep.subr.bf16.mxu0 0
  %1208 = vmatpush2.bf16.msra.mxu0 0
  %1209 = vmatprep.subr.bf16.mxu0 0
  %1210 = vmatpush2.bf16.msra.mxu0 0
  %1211 = vmatprep.subr.bf16.mxu0 0
  %1212 = vmatpush2.bf16.msra.mxu0 0
  %1213 = vmatprep.mubr.bf16.mxu0 0
  %1214 = vmatmul.mubr.bf16.gmra.mxu0 %v1119
  %v1215 = vpop.f32.mrf.mxu0
  %v1216 = vadd.f32 0.0, %v1215
  %v1217 = vpop.f32.mrf.mxu0
  %v1218 = vpop.f32.mrf.mxu0
  %v1219 = vadd.f32 0.0, %v1218
  %v1220 = vpop.f32.mrf.mxu0
  %1221 = vmatprep.mubr.bf16.mxu0 0
  %1222 = vmatmul.mubr.bf16.gmra.mxu0 %v1122
  %v1223 = vpop.f32.mrf.mxu0
  %v1224 = vadd.f32 0.0, %v1223
  %v1225 = vpop.f32.mrf.mxu0
  %v1226 = vpop.f32.mrf.mxu0
  %v1227 = vadd.f32 0.0, %v1226
  %v1228 = vpop.f32.mrf.mxu0
  %1229 = vmatprep.mubr.bf16.mxu0 0
  %1230 = vmatmul.mubr.bf16.gmra.mxu0 %v1125
  %v1231 = vpop.f32.mrf.mxu0
  %v1232 = vadd.f32 0.0, %v1231
  %v1233 = vpop.f32.mrf.mxu0
  %v1234 = vpop.f32.mrf.mxu0
  %v1235 = vadd.f32 0.0, %v1234
  %v1236 = vpop.f32.mrf.mxu0
  %1237 = vmatprep.mubr.bf16.mxu0 0
  %1238 = vmatmul.mubr.bf16.gmra.mxu0 %v1128
  %v1239 = vpop.f32.mrf.mxu0
  %v1240 = vadd.f32 0.0, %v1239
  %v1241 = vpop.f32.mrf.mxu0
  %v1242 = vpop.f32.mrf.mxu0
  %v1243 = vadd.f32 0.0, %v1242
  %v1244 = vpop.f32.mrf.mxu0
  %1245 = vmatprep.mubr.bf16.mxu0 0
  %1246 = vmatmul.mubr.bf16.gmra.mxu0 %v1131
  %v1247 = vpop.f32.mrf.mxu0
  %v1248 = vadd.f32 0.0, %v1247
  %v1249 = vpop.f32.mrf.mxu0
  %v1250 = vpop.f32.mrf.mxu0
  %v1251 = vadd.f32 0.0, %v1250
  %v1252 = vpop.f32.mrf.mxu0
  %1253 = vmatprep.mubr.bf16.mxu0 0
  %1254 = vmatmul.mubr.bf16.gmra.mxu0 %v1134
  %v1255 = vpop.f32.mrf.mxu0
  %v1256 = vadd.f32 0.0, %v1255
  %v1257 = vpop.f32.mrf.mxu0
  %v1258 = vpop.f32.mrf.mxu0
  %v1259 = vadd.f32 0.0, %v1258
  %v1260 = vpop.f32.mrf.mxu0
  %1261 = vmatprep.mubr.bf16.mxu0 0
  %1262 = vmatmul.mubr.bf16.gmra.mxu0 %v1137
  %v1263 = vpop.f32.mrf.mxu0
  %v1264 = vadd.f32 0.0, %v1263
  %v1265 = vpop.f32.mrf.mxu0
  %v1266 = vpop.f32.mrf.mxu0
  %v1267 = vadd.f32 0.0, %v1266
  %v1268 = vpop.f32.mrf.mxu0
  %1269 = vmatprep.mubr.bf16.mxu0 0
  %1270 = vmatmul.mubr.bf16.gmra.mxu0 %v1140
  %v1271 = vpop.f32.mrf.mxu0
  %v1272 = vadd.f32 0.0, %v1271
  %v1273 = vpop.f32.mrf.mxu0
  %v1274 = vpop.f32.mrf.mxu0
  %v1275 = vadd.f32 0.0, %v1274
  %v1276 = vpop.f32.mrf.mxu0
  %1277 = vmatprep.mubr.bf16.mxu0 0
  %1278 = vmatmul.mubr.bf16.gmra.mxu0 %v1143
  %v1279 = vpop.f32.mrf.mxu0
  %v1280 = vadd.f32 0.0, %v1279
  %v1281 = vpop.f32.mrf.mxu0
  %v1282 = vpop.f32.mrf.mxu0
  %v1283 = vadd.f32 0.0, %v1282
  %v1284 = vpop.f32.mrf.mxu0
  %1285 = vmatprep.mubr.bf16.mxu0 0
  %1286 = vmatmul.mubr.bf16.gmra.mxu0 %v1146
  %v1287 = vpop.f32.mrf.mxu0
  %v1288 = vadd.f32 0.0, %v1287
  %v1289 = vpop.f32.mrf.mxu0
  %v1290 = vpop.f32.mrf.mxu0
  %v1291 = vadd.f32 0.0, %v1290
  %v1292 = vpop.f32.mrf.mxu0
  %1293 = vmatprep.mubr.bf16.mxu0 0
  %1294 = vmatmul.mubr.bf16.gmra.mxu0 %v1149
  %v1295 = vpop.f32.mrf.mxu0
  %v1296 = vadd.f32 0.0, %v1295
  %v1297 = vpop.f32.mrf.mxu0
  %v1298 = vpop.f32.mrf.mxu0
  %v1299 = vadd.f32 0.0, %v1298
  %v1300 = vpop.f32.mrf.mxu0
  %1301 = vmatprep.mubr.bf16.mxu0 0
  %1302 = vmatmul.mubr.bf16.gmra.mxu0 %v1152
  %v1303 = vpop.f32.mrf.mxu0
  %v1304 = vadd.f32 0.0, %v1303
  %v1305 = vpop.f32.mrf.mxu0
  %v1306 = vpop.f32.mrf.mxu0
  %v1307 = vadd.f32 0.0, %v1306
  %v1308 = vpop.f32.mrf.mxu0
  %1309 = vmatprep.mubr.bf16.mxu0 0
  %1310 = vmatmul.mubr.bf16.gmra.mxu0 %v1155
  %v1311 = vpop.f32.mrf.mxu0
  %v1312 = vadd.f32 0.0, %v1311
  %v1313 = vpop.f32.mrf.mxu0
  %v1314 = vpop.f32.mrf.mxu0
  %v1315 = vadd.f32 0.0, %v1314
  %v1316 = vpop.f32.mrf.mxu0
  %1317 = vmatprep.mubr.bf16.mxu0 0
  %1318 = vmatmul.mubr.bf16.gmra.mxu0 %v1158
  %v1319 = vpop.f32.mrf.mxu0
  %v1320 = vadd.f32 0.0, %v1319
  %v1321 = vpop.f32.mrf.mxu0
  %v1322 = vpop.f32.mrf.mxu0
  %v1323 = vadd.f32 0.0, %v1322
  %v1324 = vpop.f32.mrf.mxu0
  %1325 = vmatprep.mubr.bf16.mxu0 0
  %1326 = vmatmul.mubr.bf16.gmra.mxu0 %v1161
  %v1327 = vpop.f32.mrf.mxu0
  %v1328 = vadd.f32 0.0, %v1327
  %v1329 = vpop.f32.mrf.mxu0
  %v1330 = vpop.f32.mrf.mxu0
  %v1331 = vadd.f32 0.0, %v1330
  %v1332 = vpop.f32.mrf.mxu0
  %1333 = vmatprep.mubr.bf16.mxu0 0
  %1334 = vmatmul.mubr.bf16.gmra.mxu0 %v1164
  %v1335 = vpop.f32.mrf.mxu0
  %v1336 = vadd.f32 0.0, %v1335
  %v1337 = vpop.f32.mrf.mxu0
  %v1338 = vpop.f32.mrf.mxu0
  %v1339 = vadd.f32 0.0, %v1338
  %v1340 = vpop.f32.mrf.mxu0
  %1341 = vmatprep.mubr.bf16.mxu0 0
  %1342 = vmatmul.mubr.bf16.gmra.mxu0 %v1167
  %v1343 = vpop.f32.mrf.mxu0
  %v1344 = vadd.f32 0.0, %v1343
  %v1345 = vpop.f32.mrf.mxu0
  %v1346 = vpop.f32.mrf.mxu0
  %v1347 = vadd.f32 0.0, %v1346
  %v1348 = vpop.f32.mrf.mxu0
  %1349 = vmatprep.mubr.bf16.mxu0 0
  %1350 = vmatmul.mubr.bf16.gmra.mxu0 %v1170
  %v1351 = vpop.f32.mrf.mxu0
  %v1352 = vadd.f32 0.0, %v1351
  %v1353 = vpop.f32.mrf.mxu0
  %v1354 = vpop.f32.mrf.mxu0
  %v1355 = vadd.f32 0.0, %v1354
  %v1356 = vpop.f32.mrf.mxu0
  %1357 = vmatprep.mubr.bf16.mxu0 0
  %1358 = vmatmul.mubr.bf16.gmra.mxu0 %v1173
  %v1359 = vpop.f32.mrf.mxu0
  %v1360 = vadd.f32 0.0, %v1359
  %v1361 = vpop.f32.mrf.mxu0
  %v1362 = vpop.f32.mrf.mxu0
  %v1363 = vadd.f32 0.0, %v1362
  %v1364 = vpop.f32.mrf.mxu0
  %1365 = vmatprep.mubr.bf16.mxu0 0
  %1366 = vmatmul.mubr.bf16.gmra.mxu0 %v1176
  %v1367 = vpop.f32.mrf.mxu0
  %v1368 = vadd.f32 0.0, %v1367
  %v1369 = vpop.f32.mrf.mxu0
  %v1370 = vpop.f32.mrf.mxu0
  %v1371 = vadd.f32 0.0, %v1370
  %v1372 = vpop.f32.mrf.mxu0
  %1373 = vmatprep.mubr.bf16.mxu0 0
  %1374 = vmatmul.mubr.bf16.gmra.mxu0 %v1179
  %v1375 = vpop.f32.mrf.mxu0
  %v1376 = vadd.f32 0.0, %v1375
  %v1377 = vpop.f32.mrf.mxu0
  %v1378 = vpop.f32.mrf.mxu0
  %v1379 = vpop.f32.mrf.mxu0
  %1380 = vdwg.mxu0
  %1402 = vrot.lane.b32.xlu0 %v951, 32
  %v1403 = vpop.permute.xlu0 %1402
  %1404 = vrot.lane.b32.xlu0 %v952, 32
  %v1405 = vpop.permute.xlu0 %1404
  %1406 = vrot.lane.b32.xlu0 %v953, 32
  %v1407 = vpop.permute.xlu0 %1406
  %1408 = vrot.lane.b32.xlu0 %v954, 32
  %v1409 = vpop.permute.xlu0 %1408
  %1410 = vrot.lane.b32.xlu0 %v955, 32
  %v1411 = vpop.permute.xlu0 %1410
  %1412 = vrot.lane.b32.xlu0 %v956, 32
  %v1413 = vpop.permute.xlu0 %1412
  %1414 = vrot.lane.b32.xlu0 %v957, 32
  %v1415 = vpop.permute.xlu0 %1414
  %1416 = vrot.lane.b32.xlu0 %v958, 32
  %v1417 = vpop.permute.xlu0 %1416
  %1418 = vrot.lane.b32.xlu0 %v959, 32
  %v1419 = vpop.permute.xlu0 %1418
  %1420 = vrot.lane.b32.xlu0 %v960, 32
  %v1421 = vpop.permute.xlu0 %1420
  %1422 = vrot.lane.b32.xlu0 %v961, 32
  %v1423 = vpop.permute.xlu0 %1422
  %1424 = vrot.lane.b32.xlu0 %v962, 32
  %v1425 = vpop.permute.xlu0 %1424
  %1426 = vrot.lane.b32.xlu0 %v963, 32
  %v1427 = vpop.permute.xlu0 %1426
  %1428 = vrot.lane.b32.xlu0 %v964, 32
  %v1429 = vpop.permute.xlu0 %1428
  %1430 = vrot.lane.b32.xlu0 %v965, 32
  %v1431 = vpop.permute.xlu0 %1430
  %1432 = vrot.lane.b32.xlu0 %v966, 32
  %v1433 = vpop.permute.xlu0 %1432
  %1434 = vrot.lane.b32.xlu0 %v967, 32
  %v1435 = vpop.permute.xlu0 %1434
  %1436 = vrot.lane.b32.xlu0 %v968, 32
  %v1437 = vpop.permute.xlu0 %1436
  %1438 = vrot.lane.b32.xlu0 %v969, 32
  %v1439 = vpop.permute.xlu0 %1438
  %1440 = vrot.lane.b32.xlu0 %v970, 32
  %v1441 = vpop.permute.xlu0 %1440
  %1442 = vrot.lane.b32.xlu0 %v971, 32
  %v1443 = vpop.permute.xlu0 %1442
  %v1448 = vunpack.c.l.b16 %v972
  %v1449 = vunpack.c.l.b16 %v973
  %v1450 = vunpack.c.l.b16 %v974
  %v1451 = vunpack.c.l.b16 %v975
  %v1452 = vpack.c.b16 %v1449, %v1448
  %v1453 = vpack.c.b16 %v1451, %v1450
  %v1457 = vsel %vm1117, %v1403, 0
  %v1460 = vsel %vm1117, %v1405, 0
  %v1463 = vsel %vm1117, %v1407, 0
  %v1466 = vsel %vm1117, %v1409, 0
  %v1469 = vsel %vm1117, %v1411, 0
  %v1472 = vsel %vm1117, %v1413, 0
  %v1475 = vsel %vm1117, %v1415, 0
  %v1478 = vsel %vm1117, %v1417, 0
  %v1481 = vsel %vm1117, %v1419, 0
  %v1484 = vsel %vm1117, %v1421, 0
  %v1487 = vsel %vm1117, %v1423, 0
  %v1490 = vsel %vm1117, %v1425, 0
  %v1493 = vsel %vm1117, %v1427, 0
  %v1496 = vsel %vm1117, %v1429, 0
  %v1499 = vsel %vm1117, %v1431, 0
  %v1502 = vsel %vm1117, %v1433, 0
  %v1505 = vsel %vm1117, %v1435, 0
  %v1508 = vsel %vm1117, %v1437, 0
  %v1511 = vsel %vm1117, %v1439, 0
  %v1514 = vsel %vm1117, %v1441, 0
  %v1517 = vsel %vm1117, %v1443, 0
  %1519 = vmatprep.subr.bf16.mxu0 0
  %1520 = vmatpush1.bf16.msra.mxu0 0
  %1521 = vmatprep.subr.bf16.mxu0 0
  %1522 = vmatpush1.bf16.msra.mxu0 0
  %1523 = vmatprep.subr.bf16.mxu0 0
  %1524 = vmatpush1.bf16.msra.mxu0 0
  %1525 = vmatprep.subr.bf16.mxu0 0
  %1526 = vmatpush1.bf16.msra.mxu0 0
  %1527 = vmatprep.subr.bf16.mxu0 0
  %1528 = vmatpush1.bf16.msra.mxu0 0
  %1529 = vmatprep.subr.bf16.mxu0 0
  %1530 = vmatpush1.bf16.msra.mxu0 0
  %1531 = vmatprep.subr.bf16.mxu0 0
  %1532 = vmatpush1.bf16.msra.mxu0 %v1453
  %1533 = vmatprep.subr.bf16.mxu0 0
  %1534 = vmatpush1.bf16.msra.mxu0 %v1452
  %1535 = vmatprep.subr.bf16.mxu0 0
  %1536 = vmatpush2.bf16.msra.mxu0 0
  %1537 = vmatprep.subr.bf16.mxu0 0
  %1538 = vmatpush2.bf16.msra.mxu0 0
  %1539 = vmatprep.subr.bf16.mxu0 0
  %1540 = vmatpush2.bf16.msra.mxu0 0
  %1541 = vmatprep.subr.bf16.mxu0 0
  %1542 = vmatpush2.bf16.msra.mxu0 0
  %1543 = vmatprep.subr.bf16.mxu0 0
  %1544 = vmatpush2.bf16.msra.mxu0 0
  %1545 = vmatprep.subr.bf16.mxu0 0
  %1546 = vmatpush2.bf16.msra.mxu0 0
  %1547 = vmatprep.subr.bf16.mxu0 0
  %1548 = vmatpush2.bf16.msra.mxu0 0
  %1549 = vmatprep.subr.bf16.mxu0 0
  %1550 = vmatpush2.bf16.msra.mxu0 0
  %1551 = vmatprep.mubr.bf16.mxu0 0
  %1552 = vmatmul.mubr.bf16.gmra.mxu0 %v1457
  %v1553 = vpop.f32.mrf.mxu0
  %v1554 = vadd.f32 %v1216, %v1553
  %v1555 = vpop.f32.mrf.mxu0
  %v1556 = vpop.f32.mrf.mxu0
  %v1557 = vadd.f32 %v1219, %v1556
  %v1558 = vpop.f32.mrf.mxu0
  %1559 = vmatprep.mubr.bf16.mxu0 0
  %1560 = vmatmul.mubr.bf16.gmra.mxu0 %v1460
  %v1561 = vpop.f32.mrf.mxu0
  %v1562 = vadd.f32 %v1224, %v1561
  %v1563 = vpop.f32.mrf.mxu0
  %v1564 = vpop.f32.mrf.mxu0
  %v1565 = vadd.f32 %v1227, %v1564
  %v1566 = vpop.f32.mrf.mxu0
  %1567 = vmatprep.mubr.bf16.mxu0 0
  %1568 = vmatmul.mubr.bf16.gmra.mxu0 %v1463
  %v1569 = vpop.f32.mrf.mxu0
  %v1570 = vadd.f32 %v1232, %v1569
  %v1571 = vpop.f32.mrf.mxu0
  %v1572 = vpop.f32.mrf.mxu0
  %v1573 = vadd.f32 %v1235, %v1572
  %v1574 = vpop.f32.mrf.mxu0
  %1575 = vmatprep.mubr.bf16.mxu0 0
  %1576 = vmatmul.mubr.bf16.gmra.mxu0 %v1466
  %v1577 = vpop.f32.mrf.mxu0
  %v1578 = vadd.f32 %v1240, %v1577
  %v1579 = vpop.f32.mrf.mxu0
  %v1580 = vpop.f32.mrf.mxu0
  %v1581 = vadd.f32 %v1243, %v1580
  %v1582 = vpop.f32.mrf.mxu0
  %1583 = vmatprep.mubr.bf16.mxu0 0
  %1584 = vmatmul.mubr.bf16.gmra.mxu0 %v1469
  %v1585 = vpop.f32.mrf.mxu0
  %v1586 = vadd.f32 %v1248, %v1585
  %v1587 = vpop.f32.mrf.mxu0
  %v1588 = vpop.f32.mrf.mxu0
  %v1589 = vadd.f32 %v1251, %v1588
  %v1590 = vpop.f32.mrf.mxu0
  %1591 = vmatprep.mubr.bf16.mxu0 0
  %1592 = vmatmul.mubr.bf16.gmra.mxu0 %v1472
  %v1593 = vpop.f32.mrf.mxu0
  %v1594 = vadd.f32 %v1256, %v1593
  %v1595 = vpop.f32.mrf.mxu0
  %v1596 = vpop.f32.mrf.mxu0
  %v1597 = vadd.f32 %v1259, %v1596
  %v1598 = vpop.f32.mrf.mxu0
  %1599 = vmatprep.mubr.bf16.mxu0 0
  %1600 = vmatmul.mubr.bf16.gmra.mxu0 %v1475
  %v1601 = vpop.f32.mrf.mxu0
  %v1602 = vadd.f32 %v1264, %v1601
  %v1603 = vpop.f32.mrf.mxu0
  %v1604 = vpop.f32.mrf.mxu0
  %v1605 = vadd.f32 %v1267, %v1604
  %v1606 = vpop.f32.mrf.mxu0
  %1607 = vmatprep.mubr.bf16.mxu0 0
  %1608 = vmatmul.mubr.bf16.gmra.mxu0 %v1478
  %v1609 = vpop.f32.mrf.mxu0
  %v1610 = vadd.f32 %v1272, %v1609
  %v1611 = vpop.f32.mrf.mxu0
  %v1612 = vpop.f32.mrf.mxu0
  %v1613 = vadd.f32 %v1275, %v1612
  %v1614 = vpop.f32.mrf.mxu0
  %1615 = vmatprep.mubr.bf16.mxu0 0
  %1616 = vmatmul.mubr.bf16.gmra.mxu0 %v1481
  %v1617 = vpop.f32.mrf.mxu0
  %v1618 = vadd.f32 %v1280, %v1617
  %v1619 = vpop.f32.mrf.mxu0
  %v1620 = vpop.f32.mrf.mxu0
  %v1621 = vadd.f32 %v1283, %v1620
  %v1622 = vpop.f32.mrf.mxu0
  %1623 = vmatprep.mubr.bf16.mxu0 0
  %1624 = vmatmul.mubr.bf16.gmra.mxu0 %v1484
  %v1625 = vpop.f32.mrf.mxu0
  %v1626 = vadd.f32 %v1288, %v1625
  %v1627 = vpop.f32.mrf.mxu0
  %v1628 = vpop.f32.mrf.mxu0
  %v1629 = vadd.f32 %v1291, %v1628
  %v1630 = vpop.f32.mrf.mxu0
  %1631 = vmatprep.mubr.bf16.mxu0 0
  %1632 = vmatmul.mubr.bf16.gmra.mxu0 %v1487
  %v1633 = vpop.f32.mrf.mxu0
  %v1634 = vadd.f32 %v1296, %v1633
  %v1635 = vpop.f32.mrf.mxu0
  %v1636 = vpop.f32.mrf.mxu0
  %v1637 = vadd.f32 %v1299, %v1636
  %v1638 = vpop.f32.mrf.mxu0
  %1639 = vmatprep.mubr.bf16.mxu0 0
  %1640 = vmatmul.mubr.bf16.gmra.mxu0 %v1490
  %v1641 = vpop.f32.mrf.mxu0
  %v1642 = vadd.f32 %v1304, %v1641
  %v1643 = vpop.f32.mrf.mxu0
  %v1644 = vpop.f32.mrf.mxu0
  %v1645 = vadd.f32 %v1307, %v1644
  %v1646 = vpop.f32.mrf.mxu0
  %1647 = vmatprep.mubr.bf16.mxu0 0
  %1648 = vmatmul.mubr.bf16.gmra.mxu0 %v1493
  %v1649 = vpop.f32.mrf.mxu0
  %v1650 = vadd.f32 %v1312, %v1649
  %v1651 = vpop.f32.mrf.mxu0
  %v1652 = vpop.f32.mrf.mxu0
  %v1653 = vadd.f32 %v1315, %v1652
  %v1654 = vpop.f32.mrf.mxu0
  %1655 = vmatprep.mubr.bf16.mxu0 0
  %1656 = vmatmul.mubr.bf16.gmra.mxu0 %v1496
  %v1657 = vpop.f32.mrf.mxu0
  %v1658 = vadd.f32 %v1320, %v1657
  %v1659 = vpop.f32.mrf.mxu0
  %v1660 = vpop.f32.mrf.mxu0
  %v1661 = vadd.f32 %v1323, %v1660
  %v1662 = vpop.f32.mrf.mxu0
  %1663 = vmatprep.mubr.bf16.mxu0 0
  %1664 = vmatmul.mubr.bf16.gmra.mxu0 %v1499
  %v1665 = vpop.f32.mrf.mxu0
  %v1666 = vadd.f32 %v1328, %v1665
  %v1667 = vpop.f32.mrf.mxu0
  %v1668 = vpop.f32.mrf.mxu0
  %v1669 = vadd.f32 %v1331, %v1668
  %v1670 = vpop.f32.mrf.mxu0
  %1671 = vmatprep.mubr.bf16.mxu0 0
  %1672 = vmatmul.mubr.bf16.gmra.mxu0 %v1502
  %v1673 = vpop.f32.mrf.mxu0
  %v1674 = vadd.f32 %v1336, %v1673
  %v1675 = vpop.f32.mrf.mxu0
  %v1676 = vpop.f32.mrf.mxu0
  %v1677 = vadd.f32 %v1339, %v1676
  %v1678 = vpop.f32.mrf.mxu0
  %1679 = vmatprep.mubr.bf16.mxu0 0
  %1680 = vmatmul.mubr.bf16.gmra.mxu0 %v1505
  %v1681 = vpop.f32.mrf.mxu0
  %v1682 = vadd.f32 %v1344, %v1681
  %v1683 = vpop.f32.mrf.mxu0
  %v1684 = vpop.f32.mrf.mxu0
  %v1685 = vadd.f32 %v1347, %v1684
  %v1686 = vpop.f32.mrf.mxu0
  %1687 = vmatprep.mubr.bf16.mxu0 0
  %1688 = vmatmul.mubr.bf16.gmra.mxu0 %v1508
  %v1689 = vpop.f32.mrf.mxu0
  %v1690 = vadd.f32 %v1352, %v1689
  %v1691 = vpop.f32.mrf.mxu0
  %v1692 = vpop.f32.mrf.mxu0
  %v1693 = vadd.f32 %v1355, %v1692
  %v1694 = vpop.f32.mrf.mxu0
  %1695 = vmatprep.mubr.bf16.mxu0 0
  %1696 = vmatmul.mubr.bf16.gmra.mxu0 %v1511
  %v1697 = vpop.f32.mrf.mxu0
  %v1698 = vadd.f32 %v1360, %v1697
  %v1699 = vpop.f32.mrf.mxu0
  %v1700 = vpop.f32.mrf.mxu0
  %v1701 = vadd.f32 %v1363, %v1700
  %v1702 = vpop.f32.mrf.mxu0
  %1703 = vmatprep.mubr.bf16.mxu0 0
  %1704 = vmatmul.mubr.bf16.gmra.mxu0 %v1514
  %v1705 = vpop.f32.mrf.mxu0
  %v1706 = vadd.f32 %v1368, %v1705
  %v1707 = vpop.f32.mrf.mxu0
  %v1708 = vpop.f32.mrf.mxu0
  %v1709 = vadd.f32 %v1371, %v1708
  %v1710 = vpop.f32.mrf.mxu0
  %1711 = vmatprep.mubr.bf16.mxu0 0
  %1712 = vmatmul.mubr.bf16.gmra.mxu0 %v1517
  %v1713 = vpop.f32.mrf.mxu0
  %v1714 = vadd.f32 %v1376, %v1713
  %v1715 = vpop.f32.mrf.mxu0
  %v1716 = vpop.f32.mrf.mxu0
  %v1717 = vpop.f32.mrf.mxu0
  %1718 = vdwg.mxu0
  %v1719 = vld [vmem:[%s5 + $0x20] sm:$0xf]
  %v1720 = vld [vmem:[%s5 + $0x24] sm:$0xf]
  %v1721 = vld [vmem:[%s5 + $0x28] sm:$0xf]
  %v1722 = vld [vmem:[%s5 + $0x2c] sm:$0xf]
  %1723 = vrot.lane.b32.xlu0 %v1017, 32
  %v1724 = vpop.permute.xlu0 %1723
  %1725 = vrot.lane.b32.xlu0 %v1018, 32
  %v1726 = vpop.permute.xlu0 %1725
  %1727 = vrot.lane.b32.xlu0 %v1019, 32
  %v1728 = vpop.permute.xlu0 %1727
  %1729 = vrot.lane.b32.xlu0 %v1020, 32
  %v1730 = vpop.permute.xlu0 %1729
  %1731 = vrot.lane.b32.xlu0 %v1021, 32
  %v1732 = vpop.permute.xlu0 %1731
  %1733 = vrot.lane.b32.xlu0 %v1022, 32
  %v1734 = vpop.permute.xlu0 %1733
  %1735 = vrot.lane.b32.xlu0 %v1023, 32
  %v1736 = vpop.permute.xlu0 %1735
  %1737 = vrot.lane.b32.xlu0 %v1024, 32
  %v1738 = vpop.permute.xlu0 %1737
  %1739 = vrot.lane.b32.xlu0 %v1025, 32
  %v1740 = vpop.permute.xlu0 %1739
  %1741 = vrot.lane.b32.xlu0 %v1026, 32
  %v1742 = vpop.permute.xlu0 %1741
  %1743 = vrot.lane.b32.xlu0 %v1027, 32
  %v1744 = vpop.permute.xlu0 %1743
  %1745 = vrot.lane.b32.xlu0 %v1028, 32
  %v1746 = vpop.permute.xlu0 %1745
  %1747 = vrot.lane.b32.xlu0 %v1029, 32
  %v1748 = vpop.permute.xlu0 %1747
  %1749 = vrot.lane.b32.xlu0 %v1030, 32
  %v1750 = vpop.permute.xlu0 %1749
  %1751 = vrot.lane.b32.xlu0 %v1031, 32
  %v1752 = vpop.permute.xlu0 %1751
  %1753 = vrot.lane.b32.xlu0 %v1032, 32
  %v1754 = vpop.permute.xlu0 %1753
  %1755 = vrot.lane.b32.xlu0 %v1033, 32
  %v1756 = vpop.permute.xlu0 %1755
  %1757 = vrot.lane.b32.xlu0 %v1034, 32
  %v1758 = vpop.permute.xlu0 %1757
  %1759 = vrot.lane.b32.xlu0 %v1035, 32
  %v1760 = vpop.permute.xlu0 %1759
  %1761 = vrot.lane.b32.xlu0 %v1036, 32
  %v1762 = vpop.permute.xlu0 %1761
  %1763 = vrot.lane.b32.xlu0 %v1037, 32
  %v1764 = vpop.permute.xlu0 %1763
  %v1769 = vunpack.c.l.b16 %v1719
  %v1770 = vunpack.c.l.b16 %v1720
  %v1771 = vunpack.c.l.b16 %v1721
  %v1772 = vunpack.c.l.b16 %v1722
  %v1773 = vpack.c.b16 %v1770, %v1769
  %v1774 = vpack.c.b16 %v1772, %v1771
  %v1778 = vsel %vm1117, %v1724, 0
  %v1781 = vsel %vm1117, %v1726, 0
  %v1784 = vsel %vm1117, %v1728, 0
  %v1787 = vsel %vm1117, %v1730, 0
  %v1790 = vsel %vm1117, %v1732, 0
  %v1793 = vsel %vm1117, %v1734, 0
  %v1796 = vsel %vm1117, %v1736, 0
  %v1799 = vsel %vm1117, %v1738, 0
  %v1802 = vsel %vm1117, %v1740, 0
  %v1805 = vsel %vm1117, %v1742, 0
  %v1808 = vsel %vm1117, %v1744, 0
  %v1811 = vsel %vm1117, %v1746, 0
  %v1814 = vsel %vm1117, %v1748, 0
  %v1817 = vsel %vm1117, %v1750, 0
  %v1820 = vsel %vm1117, %v1752, 0
  %v1823 = vsel %vm1117, %v1754, 0
  %v1826 = vsel %vm1117, %v1756, 0
  %v1829 = vsel %vm1117, %v1758, 0
  %v1832 = vsel %vm1117, %v1760, 0
  %v1835 = vsel %vm1117, %v1762, 0
  %v1838 = vsel %vm1117, %v1764, 0
  %1840 = vmatprep.subr.bf16.mxu0 0
  %1841 = vmatpush1.bf16.msra.mxu0 0
  %1842 = vmatprep.subr.bf16.mxu0 0
  %1843 = vmatpush1.bf16.msra.mxu0 0
  %1844 = vmatprep.subr.bf16.mxu0 0
  %1845 = vmatpush1.bf16.msra.mxu0 0
  %1846 = vmatprep.subr.bf16.mxu0 0
  %1847 = vmatpush1.bf16.msra.mxu0 0
  %1848 = vmatprep.subr.bf16.mxu0 0
  %1849 = vmatpush1.bf16.msra.mxu0 0
  %1850 = vmatprep.subr.bf16.mxu0 0
  %1851 = vmatpush1.bf16.msra.mxu0 0
  %1852 = vmatprep.subr.bf16.mxu0 0
  %1853 = vmatpush1.bf16.msra.mxu0 %v1774
  %1854 = vmatprep.subr.bf16.mxu0 0
  %1855 = vmatpush1.bf16.msra.mxu0 %v1773
  %1856 = vmatprep.subr.bf16.mxu0 0
  %1857 = vmatpush2.bf16.msra.mxu0 0
  %1858 = vmatprep.subr.bf16.mxu0 0
  %1859 = vmatpush2.bf16.msra.mxu0 0
  %1860 = vmatprep.subr.bf16.mxu0 0
  %1861 = vmatpush2.bf16.msra.mxu0 0
  %1862 = vmatprep.subr.bf16.mxu0 0
  %1863 = vmatpush2.bf16.msra.mxu0 0
  %1864 = vmatprep.subr.bf16.mxu0 0
  %1865 = vmatpush2.bf16.msra.mxu0 0
  %1866 = vmatprep.subr.bf16.mxu0 0
  %1867 = vmatpush2.bf16.msra.mxu0 0
  %1868 = vmatprep.subr.bf16.mxu0 0
  %1869 = vmatpush2.bf16.msra.mxu0 0
  %1870 = vmatprep.subr.bf16.mxu0 0
  %1871 = vmatpush2.bf16.msra.mxu0 0
  %1872 = vmatprep.mubr.bf16.mxu0 0
  %1873 = vmatmul.mubr.bf16.gmra.mxu0 %v1778
  %v1874 = vpop.f32.mrf.mxu0
  %v1875 = vadd.f32 0.0, %v1874
  %v1876 = vpop.f32.mrf.mxu0
  %v1877 = vpop.f32.mrf.mxu0
  %v1878 = vadd.f32 0.0, %v1877
  %v1879 = vpop.f32.mrf.mxu0
  %1880 = vmatprep.mubr.bf16.mxu0 0
  %1881 = vmatmul.mubr.bf16.gmra.mxu0 %v1781
  %v1882 = vpop.f32.mrf.mxu0
  %v1883 = vadd.f32 0.0, %v1882
  %v1884 = vpop.f32.mrf.mxu0
  %v1885 = vpop.f32.mrf.mxu0
  %v1886 = vadd.f32 0.0, %v1885
  %v1887 = vpop.f32.mrf.mxu0
  %1888 = vmatprep.mubr.bf16.mxu0 0
  %1889 = vmatmul.mubr.bf16.gmra.mxu0 %v1784
  %v1890 = vpop.f32.mrf.mxu0
  %v1891 = vadd.f32 0.0, %v1890
  %v1892 = vpop.f32.mrf.mxu0
  %v1893 = vpop.f32.mrf.mxu0
  %v1894 = vadd.f32 0.0, %v1893
  %v1895 = vpop.f32.mrf.mxu0
  %1896 = vmatprep.mubr.bf16.mxu0 0
  %1897 = vmatmul.mubr.bf16.gmra.mxu0 %v1787
  %v1898 = vpop.f32.mrf.mxu0
  %v1899 = vadd.f32 0.0, %v1898
  %v1900 = vpop.f32.mrf.mxu0
  %v1901 = vpop.f32.mrf.mxu0
  %v1902 = vadd.f32 0.0, %v1901
  %v1903 = vpop.f32.mrf.mxu0
  %1904 = vmatprep.mubr.bf16.mxu0 0
  %1905 = vmatmul.mubr.bf16.gmra.mxu0 %v1790
  %v1906 = vpop.f32.mrf.mxu0
  %v1907 = vadd.f32 0.0, %v1906
  %v1908 = vpop.f32.mrf.mxu0
  %v1909 = vpop.f32.mrf.mxu0
  %v1910 = vadd.f32 0.0, %v1909
  %v1911 = vpop.f32.mrf.mxu0
  %1912 = vmatprep.mubr.bf16.mxu0 0
  %1913 = vmatmul.mubr.bf16.gmra.mxu0 %v1793
  %v1914 = vpop.f32.mrf.mxu0
  %v1915 = vadd.f32 0.0, %v1914
  %v1916 = vpop.f32.mrf.mxu0
  %v1917 = vpop.f32.mrf.mxu0
  %v1918 = vadd.f32 0.0, %v1917
  %v1919 = vpop.f32.mrf.mxu0
  %1920 = vmatprep.mubr.bf16.mxu0 0
  %1921 = vmatmul.mubr.bf16.gmra.mxu0 %v1796
  %v1922 = vpop.f32.mrf.mxu0
  %v1923 = vadd.f32 0.0, %v1922
  %v1924 = vpop.f32.mrf.mxu0
  %v1925 = vpop.f32.mrf.mxu0
  %v1926 = vadd.f32 0.0, %v1925
  %v1927 = vpop.f32.mrf.mxu0
  %1928 = vmatprep.mubr.bf16.mxu0 0
  %1929 = vmatmul.mubr.bf16.gmra.mxu0 %v1799
  %v1930 = vpop.f32.mrf.mxu0
  %v1931 = vadd.f32 0.0, %v1930
  %v1932 = vpop.f32.mrf.mxu0
  %v1933 = vpop.f32.mrf.mxu0
  %v1934 = vadd.f32 0.0, %v1933
  %v1935 = vpop.f32.mrf.mxu0
  %1936 = vmatprep.mubr.bf16.mxu0 0
  %1937 = vmatmul.mubr.bf16.gmra.mxu0 %v1802
  %v1938 = vpop.f32.mrf.mxu0
  %v1939 = vadd.f32 0.0, %v1938
  %v1940 = vpop.f32.mrf.mxu0
  %v1941 = vpop.f32.mrf.mxu0
  %v1942 = vadd.f32 0.0, %v1941
  %v1943 = vpop.f32.mrf.mxu0
  %1944 = vmatprep.mubr.bf16.mxu0 0
  %1945 = vmatmul.mubr.bf16.gmra.mxu0 %v1805
  %v1946 = vpop.f32.mrf.mxu0
  %v1947 = vadd.f32 0.0, %v1946
  %v1948 = vpop.f32.mrf.mxu0
  %v1949 = vpop.f32.mrf.mxu0
  %v1950 = vadd.f32 0.0, %v1949
  %v1951 = vpop.f32.mrf.mxu0
  %1952 = vmatprep.mubr.bf16.mxu0 0
  %1953 = vmatmul.mubr.bf16.gmra.mxu0 %v1808
  %v1954 = vpop.f32.mrf.mxu0
  %v1955 = vadd.f32 0.0, %v1954
  %v1956 = vpop.f32.mrf.mxu0
  %v1957 = vpop.f32.mrf.mxu0
  %v1958 = vadd.f32 0.0, %v1957
  %v1959 = vpop.f32.mrf.mxu0
  %1960 = vmatprep.mubr.bf16.mxu0 0
  %1961 = vmatmul.mubr.bf16.gmra.mxu0 %v1811
  %v1962 = vpop.f32.mrf.mxu0
  %v1963 = vadd.f32 0.0, %v1962
  %v1964 = vpop.f32.mrf.mxu0
  %v1965 = vpop.f32.mrf.mxu0
  %v1966 = vadd.f32 0.0, %v1965
  %v1967 = vpop.f32.mrf.mxu0
  %1968 = vmatprep.mubr.bf16.mxu0 0
  %1969 = vmatmul.mubr.bf16.gmra.mxu0 %v1814
  %v1970 = vpop.f32.mrf.mxu0
  %v1971 = vadd.f32 0.0, %v1970
  %v1972 = vpop.f32.mrf.mxu0
  %v1973 = vpop.f32.mrf.mxu0
  %v1974 = vadd.f32 0.0, %v1973
  %v1975 = vpop.f32.mrf.mxu0
  %1976 = vmatprep.mubr.bf16.mxu0 0
  %1977 = vmatmul.mubr.bf16.gmra.mxu0 %v1817
  %v1978 = vpop.f32.mrf.mxu0
  %v1979 = vadd.f32 0.0, %v1978
  %v1980 = vpop.f32.mrf.mxu0
  %v1981 = vpop.f32.mrf.mxu0
  %v1982 = vadd.f32 0.0, %v1981
  %v1983 = vpop.f32.mrf.mxu0
  %1984 = vmatprep.mubr.bf16.mxu0 0
  %1985 = vmatmul.mubr.bf16.gmra.mxu0 %v1820
  %v1986 = vpop.f32.mrf.mxu0
  %v1987 = vadd.f32 0.0, %v1986
  %v1988 = vpop.f32.mrf.mxu0
  %v1989 = vpop.f32.mrf.mxu0
  %v1990 = vadd.f32 0.0, %v1989
  %v1991 = vpop.f32.mrf.mxu0
  %1992 = vmatprep.mubr.bf16.mxu0 0
  %1993 = vmatmul.mubr.bf16.gmra.mxu0 %v1823
  %v1994 = vpop.f32.mrf.mxu0
  %v1995 = vadd.f32 0.0, %v1994
  %v1996 = vpop.f32.mrf.mxu0
  %v1997 = vpop.f32.mrf.mxu0
  %v1998 = vadd.f32 0.0, %v1997
  %v1999 = vpop.f32.mrf.mxu0
  %2000 = vmatprep.mubr.bf16.mxu0 0
  %2001 = vmatmul.mubr.bf16.gmra.mxu0 %v1826
  %v2002 = vpop.f32.mrf.mxu0
  %v2003 = vadd.f32 0.0, %v2002
  %v2004 = vpop.f32.mrf.mxu0
  %v2005 = vpop.f32.mrf.mxu0
  %v2006 = vadd.f32 0.0, %v2005
  %v2007 = vpop.f32.mrf.mxu0
  %2008 = vmatprep.mubr.bf16.mxu0 0
  %2009 = vmatmul.mubr.bf16.gmra.mxu0 %v1829
  %v2010 = vpop.f32.mrf.mxu0
  %v2011 = vadd.f32 0.0, %v2010
  %v2012 = vpop.f32.mrf.mxu0
  %v2013 = vpop.f32.mrf.mxu0
  %v2014 = vadd.f32 0.0, %v2013
  %v2015 = vpop.f32.mrf.mxu0
  %2016 = vmatprep.mubr.bf16.mxu0 0
  %2017 = vmatmul.mubr.bf16.gmra.mxu0 %v1832
  %v2018 = vpop.f32.mrf.mxu0
  %v2019 = vadd.f32 0.0, %v2018
  %v2020 = vpop.f32.mrf.mxu0
  %v2021 = vpop.f32.mrf.mxu0
  %v2022 = vadd.f32 0.0, %v2021
  %v2023 = vpop.f32.mrf.mxu0
  %2024 = vmatprep.mubr.bf16.mxu0 0
  %2025 = vmatmul.mubr.bf16.gmra.mxu0 %v1835
  %v2026 = vpop.f32.mrf.mxu0
  %v2027 = vadd.f32 0.0, %v2026
  %v2028 = vpop.f32.mrf.mxu0
  %v2029 = vpop.f32.mrf.mxu0
  %v2030 = vadd.f32 0.0, %v2029
  %v2031 = vpop.f32.mrf.mxu0
  %2032 = vmatprep.mubr.bf16.mxu0 0
  %2033 = vmatmul.mubr.bf16.gmra.mxu0 %v1838
  %v2034 = vpop.f32.mrf.mxu0
  %v2035 = vadd.f32 0.0, %v2034
  %v2036 = vpop.f32.mrf.mxu0
  %v2037 = vpop.f32.mrf.mxu0
  %v2038 = vpop.f32.mrf.mxu0
  %2039 = vdwg.mxu0
  %v2040 = vadd.f32 %v1554, %v1875
  %v2041 = vadd.f32 %v1557, %v1878
  %v2042 = vadd.f32 %v1562, %v1883
  %v2043 = vadd.f32 %v1565, %v1886
  %v2044 = vadd.f32 %v1570, %v1891
  %v2045 = vadd.f32 %v1573, %v1894
  %v2046 = vadd.f32 %v1578, %v1899
  %v2047 = vadd.f32 %v1581, %v1902
  %v2048 = vadd.f32 %v1586, %v1907
  %v2049 = vadd.f32 %v1589, %v1910
  %v2050 = vadd.f32 %v1594, %v1915
  %v2051 = vadd.f32 %v1597, %v1918
  %v2052 = vadd.f32 %v1602, %v1923
  %v2053 = vadd.f32 %v1605, %v1926
  %v2054 = vadd.f32 %v1610, %v1931
  %v2055 = vadd.f32 %v1613, %v1934
  %v2056 = vadd.f32 %v1618, %v1939
  %v2057 = vadd.f32 %v1621, %v1942
  %v2058 = vadd.f32 %v1626, %v1947
  %v2059 = vadd.f32 %v1629, %v1950
  %v2060 = vadd.f32 %v1634, %v1955
  %v2061 = vadd.f32 %v1637, %v1958
  %v2062 = vadd.f32 %v1642, %v1963
  %v2063 = vadd.f32 %v1645, %v1966
  %v2064 = vadd.f32 %v1650, %v1971
  %v2065 = vadd.f32 %v1653, %v1974
  %v2066 = vadd.f32 %v1658, %v1979
  %v2067 = vadd.f32 %v1661, %v1982
  %v2068 = vadd.f32 %v1666, %v1987
  %v2069 = vadd.f32 %v1669, %v1990
  %v2070 = vadd.f32 %v1674, %v1995
  %v2071 = vadd.f32 %v1677, %v1998
  %v2072 = vadd.f32 %v1682, %v2003
  %v2073 = vadd.f32 %v1685, %v2006
  %v2074 = vadd.f32 %v1690, %v2011
  %v2075 = vadd.f32 %v1693, %v2014
  %v2076 = vadd.f32 %v1698, %v2019
  %v2077 = vadd.f32 %v1701, %v2022
  %v2078 = vadd.f32 %v1706, %v2027
  %v2079 = vadd.f32 %v1709, %v2030
  %v2080 = vadd.f32 %v1714, %v2035
  %v2081 = vld [vmem:[#allocation2 + $0xf] sm:$0xff]
  %v2082 = vld [vmem:[#allocation2 + $0x17] sm:$0xff]
  %v2083 = vld [vmem:[#allocation2 + $0x1f] sm:$0xff]
  %v2084 = vld [vmem:[#allocation2 + $0x27] sm:$0xff]
  %v2085 = vld [vmem:[#allocation2 + $0x2f] sm:$0xff]
  %v2086 = vld [vmem:[#allocation2 + $0x37] sm:$0xff]
  %v2087 = vld [vmem:[#allocation2 + $0x3f] sm:$0xff]
  %v2088 = vld [vmem:[#allocation2 + $0x47] sm:$0xff]
  %v2089 = vld [vmem:[#allocation2 + $0x4f] sm:$0xff]
  %v2090 = vld [vmem:[#allocation2 + $0x57] sm:$0xff]
  %v2091 = vld [vmem:[#allocation2 + $0x5f] sm:$0xff]
  %v2092 = vld [vmem:[#allocation2 + $0x67] sm:$0xff]
  %v2093 = vld [vmem:[#allocation2 + $0x6f] sm:$0xff]
  %v2094 = vld [vmem:[#allocation2 + $0x77] sm:$0xff]
  %v2095 = vld [vmem:[#allocation2 + $0x7f] sm:$0xff]
  %v2096 = vld [vmem:[#allocation2 + $0x87] sm:$0xff]
  %v2097 = vld [vmem:[#allocation2 + $0x8f] sm:$0xff]
  %v2098 = vld [vmem:[#allocation2 + $0x97] sm:$0xff]
  %v2099 = vld [vmem:[#allocation2 + $0x9f] sm:$0xff]
  %v2100 = vld [vmem:[#allocation2 + $0xa7] sm:$0xff]
  %v2101 = vld [vmem:[#allocation2 + $0xaf] sm:$0xff]
  %v2102 = vld [vmem:[#allocation2 + $0xb7] sm:$0xff]
  %v2103 = vld [vmem:[#allocation2 + $0xbf] sm:$0xff]
  %v2104 = vld [vmem:[#allocation2 + $0xc7] sm:$0xff]
  %v2105 = vld [vmem:[#allocation2 + $0xcf] sm:$0xff]
  %v2106 = vld [vmem:[#allocation2 + $0xd7] sm:$0xff]
  %v2107 = vld [vmem:[#allocation2 + $0xdf] sm:$0xff]
  %v2108 = vld [vmem:[#allocation2 + $0xe7] sm:$0xff]
  %v2109 = vld [vmem:[#allocation2 + $0xef] sm:$0xff]
  %v2110 = vld [vmem:[#allocation2 + $0xf7] sm:$0xff]
  %v2111 = vld [vmem:[#allocation2 + $0xff] sm:$0xff]
  %v2112 = vld [vmem:[#allocation2 + $0x107] sm:$0xff]
  %v2113 = vld [vmem:[#allocation2 + $0x10f] sm:$0xff]
  %v2114 = vld [vmem:[#allocation2 + $0x117] sm:$0xff]
  %v2115 = vld [vmem:[#allocation2 + $0x11f] sm:$0xff]
  %v2116 = vld [vmem:[#allocation2 + $0x127] sm:$0xff]
  %v2117 = vld [vmem:[#allocation2 + $0x12f] sm:$0xff]
  %v2118 = vld [vmem:[#allocation2 + $0x137] sm:$0xff]
  %v2119 = vld [vmem:[#allocation2 + $0x13f] sm:$0xff]
  %v2120 = vld [vmem:[#allocation2 + $0x147] sm:$0xff]
  %v2121 = vld [vmem:[#allocation2 + $0x14f] sm:$0xf]
  %v2122 = vpack.c.bf16 %v2082, %v2081
  %v2123 = vpack.c.bf16 %v2084, %v2083
  %v2124 = vpack.c.bf16 %v2086, %v2085
  %v2125 = vpack.c.bf16 %v2088, %v2087
  %v2126 = vpack.c.bf16 %v2090, %v2089
  %v2127 = vpack.c.bf16 %v2092, %v2091
  %v2128 = vpack.c.bf16 %v2094, %v2093
  %v2129 = vpack.c.bf16 %v2096, %v2095
  %v2130 = vpack.c.bf16 %v2098, %v2097
  %v2131 = vpack.c.bf16 %v2100, %v2099
  %v2132 = vpack.c.bf16 %v2102, %v2101
  %v2133 = vpack.c.bf16 %v2104, %v2103
  %v2134 = vpack.c.bf16 %v2106, %v2105
  %v2135 = vpack.c.bf16 %v2108, %v2107
  %v2136 = vpack.c.bf16 %v2110, %v2109
  %v2137 = vpack.c.bf16 %v2112, %v2111
  %v2138 = vpack.c.bf16 %v2114, %v2113
  %v2139 = vpack.c.bf16 %v2116, %v2115
  %v2140 = vpack.c.bf16 %v2118, %v2117
  %v2141 = vpack.c.bf16 %v2120, %v2119
  %v2142 = vpack.c.bf16 %v2121, %v2121
  %v2143 = vld [vmem:[%s5 + $0x30] sm:$0xf]
  %v2144 = vld [vmem:[%s5 + $0x34] sm:$0xf]
  %v2145 = vld [vmem:[%s5 + $0x38] sm:$0xf]
  %v2146 = vld [vmem:[%s5 + $0x3c] sm:$0xf]
  %2168 = vrot.lane.b32.xlu0 %v2122, 64
  %v2169 = vpop.permute.xlu0 %2168
  %2170 = vrot.lane.b32.xlu0 %v2123, 64
  %v2171 = vpop.permute.xlu0 %2170
  %2172 = vrot.lane.b32.xlu0 %v2124, 64
  %v2173 = vpop.permute.xlu0 %2172
  %2174 = vrot.lane.b32.xlu0 %v2125, 64
  %v2175 = vpop.permute.xlu0 %2174
  %2176 = vrot.lane.b32.xlu0 %v2126, 64
  %v2177 = vpop.permute.xlu0 %2176
  %2178 = vrot.lane.b32.xlu0 %v2127, 64
  %v2179 = vpop.permute.xlu0 %2178
  %2180 = vrot.lane.b32.xlu0 %v2128, 64
  %v2181 = vpop.permute.xlu0 %2180
  %2182 = vrot.lane.b32.xlu0 %v2129, 64
  %v2183 = vpop.permute.xlu0 %2182
  %2184 = vrot.lane.b32.xlu0 %v2130, 64
  %v2185 = vpop.permute.xlu0 %2184
  %2186 = vrot.lane.b32.xlu0 %v2131, 64
  %v2187 = vpop.permute.xlu0 %2186
  %2188 = vrot.lane.b32.xlu0 %v2132, 64
  %v2189 = vpop.permute.xlu0 %2188
  %2190 = vrot.lane.b32.xlu0 %v2133, 64
  %v2191 = vpop.permute.xlu0 %2190
  %2192 = vrot.lane.b32.xlu0 %v2134, 64
  %v2193 = vpop.permute.xlu0 %2192
  %2194 = vrot.lane.b32.xlu0 %v2135, 64
  %v2195 = vpop.permute.xlu0 %2194
  %2196 = vrot.lane.b32.xlu0 %v2136, 64
  %v2197 = vpop.permute.xlu0 %2196
  %2198 = vrot.lane.b32.xlu0 %v2137, 64
  %v2199 = vpop.permute.xlu0 %2198
  %2200 = vrot.lane.b32.xlu0 %v2138, 64
  %v2201 = vpop.permute.xlu0 %2200
  %2202 = vrot.lane.b32.xlu0 %v2139, 64
  %v2203 = vpop.permute.xlu0 %2202
  %2204 = vrot.lane.b32.xlu0 %v2140, 64
  %v2205 = vpop.permute.xlu0 %2204
  %2206 = vrot.lane.b32.xlu0 %v2141, 64
  %v2207 = vpop.permute.xlu0 %2206
  %2208 = vrot.lane.b32.xlu0 %v2142, 64
  %v2209 = vpop.permute.xlu0 %2208
  %v2214 = vunpack.c.l.b16 %v2143
  %v2215 = vunpack.c.l.b16 %v2144
  %v2216 = vunpack.c.l.b16 %v2145
  %v2217 = vunpack.c.l.b16 %v2146
  %v2218 = vpack.c.b16 %v2215, %v2214
  %v2219 = vpack.c.b16 %v2217, %v2216
  %v2223 = vsel %vm1117, %v2169, 0
  %v2226 = vsel %vm1117, %v2171, 0
  %v2229 = vsel %vm1117, %v2173, 0
  %v2232 = vsel %vm1117, %v2175, 0
  %v2235 = vsel %vm1117, %v2177, 0
  %v2238 = vsel %vm1117, %v2179, 0
  %v2241 = vsel %vm1117, %v2181, 0
  %v2244 = vsel %vm1117, %v2183, 0
  %v2247 = vsel %vm1117, %v2185, 0
  %v2250 = vsel %vm1117, %v2187, 0
  %v2253 = vsel %vm1117, %v2189, 0
  %v2256 = vsel %vm1117, %v2191, 0
  %v2259 = vsel %vm1117, %v2193, 0
  %v2262 = vsel %vm1117, %v2195, 0
  %v2265 = vsel %vm1117, %v2197, 0
  %v2268 = vsel %vm1117, %v2199, 0
  %v2271 = vsel %vm1117, %v2201, 0
  %v2274 = vsel %vm1117, %v2203, 0
  %v2277 = vsel %vm1117, %v2205, 0
  %v2280 = vsel %vm1117, %v2207, 0
  %v2283 = vsel %vm1117, %v2209, 0
  %2285 = vmatprep.subr.bf16.mxu0 0
  %2286 = vmatpush1.bf16.msra.mxu0 0
  %2287 = vmatprep.subr.bf16.mxu0 0
  %2288 = vmatpush1.bf16.msra.mxu0 0
  %2289 = vmatprep.subr.bf16.mxu0 0
  %2290 = vmatpush1.bf16.msra.mxu0 0
  %2291 = vmatprep.subr.bf16.mxu0 0
  %2292 = vmatpush1.bf16.msra.mxu0 0
  %2293 = vmatprep.subr.bf16.mxu0 0
  %2294 = vmatpush1.bf16.msra.mxu0 0
  %2295 = vmatprep.subr.bf16.mxu0 0
  %2296 = vmatpush1.bf16.msra.mxu0 0
  %2297 = vmatprep.subr.bf16.mxu0 0
  %2298 = vmatpush1.bf16.msra.mxu0 %v2219
  %2299 = vmatprep.subr.bf16.mxu0 0
  %2300 = vmatpush1.bf16.msra.mxu0 %v2218
  %2301 = vmatprep.subr.bf16.mxu0 0
  %2302 = vmatpush2.bf16.msra.mxu0 0
  %2303 = vmatprep.subr.bf16.mxu0 0
  %2304 = vmatpush2.bf16.msra.mxu0 0
  %2305 = vmatprep.subr.bf16.mxu0 0
  %2306 = vmatpush2.bf16.msra.mxu0 0
  %2307 = vmatprep.subr.bf16.mxu0 0
  %2308 = vmatpush2.bf16.msra.mxu0 0
  %2309 = vmatprep.subr.bf16.mxu0 0
  %2310 = vmatpush2.bf16.msra.mxu0 0
  %2311 = vmatprep.subr.bf16.mxu0 0
  %2312 = vmatpush2.bf16.msra.mxu0 0
  %2313 = vmatprep.subr.bf16.mxu0 0
  %2314 = vmatpush2.bf16.msra.mxu0 0
  %2315 = vmatprep.subr.bf16.mxu0 0
  %2316 = vmatpush2.bf16.msra.mxu0 0
  %2317 = vmatprep.mubr.bf16.mxu0 0
  %2318 = vmatmul.mubr.bf16.gmra.mxu0 %v2223
  %v2319 = vpop.f32.mrf.mxu0
  %v2320 = vadd.f32 0.0, %v2319
  %v2321 = vpop.f32.mrf.mxu0
  %v2322 = vpop.f32.mrf.mxu0
  %v2323 = vadd.f32 0.0, %v2322
  %v2324 = vpop.f32.mrf.mxu0
  %2325 = vmatprep.mubr.bf16.mxu0 0
  %2326 = vmatmul.mubr.bf16.gmra.mxu0 %v2226
  %v2327 = vpop.f32.mrf.mxu0
  %v2328 = vadd.f32 0.0, %v2327
  %v2329 = vpop.f32.mrf.mxu0
  %v2330 = vpop.f32.mrf.mxu0
  %v2331 = vadd.f32 0.0, %v2330
  %v2332 = vpop.f32.mrf.mxu0
  %2333 = vmatprep.mubr.bf16.mxu0 0
  %2334 = vmatmul.mubr.bf16.gmra.mxu0 %v2229
  %v2335 = vpop.f32.mrf.mxu0
  %v2336 = vadd.f32 0.0, %v2335
  %v2337 = vpop.f32.mrf.mxu0
  %v2338 = vpop.f32.mrf.mxu0
  %v2339 = vadd.f32 0.0, %v2338
  %v2340 = vpop.f32.mrf.mxu0
  %2341 = vmatprep.mubr.bf16.mxu0 0
  %2342 = vmatmul.mubr.bf16.gmra.mxu0 %v2232
  %v2343 = vpop.f32.mrf.mxu0
  %v2344 = vadd.f32 0.0, %v2343
  %v2345 = vpop.f32.mrf.mxu0
  %v2346 = vpop.f32.mrf.mxu0
  %v2347 = vadd.f32 0.0, %v2346
  %v2348 = vpop.f32.mrf.mxu0
  %2349 = vmatprep.mubr.bf16.mxu0 0
  %2350 = vmatmul.mubr.bf16.gmra.mxu0 %v2235
  %v2351 = vpop.f32.mrf.mxu0
  %v2352 = vadd.f32 0.0, %v2351
  %v2353 = vpop.f32.mrf.mxu0
  %v2354 = vpop.f32.mrf.mxu0
  %v2355 = vadd.f32 0.0, %v2354
  %v2356 = vpop.f32.mrf.mxu0
  %2357 = vmatprep.mubr.bf16.mxu0 0
  %2358 = vmatmul.mubr.bf16.gmra.mxu0 %v2238
  %v2359 = vpop.f32.mrf.mxu0
  %v2360 = vadd.f32 0.0, %v2359
  %v2361 = vpop.f32.mrf.mxu0
  %v2362 = vpop.f32.mrf.mxu0
  %v2363 = vadd.f32 0.0, %v2362
  %v2364 = vpop.f32.mrf.mxu0
  %2365 = vmatprep.mubr.bf16.mxu0 0
  %2366 = vmatmul.mubr.bf16.gmra.mxu0 %v2241
  %v2367 = vpop.f32.mrf.mxu0
  %v2368 = vadd.f32 0.0, %v2367
  %v2369 = vpop.f32.mrf.mxu0
  %v2370 = vpop.f32.mrf.mxu0
  %v2371 = vadd.f32 0.0, %v2370
  %v2372 = vpop.f32.mrf.mxu0
  %2373 = vmatprep.mubr.bf16.mxu0 0
  %2374 = vmatmul.mubr.bf16.gmra.mxu0 %v2244
  %v2375 = vpop.f32.mrf.mxu0
  %v2376 = vadd.f32 0.0, %v2375
  %v2377 = vpop.f32.mrf.mxu0
  %v2378 = vpop.f32.mrf.mxu0
  %v2379 = vadd.f32 0.0, %v2378
  %v2380 = vpop.f32.mrf.mxu0
  %2381 = vmatprep.mubr.bf16.mxu0 0
  %2382 = vmatmul.mubr.bf16.gmra.mxu0 %v2247
  %v2383 = vpop.f32.mrf.mxu0
  %v2384 = vadd.f32 0.0, %v2383
  %v2385 = vpop.f32.mrf.mxu0
  %v2386 = vpop.f32.mrf.mxu0
  %v2387 = vadd.f32 0.0, %v2386
  %v2388 = vpop.f32.mrf.mxu0
  %2389 = vmatprep.mubr.bf16.mxu0 0
  %2390 = vmatmul.mubr.bf16.gmra.mxu0 %v2250
  %v2391 = vpop.f32.mrf.mxu0
  %v2392 = vadd.f32 0.0, %v2391
  %v2393 = vpop.f32.mrf.mxu0
  %v2394 = vpop.f32.mrf.mxu0
  %v2395 = vadd.f32 0.0, %v2394
  %v2396 = vpop.f32.mrf.mxu0
  %2397 = vmatprep.mubr.bf16.mxu0 0
  %2398 = vmatmul.mubr.bf16.gmra.mxu0 %v2253
  %v2399 = vpop.f32.mrf.mxu0
  %v2400 = vadd.f32 0.0, %v2399
  %v2401 = vpop.f32.mrf.mxu0
  %v2402 = vpop.f32.mrf.mxu0
  %v2403 = vadd.f32 0.0, %v2402
  %v2404 = vpop.f32.mrf.mxu0
  %2405 = vmatprep.mubr.bf16.mxu0 0
  %2406 = vmatmul.mubr.bf16.gmra.mxu0 %v2256
  %v2407 = vpop.f32.mrf.mxu0
  %v2408 = vadd.f32 0.0, %v2407
  %v2409 = vpop.f32.mrf.mxu0
  %v2410 = vpop.f32.mrf.mxu0
  %v2411 = vadd.f32 0.0, %v2410
  %v2412 = vpop.f32.mrf.mxu0
  %2413 = vmatprep.mubr.bf16.mxu0 0
  %2414 = vmatmul.mubr.bf16.gmra.mxu0 %v2259
  %v2415 = vpop.f32.mrf.mxu0
  %v2416 = vadd.f32 0.0, %v2415
  %v2417 = vpop.f32.mrf.mxu0
  %v2418 = vpop.f32.mrf.mxu0
  %v2419 = vadd.f32 0.0, %v2418
  %v2420 = vpop.f32.mrf.mxu0
  %2421 = vmatprep.mubr.bf16.mxu0 0
  %2422 = vmatmul.mubr.bf16.gmra.mxu0 %v2262
  %v2423 = vpop.f32.mrf.mxu0
  %v2424 = vadd.f32 0.0, %v2423
  %v2425 = vpop.f32.mrf.mxu0
  %v2426 = vpop.f32.mrf.mxu0
  %v2427 = vadd.f32 0.0, %v2426
  %v2428 = vpop.f32.mrf.mxu0
  %2429 = vmatprep.mubr.bf16.mxu0 0
  %2430 = vmatmul.mubr.bf16.gmra.mxu0 %v2265
  %v2431 = vpop.f32.mrf.mxu0
  %v2432 = vadd.f32 0.0, %v2431
  %v2433 = vpop.f32.mrf.mxu0
  %v2434 = vpop.f32.mrf.mxu0
  %v2435 = vadd.f32 0.0, %v2434
  %v2436 = vpop.f32.mrf.mxu0
  %2437 = vmatprep.mubr.bf16.mxu0 0
  %2438 = vmatmul.mubr.bf16.gmra.mxu0 %v2268
  %v2439 = vpop.f32.mrf.mxu0
  %v2440 = vadd.f32 0.0, %v2439
  %v2441 = vpop.f32.mrf.mxu0
  %v2442 = vpop.f32.mrf.mxu0
  %v2443 = vadd.f32 0.0, %v2442
  %v2444 = vpop.f32.mrf.mxu0
  %2445 = vmatprep.mubr.bf16.mxu0 0
  %2446 = vmatmul.mubr.bf16.gmra.mxu0 %v2271
  %v2447 = vpop.f32.mrf.mxu0
  %v2448 = vadd.f32 0.0, %v2447
  %v2449 = vpop.f32.mrf.mxu0
  %v2450 = vpop.f32.mrf.mxu0
  %v2451 = vadd.f32 0.0, %v2450
  %v2452 = vpop.f32.mrf.mxu0
  %2453 = vmatprep.mubr.bf16.mxu0 0
  %2454 = vmatmul.mubr.bf16.gmra.mxu0 %v2274
  %v2455 = vpop.f32.mrf.mxu0
  %v2456 = vadd.f32 0.0, %v2455
  %v2457 = vpop.f32.mrf.mxu0
  %v2458 = vpop.f32.mrf.mxu0
  %v2459 = vadd.f32 0.0, %v2458
  %v2460 = vpop.f32.mrf.mxu0
  %2461 = vmatprep.mubr.bf16.mxu0 0
  %2462 = vmatmul.mubr.bf16.gmra.mxu0 %v2277
  %v2463 = vpop.f32.mrf.mxu0
  %v2464 = vadd.f32 0.0, %v2463
  %v2465 = vpop.f32.mrf.mxu0
  %v2466 = vpop.f32.mrf.mxu0
  %v2467 = vadd.f32 0.0, %v2466
  %v2468 = vpop.f32.mrf.mxu0
  %2469 = vmatprep.mubr.bf16.mxu0 0
  %2470 = vmatmul.mubr.bf16.gmra.mxu0 %v2280
  %v2471 = vpop.f32.mrf.mxu0
  %v2472 = vadd.f32 0.0, %v2471
  %v2473 = vpop.f32.mrf.mxu0
  %v2474 = vpop.f32.mrf.mxu0
  %v2475 = vadd.f32 0.0, %v2474
  %v2476 = vpop.f32.mrf.mxu0
  %2477 = vmatprep.mubr.bf16.mxu0 0
  %2478 = vmatmul.mubr.bf16.gmra.mxu0 %v2283
  %v2479 = vpop.f32.mrf.mxu0
  %v2480 = vadd.f32 0.0, %v2479
  %v2481 = vpop.f32.mrf.mxu0
  %v2482 = vpop.f32.mrf.mxu0
  %v2483 = vpop.f32.mrf.mxu0
  %2484 = vdwg.mxu0
  %v2485 = vadd.f32 %v2040, %v2320
  %v2486 = vadd.f32 %v2041, %v2323
  %v2487 = vadd.f32 %v2042, %v2328
  %v2488 = vadd.f32 %v2043, %v2331
  %v2489 = vadd.f32 %v2044, %v2336
  %v2490 = vadd.f32 %v2045, %v2339
  %v2491 = vadd.f32 %v2046, %v2344
  %v2492 = vadd.f32 %v2047, %v2347
  %v2493 = vadd.f32 %v2048, %v2352
  %v2494 = vadd.f32 %v2049, %v2355
  %v2495 = vadd.f32 %v2050, %v2360
  %v2496 = vadd.f32 %v2051, %v2363
  %v2497 = vadd.f32 %v2052, %v2368
  %v2498 = vadd.f32 %v2053, %v2371
  %v2499 = vadd.f32 %v2054, %v2376
  %v2500 = vadd.f32 %v2055, %v2379
  %v2501 = vadd.f32 %v2056, %v2384
  %v2502 = vadd.f32 %v2057, %v2387
  %v2503 = vadd.f32 %v2058, %v2392
  %v2504 = vadd.f32 %v2059, %v2395
  %v2505 = vadd.f32 %v2060, %v2400
  %v2506 = vadd.f32 %v2061, %v2403
  %v2507 = vadd.f32 %v2062, %v2408
  %v2508 = vadd.f32 %v2063, %v2411
  %v2509 = vadd.f32 %v2064, %v2416
  %v2510 = vadd.f32 %v2065, %v2419
  %v2511 = vadd.f32 %v2066, %v2424
  %v2512 = vadd.f32 %v2067, %v2427
  %v2513 = vadd.f32 %v2068, %v2432
  %v2514 = vadd.f32 %v2069, %v2435
  %v2515 = vadd.f32 %v2070, %v2440
  %v2516 = vadd.f32 %v2071, %v2443
  %v2517 = vadd.f32 %v2072, %v2448
  %v2518 = vadd.f32 %v2073, %v2451
  %v2519 = vadd.f32 %v2074, %v2456
  %v2520 = vadd.f32 %v2075, %v2459
  %v2521 = vadd.f32 %v2076, %v2464
  %v2522 = vadd.f32 %v2077, %v2467
  %v2523 = vadd.f32 %v2078, %v2472
  %v2524 = vadd.f32 %v2079, %v2475
  %v2525 = vadd.f32 %v2080, %v2480
  %v2526 = vld [vmem:[#allocation2 + $0x1f] sm:$0xff]
  %v2527 = vld [vmem:[#allocation2 + $0x27] sm:$0xff]
  %v2528 = vld [vmem:[#allocation2 + $0x2f] sm:$0xff]
  %v2529 = vld [vmem:[#allocation2 + $0x37] sm:$0xff]
  %v2530 = vld [vmem:[#allocation2 + $0x3f] sm:$0xff]
  %v2531 = vld [vmem:[#allocation2 + $0x47] sm:$0xff]
  %v2532 = vld [vmem:[#allocation2 + $0x4f] sm:$0xff]
  %v2533 = vld [vmem:[#allocation2 + $0x57] sm:$0xff]
  %v2534 = vld [vmem:[#allocation2 + $0x5f] sm:$0xff]
  %v2535 = vld [vmem:[#allocation2 + $0x67] sm:$0xff]
  %v2536 = vld [vmem:[#allocation2 + $0x6f] sm:$0xff]
  %v2537 = vld [vmem:[#allocation2 + $0x77] sm:$0xff]
  %v2538 = vld [vmem:[#allocation2 + $0x7f] sm:$0xff]
  %v2539 = vld [vmem:[#allocation2 + $0x87] sm:$0xff]
  %v2540 = vld [vmem:[#allocation2 + $0x8f] sm:$0xff]
  %v2541 = vld [vmem:[#allocation2 + $0x97] sm:$0xff]
  %v2542 = vld [vmem:[#allocation2 + $0x9f] sm:$0xff]
  %v2543 = vld [vmem:[#allocation2 + $0xa7] sm:$0xff]
  %v2544 = vld [vmem:[#allocation2 + $0xaf] sm:$0xff]
  %v2545 = vld [vmem:[#allocation2 + $0xb7] sm:$0xff]
  %v2546 = vld [vmem:[#allocation2 + $0xbf] sm:$0xff]
  %v2547 = vld [vmem:[#allocation2 + $0xc7] sm:$0xff]
  %v2548 = vld [vmem:[#allocation2 + $0xcf] sm:$0xff]
  %v2549 = vld [vmem:[#allocation2 + $0xd7] sm:$0xff]
  %v2550 = vld [vmem:[#allocation2 + $0xdf] sm:$0xff]
  %v2551 = vld [vmem:[#allocation2 + $0xe7] sm:$0xff]
  %v2552 = vld [vmem:[#allocation2 + $0xef] sm:$0xff]
  %v2553 = vld [vmem:[#allocation2 + $0xf7] sm:$0xff]
  %v2554 = vld [vmem:[#allocation2 + $0xff] sm:$0xff]
  %v2555 = vld [vmem:[#allocation2 + $0x107] sm:$0xff]
  %v2556 = vld [vmem:[#allocation2 + $0x10f] sm:$0xff]
  %v2557 = vld [vmem:[#allocation2 + $0x117] sm:$0xff]
  %v2558 = vld [vmem:[#allocation2 + $0x11f] sm:$0xff]
  %v2559 = vld [vmem:[#allocation2 + $0x127] sm:$0xff]
  %v2560 = vld [vmem:[#allocation2 + $0x12f] sm:$0xff]
  %v2561 = vld [vmem:[#allocation2 + $0x137] sm:$0xff]
  %v2562 = vld [vmem:[#allocation2 + $0x13f] sm:$0xff]
  %v2563 = vld [vmem:[#allocation2 + $0x147] sm:$0xff]
  %v2564 = vld [vmem:[#allocation2 + $0x14f] sm:$0xff]
  %v2565 = vld [vmem:[#allocation2 + $0x157] sm:$0xff]
  %v2566 = vld [vmem:[#allocation2 + $0x15f] sm:$0xf]
  %v2567 = vpack.c.bf16 %v2527, %v2526
  %v2568 = vpack.c.bf16 %v2529, %v2528
  %v2569 = vpack.c.bf16 %v2531, %v2530
  %v2570 = vpack.c.bf16 %v2533, %v2532
  %v2571 = vpack.c.bf16 %v2535, %v2534
  %v2572 = vpack.c.bf16 %v2537, %v2536
  %v2573 = vpack.c.bf16 %v2539, %v2538
  %v2574 = vpack.c.bf16 %v2541, %v2540
  %v2575 = vpack.c.bf16 %v2543, %v2542
  %v2576 = vpack.c.bf16 %v2545, %v2544
  %v2577 = vpack.c.bf16 %v2547, %v2546
  %v2578 = vpack.c.bf16 %v2549, %v2548
  %v2579 = vpack.c.bf16 %v2551, %v2550
  %v2580 = vpack.c.bf16 %v2553, %v2552
  %v2581 = vpack.c.bf16 %v2555, %v2554
  %v2582 = vpack.c.bf16 %v2557, %v2556
  %v2583 = vpack.c.bf16 %v2559, %v2558
  %v2584 = vpack.c.bf16 %v2561, %v2560
  %v2585 = vpack.c.bf16 %v2563, %v2562
  %v2586 = vpack.c.bf16 %v2565, %v2564
  %v2587 = vpack.c.bf16 %v2566, %v2566
  %v2588 = vld [vmem:[%s5 + $0x40] sm:$0xf]
  %v2589 = vld [vmem:[%s5 + $0x44] sm:$0xf]
  %v2590 = vld [vmem:[%s5 + $0x48] sm:$0xf]
  %v2591 = vld [vmem:[%s5 + $0x4c] sm:$0xf]
  %2613 = vrot.lane.b32.xlu0 %v2567, 96
  %v2614 = vpop.permute.xlu0 %2613
  %2615 = vrot.lane.b32.xlu0 %v2568, 96
  %v2616 = vpop.permute.xlu0 %2615
  %2617 = vrot.lane.b32.xlu0 %v2569, 96
  %v2618 = vpop.permute.xlu0 %2617
  %2619 = vrot.lane.b32.xlu0 %v2570, 96
  %v2620 = vpop.permute.xlu0 %2619
  %2621 = vrot.lane.b32.xlu0 %v2571, 96
  %v2622 = vpop.permute.xlu0 %2621
  %2623 = vrot.lane.b32.xlu0 %v2572, 96
  %v2624 = vpop.permute.xlu0 %2623
  %2625 = vrot.lane.b32.xlu0 %v2573, 96
  %v2626 = vpop.permute.xlu0 %2625
  %2627 = vrot.lane.b32.xlu0 %v2574, 96
  %v2628 = vpop.permute.xlu0 %2627
  %2629 = vrot.lane.b32.xlu0 %v2575, 96
  %v2630 = vpop.permute.xlu0 %2629
  %2631 = vrot.lane.b32.xlu0 %v2576, 96
  %v2632 = vpop.permute.xlu0 %2631
  %2633 = vrot.lane.b32.xlu0 %v2577, 96
  %v2634 = vpop.permute.xlu0 %2633
  %2635 = vrot.lane.b32.xlu0 %v2578, 96
  %v2636 = vpop.permute.xlu0 %2635
  %2637 = vrot.lane.b32.xlu0 %v2579, 96
  %v2638 = vpop.permute.xlu0 %2637
  %2639 = vrot.lane.b32.xlu0 %v2580, 96
  %v2640 = vpop.permute.xlu0 %2639
  %2641 = vrot.lane.b32.xlu0 %v2581, 96
  %v2642 = vpop.permute.xlu0 %2641
  %2643 = vrot.lane.b32.xlu0 %v2582, 96
  %v2644 = vpop.permute.xlu0 %2643
  %2645 = vrot.lane.b32.xlu0 %v2583, 96
  %v2646 = vpop.permute.xlu0 %2645
  %2647 = vrot.lane.b32.xlu0 %v2584, 96
  %v2648 = vpop.permute.xlu0 %2647
  %2649 = vrot.lane.b32.xlu0 %v2585, 96
  %v2650 = vpop.permute.xlu0 %2649
  %2651 = vrot.lane.b32.xlu0 %v2586, 96
  %v2652 = vpop.permute.xlu0 %2651
  %2653 = vrot.lane.b32.xlu0 %v2587, 96
  %v2654 = vpop.permute.xlu0 %2653
  %v2659 = vunpack.c.l.b16 %v2588
  %v2660 = vunpack.c.l.b16 %v2589
  %v2661 = vunpack.c.l.b16 %v2590
  %v2662 = vunpack.c.l.b16 %v2591
  %v2663 = vpack.c.b16 %v2660, %v2659
  %v2664 = vpack.c.b16 %v2662, %v2661
  %v2668 = vsel %vm1117, %v2614, 0
  %v2671 = vsel %vm1117, %v2616, 0
  %v2674 = vsel %vm1117, %v2618, 0
  %v2677 = vsel %vm1117, %v2620, 0
  %v2680 = vsel %vm1117, %v2622, 0
  %v2683 = vsel %vm1117, %v2624, 0
  %v2686 = vsel %vm1117, %v2626, 0
  %v2689 = vsel %vm1117, %v2628, 0
  %v2692 = vsel %vm1117, %v2630, 0
  %v2695 = vsel %vm1117, %v2632, 0
  %v2698 = vsel %vm1117, %v2634, 0
  %v2701 = vsel %vm1117, %v2636, 0
  %v2704 = vsel %vm1117, %v2638, 0
  %v2707 = vsel %vm1117, %v2640, 0
  %v2710 = vsel %vm1117, %v2642, 0
  %v2713 = vsel %vm1117, %v2644, 0
  %v2716 = vsel %vm1117, %v2646, 0
  %v2719 = vsel %vm1117, %v2648, 0
  %v2722 = vsel %vm1117, %v2650, 0
  %v2725 = vsel %vm1117, %v2652, 0
  %v2728 = vsel %vm1117, %v2654, 0
  %2730 = vmatprep.subr.bf16.mxu0 0
  %2731 = vmatpush1.bf16.msra.mxu0 0
  %2732 = vmatprep.subr.bf16.mxu0 0
  %2733 = vmatpush1.bf16.msra.mxu0 0
  %2734 = vmatprep.subr.bf16.mxu0 0
  %2735 = vmatpush1.bf16.msra.mxu0 0
  %2736 = vmatprep.subr.bf16.mxu0 0
  %2737 = vmatpush1.bf16.msra.mxu0 0
  %2738 = vmatprep.subr.bf16.mxu0 0
  %2739 = vmatpush1.bf16.msra.mxu0 0
  %2740 = vmatprep.subr.bf16.mxu0 0
  %2741 = vmatpush1.bf16.msra.mxu0 0
  %2742 = vmatprep.subr.bf16.mxu0 0
  %2743 = vmatpush1.bf16.msra.mxu0 %v2664
  %2744 = vmatprep.subr.bf16.mxu0 0
  %2745 = vmatpush1.bf16.msra.mxu0 %v2663
  %2746 = vmatprep.subr.bf16.mxu0 0
  %2747 = vmatpush2.bf16.msra.mxu0 0
  %2748 = vmatprep.subr.bf16.mxu0 0
  %2749 = vmatpush2.bf16.msra.mxu0 0
  %2750 = vmatprep.subr.bf16.mxu0 0
  %2751 = vmatpush2.bf16.msra.mxu0 0
  %2752 = vmatprep.subr.bf16.mxu0 0
  %2753 = vmatpush2.bf16.msra.mxu0 0
  %2754 = vmatprep.subr.bf16.mxu0 0
  %2755 = vmatpush2.bf16.msra.mxu0 0
  %2756 = vmatprep.subr.bf16.mxu0 0
  %2757 = vmatpush2.bf16.msra.mxu0 0
  %2758 = vmatprep.subr.bf16.mxu0 0
  %2759 = vmatpush2.bf16.msra.mxu0 0
  %2760 = vmatprep.subr.bf16.mxu0 0
  %2761 = vmatpush2.bf16.msra.mxu0 0
  %2762 = vmatprep.mubr.bf16.mxu0 0
  %2763 = vmatmul.mubr.bf16.gmra.mxu0 %v2668
  %v2764 = vpop.f32.mrf.mxu0
  %v2765 = vadd.f32 0.0, %v2764
  %v2766 = vpop.f32.mrf.mxu0
  %v2767 = vpop.f32.mrf.mxu0
  %v2768 = vadd.f32 0.0, %v2767
  %v2769 = vpop.f32.mrf.mxu0
  %2770 = vmatprep.mubr.bf16.mxu0 0
  %2771 = vmatmul.mubr.bf16.gmra.mxu0 %v2671
  %v2772 = vpop.f32.mrf.mxu0
  %v2773 = vadd.f32 0.0, %v2772
  %v2774 = vpop.f32.mrf.mxu0
  %v2775 = vpop.f32.mrf.mxu0
  %v2776 = vadd.f32 0.0, %v2775
  %v2777 = vpop.f32.mrf.mxu0
  %2778 = vmatprep.mubr.bf16.mxu0 0
  %2779 = vmatmul.mubr.bf16.gmra.mxu0 %v2674
  %v2780 = vpop.f32.mrf.mxu0
  %v2781 = vadd.f32 0.0, %v2780
  %v2782 = vpop.f32.mrf.mxu0
  %v2783 = vpop.f32.mrf.mxu0
  %v2784 = vadd.f32 0.0, %v2783
  %v2785 = vpop.f32.mrf.mxu0
  %2786 = vmatprep.mubr.bf16.mxu0 0
  %2787 = vmatmul.mubr.bf16.gmra.mxu0 %v2677
  %v2788 = vpop.f32.mrf.mxu0
  %v2789 = vadd.f32 0.0, %v2788
  %v2790 = vpop.f32.mrf.mxu0
  %v2791 = vpop.f32.mrf.mxu0
  %v2792 = vadd.f32 0.0, %v2791
  %v2793 = vpop.f32.mrf.mxu0
  %2794 = vmatprep.mubr.bf16.mxu0 0
  %2795 = vmatmul.mubr.bf16.gmra.mxu0 %v2680
  %v2796 = vpop.f32.mrf.mxu0
  %v2797 = vadd.f32 0.0, %v2796
  %v2798 = vpop.f32.mrf.mxu0
  %v2799 = vpop.f32.mrf.mxu0
  %v2800 = vadd.f32 0.0, %v2799
  %v2801 = vpop.f32.mrf.mxu0
  %2802 = vmatprep.mubr.bf16.mxu0 0
  %2803 = vmatmul.mubr.bf16.gmra.mxu0 %v2683
  %v2804 = vpop.f32.mrf.mxu0
  %v2805 = vadd.f32 0.0, %v2804
  %v2806 = vpop.f32.mrf.mxu0
  %v2807 = vpop.f32.mrf.mxu0
  %v2808 = vadd.f32 0.0, %v2807
  %v2809 = vpop.f32.mrf.mxu0
  %2810 = vmatprep.mubr.bf16.mxu0 0
  %2811 = vmatmul.mubr.bf16.gmra.mxu0 %v2686
  %v2812 = vpop.f32.mrf.mxu0
  %v2813 = vadd.f32 0.0, %v2812
  %v2814 = vpop.f32.mrf.mxu0
  %v2815 = vpop.f32.mrf.mxu0
  %v2816 = vadd.f32 0.0, %v2815
  %v2817 = vpop.f32.mrf.mxu0
  %2818 = vmatprep.mubr.bf16.mxu0 0
  %2819 = vmatmul.mubr.bf16.gmra.mxu0 %v2689
  %v2820 = vpop.f32.mrf.mxu0
  %v2821 = vadd.f32 0.0, %v2820
  %v2822 = vpop.f32.mrf.mxu0
  %v2823 = vpop.f32.mrf.mxu0
  %v2824 = vadd.f32 0.0, %v2823
  %v2825 = vpop.f32.mrf.mxu0
  %2826 = vmatprep.mubr.bf16.mxu0 0
  %2827 = vmatmul.mubr.bf16.gmra.mxu0 %v2692
  %v2828 = vpop.f32.mrf.mxu0
  %v2829 = vadd.f32 0.0, %v2828
  %v2830 = vpop.f32.mrf.mxu0
  %v2831 = vpop.f32.mrf.mxu0
  %v2832 = vadd.f32 0.0, %v2831
  %v2833 = vpop.f32.mrf.mxu0
  %2834 = vmatprep.mubr.bf16.mxu0 0
  %2835 = vmatmul.mubr.bf16.gmra.mxu0 %v2695
  %v2836 = vpop.f32.mrf.mxu0
  %v2837 = vadd.f32 0.0, %v2836
  %v2838 = vpop.f32.mrf.mxu0
  %v2839 = vpop.f32.mrf.mxu0
  %v2840 = vadd.f32 0.0, %v2839
  %v2841 = vpop.f32.mrf.mxu0
  %2842 = vmatprep.mubr.bf16.mxu0 0
  %2843 = vmatmul.mubr.bf16.gmra.mxu0 %v2698
  %v2844 = vpop.f32.mrf.mxu0
  %v2845 = vadd.f32 0.0, %v2844
  %v2846 = vpop.f32.mrf.mxu0
  %v2847 = vpop.f32.mrf.mxu0
  %v2848 = vadd.f32 0.0, %v2847
  %v2849 = vpop.f32.mrf.mxu0
  %2850 = vmatprep.mubr.bf16.mxu0 0
  %2851 = vmatmul.mubr.bf16.gmra.mxu0 %v2701
  %v2852 = vpop.f32.mrf.mxu0
  %v2853 = vadd.f32 0.0, %v2852
  %v2854 = vpop.f32.mrf.mxu0
  %v2855 = vpop.f32.mrf.mxu0
  %v2856 = vadd.f32 0.0, %v2855
  %v2857 = vpop.f32.mrf.mxu0
  %2858 = vmatprep.mubr.bf16.mxu0 0
  %2859 = vmatmul.mubr.bf16.gmra.mxu0 %v2704
  %v2860 = vpop.f32.mrf.mxu0
  %v2861 = vadd.f32 0.0, %v2860
  %v2862 = vpop.f32.mrf.mxu0
  %v2863 = vpop.f32.mrf.mxu0
  %v2864 = vadd.f32 0.0, %v2863
  %v2865 = vpop.f32.mrf.mxu0
  %2866 = vmatprep.mubr.bf16.mxu0 0
  %2867 = vmatmul.mubr.bf16.gmra.mxu0 %v2707
  %v2868 = vpop.f32.mrf.mxu0
  %v2869 = vadd.f32 0.0, %v2868
  %v2870 = vpop.f32.mrf.mxu0
  %v2871 = vpop.f32.mrf.mxu0
  %v2872 = vadd.f32 0.0, %v2871
  %v2873 = vpop.f32.mrf.mxu0
  %2874 = vmatprep.mubr.bf16.mxu0 0
  %2875 = vmatmul.mubr.bf16.gmra.mxu0 %v2710
  %v2876 = vpop.f32.mrf.mxu0
  %v2877 = vadd.f32 0.0, %v2876
  %v2878 = vpop.f32.mrf.mxu0
  %v2879 = vpop.f32.mrf.mxu0
  %v2880 = vadd.f32 0.0, %v2879
  %v2881 = vpop.f32.mrf.mxu0
  %2882 = vmatprep.mubr.bf16.mxu0 0
  %2883 = vmatmul.mubr.bf16.gmra.mxu0 %v2713
  %v2884 = vpop.f32.mrf.mxu0
  %v2885 = vadd.f32 0.0, %v2884
  %v2886 = vpop.f32.mrf.mxu0
  %v2887 = vpop.f32.mrf.mxu0
  %v2888 = vadd.f32 0.0, %v2887
  %v2889 = vpop.f32.mrf.mxu0
  %2890 = vmatprep.mubr.bf16.mxu0 0
  %2891 = vmatmul.mubr.bf16.gmra.mxu0 %v2716
  %v2892 = vpop.f32.mrf.mxu0
  %v2893 = vadd.f32 0.0, %v2892
  %v2894 = vpop.f32.mrf.mxu0
  %v2895 = vpop.f32.mrf.mxu0
  %v2896 = vadd.f32 0.0, %v2895
  %v2897 = vpop.f32.mrf.mxu0
  %2898 = vmatprep.mubr.bf16.mxu0 0
  %2899 = vmatmul.mubr.bf16.gmra.mxu0 %v2719
  %v2900 = vpop.f32.mrf.mxu0
  %v2901 = vadd.f32 0.0, %v2900
  %v2902 = vpop.f32.mrf.mxu0
  %v2903 = vpop.f32.mrf.mxu0
  %v2904 = vadd.f32 0.0, %v2903
  %v2905 = vpop.f32.mrf.mxu0
  %2906 = vmatprep.mubr.bf16.mxu0 0
  %2907 = vmatmul.mubr.bf16.gmra.mxu0 %v2722
  %v2908 = vpop.f32.mrf.mxu0
  %v2909 = vadd.f32 0.0, %v2908
  %v2910 = vpop.f32.mrf.mxu0
  %v2911 = vpop.f32.mrf.mxu0
  %v2912 = vadd.f32 0.0, %v2911
  %v2913 = vpop.f32.mrf.mxu0
  %2914 = vmatprep.mubr.bf16.mxu0 0
  %2915 = vmatmul.mubr.bf16.gmra.mxu0 %v2725
  %v2916 = vpop.f32.mrf.mxu0
  %v2917 = vadd.f32 0.0, %v2916
  %v2918 = vpop.f32.mrf.mxu0
  %v2919 = vpop.f32.mrf.mxu0
  %v2920 = vadd.f32 0.0, %v2919
  %v2921 = vpop.f32.mrf.mxu0
  %2922 = vmatprep.mubr.bf16.mxu0 0
  %2923 = vmatmul.mubr.bf16.gmra.mxu0 %v2728
  %v2924 = vpop.f32.mrf.mxu0
  %v2925 = vadd.f32 0.0, %v2924
  %v2926 = vpop.f32.mrf.mxu0
  %v2927 = vpop.f32.mrf.mxu0
  %v2928 = vpop.f32.mrf.mxu0
  %2929 = vdwg.mxu0
  %v2930 = vadd.f32 %v2485, %v2765
  %v2931 = vadd.f32 %v2486, %v2768
  %v2932 = vadd.f32 %v2487, %v2773
  %v2933 = vadd.f32 %v2488, %v2776
  %v2934 = vadd.f32 %v2489, %v2781
  %v2935 = vadd.f32 %v2490, %v2784
  %v2936 = vadd.f32 %v2491, %v2789
  %v2937 = vadd.f32 %v2492, %v2792
  %v2938 = vadd.f32 %v2493, %v2797
  %v2939 = vadd.f32 %v2494, %v2800
  %v2940 = vadd.f32 %v2495, %v2805
  %v2941 = vadd.f32 %v2496, %v2808
  %v2942 = vadd.f32 %v2497, %v2813
  %v2943 = vadd.f32 %v2498, %v2816
  %v2944 = vadd.f32 %v2499, %v2821
  %v2945 = vadd.f32 %v2500, %v2824
  %v2946 = vadd.f32 %v2501, %v2829
  %v2947 = vadd.f32 %v2502, %v2832
  %v2948 = vadd.f32 %v2503, %v2837
  %v2949 = vadd.f32 %v2504, %v2840
  %v2950 = vadd.f32 %v2505, %v2845
  %v2951 = vadd.f32 %v2506, %v2848
  %v2952 = vadd.f32 %v2507, %v2853
  %v2953 = vadd.f32 %v2508, %v2856
  %v2954 = vadd.f32 %v2509, %v2861
  %v2955 = vadd.f32 %v2510, %v2864
  %v2956 = vadd.f32 %v2511, %v2869
  %v2957 = vadd.f32 %v2512, %v2872
  %v2958 = vadd.f32 %v2513, %v2877
  %v2959 = vadd.f32 %v2514, %v2880
  %v2960 = vadd.f32 %v2515, %v2885
  %v2961 = vadd.f32 %v2516, %v2888
  %v2962 = vadd.f32 %v2517, %v2893
  %v2963 = vadd.f32 %v2518, %v2896
  %v2964 = vadd.f32 %v2519, %v2901
  %v2965 = vadd.f32 %v2520, %v2904
  %v2966 = vadd.f32 %v2521, %v2909
  %v2967 = vadd.f32 %v2522, %v2912
  %v2968 = vadd.f32 %v2523, %v2917
  %v2969 = vadd.f32 %v2524, %v2920
  %v2970 = vadd.f32 %v2525, %v2925
  %v2971 = vld [vmem:[#allocation2 + $0x20] sm:$0xff]
  %v2972 = vld [vmem:[#allocation2 + $0x28] sm:$0xff]
  %v2973 = vld [vmem:[#allocation2 + $0x30] sm:$0xff]
  %v2974 = vld [vmem:[#allocation2 + $0x38] sm:$0xff]
  %v2975 = vld [vmem:[#allocation2 + $0x40] sm:$0xff]
  %v2976 = vld [vmem:[#allocation2 + $0x48] sm:$0xff]
  %v2977 = vld [vmem:[#allocation2 + $0x50] sm:$0xff]
  %v2978 = vld [vmem:[#allocation2 + $0x58] sm:$0xff]
  %v2979 = vld [vmem:[#allocation2 + $0x60] sm:$0xff]
  %v2980 = vld [vmem:[#allocation2 + $0x68] sm:$0xff]
  %v2981 = vld [vmem:[#allocation2 + $0x70] sm:$0xff]
  %v2982 = vld [vmem:[#allocation2 + $0x78] sm:$0xff]
  %v2983 = vld [vmem:[#allocation2 + $0x80] sm:$0xff]
  %v2984 = vld [vmem:[#allocation2 + $0x88] sm:$0xff]
  %v2985 = vld [vmem:[#allocation2 + $0x90] sm:$0xff]
  %v2986 = vld [vmem:[#allocation2 + $0x98] sm:$0xff]
  %v2987 = vld [vmem:[#allocation2 + $0xa0] sm:$0xff]
  %v2988 = vld [vmem:[#allocation2 + $0xa8] sm:$0xff]
  %v2989 = vld [vmem:[#allocation2 + $0xb0] sm:$0xff]
  %v2990 = vld [vmem:[#allocation2 + $0xb8] sm:$0xff]
  %v2991 = vld [vmem:[#allocation2 + $0xc0] sm:$0xff]
  %v2992 = vld [vmem:[#allocation2 + $0xc8] sm:$0xff]
  %v2993 = vld [vmem:[#allocation2 + $0xd0] sm:$0xff]
  %v2994 = vld [vmem:[#allocation2 + $0xd8] sm:$0xff]
  %v2995 = vld [vmem:[#allocation2 + $0xe0] sm:$0xff]
  %v2996 = vld [vmem:[#allocation2 + $0xe8] sm:$0xff]
  %v2997 = vld [vmem:[#allocation2 + $0xf0] sm:$0xff]
  %v2998 = vld [vmem:[#allocation2 + $0xf8] sm:$0xff]
  %v2999 = vld [vmem:[#allocation2 + $0x100] sm:$0xff]
  %v3000 = vld [vmem:[#allocation2 + $0x108] sm:$0xff]
  %v3001 = vld [vmem:[#allocation2 + $0x110] sm:$0xff]
  %v3002 = vld [vmem:[#allocation2 + $0x118] sm:$0xff]
  %v3003 = vld [vmem:[#allocation2 + $0x120] sm:$0xff]
  %v3004 = vld [vmem:[#allocation2 + $0x128] sm:$0xff]
  %v3005 = vld [vmem:[#allocation2 + $0x130] sm:$0xff]
  %v3006 = vld [vmem:[#allocation2 + $0x138] sm:$0xff]
  %v3007 = vld [vmem:[#allocation2 + $0x140] sm:$0xff]
  %v3008 = vld [vmem:[#allocation2 + $0x148] sm:$0xff]
  %v3009 = vld [vmem:[#allocation2 + $0x150] sm:$0xff]
  %v3010 = vld [vmem:[#allocation2 + $0x158] sm:$0xff]
  %v3011 = vld [vmem:[#allocation2 + $0x160] sm:$0xf]
  %v3012 = vpack.c.bf16 %v2972, %v2971
  %v3013 = vpack.c.bf16 %v2974, %v2973
  %v3014 = vpack.c.bf16 %v2976, %v2975
  %v3015 = vpack.c.bf16 %v2978, %v2977
  %v3016 = vpack.c.bf16 %v2980, %v2979
  %v3017 = vpack.c.bf16 %v2982, %v2981
  %v3018 = vpack.c.bf16 %v2984, %v2983
  %v3019 = vpack.c.bf16 %v2986, %v2985
  %v3020 = vpack.c.bf16 %v2988, %v2987
  %v3021 = vpack.c.bf16 %v2990, %v2989
  %v3022 = vpack.c.bf16 %v2992, %v2991
  %v3023 = vpack.c.bf16 %v2994, %v2993
  %v3024 = vpack.c.bf16 %v2996, %v2995
  %v3025 = vpack.c.bf16 %v2998, %v2997
  %v3026 = vpack.c.bf16 %v3000, %v2999
  %v3027 = vpack.c.bf16 %v3002, %v3001
  %v3028 = vpack.c.bf16 %v3004, %v3003
  %v3029 = vpack.c.bf16 %v3006, %v3005
  %v3030 = vpack.c.bf16 %v3008, %v3007
  %v3031 = vpack.c.bf16 %v3010, %v3009
  %v3032 = vpack.c.bf16 %v3011, %v3011
  %v3033 = vld [vmem:[%s5 + $0x50] sm:$0xf]
  %v3034 = vld [vmem:[%s5 + $0x54] sm:$0xf]
  %v3035 = vld [vmem:[%s5 + $0x58] sm:$0xf]
  %v3036 = vld [vmem:[%s5 + $0x5c] sm:$0xf]
  %v3041 = vunpack.c.l.b16 %v3033
  %v3042 = vunpack.c.l.b16 %v3034
  %v3043 = vunpack.c.l.b16 %v3035
  %v3044 = vunpack.c.l.b16 %v3036
  %v3045 = vpack.c.b16 %v3042, %v3041
  %v3046 = vpack.c.b16 %v3044, %v3043
  %v3050 = vsel %vm1117, %v3012, 0
  %v3053 = vsel %vm1117, %v3013, 0
  %v3056 = vsel %vm1117, %v3014, 0
  %v3059 = vsel %vm1117, %v3015, 0
  %v3062 = vsel %vm1117, %v3016, 0
  %v3065 = vsel %vm1117, %v3017, 0
  %v3068 = vsel %vm1117, %v3018, 0
  %v3071 = vsel %vm1117, %v3019, 0
  %v3074 = vsel %vm1117, %v3020, 0
  %v3077 = vsel %vm1117, %v3021, 0
  %v3080 = vsel %vm1117, %v3022, 0
  %v3083 = vsel %vm1117, %v3023, 0
  %v3086 = vsel %vm1117, %v3024, 0
  %v3089 = vsel %vm1117, %v3025, 0
  %v3092 = vsel %vm1117, %v3026, 0
  %v3095 = vsel %vm1117, %v3027, 0
  %v3098 = vsel %vm1117, %v3028, 0
  %v3101 = vsel %vm1117, %v3029, 0
  %v3104 = vsel %vm1117, %v3030, 0
  %v3107 = vsel %vm1117, %v3031, 0
  %v3110 = vsel %vm1117, %v3032, 0
  %3112 = vmatprep.subr.bf16.mxu0 0
  %3113 = vmatpush1.bf16.msra.mxu0 0
  %3114 = vmatprep.subr.bf16.mxu0 0
  %3115 = vmatpush1.bf16.msra.mxu0 0
  %3116 = vmatprep.subr.bf16.mxu0 0
  %3117 = vmatpush1.bf16.msra.mxu0 0
  %3118 = vmatprep.subr.bf16.mxu0 0
  %3119 = vmatpush1.bf16.msra.mxu0 0
  %3120 = vmatprep.subr.bf16.mxu0 0
  %3121 = vmatpush1.bf16.msra.mxu0 0
  %3122 = vmatprep.subr.bf16.mxu0 0
  %3123 = vmatpush1.bf16.msra.mxu0 0
  %3124 = vmatprep.subr.bf16.mxu0 0
  %3125 = vmatpush1.bf16.msra.mxu0 %v3046
  %3126 = vmatprep.subr.bf16.mxu0 0
  %3127 = vmatpush1.bf16.msra.mxu0 %v3045
  %3128 = vmatprep.subr.bf16.mxu0 0
  %3129 = vmatpush2.bf16.msra.mxu0 0
  %3130 = vmatprep.subr.bf16.mxu0 0
  %3131 = vmatpush2.bf16.msra.mxu0 0
  %3132 = vmatprep.subr.bf16.mxu0 0
  %3133 = vmatpush2.bf16.msra.mxu0 0
  %3134 = vmatprep.subr.bf16.mxu0 0
  %3135 = vmatpush2.bf16.msra.mxu0 0
  %3136 = vmatprep.subr.bf16.mxu0 0
  %3137 = vmatpush2.bf16.msra.mxu0 0
  %3138 = vmatprep.subr.bf16.mxu0 0
  %3139 = vmatpush2.bf16.msra.mxu0 0
  %3140 = vmatprep.subr.bf16.mxu0 0
  %3141 = vmatpush2.bf16.msra.mxu0 0
  %3142 = vmatprep.subr.bf16.mxu0 0
  %3143 = vmatpush2.bf16.msra.mxu0 0
  %3144 = vmatprep.mubr.bf16.mxu0 0
  %3145 = vmatmul.mubr.bf16.gmra.mxu0 %v3050
  %v3146 = vpop.f32.mrf.mxu0
  %v3147 = vadd.f32 0.0, %v3146
  %v3148 = vpop.f32.mrf.mxu0
  %v3149 = vpop.f32.mrf.mxu0
  %v3150 = vadd.f32 0.0, %v3149
  %v3151 = vpop.f32.mrf.mxu0
  %3152 = vmatprep.mubr.bf16.mxu0 0
  %3153 = vmatmul.mubr.bf16.gmra.mxu0 %v3053
  %v3154 = vpop.f32.mrf.mxu0
  %v3155 = vadd.f32 0.0, %v3154
  %v3156 = vpop.f32.mrf.mxu0
  %v3157 = vpop.f32.mrf.mxu0
  %v3158 = vadd.f32 0.0, %v3157
  %v3159 = vpop.f32.mrf.mxu0
  %3160 = vmatprep.mubr.bf16.mxu0 0
  %3161 = vmatmul.mubr.bf16.gmra.mxu0 %v3056
  %v3162 = vpop.f32.mrf.mxu0
  %v3163 = vadd.f32 0.0, %v3162
  %v3164 = vpop.f32.mrf.mxu0
  %v3165 = vpop.f32.mrf.mxu0
  %v3166 = vadd.f32 0.0, %v3165
  %v3167 = vpop.f32.mrf.mxu0
  %3168 = vmatprep.mubr.bf16.mxu0 0
  %3169 = vmatmul.mubr.bf16.gmra.mxu0 %v3059
  %v3170 = vpop.f32.mrf.mxu0
  %v3171 = vadd.f32 0.0, %v3170
  %v3172 = vpop.f32.mrf.mxu0
  %v3173 = vpop.f32.mrf.mxu0
  %v3174 = vadd.f32 0.0, %v3173
  %v3175 = vpop.f32.mrf.mxu0
  %3176 = vmatprep.mubr.bf16.mxu0 0
  %3177 = vmatmul.mubr.bf16.gmra.mxu0 %v3062
  %v3178 = vpop.f32.mrf.mxu0
  %v3179 = vadd.f32 0.0, %v3178
  %v3180 = vpop.f32.mrf.mxu0
  %v3181 = vpop.f32.mrf.mxu0
  %v3182 = vadd.f32 0.0, %v3181
  %v3183 = vpop.f32.mrf.mxu0
  %3184 = vmatprep.mubr.bf16.mxu0 0
  %3185 = vmatmul.mubr.bf16.gmra.mxu0 %v3065
  %v3186 = vpop.f32.mrf.mxu0
  %v3187 = vadd.f32 0.0, %v3186
  %v3188 = vpop.f32.mrf.mxu0
  %v3189 = vpop.f32.mrf.mxu0
  %v3190 = vadd.f32 0.0, %v3189
  %v3191 = vpop.f32.mrf.mxu0
  %3192 = vmatprep.mubr.bf16.mxu0 0
  %3193 = vmatmul.mubr.bf16.gmra.mxu0 %v3068
  %v3194 = vpop.f32.mrf.mxu0
  %v3195 = vadd.f32 0.0, %v3194
  %v3196 = vpop.f32.mrf.mxu0
  %v3197 = vpop.f32.mrf.mxu0
  %v3198 = vadd.f32 0.0, %v3197
  %v3199 = vpop.f32.mrf.mxu0
  %3200 = vmatprep.mubr.bf16.mxu0 0
  %3201 = vmatmul.mubr.bf16.gmra.mxu0 %v3071
  %v3202 = vpop.f32.mrf.mxu0
  %v3203 = vadd.f32 0.0, %v3202
  %v3204 = vpop.f32.mrf.mxu0
  %v3205 = vpop.f32.mrf.mxu0
  %v3206 = vadd.f32 0.0, %v3205
  %v3207 = vpop.f32.mrf.mxu0
  %3208 = vmatprep.mubr.bf16.mxu0 0
  %3209 = vmatmul.mubr.bf16.gmra.mxu0 %v3074
  %v3210 = vpop.f32.mrf.mxu0
  %v3211 = vadd.f32 0.0, %v3210
  %v3212 = vpop.f32.mrf.mxu0
  %v3213 = vpop.f32.mrf.mxu0
  %v3214 = vadd.f32 0.0, %v3213
  %v3215 = vpop.f32.mrf.mxu0
  %3216 = vmatprep.mubr.bf16.mxu0 0
  %3217 = vmatmul.mubr.bf16.gmra.mxu0 %v3077
  %v3218 = vpop.f32.mrf.mxu0
  %v3219 = vadd.f32 0.0, %v3218
  %v3220 = vpop.f32.mrf.mxu0
  %v3221 = vpop.f32.mrf.mxu0
  %v3222 = vadd.f32 0.0, %v3221
  %v3223 = vpop.f32.mrf.mxu0
  %3224 = vmatprep.mubr.bf16.mxu0 0
  %3225 = vmatmul.mubr.bf16.gmra.mxu0 %v3080
  %v3226 = vpop.f32.mrf.mxu0
  %v3227 = vadd.f32 0.0, %v3226
  %v3228 = vpop.f32.mrf.mxu0
  %v3229 = vpop.f32.mrf.mxu0
  %v3230 = vadd.f32 0.0, %v3229
  %v3231 = vpop.f32.mrf.mxu0
  %3232 = vmatprep.mubr.bf16.mxu0 0
  %3233 = vmatmul.mubr.bf16.gmra.mxu0 %v3083
  %v3234 = vpop.f32.mrf.mxu0
  %v3235 = vadd.f32 0.0, %v3234
  %v3236 = vpop.f32.mrf.mxu0
  %v3237 = vpop.f32.mrf.mxu0
  %v3238 = vadd.f32 0.0, %v3237
  %v3239 = vpop.f32.mrf.mxu0
  %3240 = vmatprep.mubr.bf16.mxu0 0
  %3241 = vmatmul.mubr.bf16.gmra.mxu0 %v3086
  %v3242 = vpop.f32.mrf.mxu0
  %v3243 = vadd.f32 0.0, %v3242
  %v3244 = vpop.f32.mrf.mxu0
  %v3245 = vpop.f32.mrf.mxu0
  %v3246 = vadd.f32 0.0, %v3245
  %v3247 = vpop.f32.mrf.mxu0
  %3248 = vmatprep.mubr.bf16.mxu0 0
  %3249 = vmatmul.mubr.bf16.gmra.mxu0 %v3089
  %v3250 = vpop.f32.mrf.mxu0
  %v3251 = vadd.f32 0.0, %v3250
  %v3252 = vpop.f32.mrf.mxu0
  %v3253 = vpop.f32.mrf.mxu0
  %v3254 = vadd.f32 0.0, %v3253
  %v3255 = vpop.f32.mrf.mxu0
  %3256 = vmatprep.mubr.bf16.mxu0 0
  %3257 = vmatmul.mubr.bf16.gmra.mxu0 %v3092
  %v3258 = vpop.f32.mrf.mxu0
  %v3259 = vadd.f32 0.0, %v3258
  %v3260 = vpop.f32.mrf.mxu0
  %v3261 = vpop.f32.mrf.mxu0
  %v3262 = vadd.f32 0.0, %v3261
  %v3263 = vpop.f32.mrf.mxu0
  %3264 = vmatprep.mubr.bf16.mxu0 0
  %3265 = vmatmul.mubr.bf16.gmra.mxu0 %v3095
  %v3266 = vpop.f32.mrf.mxu0
  %v3267 = vadd.f32 0.0, %v3266
  %v3268 = vpop.f32.mrf.mxu0
  %v3269 = vpop.f32.mrf.mxu0
  %v3270 = vadd.f32 0.0, %v3269
  %v3271 = vpop.f32.mrf.mxu0
  %3272 = vmatprep.mubr.bf16.mxu0 0
  %3273 = vmatmul.mubr.bf16.gmra.mxu0 %v3098
  %v3274 = vpop.f32.mrf.mxu0
  %v3275 = vadd.f32 0.0, %v3274
  %v3276 = vpop.f32.mrf.mxu0
  %v3277 = vpop.f32.mrf.mxu0
  %v3278 = vadd.f32 0.0, %v3277
  %v3279 = vpop.f32.mrf.mxu0
  %3280 = vmatprep.mubr.bf16.mxu0 0
  %3281 = vmatmul.mubr.bf16.gmra.mxu0 %v3101
  %v3282 = vpop.f32.mrf.mxu0
  %v3283 = vadd.f32 0.0, %v3282
  %v3284 = vpop.f32.mrf.mxu0
  %v3285 = vpop.f32.mrf.mxu0
  %v3286 = vadd.f32 0.0, %v3285
  %v3287 = vpop.f32.mrf.mxu0
  %3288 = vmatprep.mubr.bf16.mxu0 0
  %3289 = vmatmul.mubr.bf16.gmra.mxu0 %v3104
  %v3290 = vpop.f32.mrf.mxu0
  %v3291 = vadd.f32 0.0, %v3290
  %v3292 = vpop.f32.mrf.mxu0
  %v3293 = vpop.f32.mrf.mxu0
  %v3294 = vadd.f32 0.0, %v3293
  %v3295 = vpop.f32.mrf.mxu0
  %3296 = vmatprep.mubr.bf16.mxu0 0
  %3297 = vmatmul.mubr.bf16.gmra.mxu0 %v3107
  %v3298 = vpop.f32.mrf.mxu0
  %v3299 = vadd.f32 0.0, %v3298
  %v3300 = vpop.f32.mrf.mxu0
  %v3301 = vpop.f32.mrf.mxu0
  %v3302 = vadd.f32 0.0, %v3301
  %v3303 = vpop.f32.mrf.mxu0
  %3304 = vmatprep.mubr.bf16.mxu0 0
  %3305 = vmatmul.mubr.bf16.gmra.mxu0 %v3110
  %v3306 = vpop.f32.mrf.mxu0
  %v3307 = vadd.f32 0.0, %v3306
  %v3308 = vpop.f32.mrf.mxu0
  %v3309 = vpop.f32.mrf.mxu0
  %v3310 = vpop.f32.mrf.mxu0
  %3311 = vdwg.mxu0
  %v3312 = vadd.f32 %v2930, %v3147
  %v3313 = vadd.f32 %v2931, %v3150
  %v3314 = vadd.f32 %v2932, %v3155
  %v3315 = vadd.f32 %v2933, %v3158
  %v3316 = vadd.f32 %v2934, %v3163
  %v3317 = vadd.f32 %v2935, %v3166
  %v3318 = vadd.f32 %v2936, %v3171
  %v3319 = vadd.f32 %v2937, %v3174
  %v3320 = vadd.f32 %v2938, %v3179
  %v3321 = vadd.f32 %v2939, %v3182
  %v3322 = vadd.f32 %v2940, %v3187
  %v3323 = vadd.f32 %v2941, %v3190
  %v3324 = vadd.f32 %v2942, %v3195
  %v3325 = vadd.f32 %v2943, %v3198
  %v3326 = vadd.f32 %v2944, %v3203
  %v3327 = vadd.f32 %v2945, %v3206
  %v3328 = vadd.f32 %v2946, %v3211
  %v3329 = vadd.f32 %v2947, %v3214
  %v3330 = vadd.f32 %v2948, %v3219
  %v3331 = vadd.f32 %v2949, %v3222
  %v3332 = vadd.f32 %v2950, %v3227
  %v3333 = vadd.f32 %v2951, %v3230
  %v3334 = vadd.f32 %v2952, %v3235
  %v3335 = vadd.f32 %v2953, %v3238
  %v3336 = vadd.f32 %v2954, %v3243
  %v3337 = vadd.f32 %v2955, %v3246
  %v3338 = vadd.f32 %v2956, %v3251
  %v3339 = vadd.f32 %v2957, %v3254
  %v3340 = vadd.f32 %v2958, %v3259
  %v3341 = vadd.f32 %v2959, %v3262
  %v3342 = vadd.f32 %v2960, %v3267
  %v3343 = vadd.f32 %v2961, %v3270
  %v3344 = vadd.f32 %v2962, %v3275
  %v3345 = vadd.f32 %v2963, %v3278
  %v3346 = vadd.f32 %v2964, %v3283
  %v3347 = vadd.f32 %v2965, %v3286
  %v3348 = vadd.f32 %v2966, %v3291
  %v3349 = vadd.f32 %v2967, %v3294
  %v3350 = vadd.f32 %v2968, %v3299
  %v3351 = vadd.f32 %v2969, %v3302
  %v3352 = vadd.f32 %v2970, %v3307
  %v3353 = vld [vmem:[%s5 + $0x60] sm:$0xf]
  %v3354 = vld [vmem:[%s5 + $0x64] sm:$0xf]
  %v3355 = vld [vmem:[%s5 + $0x68] sm:$0xf]
  %v3356 = vld [vmem:[%s5 + $0x6c] sm:$0xf]
  %3378 = vrot.lane.b32.xlu0 %v3012, 96
  %v3379 = vpop.permute.xlu0 %3378
  %3380 = vrot.lane.b32.xlu0 %v3013, 96
  %v3381 = vpop.permute.xlu0 %3380
  %3382 = vrot.lane.b32.xlu0 %v3014, 96
  %v3383 = vpop.permute.xlu0 %3382
  %3384 = vrot.lane.b32.xlu0 %v3015, 96
  %v3385 = vpop.permute.xlu0 %3384
  %3386 = vrot.lane.b32.xlu0 %v3016, 96
  %v3387 = vpop.permute.xlu0 %3386
  %3388 = vrot.lane.b32.xlu0 %v3017, 96
  %v3389 = vpop.permute.xlu0 %3388
  %3390 = vrot.lane.b32.xlu0 %v3018, 96
  %v3391 = vpop.permute.xlu0 %3390
  %3392 = vrot.lane.b32.xlu0 %v3019, 96
  %v3393 = vpop.permute.xlu0 %3392
  %3394 = vrot.lane.b32.xlu0 %v3020, 96
  %v3395 = vpop.permute.xlu0 %3394
  %3396 = vrot.lane.b32.xlu0 %v3021, 96
  %v3397 = vpop.permute.xlu0 %3396
  %3398 = vrot.lane.b32.xlu0 %v3022, 96
  %v3399 = vpop.permute.xlu0 %3398
  %3400 = vrot.lane.b32.xlu0 %v3023, 96
  %v3401 = vpop.permute.xlu0 %3400
  %3402 = vrot.lane.b32.xlu0 %v3024, 96
  %v3403 = vpop.permute.xlu0 %3402
  %3404 = vrot.lane.b32.xlu0 %v3025, 96
  %v3405 = vpop.permute.xlu0 %3404
  %3406 = vrot.lane.b32.xlu0 %v3026, 96
  %v3407 = vpop.permute.xlu0 %3406
  %3408 = vrot.lane.b32.xlu0 %v3027, 96
  %v3409 = vpop.permute.xlu0 %3408
  %3410 = vrot.lane.b32.xlu0 %v3028, 96
  %v3411 = vpop.permute.xlu0 %3410
  %3412 = vrot.lane.b32.xlu0 %v3029, 96
  %v3413 = vpop.permute.xlu0 %3412
  %3414 = vrot.lane.b32.xlu0 %v3030, 96
  %v3415 = vpop.permute.xlu0 %3414
  %3416 = vrot.lane.b32.xlu0 %v3031, 96
  %v3417 = vpop.permute.xlu0 %3416
  %3418 = vrot.lane.b32.xlu0 %v3032, 96
  %v3419 = vpop.permute.xlu0 %3418
  %v3424 = vunpack.c.l.b16 %v3353
  %v3425 = vunpack.c.l.b16 %v3354
  %v3426 = vunpack.c.l.b16 %v3355
  %v3427 = vunpack.c.l.b16 %v3356
  %v3428 = vpack.c.b16 %v3425, %v3424
  %v3429 = vpack.c.b16 %v3427, %v3426
  %v3433 = vsel %vm1117, %v3379, 0
  %v3436 = vsel %vm1117, %v3381, 0
  %v3439 = vsel %vm1117, %v3383, 0
  %v3442 = vsel %vm1117, %v3385, 0
  %v3445 = vsel %vm1117, %v3387, 0
  %v3448 = vsel %vm1117, %v3389, 0
  %v3451 = vsel %vm1117, %v3391, 0
  %v3454 = vsel %vm1117, %v3393, 0
  %v3457 = vsel %vm1117, %v3395, 0
  %v3460 = vsel %vm1117, %v3397, 0
  %v3463 = vsel %vm1117, %v3399, 0
  %v3466 = vsel %vm1117, %v3401, 0
  %v3469 = vsel %vm1117, %v3403, 0
  %v3472 = vsel %vm1117, %v3405, 0
  %v3475 = vsel %vm1117, %v3407, 0
  %v3478 = vsel %vm1117, %v3409, 0
  %v3481 = vsel %vm1117, %v3411, 0
  %v3484 = vsel %vm1117, %v3413, 0
  %v3487 = vsel %vm1117, %v3415, 0
  %v3490 = vsel %vm1117, %v3417, 0
  %v3493 = vsel %vm1117, %v3419, 0
  %3495 = vmatprep.subr.bf16.mxu0 0
  %3496 = vmatpush1.bf16.msra.mxu0 0
  %3497 = vmatprep.subr.bf16.mxu0 0
  %3498 = vmatpush1.bf16.msra.mxu0 0
  %3499 = vmatprep.subr.bf16.mxu0 0
  %3500 = vmatpush1.bf16.msra.mxu0 0
  %3501 = vmatprep.subr.bf16.mxu0 0
  %3502 = vmatpush1.bf16.msra.mxu0 0
  %3503 = vmatprep.subr.bf16.mxu0 0
  %3504 = vmatpush1.bf16.msra.mxu0 0
  %3505 = vmatprep.subr.bf16.mxu0 0
  %3506 = vmatpush1.bf16.msra.mxu0 0
  %3507 = vmatprep.subr.bf16.mxu0 0
  %3508 = vmatpush1.bf16.msra.mxu0 %v3429
  %3509 = vmatprep.subr.bf16.mxu0 0
  %3510 = vmatpush1.bf16.msra.mxu0 %v3428
  %3511 = vmatprep.subr.bf16.mxu0 0
  %3512 = vmatpush2.bf16.msra.mxu0 0
  %3513 = vmatprep.subr.bf16.mxu0 0
  %3514 = vmatpush2.bf16.msra.mxu0 0
  %3515 = vmatprep.subr.bf16.mxu0 0
  %3516 = vmatpush2.bf16.msra.mxu0 0
  %3517 = vmatprep.subr.bf16.mxu0 0
  %3518 = vmatpush2.bf16.msra.mxu0 0
  %3519 = vmatprep.subr.bf16.mxu0 0
  %3520 = vmatpush2.bf16.msra.mxu0 0
  %3521 = vmatprep.subr.bf16.mxu0 0
  %3522 = vmatpush2.bf16.msra.mxu0 0
  %3523 = vmatprep.subr.bf16.mxu0 0
  %3524 = vmatpush2.bf16.msra.mxu0 0
  %3525 = vmatprep.subr.bf16.mxu0 0
  %3526 = vmatpush2.bf16.msra.mxu0 0
  %3527 = vmatprep.mubr.bf16.mxu0 0
  %3528 = vmatmul.mubr.bf16.gmra.mxu0 %v3433
  %v3529 = vpop.f32.mrf.mxu0
  %v3530 = vadd.f32 0.0, %v3529
  %v3531 = vpop.f32.mrf.mxu0
  %v3532 = vpop.f32.mrf.mxu0
  %v3533 = vadd.f32 0.0, %v3532
  %v3534 = vpop.f32.mrf.mxu0
  %3535 = vmatprep.mubr.bf16.mxu0 0
  %3536 = vmatmul.mubr.bf16.gmra.mxu0 %v3436
  %v3537 = vpop.f32.mrf.mxu0
  %v3538 = vadd.f32 0.0, %v3537
  %v3539 = vpop.f32.mrf.mxu0
  %v3540 = vpop.f32.mrf.mxu0
  %v3541 = vadd.f32 0.0, %v3540
  %v3542 = vpop.f32.mrf.mxu0
  %3543 = vmatprep.mubr.bf16.mxu0 0
  %3544 = vmatmul.mubr.bf16.gmra.mxu0 %v3439
  %v3545 = vpop.f32.mrf.mxu0
  %v3546 = vadd.f32 0.0, %v3545
  %v3547 = vpop.f32.mrf.mxu0
  %v3548 = vpop.f32.mrf.mxu0
  %v3549 = vadd.f32 0.0, %v3548
  %v3550 = vpop.f32.mrf.mxu0
  %3551 = vmatprep.mubr.bf16.mxu0 0
  %3552 = vmatmul.mubr.bf16.gmra.mxu0 %v3442
  %v3553 = vpop.f32.mrf.mxu0
  %v3554 = vadd.f32 0.0, %v3553
  %v3555 = vpop.f32.mrf.mxu0
  %v3556 = vpop.f32.mrf.mxu0
  %v3557 = vadd.f32 0.0, %v3556
  %v3558 = vpop.f32.mrf.mxu0
  %3559 = vmatprep.mubr.bf16.mxu0 0
  %3560 = vmatmul.mubr.bf16.gmra.mxu0 %v3445
  %v3561 = vpop.f32.mrf.mxu0
  %v3562 = vadd.f32 0.0, %v3561
  %v3563 = vpop.f32.mrf.mxu0
  %v3564 = vpop.f32.mrf.mxu0
  %v3565 = vadd.f32 0.0, %v3564
  %v3566 = vpop.f32.mrf.mxu0
  %3567 = vmatprep.mubr.bf16.mxu0 0
  %3568 = vmatmul.mubr.bf16.gmra.mxu0 %v3448
  %v3569 = vpop.f32.mrf.mxu0
  %v3570 = vadd.f32 0.0, %v3569
  %v3571 = vpop.f32.mrf.mxu0
  %v3572 = vpop.f32.mrf.mxu0
  %v3573 = vadd.f32 0.0, %v3572
  %v3574 = vpop.f32.mrf.mxu0
  %3575 = vmatprep.mubr.bf16.mxu0 0
  %3576 = vmatmul.mubr.bf16.gmra.mxu0 %v3451
  %v3577 = vpop.f32.mrf.mxu0
  %v3578 = vadd.f32 0.0, %v3577
  %v3579 = vpop.f32.mrf.mxu0
  %v3580 = vpop.f32.mrf.mxu0
  %v3581 = vadd.f32 0.0, %v3580
  %v3582 = vpop.f32.mrf.mxu0
  %3583 = vmatprep.mubr.bf16.mxu0 0
  %3584 = vmatmul.mubr.bf16.gmra.mxu0 %v3454
  %v3585 = vpop.f32.mrf.mxu0
  %v3586 = vadd.f32 0.0, %v3585
  %v3587 = vpop.f32.mrf.mxu0
  %v3588 = vpop.f32.mrf.mxu0
  %v3589 = vadd.f32 0.0, %v3588
  %v3590 = vpop.f32.mrf.mxu0
  %3591 = vmatprep.mubr.bf16.mxu0 0
  %3592 = vmatmul.mubr.bf16.gmra.mxu0 %v3457
  %v3593 = vpop.f32.mrf.mxu0
  %v3594 = vadd.f32 0.0, %v3593
  %v3595 = vpop.f32.mrf.mxu0
  %v3596 = vpop.f32.mrf.mxu0
  %v3597 = vadd.f32 0.0, %v3596
  %v3598 = vpop.f32.mrf.mxu0
  %3599 = vmatprep.mubr.bf16.mxu0 0
  %3600 = vmatmul.mubr.bf16.gmra.mxu0 %v3460
  %v3601 = vpop.f32.mrf.mxu0
  %v3602 = vadd.f32 0.0, %v3601
  %v3603 = vpop.f32.mrf.mxu0
  %v3604 = vpop.f32.mrf.mxu0
  %v3605 = vadd.f32 0.0, %v3604
  %v3606 = vpop.f32.mrf.mxu0
  %3607 = vmatprep.mubr.bf16.mxu0 0
  %3608 = vmatmul.mubr.bf16.gmra.mxu0 %v3463
  %v3609 = vpop.f32.mrf.mxu0
  %v3610 = vadd.f32 0.0, %v3609
  %v3611 = vpop.f32.mrf.mxu0
  %v3612 = vpop.f32.mrf.mxu0
  %v3613 = vadd.f32 0.0, %v3612
  %v3614 = vpop.f32.mrf.mxu0
  %3615 = vmatprep.mubr.bf16.mxu0 0
  %3616 = vmatmul.mubr.bf16.gmra.mxu0 %v3466
  %v3617 = vpop.f32.mrf.mxu0
  %v3618 = vadd.f32 0.0, %v3617
  %v3619 = vpop.f32.mrf.mxu0
  %v3620 = vpop.f32.mrf.mxu0
  %v3621 = vadd.f32 0.0, %v3620
  %v3622 = vpop.f32.mrf.mxu0
  %3623 = vmatprep.mubr.bf16.mxu0 0
  %3624 = vmatmul.mubr.bf16.gmra.mxu0 %v3469
  %v3625 = vpop.f32.mrf.mxu0
  %v3626 = vadd.f32 0.0, %v3625
  %v3627 = vpop.f32.mrf.mxu0
  %v3628 = vpop.f32.mrf.mxu0
  %v3629 = vadd.f32 0.0, %v3628
  %v3630 = vpop.f32.mrf.mxu0
  %3631 = vmatprep.mubr.bf16.mxu0 0
  %3632 = vmatmul.mubr.bf16.gmra.mxu0 %v3472
  %v3633 = vpop.f32.mrf.mxu0
  %v3634 = vadd.f32 0.0, %v3633
  %v3635 = vpop.f32.mrf.mxu0
  %v3636 = vpop.f32.mrf.mxu0
  %v3637 = vadd.f32 0.0, %v3636
  %v3638 = vpop.f32.mrf.mxu0
  %3639 = vmatprep.mubr.bf16.mxu0 0
  %3640 = vmatmul.mubr.bf16.gmra.mxu0 %v3475
  %v3641 = vpop.f32.mrf.mxu0
  %v3642 = vadd.f32 0.0, %v3641
  %v3643 = vpop.f32.mrf.mxu0
  %v3644 = vpop.f32.mrf.mxu0
  %v3645 = vadd.f32 0.0, %v3644
  %v3646 = vpop.f32.mrf.mxu0
  %3647 = vmatprep.mubr.bf16.mxu0 0
  %3648 = vmatmul.mubr.bf16.gmra.mxu0 %v3478
  %v3649 = vpop.f32.mrf.mxu0
  %v3650 = vadd.f32 0.0, %v3649
  %v3651 = vpop.f32.mrf.mxu0
  %v3652 = vpop.f32.mrf.mxu0
  %v3653 = vadd.f32 0.0, %v3652
  %v3654 = vpop.f32.mrf.mxu0
  %3655 = vmatprep.mubr.bf16.mxu0 0
  %3656 = vmatmul.mubr.bf16.gmra.mxu0 %v3481
  %v3657 = vpop.f32.mrf.mxu0
  %v3658 = vadd.f32 0.0, %v3657
  %v3659 = vpop.f32.mrf.mxu0
  %v3660 = vpop.f32.mrf.mxu0
  %v3661 = vadd.f32 0.0, %v3660
  %v3662 = vpop.f32.mrf.mxu0
  %3663 = vmatprep.mubr.bf16.mxu0 0
  %3664 = vmatmul.mubr.bf16.gmra.mxu0 %v3484
  %v3665 = vpop.f32.mrf.mxu0
  %v3666 = vadd.f32 0.0, %v3665
  %v3667 = vpop.f32.mrf.mxu0
  %v3668 = vpop.f32.mrf.mxu0
  %v3669 = vadd.f32 0.0, %v3668
  %v3670 = vpop.f32.mrf.mxu0
  %3671 = vmatprep.mubr.bf16.mxu0 0
  %3672 = vmatmul.mubr.bf16.gmra.mxu0 %v3487
  %v3673 = vpop.f32.mrf.mxu0
  %v3674 = vadd.f32 0.0, %v3673
  %v3675 = vpop.f32.mrf.mxu0
  %v3676 = vpop.f32.mrf.mxu0
  %v3677 = vadd.f32 0.0, %v3676
  %v3678 = vpop.f32.mrf.mxu0
  %3679 = vmatprep.mubr.bf16.mxu0 0
  %3680 = vmatmul.mubr.bf16.gmra.mxu0 %v3490
  %v3681 = vpop.f32.mrf.mxu0
  %v3682 = vadd.f32 0.0, %v3681
  %v3683 = vpop.f32.mrf.mxu0
  %v3684 = vpop.f32.mrf.mxu0
  %v3685 = vadd.f32 0.0, %v3684
  %v3686 = vpop.f32.mrf.mxu0
  %3687 = vmatprep.mubr.bf16.mxu0 0
  %3688 = vmatmul.mubr.bf16.gmra.mxu0 %v3493
  %v3689 = vpop.f32.mrf.mxu0
  %v3690 = vadd.f32 0.0, %v3689
  %v3691 = vpop.f32.mrf.mxu0
  %v3692 = vpop.f32.mrf.mxu0
  %v3693 = vpop.f32.mrf.mxu0
  %3694 = vdwg.mxu0
  %v3695 = vadd.f32 %v3312, %v3530
  %v3696 = vadd.f32 %v3313, %v3533
  %v3697 = vadd.f32 %v3314, %v3538
  %v3698 = vadd.f32 %v3315, %v3541
  %v3699 = vadd.f32 %v3316, %v3546
  %v3700 = vadd.f32 %v3317, %v3549
  %v3701 = vadd.f32 %v3318, %v3554
  %v3702 = vadd.f32 %v3319, %v3557
  %v3703 = vadd.f32 %v3320, %v3562
  %v3704 = vadd.f32 %v3321, %v3565
  %v3705 = vadd.f32 %v3322, %v3570
  %v3706 = vadd.f32 %v3323, %v3573
  %v3707 = vadd.f32 %v3324, %v3578
  %v3708 = vadd.f32 %v3325, %v3581
  %v3709 = vadd.f32 %v3326, %v3586
  %v3710 = vadd.f32 %v3327, %v3589
  %v3711 = vadd.f32 %v3328, %v3594
  %v3712 = vadd.f32 %v3329, %v3597
  %v3713 = vadd.f32 %v3330, %v3602
  %v3714 = vadd.f32 %v3331, %v3605
  %v3715 = vadd.f32 %v3332, %v3610
  %v3716 = vadd.f32 %v3333, %v3613
  %v3717 = vadd.f32 %v3334, %v3618
  %v3718 = vadd.f32 %v3335, %v3621
  %v3719 = vadd.f32 %v3336, %v3626
  %v3720 = vadd.f32 %v3337, %v3629
  %v3721 = vadd.f32 %v3338, %v3634
  %v3722 = vadd.f32 %v3339, %v3637
  %v3723 = vadd.f32 %v3340, %v3642
  %v3724 = vadd.f32 %v3341, %v3645
  %v3725 = vadd.f32 %v3342, %v3650
  %v3726 = vadd.f32 %v3343, %v3653
  %v3727 = vadd.f32 %v3344, %v3658
  %v3728 = vadd.f32 %v3345, %v3661
  %v3729 = vadd.f32 %v3346, %v3666
  %v3730 = vadd.f32 %v3347, %v3669
  %v3731 = vadd.f32 %v3348, %v3674
  %v3732 = vadd.f32 %v3349, %v3677
  %v3733 = vadd.f32 %v3350, %v3682
  %v3734 = vadd.f32 %v3351, %v3685
  %v3735 = vadd.f32 %v3352, %v3690
  %v3736 = vld [vmem:[#allocation2 + $0x21] sm:$0xff]
  %v3737 = vld [vmem:[#allocation2 + $0x29] sm:$0xff]
  %v3738 = vld [vmem:[#allocation2 + $0x31] sm:$0xff]
  %v3739 = vld [vmem:[#allocation2 + $0x39] sm:$0xff]
  %v3740 = vld [vmem:[#allocation2 + $0x41] sm:$0xff]
  %v3741 = vld [vmem:[#allocation2 + $0x49] sm:$0xff]
  %v3742 = vld [vmem:[#allocation2 + $0x51] sm:$0xff]
  %v3743 = vld [vmem:[#allocation2 + $0x59] sm:$0xff]
  %v3744 = vld [vmem:[#allocation2 + $0x61] sm:$0xff]
  %v3745 = vld [vmem:[#allocation2 + $0x69] sm:$0xff]
  %v3746 = vld [vmem:[#allocation2 + $0x71] sm:$0xff]
  %v3747 = vld [vmem:[#allocation2 + $0x79] sm:$0xff]
  %v3748 = vld [vmem:[#allocation2 + $0x81] sm:$0xff]
  %v3749 = vld [vmem:[#allocation2 + $0x89] sm:$0xff]
  %v3750 = vld [vmem:[#allocation2 + $0x91] sm:$0xff]
  %v3751 = vld [vmem:[#allocation2 + $0x99] sm:$0xff]
  %v3752 = vld [vmem:[#allocation2 + $0xa1] sm:$0xff]
  %v3753 = vld [vmem:[#allocation2 + $0xa9] sm:$0xff]
  %v3754 = vld [vmem:[#allocation2 + $0xb1] sm:$0xff]
  %v3755 = vld [vmem:[#allocation2 + $0xb9] sm:$0xff]
  %v3756 = vld [vmem:[#allocation2 + $0xc1] sm:$0xff]
  %v3757 = vld [vmem:[#allocation2 + $0xc9] sm:$0xff]
  %v3758 = vld [vmem:[#allocation2 + $0xd1] sm:$0xff]
  %v3759 = vld [vmem:[#allocation2 + $0xd9] sm:$0xff]
  %v3760 = vld [vmem:[#allocation2 + $0xe1] sm:$0xff]
  %v3761 = vld [vmem:[#allocation2 + $0xe9] sm:$0xff]
  %v3762 = vld [vmem:[#allocation2 + $0xf1] sm:$0xff]
  %v3763 = vld [vmem:[#allocation2 + $0xf9] sm:$0xff]
  %v3764 = vld [vmem:[#allocation2 + $0x101] sm:$0xff]
  %v3765 = vld [vmem:[#allocation2 + $0x109] sm:$0xff]
  %v3766 = vld [vmem:[#allocation2 + $0x111] sm:$0xff]
  %v3767 = vld [vmem:[#allocation2 + $0x119] sm:$0xff]
  %v3768 = vld [vmem:[#allocation2 + $0x121] sm:$0xff]
  %v3769 = vld [vmem:[#allocation2 + $0x129] sm:$0xff]
  %v3770 = vld [vmem:[#allocation2 + $0x131] sm:$0xff]
  %v3771 = vld [vmem:[#allocation2 + $0x139] sm:$0xff]
  %v3772 = vld [vmem:[#allocation2 + $0x141] sm:$0xff]
  %v3773 = vld [vmem:[#allocation2 + $0x149] sm:$0xff]
  %v3774 = vld [vmem:[#allocation2 + $0x151] sm:$0xff]
  %v3775 = vld [vmem:[#allocation2 + $0x159] sm:$0xff]
  %v3776 = vld [vmem:[#allocation2 + $0x161] sm:$0xf]
  %v3777 = vpack.c.bf16 %v3737, %v3736
  %v3778 = vpack.c.bf16 %v3739, %v3738
  %v3779 = vpack.c.bf16 %v3741, %v3740
  %v3780 = vpack.c.bf16 %v3743, %v3742
  %v3781 = vpack.c.bf16 %v3745, %v3744
  %v3782 = vpack.c.bf16 %v3747, %v3746
  %v3783 = vpack.c.bf16 %v3749, %v3748
  %v3784 = vpack.c.bf16 %v3751, %v3750
  %v3785 = vpack.c.bf16 %v3753, %v3752
  %v3786 = vpack.c.bf16 %v3755, %v3754
  %v3787 = vpack.c.bf16 %v3757, %v3756
  %v3788 = vpack.c.bf16 %v3759, %v3758
  %v3789 = vpack.c.bf16 %v3761, %v3760
  %v3790 = vpack.c.bf16 %v3763, %v3762
  %v3791 = vpack.c.bf16 %v3765, %v3764
  %v3792 = vpack.c.bf16 %v3767, %v3766
  %v3793 = vpack.c.bf16 %v3769, %v3768
  %v3794 = vpack.c.bf16 %v3771, %v3770
  %v3795 = vpack.c.bf16 %v3773, %v3772
  %v3796 = vpack.c.bf16 %v3775, %v3774
  %v3797 = vpack.c.bf16 %v3776, %v3776
  %v3798 = vld [vmem:[%s5 + $0x70] sm:$0xf]
  %v3799 = vld [vmem:[%s5 + $0x74] sm:$0xf]
  %v3800 = vld [vmem:[%s5 + $0x78] sm:$0xf]
  %v3801 = vld [vmem:[%s5 + $0x7c] sm:$0xf]
  %v3806 = vunpack.c.l.b16 %v3798
  %v3807 = vunpack.c.l.b16 %v3799
  %v3808 = vunpack.c.l.b16 %v3800
  %v3809 = vunpack.c.l.b16 %v3801
  %v3810 = vpack.c.b16 %v3807, %v3806
  %v3811 = vpack.c.b16 %v3809, %v3808
  %v3815 = vsel %vm1117, %v3777, 0
  %v3818 = vsel %vm1117, %v3778, 0
  %v3821 = vsel %vm1117, %v3779, 0
  %v3824 = vsel %vm1117, %v3780, 0
  %v3827 = vsel %vm1117, %v3781, 0
  %v3830 = vsel %vm1117, %v3782, 0
  %v3833 = vsel %vm1117, %v3783, 0
  %v3836 = vsel %vm1117, %v3784, 0
  %v3839 = vsel %vm1117, %v3785, 0
  %v3842 = vsel %vm1117, %v3786, 0
  %v3845 = vsel %vm1117, %v3787, 0
  %v3848 = vsel %vm1117, %v3788, 0
  %v3851 = vsel %vm1117, %v3789, 0
  %v3854 = vsel %vm1117, %v3790, 0
  %v3857 = vsel %vm1117, %v3791, 0
  %v3860 = vsel %vm1117, %v3792, 0
  %v3863 = vsel %vm1117, %v3793, 0
  %v3866 = vsel %vm1117, %v3794, 0
  %v3869 = vsel %vm1117, %v3795, 0
  %v3872 = vsel %vm1117, %v3796, 0
  %v3875 = vsel %vm1117, %v3797, 0
  %3877 = vmatprep.subr.bf16.mxu0 0
  %3878 = vmatpush1.bf16.msra.mxu0 0
  %3879 = vmatprep.subr.bf16.mxu0 0
  %3880 = vmatpush1.bf16.msra.mxu0 0
  %3881 = vmatprep.subr.bf16.mxu0 0
  %3882 = vmatpush1.bf16.msra.mxu0 0
  %3883 = vmatprep.subr.bf16.mxu0 0
  %3884 = vmatpush1.bf16.msra.mxu0 0
  %3885 = vmatprep.subr.bf16.mxu0 0
  %3886 = vmatpush1.bf16.msra.mxu0 0
  %3887 = vmatprep.subr.bf16.mxu0 0
  %3888 = vmatpush1.bf16.msra.mxu0 0
  %3889 = vmatprep.subr.bf16.mxu0 0
  %3890 = vmatpush1.bf16.msra.mxu0 %v3811
  %3891 = vmatprep.subr.bf16.mxu0 0
  %3892 = vmatpush1.bf16.msra.mxu0 %v3810
  %3893 = vmatprep.subr.bf16.mxu0 0
  %3894 = vmatpush2.bf16.msra.mxu0 0
  %3895 = vmatprep.subr.bf16.mxu0 0
  %3896 = vmatpush2.bf16.msra.mxu0 0
  %3897 = vmatprep.subr.bf16.mxu0 0
  %3898 = vmatpush2.bf16.msra.mxu0 0
  %3899 = vmatprep.subr.bf16.mxu0 0
  %3900 = vmatpush2.bf16.msra.mxu0 0
  %3901 = vmatprep.subr.bf16.mxu0 0
  %3902 = vmatpush2.bf16.msra.mxu0 0
  %3903 = vmatprep.subr.bf16.mxu0 0
  %3904 = vmatpush2.bf16.msra.mxu0 0
  %3905 = vmatprep.subr.bf16.mxu0 0
  %3906 = vmatpush2.bf16.msra.mxu0 0
  %3907 = vmatprep.subr.bf16.mxu0 0
  %3908 = vmatpush2.bf16.msra.mxu0 0
  %3909 = vmatprep.mubr.bf16.mxu0 0
  %3910 = vmatmul.mubr.bf16.gmra.mxu0 %v3815
  %v3911 = vpop.f32.mrf.mxu0
  %v3912 = vadd.f32 0.0, %v3911
  %v3913 = vpop.f32.mrf.mxu0
  %v3914 = vpop.f32.mrf.mxu0
  %v3915 = vadd.f32 0.0, %v3914
  %v3916 = vpop.f32.mrf.mxu0
  %3917 = vmatprep.mubr.bf16.mxu0 0
  %3918 = vmatmul.mubr.bf16.gmra.mxu0 %v3818
  %v3919 = vpop.f32.mrf.mxu0
  %v3920 = vadd.f32 0.0, %v3919
  %v3921 = vpop.f32.mrf.mxu0
  %v3922 = vpop.f32.mrf.mxu0
  %v3923 = vadd.f32 0.0, %v3922
  %v3924 = vpop.f32.mrf.mxu0
  %3925 = vmatprep.mubr.bf16.mxu0 0
  %3926 = vmatmul.mubr.bf16.gmra.mxu0 %v3821
  %v3927 = vpop.f32.mrf.mxu0
  %v3928 = vadd.f32 0.0, %v3927
  %v3929 = vpop.f32.mrf.mxu0
  %v3930 = vpop.f32.mrf.mxu0
  %v3931 = vadd.f32 0.0, %v3930
  %v3932 = vpop.f32.mrf.mxu0
  %3933 = vmatprep.mubr.bf16.mxu0 0
  %3934 = vmatmul.mubr.bf16.gmra.mxu0 %v3824
  %v3935 = vpop.f32.mrf.mxu0
  %v3936 = vadd.f32 0.0, %v3935
  %v3937 = vpop.f32.mrf.mxu0
  %v3938 = vpop.f32.mrf.mxu0
  %v3939 = vadd.f32 0.0, %v3938
  %v3940 = vpop.f32.mrf.mxu0
  %3941 = vmatprep.mubr.bf16.mxu0 0
  %3942 = vmatmul.mubr.bf16.gmra.mxu0 %v3827
  %v3943 = vpop.f32.mrf.mxu0
  %v3944 = vadd.f32 0.0, %v3943
  %v3945 = vpop.f32.mrf.mxu0
  %v3946 = vpop.f32.mrf.mxu0
  %v3947 = vadd.f32 0.0, %v3946
  %v3948 = vpop.f32.mrf.mxu0
  %3949 = vmatprep.mubr.bf16.mxu0 0
  %3950 = vmatmul.mubr.bf16.gmra.mxu0 %v3830
  %v3951 = vpop.f32.mrf.mxu0
  %v3952 = vadd.f32 0.0, %v3951
  %v3953 = vpop.f32.mrf.mxu0
  %v3954 = vpop.f32.mrf.mxu0
  %v3955 = vadd.f32 0.0, %v3954
  %v3956 = vpop.f32.mrf.mxu0
  %3957 = vmatprep.mubr.bf16.mxu0 0
  %3958 = vmatmul.mubr.bf16.gmra.mxu0 %v3833
  %v3959 = vpop.f32.mrf.mxu0
  %v3960 = vadd.f32 0.0, %v3959
  %v3961 = vpop.f32.mrf.mxu0
  %v3962 = vpop.f32.mrf.mxu0
  %v3963 = vadd.f32 0.0, %v3962
  %v3964 = vpop.f32.mrf.mxu0
  %3965 = vmatprep.mubr.bf16.mxu0 0
  %3966 = vmatmul.mubr.bf16.gmra.mxu0 %v3836
  %v3967 = vpop.f32.mrf.mxu0
  %v3968 = vadd.f32 0.0, %v3967
  %v3969 = vpop.f32.mrf.mxu0
  %v3970 = vpop.f32.mrf.mxu0
  %v3971 = vadd.f32 0.0, %v3970
  %v3972 = vpop.f32.mrf.mxu0
  %3973 = vmatprep.mubr.bf16.mxu0 0
  %3974 = vmatmul.mubr.bf16.gmra.mxu0 %v3839
  %v3975 = vpop.f32.mrf.mxu0
  %v3976 = vadd.f32 0.0, %v3975
  %v3977 = vpop.f32.mrf.mxu0
  %v3978 = vpop.f32.mrf.mxu0
  %v3979 = vadd.f32 0.0, %v3978
  %v3980 = vpop.f32.mrf.mxu0
  %3981 = vmatprep.mubr.bf16.mxu0 0
  %3982 = vmatmul.mubr.bf16.gmra.mxu0 %v3842
  %v3983 = vpop.f32.mrf.mxu0
  %v3984 = vadd.f32 0.0, %v3983
  %v3985 = vpop.f32.mrf.mxu0
  %v3986 = vpop.f32.mrf.mxu0
  %v3987 = vadd.f32 0.0, %v3986
  %v3988 = vpop.f32.mrf.mxu0
  %3989 = vmatprep.mubr.bf16.mxu0 0
  %3990 = vmatmul.mubr.bf16.gmra.mxu0 %v3845
  %v3991 = vpop.f32.mrf.mxu0
  %v3992 = vadd.f32 0.0, %v3991
  %v3993 = vpop.f32.mrf.mxu0
  %v3994 = vpop.f32.mrf.mxu0
  %v3995 = vadd.f32 0.0, %v3994
  %v3996 = vpop.f32.mrf.mxu0
  %3997 = vmatprep.mubr.bf16.mxu0 0
  %3998 = vmatmul.mubr.bf16.gmra.mxu0 %v3848
  %v3999 = vpop.f32.mrf.mxu0
  %v4000 = vadd.f32 0.0, %v3999
  %v4001 = vpop.f32.mrf.mxu0
  %v4002 = vpop.f32.mrf.mxu0
  %v4003 = vadd.f32 0.0, %v4002
  %v4004 = vpop.f32.mrf.mxu0
  %4005 = vmatprep.mubr.bf16.mxu0 0
  %4006 = vmatmul.mubr.bf16.gmra.mxu0 %v3851
  %v4007 = vpop.f32.mrf.mxu0
  %v4008 = vadd.f32 0.0, %v4007
  %v4009 = vpop.f32.mrf.mxu0
  %v4010 = vpop.f32.mrf.mxu0
  %v4011 = vadd.f32 0.0, %v4010
  %v4012 = vpop.f32.mrf.mxu0
  %4013 = vmatprep.mubr.bf16.mxu0 0
  %4014 = vmatmul.mubr.bf16.gmra.mxu0 %v3854
  %v4015 = vpop.f32.mrf.mxu0
  %v4016 = vadd.f32 0.0, %v4015
  %v4017 = vpop.f32.mrf.mxu0
  %v4018 = vpop.f32.mrf.mxu0
  %v4019 = vadd.f32 0.0, %v4018
  %v4020 = vpop.f32.mrf.mxu0
  %4021 = vmatprep.mubr.bf16.mxu0 0
  %4022 = vmatmul.mubr.bf16.gmra.mxu0 %v3857
  %v4023 = vpop.f32.mrf.mxu0
  %v4024 = vadd.f32 0.0, %v4023
  %v4025 = vpop.f32.mrf.mxu0
  %v4026 = vpop.f32.mrf.mxu0
  %v4027 = vadd.f32 0.0, %v4026
  %v4028 = vpop.f32.mrf.mxu0
  %4029 = vmatprep.mubr.bf16.mxu0 0
  %4030 = vmatmul.mubr.bf16.gmra.mxu0 %v3860
  %v4031 = vpop.f32.mrf.mxu0
  %v4032 = vadd.f32 0.0, %v4031
  %v4033 = vpop.f32.mrf.mxu0
  %v4034 = vpop.f32.mrf.mxu0
  %v4035 = vadd.f32 0.0, %v4034
  %v4036 = vpop.f32.mrf.mxu0
  %4037 = vmatprep.mubr.bf16.mxu0 0
  %4038 = vmatmul.mubr.bf16.gmra.mxu0 %v3863
  %v4039 = vpop.f32.mrf.mxu0
  %v4040 = vadd.f32 0.0, %v4039
  %v4041 = vpop.f32.mrf.mxu0
  %v4042 = vpop.f32.mrf.mxu0
  %v4043 = vadd.f32 0.0, %v4042
  %v4044 = vpop.f32.mrf.mxu0
  %4045 = vmatprep.mubr.bf16.mxu0 0
  %4046 = vmatmul.mubr.bf16.gmra.mxu0 %v3866
  %v4047 = vpop.f32.mrf.mxu0
  %v4048 = vadd.f32 0.0, %v4047
  %v4049 = vpop.f32.mrf.mxu0
  %v4050 = vpop.f32.mrf.mxu0
  %v4051 = vadd.f32 0.0, %v4050
  %v4052 = vpop.f32.mrf.mxu0
  %4053 = vmatprep.mubr.bf16.mxu0 0
  %4054 = vmatmul.mubr.bf16.gmra.mxu0 %v3869
  %v4055 = vpop.f32.mrf.mxu0
  %v4056 = vadd.f32 0.0, %v4055
  %v4057 = vpop.f32.mrf.mxu0
  %v4058 = vpop.f32.mrf.mxu0
  %v4059 = vadd.f32 0.0, %v4058
  %v4060 = vpop.f32.mrf.mxu0
  %4061 = vmatprep.mubr.bf16.mxu0 0
  %4062 = vmatmul.mubr.bf16.gmra.mxu0 %v3872
  %v4063 = vpop.f32.mrf.mxu0
  %v4064 = vadd.f32 0.0, %v4063
  %v4065 = vpop.f32.mrf.mxu0
  %v4066 = vpop.f32.mrf.mxu0
  %v4067 = vadd.f32 0.0, %v4066
  %v4068 = vpop.f32.mrf.mxu0
  %4069 = vmatprep.mubr.bf16.mxu0 0
  %4070 = vmatmul.mubr.bf16.gmra.mxu0 %v3875
  %v4071 = vpop.f32.mrf.mxu0
  %v4072 = vadd.f32 0.0, %v4071
  %v4073 = vpop.f32.mrf.mxu0
  %v4074 = vpop.f32.mrf.mxu0
  %v4075 = vpop.f32.mrf.mxu0
  %4076 = vdwg.mxu0
  %v4077 = vadd.f32 %v3695, %v3912
  %v4078 = vadd.f32 %v3696, %v3915
  %v4079 = vadd.f32 %v3697, %v3920
  %v4080 = vadd.f32 %v3698, %v3923
  %v4081 = vadd.f32 %v3699, %v3928
  %v4082 = vadd.f32 %v3700, %v3931
  %v4083 = vadd.f32 %v3701, %v3936
  %v4084 = vadd.f32 %v3702, %v3939
  %v4085 = vadd.f32 %v3703, %v3944
  %v4086 = vadd.f32 %v3704, %v3947
  %v4087 = vadd.f32 %v3705, %v3952
  %v4088 = vadd.f32 %v3706, %v3955
  %v4089 = vadd.f32 %v3707, %v3960
  %v4090 = vadd.f32 %v3708, %v3963
  %v4091 = vadd.f32 %v3709, %v3968
  %v4092 = vadd.f32 %v3710, %v3971
  %v4093 = vadd.f32 %v3711, %v3976
  %v4094 = vadd.f32 %v3712, %v3979
  %v4095 = vadd.f32 %v3713, %v3984
  %v4096 = vadd.f32 %v3714, %v3987
  %v4097 = vadd.f32 %v3715, %v3992
  %v4098 = vadd.f32 %v3716, %v3995
  %v4099 = vadd.f32 %v3717, %v4000
  %v4100 = vadd.f32 %v3718, %v4003
  %v4101 = vadd.f32 %v3719, %v4008
  %v4102 = vadd.f32 %v3720, %v4011
  %v4103 = vadd.f32 %v3721, %v4016
  %v4104 = vadd.f32 %v3722, %v4019
  %v4105 = vadd.f32 %v3723, %v4024
  %v4106 = vadd.f32 %v3724, %v4027
  %v4107 = vadd.f32 %v3725, %v4032
  %v4108 = vadd.f32 %v3726, %v4035
  %v4109 = vadd.f32 %v3727, %v4040
  %v4110 = vadd.f32 %v3728, %v4043
  %v4111 = vadd.f32 %v3729, %v4048
  %v4112 = vadd.f32 %v3730, %v4051
  %v4113 = vadd.f32 %v3731, %v4056
  %v4114 = vadd.f32 %v3732, %v4059
  %v4115 = vadd.f32 %v3733, %v4064
  %v4116 = vadd.f32 %v3734, %v4067
  %v4117 = vadd.f32 %v3735, %v4072
  %v4118 = vld [vmem:[%s5 + $0x80] sm:$0xf]
  %v4119 = vld [vmem:[%s5 + $0x84] sm:$0xf]
  %v4120 = vld [vmem:[%s5 + $0x88] sm:$0xf]
  %v4121 = vld [vmem:[%s5 + $0x8c] sm:$0xf]
  %4122 = vrot.lane.b32.xlu0 %v2567, 32
  %v4123 = vpop.permute.xlu0 %4122
  %4124 = vrot.lane.b32.xlu0 %v2568, 32
  %v4125 = vpop.permute.xlu0 %4124
  %4126 = vrot.lane.b32.xlu0 %v2569, 32
  %v4127 = vpop.permute.xlu0 %4126
  %4128 = vrot.lane.b32.xlu0 %v2570, 32
  %v4129 = vpop.permute.xlu0 %4128
  %4130 = vrot.lane.b32.xlu0 %v2571, 32
  %v4131 = vpop.permute.xlu0 %4130
  %4132 = vrot.lane.b32.xlu0 %v2572, 32
  %v4133 = vpop.permute.xlu0 %4132
  %4134 = vrot.lane.b32.xlu0 %v2573, 32
  %v4135 = vpop.permute.xlu0 %4134
  %4136 = vrot.lane.b32.xlu0 %v2574, 32
  %v4137 = vpop.permute.xlu0 %4136
  %4138 = vrot.lane.b32.xlu0 %v2575, 32
  %v4139 = vpop.permute.xlu0 %4138
  %4140 = vrot.lane.b32.xlu0 %v2576, 32
  %v4141 = vpop.permute.xlu0 %4140
  %4142 = vrot.lane.b32.xlu0 %v2577, 32
  %v4143 = vpop.permute.xlu0 %4142
  %4144 = vrot.lane.b32.xlu0 %v2578, 32
  %v4145 = vpop.permute.xlu0 %4144
  %4146 = vrot.lane.b32.xlu0 %v2579, 32
  %v4147 = vpop.permute.xlu0 %4146
  %4148 = vrot.lane.b32.xlu0 %v2580, 32
  %v4149 = vpop.permute.xlu0 %4148
  %4150 = vrot.lane.b32.xlu0 %v2581, 32
  %v4151 = vpop.permute.xlu0 %4150
  %4152 = vrot.lane.b32.xlu0 %v2582, 32
  %v4153 = vpop.permute.xlu0 %4152
  %4154 = vrot.lane.b32.xlu0 %v2583, 32
  %v4155 = vpop.permute.xlu0 %4154
  %4156 = vrot.lane.b32.xlu0 %v2584, 32
  %v4157 = vpop.permute.xlu0 %4156
  %4158 = vrot.lane.b32.xlu0 %v2585, 32
  %v4159 = vpop.permute.xlu0 %4158
  %4160 = vrot.lane.b32.xlu0 %v2586, 32
  %v4161 = vpop.permute.xlu0 %4160
  %4162 = vrot.lane.b32.xlu0 %v2587, 32
  %v4163 = vpop.permute.xlu0 %4162
  %v4168 = vunpack.c.l.b16 %v4118
  %v4169 = vunpack.c.l.b16 %v4119
  %v4170 = vunpack.c.l.b16 %v4120
  %v4171 = vunpack.c.l.b16 %v4121
  %v4172 = vpack.c.b16 %v4169, %v4168
  %v4173 = vpack.c.b16 %v4171, %v4170
  %v4177 = vsel %vm1117, %v4123, 0
  %v4180 = vsel %vm1117, %v4125, 0
  %v4183 = vsel %vm1117, %v4127, 0
  %v4186 = vsel %vm1117, %v4129, 0
  %v4189 = vsel %vm1117, %v4131, 0
  %v4192 = vsel %vm1117, %v4133, 0
  %v4195 = vsel %vm1117, %v4135, 0
  %v4198 = vsel %vm1117, %v4137, 0
  %v4201 = vsel %vm1117, %v4139, 0
  %v4204 = vsel %vm1117, %v4141, 0
  %v4207 = vsel %vm1117, %v4143, 0
  %v4210 = vsel %vm1117, %v4145, 0
  %v4213 = vsel %vm1117, %v4147, 0
  %v4216 = vsel %vm1117, %v4149, 0
  %v4219 = vsel %vm1117, %v4151, 0
  %v4222 = vsel %vm1117, %v4153, 0
  %v4225 = vsel %vm1117, %v4155, 0
  %v4228 = vsel %vm1117, %v4157, 0
  %v4231 = vsel %vm1117, %v4159, 0
  %v4234 = vsel %vm1117, %v4161, 0
  %v4237 = vsel %vm1117, %v4163, 0
  %4239 = vmatprep.subr.bf16.mxu0 0
  %4240 = vmatpush1.bf16.msra.mxu0 0
  %4241 = vmatprep.subr.bf16.mxu0 0
  %4242 = vmatpush1.bf16.msra.mxu0 0
  %4243 = vmatprep.subr.bf16.mxu0 0
  %4244 = vmatpush1.bf16.msra.mxu0 0
  %4245 = vmatprep.subr.bf16.mxu0 0
  %4246 = vmatpush1.bf16.msra.mxu0 0
  %4247 = vmatprep.subr.bf16.mxu0 0
  %4248 = vmatpush1.bf16.msra.mxu0 0
  %4249 = vmatprep.subr.bf16.mxu0 0
  %4250 = vmatpush1.bf16.msra.mxu0 0
  %4251 = vmatprep.subr.bf16.mxu0 0
  %4252 = vmatpush1.bf16.msra.mxu0 %v4173
  %4253 = vmatprep.subr.bf16.mxu0 0
  %4254 = vmatpush1.bf16.msra.mxu0 %v4172
  %4255 = vmatprep.subr.bf16.mxu0 0
  %4256 = vmatpush2.bf16.msra.mxu0 0
  %4257 = vmatprep.subr.bf16.mxu0 0
  %4258 = vmatpush2.bf16.msra.mxu0 0
  %4259 = vmatprep.subr.bf16.mxu0 0
  %4260 = vmatpush2.bf16.msra.mxu0 0
  %4261 = vmatprep.subr.bf16.mxu0 0
  %4262 = vmatpush2.bf16.msra.mxu0 0
  %4263 = vmatprep.subr.bf16.mxu0 0
  %4264 = vmatpush2.bf16.msra.mxu0 0
  %4265 = vmatprep.subr.bf16.mxu0 0
  %4266 = vmatpush2.bf16.msra.mxu0 0
  %4267 = vmatprep.subr.bf16.mxu0 0
  %4268 = vmatpush2.bf16.msra.mxu0 0
  %4269 = vmatprep.subr.bf16.mxu0 0
  %4270 = vmatpush2.bf16.msra.mxu0 0
  %4271 = vmatprep.mubr.bf16.mxu0 0
  %4272 = vmatmul.mubr.bf16.gmra.mxu0 %v4177
  %v4273 = vpop.f32.mrf.mxu0
  %v4274 = vadd.f32 0.0, %v4273
  %v4275 = vpop.f32.mrf.mxu0
  %v4276 = vpop.f32.mrf.mxu0
  %v4277 = vadd.f32 0.0, %v4276
  %v4278 = vpop.f32.mrf.mxu0
  %4279 = vmatprep.mubr.bf16.mxu0 0
  %4280 = vmatmul.mubr.bf16.gmra.mxu0 %v4180
  %v4281 = vpop.f32.mrf.mxu0
  %v4282 = vadd.f32 0.0, %v4281
  %v4283 = vpop.f32.mrf.mxu0
  %v4284 = vpop.f32.mrf.mxu0
  %v4285 = vadd.f32 0.0, %v4284
  %v4286 = vpop.f32.mrf.mxu0
  %4287 = vmatprep.mubr.bf16.mxu0 0
  %4288 = vmatmul.mubr.bf16.gmra.mxu0 %v4183
  %v4289 = vpop.f32.mrf.mxu0
  %v4290 = vadd.f32 0.0, %v4289
  %v4291 = vpop.f32.mrf.mxu0
  %v4292 = vpop.f32.mrf.mxu0
  %v4293 = vadd.f32 0.0, %v4292
  %v4294 = vpop.f32.mrf.mxu0
  %4295 = vmatprep.mubr.bf16.mxu0 0
  %4296 = vmatmul.mubr.bf16.gmra.mxu0 %v4186
  %v4297 = vpop.f32.mrf.mxu0
  %v4298 = vadd.f32 0.0, %v4297
  %v4299 = vpop.f32.mrf.mxu0
  %v4300 = vpop.f32.mrf.mxu0
  %v4301 = vadd.f32 0.0, %v4300
  %v4302 = vpop.f32.mrf.mxu0
  %4303 = vmatprep.mubr.bf16.mxu0 0
  %4304 = vmatmul.mubr.bf16.gmra.mxu0 %v4189
  %v4305 = vpop.f32.mrf.mxu0
  %v4306 = vadd.f32 0.0, %v4305
  %v4307 = vpop.f32.mrf.mxu0
  %v4308 = vpop.f32.mrf.mxu0
  %v4309 = vadd.f32 0.0, %v4308
  %v4310 = vpop.f32.mrf.mxu0
  %4311 = vmatprep.mubr.bf16.mxu0 0
  %4312 = vmatmul.mubr.bf16.gmra.mxu0 %v4192
  %v4313 = vpop.f32.mrf.mxu0
  %v4314 = vadd.f32 0.0, %v4313
  %v4315 = vpop.f32.mrf.mxu0
  %v4316 = vpop.f32.mrf.mxu0
  %v4317 = vadd.f32 0.0, %v4316
  %v4318 = vpop.f32.mrf.mxu0
  %4319 = vmatprep.mubr.bf16.mxu0 0
  %4320 = vmatmul.mubr.bf16.gmra.mxu0 %v4195
  %v4321 = vpop.f32.mrf.mxu0
  %v4322 = vadd.f32 0.0, %v4321
  %v4323 = vpop.f32.mrf.mxu0
  %v4324 = vpop.f32.mrf.mxu0
  %v4325 = vadd.f32 0.0, %v4324
  %v4326 = vpop.f32.mrf.mxu0
  %4327 = vmatprep.mubr.bf16.mxu0 0
  %4328 = vmatmul.mubr.bf16.gmra.mxu0 %v4198
  %v4329 = vpop.f32.mrf.mxu0
  %v4330 = vadd.f32 0.0, %v4329
  %v4331 = vpop.f32.mrf.mxu0
  %v4332 = vpop.f32.mrf.mxu0
  %v4333 = vadd.f32 0.0, %v4332
  %v4334 = vpop.f32.mrf.mxu0
  %4335 = vmatprep.mubr.bf16.mxu0 0
  %4336 = vmatmul.mubr.bf16.gmra.mxu0 %v4201
  %v4337 = vpop.f32.mrf.mxu0
  %v4338 = vadd.f32 0.0, %v4337
  %v4339 = vpop.f32.mrf.mxu0
  %v4340 = vpop.f32.mrf.mxu0
  %v4341 = vadd.f32 0.0, %v4340
  %v4342 = vpop.f32.mrf.mxu0
  %4343 = vmatprep.mubr.bf16.mxu0 0
  %4344 = vmatmul.mubr.bf16.gmra.mxu0 %v4204
  %v4345 = vpop.f32.mrf.mxu0
  %v4346 = vadd.f32 0.0, %v4345
  %v4347 = vpop.f32.mrf.mxu0
  %v4348 = vpop.f32.mrf.mxu0
  %v4349 = vadd.f32 0.0, %v4348
  %v4350 = vpop.f32.mrf.mxu0
  %4351 = vmatprep.mubr.bf16.mxu0 0
  %4352 = vmatmul.mubr.bf16.gmra.mxu0 %v4207
  %v4353 = vpop.f32.mrf.mxu0
  %v4354 = vadd.f32 0.0, %v4353
  %v4355 = vpop.f32.mrf.mxu0
  %v4356 = vpop.f32.mrf.mxu0
  %v4357 = vadd.f32 0.0, %v4356
  %v4358 = vpop.f32.mrf.mxu0
  %4359 = vmatprep.mubr.bf16.mxu0 0
  %4360 = vmatmul.mubr.bf16.gmra.mxu0 %v4210
  %v4361 = vpop.f32.mrf.mxu0
  %v4362 = vadd.f32 0.0, %v4361
  %v4363 = vpop.f32.mrf.mxu0
  %v4364 = vpop.f32.mrf.mxu0
  %v4365 = vadd.f32 0.0, %v4364
  %v4366 = vpop.f32.mrf.mxu0
  %4367 = vmatprep.mubr.bf16.mxu0 0
  %4368 = vmatmul.mubr.bf16.gmra.mxu0 %v4213
  %v4369 = vpop.f32.mrf.mxu0
  %v4370 = vadd.f32 0.0, %v4369
  %v4371 = vpop.f32.mrf.mxu0
  %v4372 = vpop.f32.mrf.mxu0
  %v4373 = vadd.f32 0.0, %v4372
  %v4374 = vpop.f32.mrf.mxu0
  %4375 = vmatprep.mubr.bf16.mxu0 0
  %4376 = vmatmul.mubr.bf16.gmra.mxu0 %v4216
  %v4377 = vpop.f32.mrf.mxu0
  %v4378 = vadd.f32 0.0, %v4377
  %v4379 = vpop.f32.mrf.mxu0
  %v4380 = vpop.f32.mrf.mxu0
  %v4381 = vadd.f32 0.0, %v4380
  %v4382 = vpop.f32.mrf.mxu0
  %4383 = vmatprep.mubr.bf16.mxu0 0
  %4384 = vmatmul.mubr.bf16.gmra.mxu0 %v4219
  %v4385 = vpop.f32.mrf.mxu0
  %v4386 = vadd.f32 0.0, %v4385
  %v4387 = vpop.f32.mrf.mxu0
  %v4388 = vpop.f32.mrf.mxu0
  %v4389 = vadd.f32 0.0, %v4388
  %v4390 = vpop.f32.mrf.mxu0
  %4391 = vmatprep.mubr.bf16.mxu0 0
  %4392 = vmatmul.mubr.bf16.gmra.mxu0 %v4222
  %v4393 = vpop.f32.mrf.mxu0
  %v4394 = vadd.f32 0.0, %v4393
  %v4395 = vpop.f32.mrf.mxu0
  %v4396 = vpop.f32.mrf.mxu0
  %v4397 = vadd.f32 0.0, %v4396
  %v4398 = vpop.f32.mrf.mxu0
  %4399 = vmatprep.mubr.bf16.mxu0 0
  %4400 = vmatmul.mubr.bf16.gmra.mxu0 %v4225
  %v4401 = vpop.f32.mrf.mxu0
  %v4402 = vadd.f32 0.0, %v4401
  %v4403 = vpop.f32.mrf.mxu0
  %v4404 = vpop.f32.mrf.mxu0
  %v4405 = vadd.f32 0.0, %v4404
  %v4406 = vpop.f32.mrf.mxu0
  %4407 = vmatprep.mubr.bf16.mxu0 0
  %4408 = vmatmul.mubr.bf16.gmra.mxu0 %v4228
  %v4409 = vpop.f32.mrf.mxu0
  %v4410 = vadd.f32 0.0, %v4409
  %v4411 = vpop.f32.mrf.mxu0
  %v4412 = vpop.f32.mrf.mxu0
  %v4413 = vadd.f32 0.0, %v4412
  %v4414 = vpop.f32.mrf.mxu0
  %4415 = vmatprep.mubr.bf16.mxu0 0
  %4416 = vmatmul.mubr.bf16.gmra.mxu0 %v4231
  %v4417 = vpop.f32.mrf.mxu0
  %v4418 = vadd.f32 0.0, %v4417
  %v4419 = vpop.f32.mrf.mxu0
  %v4420 = vpop.f32.mrf.mxu0
  %v4421 = vadd.f32 0.0, %v4420
  %v4422 = vpop.f32.mrf.mxu0
  %4423 = vmatprep.mubr.bf16.mxu0 0
  %4424 = vmatmul.mubr.bf16.gmra.mxu0 %v4234
  %v4425 = vpop.f32.mrf.mxu0
  %v4426 = vadd.f32 0.0, %v4425
  %v4427 = vpop.f32.mrf.mxu0
  %v4428 = vpop.f32.mrf.mxu0
  %v4429 = vadd.f32 0.0, %v4428
  %v4430 = vpop.f32.mrf.mxu0
  %4431 = vmatprep.mubr.bf16.mxu0 0
  %4432 = vmatmul.mubr.bf16.gmra.mxu0 %v4237
  %v4433 = vpop.f32.mrf.mxu0
  %v4434 = vadd.f32 0.0, %v4433
  %v4435 = vpop.f32.mrf.mxu0
  %v4436 = vpop.f32.mrf.mxu0
  %v4437 = vpop.f32.mrf.mxu0
  %4438 = vdwg.mxu0
  %v4439 = vadd.f32 %v4077, %v4274
  %v4440 = vadd.f32 %v4078, %v4277
  %v4441 = vadd.f32 %v4079, %v4282
  %v4442 = vadd.f32 %v4080, %v4285
  %v4443 = vadd.f32 %v4081, %v4290
  %v4444 = vadd.f32 %v4082, %v4293
  %v4445 = vadd.f32 %v4083, %v4298
  %v4446 = vadd.f32 %v4084, %v4301
  %v4447 = vadd.f32 %v4085, %v4306
  %v4448 = vadd.f32 %v4086, %v4309
  %v4449 = vadd.f32 %v4087, %v4314
  %v4450 = vadd.f32 %v4088, %v4317
  %v4451 = vadd.f32 %v4089, %v4322
  %v4452 = vadd.f32 %v4090, %v4325
  %v4453 = vadd.f32 %v4091, %v4330
  %v4454 = vadd.f32 %v4092, %v4333
  %v4455 = vadd.f32 %v4093, %v4338
  %v4456 = vadd.f32 %v4094, %v4341
  %v4457 = vadd.f32 %v4095, %v4346
  %v4458 = vadd.f32 %v4096, %v4349
  %v4459 = vadd.f32 %v4097, %v4354
  %v4460 = vadd.f32 %v4098, %v4357
  %v4461 = vadd.f32 %v4099, %v4362
  %v4462 = vadd.f32 %v4100, %v4365
  %v4463 = vadd.f32 %v4101, %v4370
  %v4464 = vadd.f32 %v4102, %v4373
  %v4465 = vadd.f32 %v4103, %v4378
  %v4466 = vadd.f32 %v4104, %v4381
  %v4467 = vadd.f32 %v4105, %v4386
  %v4468 = vadd.f32 %v4106, %v4389
  %v4469 = vadd.f32 %v4107, %v4394
  %v4470 = vadd.f32 %v4108, %v4397
  %v4471 = vadd.f32 %v4109, %v4402
  %v4472 = vadd.f32 %v4110, %v4405
  %v4473 = vadd.f32 %v4111, %v4410
  %v4474 = vadd.f32 %v4112, %v4413
  %v4475 = vadd.f32 %v4113, %v4418
  %v4476 = vadd.f32 %v4114, %v4421
  %v4477 = vadd.f32 %v4115, %v4426
  %v4478 = vadd.f32 %v4116, %v4429
  %v4479 = vadd.f32 %v4117, %v4434
  %v4480 = vld [vmem:[%s5 + $0x90] sm:$0xf]
  %v4481 = vld [vmem:[%s5 + $0x94] sm:$0xf]
  %v4482 = vld [vmem:[%s5 + $0x98] sm:$0xf]
  %v4483 = vld [vmem:[%s5 + $0x9c] sm:$0xf]
  %4484 = vrot.lane.b32.xlu0 %v3012, 64
  %v4485 = vpop.permute.xlu0 %4484
  %4486 = vrot.lane.b32.xlu0 %v3013, 64
  %v4487 = vpop.permute.xlu0 %4486
  %4488 = vrot.lane.b32.xlu0 %v3014, 64
  %v4489 = vpop.permute.xlu0 %4488
  %4490 = vrot.lane.b32.xlu0 %v3015, 64
  %v4491 = vpop.permute.xlu0 %4490
  %4492 = vrot.lane.b32.xlu0 %v3016, 64
  %v4493 = vpop.permute.xlu0 %4492
  %4494 = vrot.lane.b32.xlu0 %v3017, 64
  %v4495 = vpop.permute.xlu0 %4494
  %4496 = vrot.lane.b32.xlu0 %v3018, 64
  %v4497 = vpop.permute.xlu0 %4496
  %4498 = vrot.lane.b32.xlu0 %v3019, 64
  %v4499 = vpop.permute.xlu0 %4498
  %4500 = vrot.lane.b32.xlu0 %v3020, 64
  %v4501 = vpop.permute.xlu0 %4500
  %4502 = vrot.lane.b32.xlu0 %v3021, 64
  %v4503 = vpop.permute.xlu0 %4502
  %4504 = vrot.lane.b32.xlu0 %v3022, 64
  %v4505 = vpop.permute.xlu0 %4504
  %4506 = vrot.lane.b32.xlu0 %v3023, 64
  %v4507 = vpop.permute.xlu0 %4506
  %4508 = vrot.lane.b32.xlu0 %v3024, 64
  %v4509 = vpop.permute.xlu0 %4508
  %4510 = vrot.lane.b32.xlu0 %v3025, 64
  %v4511 = vpop.permute.xlu0 %4510
  %4512 = vrot.lane.b32.xlu0 %v3026, 64
  %v4513 = vpop.permute.xlu0 %4512
  %4514 = vrot.lane.b32.xlu0 %v3027, 64
  %v4515 = vpop.permute.xlu0 %4514
  %4516 = vrot.lane.b32.xlu0 %v3028, 64
  %v4517 = vpop.permute.xlu0 %4516
  %4518 = vrot.lane.b32.xlu0 %v3029, 64
  %v4519 = vpop.permute.xlu0 %4518
  %4520 = vrot.lane.b32.xlu0 %v3030, 64
  %v4521 = vpop.permute.xlu0 %4520
  %4522 = vrot.lane.b32.xlu0 %v3031, 64
  %v4523 = vpop.permute.xlu0 %4522
  %4524 = vrot.lane.b32.xlu0 %v3032, 64
  %v4525 = vpop.permute.xlu0 %4524
  %v4530 = vunpack.c.l.b16 %v4480
  %v4531 = vunpack.c.l.b16 %v4481
  %v4532 = vunpack.c.l.b16 %v4482
  %v4533 = vunpack.c.l.b16 %v4483
  %v4534 = vpack.c.b16 %v4531, %v4530
  %v4535 = vpack.c.b16 %v4533, %v4532
  %v4539 = vsel %vm1117, %v4485, 0
  %v4542 = vsel %vm1117, %v4487, 0
  %v4545 = vsel %vm1117, %v4489, 0
  %v4548 = vsel %vm1117, %v4491, 0
  %v4551 = vsel %vm1117, %v4493, 0
  %v4554 = vsel %vm1117, %v4495, 0
  %v4557 = vsel %vm1117, %v4497, 0
  %v4560 = vsel %vm1117, %v4499, 0
  %v4563 = vsel %vm1117, %v4501, 0
  %v4566 = vsel %vm1117, %v4503, 0
  %v4569 = vsel %vm1117, %v4505, 0
  %v4572 = vsel %vm1117, %v4507, 0
  %v4575 = vsel %vm1117, %v4509, 0
  %v4578 = vsel %vm1117, %v4511, 0
  %v4581 = vsel %vm1117, %v4513, 0
  %v4584 = vsel %vm1117, %v4515, 0
  %v4587 = vsel %vm1117, %v4517, 0
  %v4590 = vsel %vm1117, %v4519, 0
  %v4593 = vsel %vm1117, %v4521, 0
  %v4596 = vsel %vm1117, %v4523, 0
  %v4599 = vsel %vm1117, %v4525, 0
  %4601 = vmatprep.subr.bf16.mxu0 0
  %4602 = vmatpush1.bf16.msra.mxu0 0
  %4603 = vmatprep.subr.bf16.mxu0 0
  %4604 = vmatpush1.bf16.msra.mxu0 0
  %4605 = vmatprep.subr.bf16.mxu0 0
  %4606 = vmatpush1.bf16.msra.mxu0 0
  %4607 = vmatprep.subr.bf16.mxu0 0
  %4608 = vmatpush1.bf16.msra.mxu0 0
  %4609 = vmatprep.subr.bf16.mxu0 0
  %4610 = vmatpush1.bf16.msra.mxu0 0
  %4611 = vmatprep.subr.bf16.mxu0 0
  %4612 = vmatpush1.bf16.msra.mxu0 0
  %4613 = vmatprep.subr.bf16.mxu0 0
  %4614 = vmatpush1.bf16.msra.mxu0 %v4535
  %4615 = vmatprep.subr.bf16.mxu0 0
  %4616 = vmatpush1.bf16.msra.mxu0 %v4534
  %4617 = vmatprep.subr.bf16.mxu0 0
  %4618 = vmatpush2.bf16.msra.mxu0 0
  %4619 = vmatprep.subr.bf16.mxu0 0
  %4620 = vmatpush2.bf16.msra.mxu0 0
  %4621 = vmatprep.subr.bf16.mxu0 0
  %4622 = vmatpush2.bf16.msra.mxu0 0
  %4623 = vmatprep.subr.bf16.mxu0 0
  %4624 = vmatpush2.bf16.msra.mxu0 0
  %4625 = vmatprep.subr.bf16.mxu0 0
  %4626 = vmatpush2.bf16.msra.mxu0 0
  %4627 = vmatprep.subr.bf16.mxu0 0
  %4628 = vmatpush2.bf16.msra.mxu0 0
  %4629 = vmatprep.subr.bf16.mxu0 0
  %4630 = vmatpush2.bf16.msra.mxu0 0
  %4631 = vmatprep.subr.bf16.mxu0 0
  %4632 = vmatpush2.bf16.msra.mxu0 0
  %4633 = vmatprep.mubr.bf16.mxu0 0
  %4634 = vmatmul.mubr.bf16.gmra.mxu0 %v4539
  %v4635 = vpop.f32.mrf.mxu0
  %v4636 = vadd.f32 0.0, %v4635
  %v4637 = vpop.f32.mrf.mxu0
  %v4638 = vpop.f32.mrf.mxu0
  %v4639 = vadd.f32 0.0, %v4638
  %v4640 = vpop.f32.mrf.mxu0
  %4641 = vmatprep.mubr.bf16.mxu0 0
  %4642 = vmatmul.mubr.bf16.gmra.mxu0 %v4542
  %v4643 = vpop.f32.mrf.mxu0
  %v4644 = vadd.f32 0.0, %v4643
  %v4645 = vpop.f32.mrf.mxu0
  %v4646 = vpop.f32.mrf.mxu0
  %v4647 = vadd.f32 0.0, %v4646
  %v4648 = vpop.f32.mrf.mxu0
  %4649 = vmatprep.mubr.bf16.mxu0 0
  %4650 = vmatmul.mubr.bf16.gmra.mxu0 %v4545
  %v4651 = vpop.f32.mrf.mxu0
  %v4652 = vadd.f32 0.0, %v4651
  %v4653 = vpop.f32.mrf.mxu0
  %v4654 = vpop.f32.mrf.mxu0
  %v4655 = vadd.f32 0.0, %v4654
  %v4656 = vpop.f32.mrf.mxu0
  %4657 = vmatprep.mubr.bf16.mxu0 0
  %4658 = vmatmul.mubr.bf16.gmra.mxu0 %v4548
  %v4659 = vpop.f32.mrf.mxu0
  %v4660 = vadd.f32 0.0, %v4659
  %v4661 = vpop.f32.mrf.mxu0
  %v4662 = vpop.f32.mrf.mxu0
  %v4663 = vadd.f32 0.0, %v4662
  %v4664 = vpop.f32.mrf.mxu0
  %4665 = vmatprep.mubr.bf16.mxu0 0
  %4666 = vmatmul.mubr.bf16.gmra.mxu0 %v4551
  %v4667 = vpop.f32.mrf.mxu0
  %v4668 = vadd.f32 0.0, %v4667
  %v4669 = vpop.f32.mrf.mxu0
  %v4670 = vpop.f32.mrf.mxu0
  %v4671 = vadd.f32 0.0, %v4670
  %v4672 = vpop.f32.mrf.mxu0
  %4673 = vmatprep.mubr.bf16.mxu0 0
  %4674 = vmatmul.mubr.bf16.gmra.mxu0 %v4554
  %v4675 = vpop.f32.mrf.mxu0
  %v4676 = vadd.f32 0.0, %v4675
  %v4677 = vpop.f32.mrf.mxu0
  %v4678 = vpop.f32.mrf.mxu0
  %v4679 = vadd.f32 0.0, %v4678
  %v4680 = vpop.f32.mrf.mxu0
  %4681 = vmatprep.mubr.bf16.mxu0 0
  %4682 = vmatmul.mubr.bf16.gmra.mxu0 %v4557
  %v4683 = vpop.f32.mrf.mxu0
  %v4684 = vadd.f32 0.0, %v4683
  %v4685 = vpop.f32.mrf.mxu0
  %v4686 = vpop.f32.mrf.mxu0
  %v4687 = vadd.f32 0.0, %v4686
  %v4688 = vpop.f32.mrf.mxu0
  %4689 = vmatprep.mubr.bf16.mxu0 0
  %4690 = vmatmul.mubr.bf16.gmra.mxu0 %v4560
  %v4691 = vpop.f32.mrf.mxu0
  %v4692 = vadd.f32 0.0, %v4691
  %v4693 = vpop.f32.mrf.mxu0
  %v4694 = vpop.f32.mrf.mxu0
  %v4695 = vadd.f32 0.0, %v4694
  %v4696 = vpop.f32.mrf.mxu0
  %4697 = vmatprep.mubr.bf16.mxu0 0
  %4698 = vmatmul.mubr.bf16.gmra.mxu0 %v4563
  %v4699 = vpop.f32.mrf.mxu0
  %v4700 = vadd.f32 0.0, %v4699
  %v4701 = vpop.f32.mrf.mxu0
  %v4702 = vpop.f32.mrf.mxu0
  %v4703 = vadd.f32 0.0, %v4702
  %v4704 = vpop.f32.mrf.mxu0
  %4705 = vmatprep.mubr.bf16.mxu0 0
  %4706 = vmatmul.mubr.bf16.gmra.mxu0 %v4566
  %v4707 = vpop.f32.mrf.mxu0
  %v4708 = vadd.f32 0.0, %v4707
  %v4709 = vpop.f32.mrf.mxu0
  %v4710 = vpop.f32.mrf.mxu0
  %v4711 = vadd.f32 0.0, %v4710
  %v4712 = vpop.f32.mrf.mxu0
  %4713 = vmatprep.mubr.bf16.mxu0 0
  %4714 = vmatmul.mubr.bf16.gmra.mxu0 %v4569
  %v4715 = vpop.f32.mrf.mxu0
  %v4716 = vadd.f32 0.0, %v4715
  %v4717 = vpop.f32.mrf.mxu0
  %v4718 = vpop.f32.mrf.mxu0
  %v4719 = vadd.f32 0.0, %v4718
  %v4720 = vpop.f32.mrf.mxu0
  %4721 = vmatprep.mubr.bf16.mxu0 0
  %4722 = vmatmul.mubr.bf16.gmra.mxu0 %v4572
  %v4723 = vpop.f32.mrf.mxu0
  %v4724 = vadd.f32 0.0, %v4723
  %v4725 = vpop.f32.mrf.mxu0
  %v4726 = vpop.f32.mrf.mxu0
  %v4727 = vadd.f32 0.0, %v4726
  %v4728 = vpop.f32.mrf.mxu0
  %4729 = vmatprep.mubr.bf16.mxu0 0
  %4730 = vmatmul.mubr.bf16.gmra.mxu0 %v4575
  %v4731 = vpop.f32.mrf.mxu0
  %v4732 = vadd.f32 0.0, %v4731
  %v4733 = vpop.f32.mrf.mxu0
  %v4734 = vpop.f32.mrf.mxu0
  %v4735 = vadd.f32 0.0, %v4734
  %v4736 = vpop.f32.mrf.mxu0
  %4737 = vmatprep.mubr.bf16.mxu0 0
  %4738 = vmatmul.mubr.bf16.gmra.mxu0 %v4578
  %v4739 = vpop.f32.mrf.mxu0
  %v4740 = vadd.f32 0.0, %v4739
  %v4741 = vpop.f32.mrf.mxu0
  %v4742 = vpop.f32.mrf.mxu0
  %v4743 = vadd.f32 0.0, %v4742
  %v4744 = vpop.f32.mrf.mxu0
  %4745 = vmatprep.mubr.bf16.mxu0 0
  %4746 = vmatmul.mubr.bf16.gmra.mxu0 %v4581
  %v4747 = vpop.f32.mrf.mxu0
  %v4748 = vadd.f32 0.0, %v4747
  %v4749 = vpop.f32.mrf.mxu0
  %v4750 = vpop.f32.mrf.mxu0
  %v4751 = vadd.f32 0.0, %v4750
  %v4752 = vpop.f32.mrf.mxu0
  %4753 = vmatprep.mubr.bf16.mxu0 0
  %4754 = vmatmul.mubr.bf16.gmra.mxu0 %v4584
  %v4755 = vpop.f32.mrf.mxu0
  %v4756 = vadd.f32 0.0, %v4755
  %v4757 = vpop.f32.mrf.mxu0
  %v4758 = vpop.f32.mrf.mxu0
  %v4759 = vadd.f32 0.0, %v4758
  %v4760 = vpop.f32.mrf.mxu0
  %4761 = vmatprep.mubr.bf16.mxu0 0
  %4762 = vmatmul.mubr.bf16.gmra.mxu0 %v4587
  %v4763 = vpop.f32.mrf.mxu0
  %v4764 = vadd.f32 0.0, %v4763
  %v4765 = vpop.f32.mrf.mxu0
  %v4766 = vpop.f32.mrf.mxu0
  %v4767 = vadd.f32 0.0, %v4766
  %v4768 = vpop.f32.mrf.mxu0
  %4769 = vmatprep.mubr.bf16.mxu0 0
  %4770 = vmatmul.mubr.bf16.gmra.mxu0 %v4590
  %v4771 = vpop.f32.mrf.mxu0
  %v4772 = vadd.f32 0.0, %v4771
  %v4773 = vpop.f32.mrf.mxu0
  %v4774 = vpop.f32.mrf.mxu0
  %v4775 = vadd.f32 0.0, %v4774
  %v4776 = vpop.f32.mrf.mxu0
  %4777 = vmatprep.mubr.bf16.mxu0 0
  %4778 = vmatmul.mubr.bf16.gmra.mxu0 %v4593
  %v4779 = vpop.f32.mrf.mxu0
  %v4780 = vadd.f32 0.0, %v4779
  %v4781 = vpop.f32.mrf.mxu0
  %v4782 = vpop.f32.mrf.mxu0
  %v4783 = vadd.f32 0.0, %v4782
  %v4784 = vpop.f32.mrf.mxu0
  %4785 = vmatprep.mubr.bf16.mxu0 0
  %4786 = vmatmul.mubr.bf16.gmra.mxu0 %v4596
  %v4787 = vpop.f32.mrf.mxu0
  %v4788 = vadd.f32 0.0, %v4787
  %v4789 = vpop.f32.mrf.mxu0
  %v4790 = vpop.f32.mrf.mxu0
  %v4791 = vadd.f32 0.0, %v4790
  %v4792 = vpop.f32.mrf.mxu0
  %4793 = vmatprep.mubr.bf16.mxu0 0
  %4794 = vmatmul.mubr.bf16.gmra.mxu0 %v4599
  %v4795 = vpop.f32.mrf.mxu0
  %v4796 = vadd.f32 0.0, %v4795
  %v4797 = vpop.f32.mrf.mxu0
  %v4798 = vpop.f32.mrf.mxu0
  %v4799 = vpop.f32.mrf.mxu0
  %4800 = vdwg.mxu0
  %v4801 = vadd.f32 %v4439, %v4636
  %v4802 = vadd.f32 %v4440, %v4639
  %v4803 = vadd.f32 %v4441, %v4644
  %v4804 = vadd.f32 %v4442, %v4647
  %v4805 = vadd.f32 %v4443, %v4652
  %v4806 = vadd.f32 %v4444, %v4655
  %v4807 = vadd.f32 %v4445, %v4660
  %v4808 = vadd.f32 %v4446, %v4663
  %v4809 = vadd.f32 %v4447, %v4668
  %v4810 = vadd.f32 %v4448, %v4671
  %v4811 = vadd.f32 %v4449, %v4676
  %v4812 = vadd.f32 %v4450, %v4679
  %v4813 = vadd.f32 %v4451, %v4684
  %v4814 = vadd.f32 %v4452, %v4687
  %v4815 = vadd.f32 %v4453, %v4692
  %v4816 = vadd.f32 %v4454, %v4695
  %v4817 = vadd.f32 %v4455, %v4700
  %v4818 = vadd.f32 %v4456, %v4703
  %v4819 = vadd.f32 %v4457, %v4708
  %v4820 = vadd.f32 %v4458, %v4711
  %v4821 = vadd.f32 %v4459, %v4716
  %v4822 = vadd.f32 %v4460, %v4719
  %v4823 = vadd.f32 %v4461, %v4724
  %v4824 = vadd.f32 %v4462, %v4727
  %v4825 = vadd.f32 %v4463, %v4732
  %v4826 = vadd.f32 %v4464, %v4735
  %v4827 = vadd.f32 %v4465, %v4740
  %v4828 = vadd.f32 %v4466, %v4743
  %v4829 = vadd.f32 %v4467, %v4748
  %v4830 = vadd.f32 %v4468, %v4751
  %v4831 = vadd.f32 %v4469, %v4756
  %v4832 = vadd.f32 %v4470, %v4759
  %v4833 = vadd.f32 %v4471, %v4764
  %v4834 = vadd.f32 %v4472, %v4767
  %v4835 = vadd.f32 %v4473, %v4772
  %v4836 = vadd.f32 %v4474, %v4775
  %v4837 = vadd.f32 %v4475, %v4780
  %v4838 = vadd.f32 %v4476, %v4783
  %v4839 = vadd.f32 %v4477, %v4788
  %v4840 = vadd.f32 %v4478, %v4791
  %v4841 = vadd.f32 %v4479, %v4796
  %v4842 = vld [vmem:[%s5 + $0xa0] sm:$0xf]
  %v4843 = vld [vmem:[%s5 + $0xa4] sm:$0xf]
  %v4844 = vld [vmem:[%s5 + $0xa8] sm:$0xf]
  %v4845 = vld [vmem:[%s5 + $0xac] sm:$0xf]
  %4846 = vrot.lane.b32.xlu0 %v3012, 32
  %v4847 = vpop.permute.xlu0 %4846
  %4848 = vrot.lane.b32.xlu0 %v3013, 32
  %v4849 = vpop.permute.xlu0 %4848
  %4850 = vrot.lane.b32.xlu0 %v3014, 32
  %v4851 = vpop.permute.xlu0 %4850
  %4852 = vrot.lane.b32.xlu0 %v3015, 32
  %v4853 = vpop.permute.xlu0 %4852
  %4854 = vrot.lane.b32.xlu0 %v3016, 32
  %v4855 = vpop.permute.xlu0 %4854
  %4856 = vrot.lane.b32.xlu0 %v3017, 32
  %v4857 = vpop.permute.xlu0 %4856
  %4858 = vrot.lane.b32.xlu0 %v3018, 32
  %v4859 = vpop.permute.xlu0 %4858
  %4860 = vrot.lane.b32.xlu0 %v3019, 32
  %v4861 = vpop.permute.xlu0 %4860
  %4862 = vrot.lane.b32.xlu0 %v3020, 32
  %v4863 = vpop.permute.xlu0 %4862
  %4864 = vrot.lane.b32.xlu0 %v3021, 32
  %v4865 = vpop.permute.xlu0 %4864
  %4866 = vrot.lane.b32.xlu0 %v3022, 32
  %v4867 = vpop.permute.xlu0 %4866
  %4868 = vrot.lane.b32.xlu0 %v3023, 32
  %v4869 = vpop.permute.xlu0 %4868
  %4870 = vrot.lane.b32.xlu0 %v3024, 32
  %v4871 = vpop.permute.xlu0 %4870
  %4872 = vrot.lane.b32.xlu0 %v3025, 32
  %v4873 = vpop.permute.xlu0 %4872
  %4874 = vrot.lane.b32.xlu0 %v3026, 32
  %v4875 = vpop.permute.xlu0 %4874
  %4876 = vrot.lane.b32.xlu0 %v3027, 32
  %v4877 = vpop.permute.xlu0 %4876
  %4878 = vrot.lane.b32.xlu0 %v3028, 32
  %v4879 = vpop.permute.xlu0 %4878
  %4880 = vrot.lane.b32.xlu0 %v3029, 32
  %v4881 = vpop.permute.xlu0 %4880
  %4882 = vrot.lane.b32.xlu0 %v3030, 32
  %v4883 = vpop.permute.xlu0 %4882
  %4884 = vrot.lane.b32.xlu0 %v3031, 32
  %v4885 = vpop.permute.xlu0 %4884
  %4886 = vrot.lane.b32.xlu0 %v3032, 32
  %v4887 = vpop.permute.xlu0 %4886
  %v4892 = vunpack.c.l.b16 %v4842
  %v4893 = vunpack.c.l.b16 %v4843
  %v4894 = vunpack.c.l.b16 %v4844
  %v4895 = vunpack.c.l.b16 %v4845
  %v4896 = vpack.c.b16 %v4893, %v4892
  %v4897 = vpack.c.b16 %v4895, %v4894
  %v4901 = vsel %vm1117, %v4847, 0
  %v4904 = vsel %vm1117, %v4849, 0
  %v4907 = vsel %vm1117, %v4851, 0
  %v4910 = vsel %vm1117, %v4853, 0
  %v4913 = vsel %vm1117, %v4855, 0
  %v4916 = vsel %vm1117, %v4857, 0
  %v4919 = vsel %vm1117, %v4859, 0
  %v4922 = vsel %vm1117, %v4861, 0
  %v4925 = vsel %vm1117, %v4863, 0
  %v4928 = vsel %vm1117, %v4865, 0
  %v4931 = vsel %vm1117, %v4867, 0
  %v4934 = vsel %vm1117, %v4869, 0
  %v4937 = vsel %vm1117, %v4871, 0
  %v4940 = vsel %vm1117, %v4873, 0
  %v4943 = vsel %vm1117, %v4875, 0
  %v4946 = vsel %vm1117, %v4877, 0
  %v4949 = vsel %vm1117, %v4879, 0
  %v4952 = vsel %vm1117, %v4881, 0
  %v4955 = vsel %vm1117, %v4883, 0
  %v4958 = vsel %vm1117, %v4885, 0
  %v4961 = vsel %vm1117, %v4887, 0
  %4963 = vmatprep.subr.bf16.mxu0 0
  %4964 = vmatpush1.bf16.msra.mxu0 0
  %4965 = vmatprep.subr.bf16.mxu0 0
  %4966 = vmatpush1.bf16.msra.mxu0 0
  %4967 = vmatprep.subr.bf16.mxu0 0
  %4968 = vmatpush1.bf16.msra.mxu0 0
  %4969 = vmatprep.subr.bf16.mxu0 0
  %4970 = vmatpush1.bf16.msra.mxu0 0
  %4971 = vmatprep.subr.bf16.mxu0 0
  %4972 = vmatpush1.bf16.msra.mxu0 0
  %4973 = vmatprep.subr.bf16.mxu0 0
  %4974 = vmatpush1.bf16.msra.mxu0 0
  %4975 = vmatprep.subr.bf16.mxu0 0
  %4976 = vmatpush1.bf16.msra.mxu0 %v4897
  %4977 = vmatprep.subr.bf16.mxu0 0
  %4978 = vmatpush1.bf16.msra.mxu0 %v4896
  %4979 = vmatprep.subr.bf16.mxu0 0
  %4980 = vmatpush2.bf16.msra.mxu0 0
  %4981 = vmatprep.subr.bf16.mxu0 0
  %4982 = vmatpush2.bf16.msra.mxu0 0
  %4983 = vmatprep.subr.bf16.mxu0 0
  %4984 = vmatpush2.bf16.msra.mxu0 0
  %4985 = vmatprep.subr.bf16.mxu0 0
  %4986 = vmatpush2.bf16.msra.mxu0 0
  %4987 = vmatprep.subr.bf16.mxu0 0
  %4988 = vmatpush2.bf16.msra.mxu0 0
  %4989 = vmatprep.subr.bf16.mxu0 0
  %4990 = vmatpush2.bf16.msra.mxu0 0
  %4991 = vmatprep.subr.bf16.mxu0 0
  %4992 = vmatpush2.bf16.msra.mxu0 0
  %4993 = vmatprep.subr.bf16.mxu0 0
  %4994 = vmatpush2.bf16.msra.mxu0 0
  %4995 = vmatprep.mubr.bf16.mxu0 0
  %4996 = vmatmul.mubr.bf16.gmra.mxu0 %v4901
  %v4997 = vpop.f32.mrf.mxu0
  %v4998 = vadd.f32 0.0, %v4997
  %v4999 = vpop.f32.mrf.mxu0
  %v5000 = vpop.f32.mrf.mxu0
  %v5001 = vadd.f32 0.0, %v5000
  %v5002 = vpop.f32.mrf.mxu0
  %5003 = vmatprep.mubr.bf16.mxu0 0
  %5004 = vmatmul.mubr.bf16.gmra.mxu0 %v4904
  %v5005 = vpop.f32.mrf.mxu0
  %v5006 = vadd.f32 0.0, %v5005
  %v5007 = vpop.f32.mrf.mxu0
  %v5008 = vpop.f32.mrf.mxu0
  %v5009 = vadd.f32 0.0, %v5008
  %v5010 = vpop.f32.mrf.mxu0
  %5011 = vmatprep.mubr.bf16.mxu0 0
  %5012 = vmatmul.mubr.bf16.gmra.mxu0 %v4907
  %v5013 = vpop.f32.mrf.mxu0
  %v5014 = vadd.f32 0.0, %v5013
  %v5015 = vpop.f32.mrf.mxu0
  %v5016 = vpop.f32.mrf.mxu0
  %v5017 = vadd.f32 0.0, %v5016
  %v5018 = vpop.f32.mrf.mxu0
  %5019 = vmatprep.mubr.bf16.mxu0 0
  %5020 = vmatmul.mubr.bf16.gmra.mxu0 %v4910
  %v5021 = vpop.f32.mrf.mxu0
  %v5022 = vadd.f32 0.0, %v5021
  %v5023 = vpop.f32.mrf.mxu0
  %v5024 = vpop.f32.mrf.mxu0
  %v5025 = vadd.f32 0.0, %v5024
  %v5026 = vpop.f32.mrf.mxu0
  %5027 = vmatprep.mubr.bf16.mxu0 0
  %5028 = vmatmul.mubr.bf16.gmra.mxu0 %v4913
  %v5029 = vpop.f32.mrf.mxu0
  %v5030 = vadd.f32 0.0, %v5029
  %v5031 = vpop.f32.mrf.mxu0
  %v5032 = vpop.f32.mrf.mxu0
  %v5033 = vadd.f32 0.0, %v5032
  %v5034 = vpop.f32.mrf.mxu0
  %5035 = vmatprep.mubr.bf16.mxu0 0
  %5036 = vmatmul.mubr.bf16.gmra.mxu0 %v4916
  %v5037 = vpop.f32.mrf.mxu0
  %v5038 = vadd.f32 0.0, %v5037
  %v5039 = vpop.f32.mrf.mxu0
  %v5040 = vpop.f32.mrf.mxu0
  %v5041 = vadd.f32 0.0, %v5040
  %v5042 = vpop.f32.mrf.mxu0
  %5043 = vmatprep.mubr.bf16.mxu0 0
  %5044 = vmatmul.mubr.bf16.gmra.mxu0 %v4919
  %v5045 = vpop.f32.mrf.mxu0
  %v5046 = vadd.f32 0.0, %v5045
  %v5047 = vpop.f32.mrf.mxu0
  %v5048 = vpop.f32.mrf.mxu0
  %v5049 = vadd.f32 0.0, %v5048
  %v5050 = vpop.f32.mrf.mxu0
  %5051 = vmatprep.mubr.bf16.mxu0 0
  %5052 = vmatmul.mubr.bf16.gmra.mxu0 %v4922
  %v5053 = vpop.f32.mrf.mxu0
  %v5054 = vadd.f32 0.0, %v5053
  %v5055 = vpop.f32.mrf.mxu0
  %v5056 = vpop.f32.mrf.mxu0
  %v5057 = vadd.f32 0.0, %v5056
  %v5058 = vpop.f32.mrf.mxu0
  %5059 = vmatprep.mubr.bf16.mxu0 0
  %5060 = vmatmul.mubr.bf16.gmra.mxu0 %v4925
  %v5061 = vpop.f32.mrf.mxu0
  %v5062 = vadd.f32 0.0, %v5061
  %v5063 = vpop.f32.mrf.mxu0
  %v5064 = vpop.f32.mrf.mxu0
  %v5065 = vadd.f32 0.0, %v5064
  %v5066 = vpop.f32.mrf.mxu0
  %5067 = vmatprep.mubr.bf16.mxu0 0
  %5068 = vmatmul.mubr.bf16.gmra.mxu0 %v4928
  %v5069 = vpop.f32.mrf.mxu0
  %v5070 = vadd.f32 0.0, %v5069
  %v5071 = vpop.f32.mrf.mxu0
  %v5072 = vpop.f32.mrf.mxu0
  %v5073 = vadd.f32 0.0, %v5072
  %v5074 = vpop.f32.mrf.mxu0
  %5075 = vmatprep.mubr.bf16.mxu0 0
  %5076 = vmatmul.mubr.bf16.gmra.mxu0 %v4931
  %v5077 = vpop.f32.mrf.mxu0
  %v5078 = vadd.f32 0.0, %v5077
  %v5079 = vpop.f32.mrf.mxu0
  %v5080 = vpop.f32.mrf.mxu0
  %v5081 = vadd.f32 0.0, %v5080
  %v5082 = vpop.f32.mrf.mxu0
  %5083 = vmatprep.mubr.bf16.mxu0 0
  %5084 = vmatmul.mubr.bf16.gmra.mxu0 %v4934
  %v5085 = vpop.f32.mrf.mxu0
  %v5086 = vadd.f32 0.0, %v5085
  %v5087 = vpop.f32.mrf.mxu0
  %v5088 = vpop.f32.mrf.mxu0
  %v5089 = vadd.f32 0.0, %v5088
  %v5090 = vpop.f32.mrf.mxu0
  %5091 = vmatprep.mubr.bf16.mxu0 0
  %5092 = vmatmul.mubr.bf16.gmra.mxu0 %v4937
  %v5093 = vpop.f32.mrf.mxu0
  %v5094 = vadd.f32 0.0, %v5093
  %v5095 = vpop.f32.mrf.mxu0
  %v5096 = vpop.f32.mrf.mxu0
  %v5097 = vadd.f32 0.0, %v5096
  %v5098 = vpop.f32.mrf.mxu0
  %5099 = vmatprep.mubr.bf16.mxu0 0
  %5100 = vmatmul.mubr.bf16.gmra.mxu0 %v4940
  %v5101 = vpop.f32.mrf.mxu0
  %v5102 = vadd.f32 0.0, %v5101
  %v5103 = vpop.f32.mrf.mxu0
  %v5104 = vpop.f32.mrf.mxu0
  %v5105 = vadd.f32 0.0, %v5104
  %v5106 = vpop.f32.mrf.mxu0
  %5107 = vmatprep.mubr.bf16.mxu0 0
  %5108 = vmatmul.mubr.bf16.gmra.mxu0 %v4943
  %v5109 = vpop.f32.mrf.mxu0
  %v5110 = vadd.f32 0.0, %v5109
  %v5111 = vpop.f32.mrf.mxu0
  %v5112 = vpop.f32.mrf.mxu0
  %v5113 = vadd.f32 0.0, %v5112
  %v5114 = vpop.f32.mrf.mxu0
  %5115 = vmatprep.mubr.bf16.mxu0 0
  %5116 = vmatmul.mubr.bf16.gmra.mxu0 %v4946
  %v5117 = vpop.f32.mrf.mxu0
  %v5118 = vadd.f32 0.0, %v5117
  %v5119 = vpop.f32.mrf.mxu0
  %v5120 = vpop.f32.mrf.mxu0
  %v5121 = vadd.f32 0.0, %v5120
  %v5122 = vpop.f32.mrf.mxu0
  %5123 = vmatprep.mubr.bf16.mxu0 0
  %5124 = vmatmul.mubr.bf16.gmra.mxu0 %v4949
  %v5125 = vpop.f32.mrf.mxu0
  %v5126 = vadd.f32 0.0, %v5125
  %v5127 = vpop.f32.mrf.mxu0
  %v5128 = vpop.f32.mrf.mxu0
  %v5129 = vadd.f32 0.0, %v5128
  %v5130 = vpop.f32.mrf.mxu0
  %5131 = vmatprep.mubr.bf16.mxu0 0
  %5132 = vmatmul.mubr.bf16.gmra.mxu0 %v4952
  %v5133 = vpop.f32.mrf.mxu0
  %v5134 = vadd.f32 0.0, %v5133
  %v5135 = vpop.f32.mrf.mxu0
  %v5136 = vpop.f32.mrf.mxu0
  %v5137 = vadd.f32 0.0, %v5136
  %v5138 = vpop.f32.mrf.mxu0
  %5139 = vmatprep.mubr.bf16.mxu0 0
  %5140 = vmatmul.mubr.bf16.gmra.mxu0 %v4955
  %v5141 = vpop.f32.mrf.mxu0
  %v5142 = vadd.f32 0.0, %v5141
  %v5143 = vpop.f32.mrf.mxu0
  %v5144 = vpop.f32.mrf.mxu0
  %v5145 = vadd.f32 0.0, %v5144
  %v5146 = vpop.f32.mrf.mxu0
  %5147 = vmatprep.mubr.bf16.mxu0 0
  %5148 = vmatmul.mubr.bf16.gmra.mxu0 %v4958
  %v5149 = vpop.f32.mrf.mxu0
  %v5150 = vadd.f32 0.0, %v5149
  %v5151 = vpop.f32.mrf.mxu0
  %v5152 = vpop.f32.mrf.mxu0
  %v5153 = vadd.f32 0.0, %v5152
  %v5154 = vpop.f32.mrf.mxu0
  %5155 = vmatprep.mubr.bf16.mxu0 0
  %5156 = vmatmul.mubr.bf16.gmra.mxu0 %v4961
  %v5157 = vpop.f32.mrf.mxu0
  %v5158 = vadd.f32 0.0, %v5157
  %v5159 = vpop.f32.mrf.mxu0
  %v5160 = vpop.f32.mrf.mxu0
  %v5161 = vpop.f32.mrf.mxu0
  %5162 = vdwg.mxu0
  %v5163 = vadd.f32 %v4801, %v4998
  %v5164 = vadd.f32 %v4802, %v5001
  %v5165 = vadd.f32 %v4803, %v5006
  %v5166 = vadd.f32 %v4804, %v5009
  %v5167 = vadd.f32 %v4805, %v5014
  %v5168 = vadd.f32 %v4806, %v5017
  %v5169 = vadd.f32 %v4807, %v5022
  %v5170 = vadd.f32 %v4808, %v5025
  %v5171 = vadd.f32 %v4809, %v5030
  %v5172 = vadd.f32 %v4810, %v5033
  %v5173 = vadd.f32 %v4811, %v5038
  %v5174 = vadd.f32 %v4812, %v5041
  %v5175 = vadd.f32 %v4813, %v5046
  %v5176 = vadd.f32 %v4814, %v5049
  %v5177 = vadd.f32 %v4815, %v5054
  %v5178 = vadd.f32 %v4816, %v5057
  %v5179 = vadd.f32 %v4817, %v5062
  %v5180 = vadd.f32 %v4818, %v5065
  %v5181 = vadd.f32 %v4819, %v5070
  %v5182 = vadd.f32 %v4820, %v5073
  %v5183 = vadd.f32 %v4821, %v5078
  %v5184 = vadd.f32 %v4822, %v5081
  %v5185 = vadd.f32 %v4823, %v5086
  %v5186 = vadd.f32 %v4824, %v5089
  %v5187 = vadd.f32 %v4825, %v5094
  %v5188 = vadd.f32 %v4826, %v5097
  %v5189 = vadd.f32 %v4827, %v5102
  %v5190 = vadd.f32 %v4828, %v5105
  %v5191 = vadd.f32 %v4829, %v5110
  %v5192 = vadd.f32 %v4830, %v5113
  %v5193 = vadd.f32 %v4831, %v5118
  %v5194 = vadd.f32 %v4832, %v5121
  %v5195 = vadd.f32 %v4833, %v5126
  %v5196 = vadd.f32 %v4834, %v5129
  %v5197 = vadd.f32 %v4835, %v5134
  %v5198 = vadd.f32 %v4836, %v5137
  %v5199 = vadd.f32 %v4837, %v5142
  %v5200 = vadd.f32 %v4838, %v5145
  %v5201 = vadd.f32 %v4839, %v5150
  %v5202 = vadd.f32 %v4840, %v5153
  %v5203 = vadd.f32 %v4841, %v5158
  %v5204 = vld [vmem:[%s5 + $0xb0] sm:$0xf]
  %v5205 = vld [vmem:[%s5 + $0xb4] sm:$0xf]
  %v5206 = vld [vmem:[%s5 + $0xb8] sm:$0xf]
  %v5207 = vld [vmem:[%s5 + $0xbc] sm:$0xf]
  %5229 = vrot.lane.b32.xlu0 %v3777, 64
  %v5230 = vpop.permute.xlu0 %5229
  %5231 = vrot.lane.b32.xlu0 %v3778, 64
  %v5232 = vpop.permute.xlu0 %5231
  %5233 = vrot.lane.b32.xlu0 %v3779, 64
  %v5234 = vpop.permute.xlu0 %5233
  %5235 = vrot.lane.b32.xlu0 %v3780, 64
  %v5236 = vpop.permute.xlu0 %5235
  %5237 = vrot.lane.b32.xlu0 %v3781, 64
  %v5238 = vpop.permute.xlu0 %5237
  %5239 = vrot.lane.b32.xlu0 %v3782, 64
  %v5240 = vpop.permute.xlu0 %5239
  %5241 = vrot.lane.b32.xlu0 %v3783, 64
  %v5242 = vpop.permute.xlu0 %5241
  %5243 = vrot.lane.b32.xlu0 %v3784, 64
  %v5244 = vpop.permute.xlu0 %5243
  %5245 = vrot.lane.b32.xlu0 %v3785, 64
  %v5246 = vpop.permute.xlu0 %5245
  %5247 = vrot.lane.b32.xlu0 %v3786, 64
  %v5248 = vpop.permute.xlu0 %5247
  %5249 = vrot.lane.b32.xlu0 %v3787, 64
  %v5250 = vpop.permute.xlu0 %5249
  %5251 = vrot.lane.b32.xlu0 %v3788, 64
  %v5252 = vpop.permute.xlu0 %5251
  %5253 = vrot.lane.b32.xlu0 %v3789, 64
  %v5254 = vpop.permute.xlu0 %5253
  %5255 = vrot.lane.b32.xlu0 %v3790, 64
  %v5256 = vpop.permute.xlu0 %5255
  %5257 = vrot.lane.b32.xlu0 %v3791, 64
  %v5258 = vpop.permute.xlu0 %5257
  %5259 = vrot.lane.b32.xlu0 %v3792, 64
  %v5260 = vpop.permute.xlu0 %5259
  %5261 = vrot.lane.b32.xlu0 %v3793, 64
  %v5262 = vpop.permute.xlu0 %5261
  %5263 = vrot.lane.b32.xlu0 %v3794, 64
  %v5264 = vpop.permute.xlu0 %5263
  %5265 = vrot.lane.b32.xlu0 %v3795, 64
  %v5266 = vpop.permute.xlu0 %5265
  %5267 = vrot.lane.b32.xlu0 %v3796, 64
  %v5268 = vpop.permute.xlu0 %5267
  %5269 = vrot.lane.b32.xlu0 %v3797, 64
  %v5270 = vpop.permute.xlu0 %5269
  %v5275 = vunpack.c.l.b16 %v5204
  %v5276 = vunpack.c.l.b16 %v5205
  %v5277 = vunpack.c.l.b16 %v5206
  %v5278 = vunpack.c.l.b16 %v5207
  %v5279 = vpack.c.b16 %v5276, %v5275
  %v5280 = vpack.c.b16 %v5278, %v5277
  %v5284 = vsel %vm1117, %v5230, 0
  %v5287 = vsel %vm1117, %v5232, 0
  %v5290 = vsel %vm1117, %v5234, 0
  %v5293 = vsel %vm1117, %v5236, 0
  %v5296 = vsel %vm1117, %v5238, 0
  %v5299 = vsel %vm1117, %v5240, 0
  %v5302 = vsel %vm1117, %v5242, 0
  %v5305 = vsel %vm1117, %v5244, 0
  %v5308 = vsel %vm1117, %v5246, 0
  %v5311 = vsel %vm1117, %v5248, 0
  %v5314 = vsel %vm1117, %v5250, 0
  %v5317 = vsel %vm1117, %v5252, 0
  %v5320 = vsel %vm1117, %v5254, 0
  %v5323 = vsel %vm1117, %v5256, 0
  %v5326 = vsel %vm1117, %v5258, 0
  %v5329 = vsel %vm1117, %v5260, 0
  %v5332 = vsel %vm1117, %v5262, 0
  %v5335 = vsel %vm1117, %v5264, 0
  %v5338 = vsel %vm1117, %v5266, 0
  %v5341 = vsel %vm1117, %v5268, 0
  %v5344 = vsel %vm1117, %v5270, 0
  %5346 = vmatprep.subr.bf16.mxu0 0
  %5347 = vmatpush1.bf16.msra.mxu0 0
  %5348 = vmatprep.subr.bf16.mxu0 0
  %5349 = vmatpush1.bf16.msra.mxu0 0
  %5350 = vmatprep.subr.bf16.mxu0 0
  %5351 = vmatpush1.bf16.msra.mxu0 0
  %5352 = vmatprep.subr.bf16.mxu0 0
  %5353 = vmatpush1.bf16.msra.mxu0 0
  %5354 = vmatprep.subr.bf16.mxu0 0
  %5355 = vmatpush1.bf16.msra.mxu0 0
  %5356 = vmatprep.subr.bf16.mxu0 0
  %5357 = vmatpush1.bf16.msra.mxu0 0
  %5358 = vmatprep.subr.bf16.mxu0 0
  %5359 = vmatpush1.bf16.msra.mxu0 %v5280
  %5360 = vmatprep.subr.bf16.mxu0 0
  %5361 = vmatpush1.bf16.msra.mxu0 %v5279
  %5362 = vmatprep.subr.bf16.mxu0 0
  %5363 = vmatpush2.bf16.msra.mxu0 0
  %5364 = vmatprep.subr.bf16.mxu0 0
  %5365 = vmatpush2.bf16.msra.mxu0 0
  %5366 = vmatprep.subr.bf16.mxu0 0
  %5367 = vmatpush2.bf16.msra.mxu0 0
  %5368 = vmatprep.subr.bf16.mxu0 0
  %5369 = vmatpush2.bf16.msra.mxu0 0
  %5370 = vmatprep.subr.bf16.mxu0 0
  %5371 = vmatpush2.bf16.msra.mxu0 0
  %5372 = vmatprep.subr.bf16.mxu0 0
  %5373 = vmatpush2.bf16.msra.mxu0 0
  %5374 = vmatprep.subr.bf16.mxu0 0
  %5375 = vmatpush2.bf16.msra.mxu0 0
  %5376 = vmatprep.subr.bf16.mxu0 0
  %5377 = vmatpush2.bf16.msra.mxu0 0
  %5378 = vmatprep.mubr.bf16.mxu0 0
  %5379 = vmatmul.mubr.bf16.gmra.mxu0 %v5284
  %v5380 = vpop.f32.mrf.mxu0
  %v5381 = vadd.f32 0.0, %v5380
  %v5382 = vpop.f32.mrf.mxu0
  %v5383 = vpop.f32.mrf.mxu0
  %v5384 = vadd.f32 0.0, %v5383
  %v5385 = vpop.f32.mrf.mxu0
  %5386 = vmatprep.mubr.bf16.mxu0 0
  %5387 = vmatmul.mubr.bf16.gmra.mxu0 %v5287
  %v5388 = vpop.f32.mrf.mxu0
  %v5389 = vadd.f32 0.0, %v5388
  %v5390 = vpop.f32.mrf.mxu0
  %v5391 = vpop.f32.mrf.mxu0
  %v5392 = vadd.f32 0.0, %v5391
  %v5393 = vpop.f32.mrf.mxu0
  %5394 = vmatprep.mubr.bf16.mxu0 0
  %5395 = vmatmul.mubr.bf16.gmra.mxu0 %v5290
  %v5396 = vpop.f32.mrf.mxu0
  %v5397 = vadd.f32 0.0, %v5396
  %v5398 = vpop.f32.mrf.mxu0
  %v5399 = vpop.f32.mrf.mxu0
  %v5400 = vadd.f32 0.0, %v5399
  %v5401 = vpop.f32.mrf.mxu0
  %5402 = vmatprep.mubr.bf16.mxu0 0
  %5403 = vmatmul.mubr.bf16.gmra.mxu0 %v5293
  %v5404 = vpop.f32.mrf.mxu0
  %v5405 = vadd.f32 0.0, %v5404
  %v5406 = vpop.f32.mrf.mxu0
  %v5407 = vpop.f32.mrf.mxu0
  %v5408 = vadd.f32 0.0, %v5407
  %v5409 = vpop.f32.mrf.mxu0
  %5410 = vmatprep.mubr.bf16.mxu0 0
  %5411 = vmatmul.mubr.bf16.gmra.mxu0 %v5296
  %v5412 = vpop.f32.mrf.mxu0
  %v5413 = vadd.f32 0.0, %v5412
  %v5414 = vpop.f32.mrf.mxu0
  %v5415 = vpop.f32.mrf.mxu0
  %v5416 = vadd.f32 0.0, %v5415
  %v5417 = vpop.f32.mrf.mxu0
  %5418 = vmatprep.mubr.bf16.mxu0 0
  %5419 = vmatmul.mubr.bf16.gmra.mxu0 %v5299
  %v5420 = vpop.f32.mrf.mxu0
  %v5421 = vadd.f32 0.0, %v5420
  %v5422 = vpop.f32.mrf.mxu0
  %v5423 = vpop.f32.mrf.mxu0
  %v5424 = vadd.f32 0.0, %v5423
  %v5425 = vpop.f32.mrf.mxu0
  %5426 = vmatprep.mubr.bf16.mxu0 0
  %5427 = vmatmul.mubr.bf16.gmra.mxu0 %v5302
  %v5428 = vpop.f32.mrf.mxu0
  %v5429 = vadd.f32 0.0, %v5428
  %v5430 = vpop.f32.mrf.mxu0
  %v5431 = vpop.f32.mrf.mxu0
  %v5432 = vadd.f32 0.0, %v5431
  %v5433 = vpop.f32.mrf.mxu0
  %5434 = vmatprep.mubr.bf16.mxu0 0
  %5435 = vmatmul.mubr.bf16.gmra.mxu0 %v5305
  %v5436 = vpop.f32.mrf.mxu0
  %v5437 = vadd.f32 0.0, %v5436
  %v5438 = vpop.f32.mrf.mxu0
  %v5439 = vpop.f32.mrf.mxu0
  %v5440 = vadd.f32 0.0, %v5439
  %v5441 = vpop.f32.mrf.mxu0
  %5442 = vmatprep.mubr.bf16.mxu0 0
  %5443 = vmatmul.mubr.bf16.gmra.mxu0 %v5308
  %v5444 = vpop.f32.mrf.mxu0
  %v5445 = vadd.f32 0.0, %v5444
  %v5446 = vpop.f32.mrf.mxu0
  %v5447 = vpop.f32.mrf.mxu0
  %v5448 = vadd.f32 0.0, %v5447
  %v5449 = vpop.f32.mrf.mxu0
  %5450 = vmatprep.mubr.bf16.mxu0 0
  %5451 = vmatmul.mubr.bf16.gmra.mxu0 %v5311
  %v5452 = vpop.f32.mrf.mxu0
  %v5453 = vadd.f32 0.0, %v5452
  %v5454 = vpop.f32.mrf.mxu0
  %v5455 = vpop.f32.mrf.mxu0
  %v5456 = vadd.f32 0.0, %v5455
  %v5457 = vpop.f32.mrf.mxu0
  %5458 = vmatprep.mubr.bf16.mxu0 0
  %5459 = vmatmul.mubr.bf16.gmra.mxu0 %v5314
  %v5460 = vpop.f32.mrf.mxu0
  %v5461 = vadd.f32 0.0, %v5460
  %v5462 = vpop.f32.mrf.mxu0
  %v5463 = vpop.f32.mrf.mxu0
  %v5464 = vadd.f32 0.0, %v5463
  %v5465 = vpop.f32.mrf.mxu0
  %5466 = vmatprep.mubr.bf16.mxu0 0
  %5467 = vmatmul.mubr.bf16.gmra.mxu0 %v5317
  %v5468 = vpop.f32.mrf.mxu0
  %v5469 = vadd.f32 0.0, %v5468
  %v5470 = vpop.f32.mrf.mxu0
  %v5471 = vpop.f32.mrf.mxu0
  %v5472 = vadd.f32 0.0, %v5471
  %v5473 = vpop.f32.mrf.mxu0
  %5474 = vmatprep.mubr.bf16.mxu0 0
  %5475 = vmatmul.mubr.bf16.gmra.mxu0 %v5320
  %v5476 = vpop.f32.mrf.mxu0
  %v5477 = vadd.f32 0.0, %v5476
  %v5478 = vpop.f32.mrf.mxu0
  %v5479 = vpop.f32.mrf.mxu0
  %v5480 = vadd.f32 0.0, %v5479
  %v5481 = vpop.f32.mrf.mxu0
  %5482 = vmatprep.mubr.bf16.mxu0 0
  %5483 = vmatmul.mubr.bf16.gmra.mxu0 %v5323
  %v5484 = vpop.f32.mrf.mxu0
  %v5485 = vadd.f32 0.0, %v5484
  %v5486 = vpop.f32.mrf.mxu0
  %v5487 = vpop.f32.mrf.mxu0
  %v5488 = vadd.f32 0.0, %v5487
  %v5489 = vpop.f32.mrf.mxu0
  %5490 = vmatprep.mubr.bf16.mxu0 0
  %5491 = vmatmul.mubr.bf16.gmra.mxu0 %v5326
  %v5492 = vpop.f32.mrf.mxu0
  %v5493 = vadd.f32 0.0, %v5492
  %v5494 = vpop.f32.mrf.mxu0
  %v5495 = vpop.f32.mrf.mxu0
  %v5496 = vadd.f32 0.0, %v5495
  %v5497 = vpop.f32.mrf.mxu0
  %5498 = vmatprep.mubr.bf16.mxu0 0
  %5499 = vmatmul.mubr.bf16.gmra.mxu0 %v5329
  %v5500 = vpop.f32.mrf.mxu0
  %v5501 = vadd.f32 0.0, %v5500
  %v5502 = vpop.f32.mrf.mxu0
  %v5503 = vpop.f32.mrf.mxu0
  %v5504 = vadd.f32 0.0, %v5503
  %v5505 = vpop.f32.mrf.mxu0
  %5506 = vmatprep.mubr.bf16.mxu0 0
  %5507 = vmatmul.mubr.bf16.gmra.mxu0 %v5332
  %v5508 = vpop.f32.mrf.mxu0
  %v5509 = vadd.f32 0.0, %v5508
  %v5510 = vpop.f32.mrf.mxu0
  %v5511 = vpop.f32.mrf.mxu0
  %v5512 = vadd.f32 0.0, %v5511
  %v5513 = vpop.f32.mrf.mxu0
  %5514 = vmatprep.mubr.bf16.mxu0 0
  %5515 = vmatmul.mubr.bf16.gmra.mxu0 %v5335
  %v5516 = vpop.f32.mrf.mxu0
  %v5517 = vadd.f32 0.0, %v5516
  %v5518 = vpop.f32.mrf.mxu0
  %v5519 = vpop.f32.mrf.mxu0
  %v5520 = vadd.f32 0.0, %v5519
  %v5521 = vpop.f32.mrf.mxu0
  %5522 = vmatprep.mubr.bf16.mxu0 0
  %5523 = vmatmul.mubr.bf16.gmra.mxu0 %v5338
  %v5524 = vpop.f32.mrf.mxu0
  %v5525 = vadd.f32 0.0, %v5524
  %v5526 = vpop.f32.mrf.mxu0
  %v5527 = vpop.f32.mrf.mxu0
  %v5528 = vadd.f32 0.0, %v5527
  %v5529 = vpop.f32.mrf.mxu0
  %5530 = vmatprep.mubr.bf16.mxu0 0
  %5531 = vmatmul.mubr.bf16.gmra.mxu0 %v5341
  %v5532 = vpop.f32.mrf.mxu0
  %v5533 = vadd.f32 0.0, %v5532
  %v5534 = vpop.f32.mrf.mxu0
  %v5535 = vpop.f32.mrf.mxu0
  %v5536 = vadd.f32 0.0, %v5535
  %v5537 = vpop.f32.mrf.mxu0
  %5538 = vmatprep.mubr.bf16.mxu0 0
  %5539 = vmatmul.mubr.bf16.gmra.mxu0 %v5344
  %v5540 = vpop.f32.mrf.mxu0
  %v5541 = vadd.f32 0.0, %v5540
  %v5542 = vpop.f32.mrf.mxu0
  %v5543 = vpop.f32.mrf.mxu0
  %v5544 = vpop.f32.mrf.mxu0
  %5545 = vdwg.mxu0
  %v5546 = vadd.f32 %v5163, %v5381
  %v5547 = vadd.f32 %v5164, %v5384
  %v5548 = vadd.f32 %v5165, %v5389
  %v5549 = vadd.f32 %v5166, %v5392
  %v5550 = vadd.f32 %v5167, %v5397
  %v5551 = vadd.f32 %v5168, %v5400
  %v5552 = vadd.f32 %v5169, %v5405
  %v5553 = vadd.f32 %v5170, %v5408
  %v5554 = vadd.f32 %v5171, %v5413
  %v5555 = vadd.f32 %v5172, %v5416
  %v5556 = vadd.f32 %v5173, %v5421
  %v5557 = vadd.f32 %v5174, %v5424
  %v5558 = vadd.f32 %v5175, %v5429
  %v5559 = vadd.f32 %v5176, %v5432
  %v5560 = vadd.f32 %v5177, %v5437
  %v5561 = vadd.f32 %v5178, %v5440
  %v5562 = vadd.f32 %v5179, %v5445
  %v5563 = vadd.f32 %v5180, %v5448
  %v5564 = vadd.f32 %v5181, %v5453
  %v5565 = vadd.f32 %v5182, %v5456
  %v5566 = vadd.f32 %v5183, %v5461
  %v5567 = vadd.f32 %v5184, %v5464
  %v5568 = vadd.f32 %v5185, %v5469
  %v5569 = vadd.f32 %v5186, %v5472
  %v5570 = vadd.f32 %v5187, %v5477
  %v5571 = vadd.f32 %v5188, %v5480
  %v5572 = vadd.f32 %v5189, %v5485
  %v5573 = vadd.f32 %v5190, %v5488
  %v5574 = vadd.f32 %v5191, %v5493
  %v5575 = vadd.f32 %v5192, %v5496
  %v5576 = vadd.f32 %v5193, %v5501
  %v5577 = vadd.f32 %v5194, %v5504
  %v5578 = vadd.f32 %v5195, %v5509
  %v5579 = vadd.f32 %v5196, %v5512
  %v5580 = vadd.f32 %v5197, %v5517
  %v5581 = vadd.f32 %v5198, %v5520
  %v5582 = vadd.f32 %v5199, %v5525
  %v5583 = vadd.f32 %v5200, %v5528
  %v5584 = vadd.f32 %v5201, %v5533
  %v5585 = vadd.f32 %v5202, %v5536
  %v5586 = vadd.f32 %v5203, %v5541
  %v5587 = vld [vmem:[#allocation2 + $0x31] sm:$0xff]
  %v5588 = vld [vmem:[#allocation2 + $0x39] sm:$0xff]
  %v5589 = vld [vmem:[#allocation2 + $0x41] sm:$0xff]
  %v5590 = vld [vmem:[#allocation2 + $0x49] sm:$0xff]
  %v5591 = vld [vmem:[#allocation2 + $0x51] sm:$0xff]
  %v5592 = vld [vmem:[#allocation2 + $0x59] sm:$0xff]
  %v5593 = vld [vmem:[#allocation2 + $0x61] sm:$0xff]
  %v5594 = vld [vmem:[#allocation2 + $0x69] sm:$0xff]
  %v5595 = vld [vmem:[#allocation2 + $0x71] sm:$0xff]
  %v5596 = vld [vmem:[#allocation2 + $0x79] sm:$0xff]
  %v5597 = vld [vmem:[#allocation2 + $0x81] sm:$0xff]
  %v5598 = vld [vmem:[#allocation2 + $0x89] sm:$0xff]
  %v5599 = vld [vmem:[#allocation2 + $0x91] sm:$0xff]
  %v5600 = vld [vmem:[#allocation2 + $0x99] sm:$0xff]
  %v5601 = vld [vmem:[#allocation2 + $0xa1] sm:$0xff]
  %v5602 = vld [vmem:[#allocation2 + $0xa9] sm:$0xff]
  %v5603 = vld [vmem:[#allocation2 + $0xb1] sm:$0xff]
  %v5604 = vld [vmem:[#allocation2 + $0xb9] sm:$0xff]
  %v5605 = vld [vmem:[#allocation2 + $0xc1] sm:$0xff]
  %v5606 = vld [vmem:[#allocation2 + $0xc9] sm:$0xff]
  %v5607 = vld [vmem:[#allocation2 + $0xd1] sm:$0xff]
  %v5608 = vld [vmem:[#allocation2 + $0xd9] sm:$0xff]
  %v5609 = vld [vmem:[#allocation2 + $0xe1] sm:$0xff]
  %v5610 = vld [vmem:[#allocation2 + $0xe9] sm:$0xff]
  %v5611 = vld [vmem:[#allocation2 + $0xf1] sm:$0xff]
  %v5612 = vld [vmem:[#allocation2 + $0xf9] sm:$0xff]
  %v5613 = vld [vmem:[#allocation2 + $0x101] sm:$0xff]
  %v5614 = vld [vmem:[#allocation2 + $0x109] sm:$0xff]
  %v5615 = vld [vmem:[#allocation2 + $0x111] sm:$0xff]
  %v5616 = vld [vmem:[#allocation2 + $0x119] sm:$0xff]
  %v5617 = vld [vmem:[#allocation2 + $0x121] sm:$0xff]
  %v5618 = vld [vmem:[#allocation2 + $0x129] sm:$0xff]
  %v5619 = vld [vmem:[#allocation2 + $0x131] sm:$0xff]
  %v5620 = vld [vmem:[#allocation2 + $0x139] sm:$0xff]
  %v5621 = vld [vmem:[#allocation2 + $0x141] sm:$0xff]
  %v5622 = vld [vmem:[#allocation2 + $0x149] sm:$0xff]
  %v5623 = vld [vmem:[#allocation2 + $0x151] sm:$0xff]
  %v5624 = vld [vmem:[#allocation2 + $0x159] sm:$0xff]
  %v5625 = vld [vmem:[#allocation2 + $0x161] sm:$0xff]
  %v5626 = vld [vmem:[#allocation2 + $0x169] sm:$0xff]
  %v5627 = vld [vmem:[#allocation2 + $0x171] sm:$0xf]
  %v5628 = vpack.c.bf16 %v5588, %v5587
  %v5629 = vpack.c.bf16 %v5590, %v5589
  %v5630 = vpack.c.bf16 %v5592, %v5591
  %v5631 = vpack.c.bf16 %v5594, %v5593
  %v5632 = vpack.c.bf16 %v5596, %v5595
  %v5633 = vpack.c.bf16 %v5598, %v5597
  %v5634 = vpack.c.bf16 %v5600, %v5599
  %v5635 = vpack.c.bf16 %v5602, %v5601
  %v5636 = vpack.c.bf16 %v5604, %v5603
  %v5637 = vpack.c.bf16 %v5606, %v5605
  %v5638 = vpack.c.bf16 %v5608, %v5607
  %v5639 = vpack.c.bf16 %v5610, %v5609
  %v5640 = vpack.c.bf16 %v5612, %v5611
  %v5641 = vpack.c.bf16 %v5614, %v5613
  %v5642 = vpack.c.bf16 %v5616, %v5615
  %v5643 = vpack.c.bf16 %v5618, %v5617
  %v5644 = vpack.c.bf16 %v5620, %v5619
  %v5645 = vpack.c.bf16 %v5622, %v5621
  %v5646 = vpack.c.bf16 %v5624, %v5623
  %v5647 = vpack.c.bf16 %v5626, %v5625
  %v5648 = vpack.c.bf16 %v5627, %v5627
  %v5649 = vld [vmem:[%s5 + $0xc0] sm:$0xf]
  %v5650 = vld [vmem:[%s5 + $0xc4] sm:$0xf]
  %v5651 = vld [vmem:[%s5 + $0xc8] sm:$0xf]
  %v5652 = vld [vmem:[%s5 + $0xcc] sm:$0xf]
  %5674 = vrot.lane.b32.xlu0 %v5628, 96
  %v5675 = vpop.permute.xlu0 %5674
  %5676 = vrot.lane.b32.xlu0 %v5629, 96
  %v5677 = vpop.permute.xlu0 %5676
  %5678 = vrot.lane.b32.xlu0 %v5630, 96
  %v5679 = vpop.permute.xlu0 %5678
  %5680 = vrot.lane.b32.xlu0 %v5631, 96
  %v5681 = vpop.permute.xlu0 %5680
  %5682 = vrot.lane.b32.xlu0 %v5632, 96
  %v5683 = vpop.permute.xlu0 %5682
  %5684 = vrot.lane.b32.xlu0 %v5633, 96
  %v5685 = vpop.permute.xlu0 %5684
  %5686 = vrot.lane.b32.xlu0 %v5634, 96
  %v5687 = vpop.permute.xlu0 %5686
  %5688 = vrot.lane.b32.xlu0 %v5635, 96
  %v5689 = vpop.permute.xlu0 %5688
  %5690 = vrot.lane.b32.xlu0 %v5636, 96
  %v5691 = vpop.permute.xlu0 %5690
  %5692 = vrot.lane.b32.xlu0 %v5637, 96
  %v5693 = vpop.permute.xlu0 %5692
  %5694 = vrot.lane.b32.xlu0 %v5638, 96
  %v5695 = vpop.permute.xlu0 %5694
  %5696 = vrot.lane.b32.xlu0 %v5639, 96
  %v5697 = vpop.permute.xlu0 %5696
  %5698 = vrot.lane.b32.xlu0 %v5640, 96
  %v5699 = vpop.permute.xlu0 %5698
  %5700 = vrot.lane.b32.xlu0 %v5641, 96
  %v5701 = vpop.permute.xlu0 %5700
  %5702 = vrot.lane.b32.xlu0 %v5642, 96
  %v5703 = vpop.permute.xlu0 %5702
  %5704 = vrot.lane.b32.xlu0 %v5643, 96
  %v5705 = vpop.permute.xlu0 %5704
  %5706 = vrot.lane.b32.xlu0 %v5644, 96
  %v5707 = vpop.permute.xlu0 %5706
  %5708 = vrot.lane.b32.xlu0 %v5645, 96
  %v5709 = vpop.permute.xlu0 %5708
  %5710 = vrot.lane.b32.xlu0 %v5646, 96
  %v5711 = vpop.permute.xlu0 %5710
  %5712 = vrot.lane.b32.xlu0 %v5647, 96
  %v5713 = vpop.permute.xlu0 %5712
  %5714 = vrot.lane.b32.xlu0 %v5648, 96
  %v5715 = vpop.permute.xlu0 %5714
  %v5720 = vunpack.c.l.b16 %v5649
  %v5721 = vunpack.c.l.b16 %v5650
  %v5722 = vunpack.c.l.b16 %v5651
  %v5723 = vunpack.c.l.b16 %v5652
  %v5724 = vpack.c.b16 %v5721, %v5720
  %v5725 = vpack.c.b16 %v5723, %v5722
  %v5729 = vsel %vm1117, %v5675, 0
  %v5732 = vsel %vm1117, %v5677, 0
  %v5735 = vsel %vm1117, %v5679, 0
  %v5738 = vsel %vm1117, %v5681, 0
  %v5741 = vsel %vm1117, %v5683, 0
  %v5744 = vsel %vm1117, %v5685, 0
  %v5747 = vsel %vm1117, %v5687, 0
  %v5750 = vsel %vm1117, %v5689, 0
  %v5753 = vsel %vm1117, %v5691, 0
  %v5756 = vsel %vm1117, %v5693, 0
  %v5759 = vsel %vm1117, %v5695, 0
  %v5762 = vsel %vm1117, %v5697, 0
  %v5765 = vsel %vm1117, %v5699, 0
  %v5768 = vsel %vm1117, %v5701, 0
  %v5771 = vsel %vm1117, %v5703, 0
  %v5774 = vsel %vm1117, %v5705, 0
  %v5777 = vsel %vm1117, %v5707, 0
  %v5780 = vsel %vm1117, %v5709, 0
  %v5783 = vsel %vm1117, %v5711, 0
  %v5786 = vsel %vm1117, %v5713, 0
  %v5789 = vsel %vm1117, %v5715, 0
  %5791 = vmatprep.subr.bf16.mxu0 0
  %5792 = vmatpush1.bf16.msra.mxu0 0
  %5793 = vmatprep.subr.bf16.mxu0 0
  %5794 = vmatpush1.bf16.msra.mxu0 0
  %5795 = vmatprep.subr.bf16.mxu0 0
  %5796 = vmatpush1.bf16.msra.mxu0 0
  %5797 = vmatprep.subr.bf16.mxu0 0
  %5798 = vmatpush1.bf16.msra.mxu0 0
  %5799 = vmatprep.subr.bf16.mxu0 0
  %5800 = vmatpush1.bf16.msra.mxu0 0
  %5801 = vmatprep.subr.bf16.mxu0 0
  %5802 = vmatpush1.bf16.msra.mxu0 0
  %5803 = vmatprep.subr.bf16.mxu0 0
  %5804 = vmatpush1.bf16.msra.mxu0 %v5725
  %5805 = vmatprep.subr.bf16.mxu0 0
  %5806 = vmatpush1.bf16.msra.mxu0 %v5724
  %5807 = vmatprep.subr.bf16.mxu0 0
  %5808 = vmatpush2.bf16.msra.mxu0 0
  %5809 = vmatprep.subr.bf16.mxu0 0
  %5810 = vmatpush2.bf16.msra.mxu0 0
  %5811 = vmatprep.subr.bf16.mxu0 0
  %5812 = vmatpush2.bf16.msra.mxu0 0
  %5813 = vmatprep.subr.bf16.mxu0 0
  %5814 = vmatpush2.bf16.msra.mxu0 0
  %5815 = vmatprep.subr.bf16.mxu0 0
  %5816 = vmatpush2.bf16.msra.mxu0 0
  %5817 = vmatprep.subr.bf16.mxu0 0
  %5818 = vmatpush2.bf16.msra.mxu0 0
  %5819 = vmatprep.subr.bf16.mxu0 0
  %5820 = vmatpush2.bf16.msra.mxu0 0
  %5821 = vmatprep.subr.bf16.mxu0 0
  %5822 = vmatpush2.bf16.msra.mxu0 0
  %5823 = vmatprep.mubr.bf16.mxu0 0
  %5824 = vmatmul.mubr.bf16.gmra.mxu0 %v5729
  %v5825 = vpop.f32.mrf.mxu0
  %v5826 = vadd.f32 0.0, %v5825
  %v5827 = vpop.f32.mrf.mxu0
  %v5828 = vpop.f32.mrf.mxu0
  %v5829 = vadd.f32 0.0, %v5828
  %v5830 = vpop.f32.mrf.mxu0
  %5831 = vmatprep.mubr.bf16.mxu0 0
  %5832 = vmatmul.mubr.bf16.gmra.mxu0 %v5732
  %v5833 = vpop.f32.mrf.mxu0
  %v5834 = vadd.f32 0.0, %v5833
  %v5835 = vpop.f32.mrf.mxu0
  %v5836 = vpop.f32.mrf.mxu0
  %v5837 = vadd.f32 0.0, %v5836
  %v5838 = vpop.f32.mrf.mxu0
  %5839 = vmatprep.mubr.bf16.mxu0 0
  %5840 = vmatmul.mubr.bf16.gmra.mxu0 %v5735
  %v5841 = vpop.f32.mrf.mxu0
  %v5842 = vadd.f32 0.0, %v5841
  %v5843 = vpop.f32.mrf.mxu0
  %v5844 = vpop.f32.mrf.mxu0
  %v5845 = vadd.f32 0.0, %v5844
  %v5846 = vpop.f32.mrf.mxu0
  %5847 = vmatprep.mubr.bf16.mxu0 0
  %5848 = vmatmul.mubr.bf16.gmra.mxu0 %v5738
  %v5849 = vpop.f32.mrf.mxu0
  %v5850 = vadd.f32 0.0, %v5849
  %v5851 = vpop.f32.mrf.mxu0
  %v5852 = vpop.f32.mrf.mxu0
  %v5853 = vadd.f32 0.0, %v5852
  %v5854 = vpop.f32.mrf.mxu0
  %5855 = vmatprep.mubr.bf16.mxu0 0
  %5856 = vmatmul.mubr.bf16.gmra.mxu0 %v5741
  %v5857 = vpop.f32.mrf.mxu0
  %v5858 = vadd.f32 0.0, %v5857
  %v5859 = vpop.f32.mrf.mxu0
  %v5860 = vpop.f32.mrf.mxu0
  %v5861 = vadd.f32 0.0, %v5860
  %v5862 = vpop.f32.mrf.mxu0
  %5863 = vmatprep.mubr.bf16.mxu0 0
  %5864 = vmatmul.mubr.bf16.gmra.mxu0 %v5744
  %v5865 = vpop.f32.mrf.mxu0
  %v5866 = vadd.f32 0.0, %v5865
  %v5867 = vpop.f32.mrf.mxu0
  %v5868 = vpop.f32.mrf.mxu0
  %v5869 = vadd.f32 0.0, %v5868
  %v5870 = vpop.f32.mrf.mxu0
  %5871 = vmatprep.mubr.bf16.mxu0 0
  %5872 = vmatmul.mubr.bf16.gmra.mxu0 %v5747
  %v5873 = vpop.f32.mrf.mxu0
  %v5874 = vadd.f32 0.0, %v5873
  %v5875 = vpop.f32.mrf.mxu0
  %v5876 = vpop.f32.mrf.mxu0
  %v5877 = vadd.f32 0.0, %v5876
  %v5878 = vpop.f32.mrf.mxu0
  %5879 = vmatprep.mubr.bf16.mxu0 0
  %5880 = vmatmul.mubr.bf16.gmra.mxu0 %v5750
  %v5881 = vpop.f32.mrf.mxu0
  %v5882 = vadd.f32 0.0, %v5881
  %v5883 = vpop.f32.mrf.mxu0
  %v5884 = vpop.f32.mrf.mxu0
  %v5885 = vadd.f32 0.0, %v5884
  %v5886 = vpop.f32.mrf.mxu0
  %5887 = vmatprep.mubr.bf16.mxu0 0
  %5888 = vmatmul.mubr.bf16.gmra.mxu0 %v5753
  %v5889 = vpop.f32.mrf.mxu0
  %v5890 = vadd.f32 0.0, %v5889
  %v5891 = vpop.f32.mrf.mxu0
  %v5892 = vpop.f32.mrf.mxu0
  %v5893 = vadd.f32 0.0, %v5892
  %v5894 = vpop.f32.mrf.mxu0
  %5895 = vmatprep.mubr.bf16.mxu0 0
  %5896 = vmatmul.mubr.bf16.gmra.mxu0 %v5756
  %v5897 = vpop.f32.mrf.mxu0
  %v5898 = vadd.f32 0.0, %v5897
  %v5899 = vpop.f32.mrf.mxu0
  %v5900 = vpop.f32.mrf.mxu0
  %v5901 = vadd.f32 0.0, %v5900
  %v5902 = vpop.f32.mrf.mxu0
  %5903 = vmatprep.mubr.bf16.mxu0 0
  %5904 = vmatmul.mubr.bf16.gmra.mxu0 %v5759
  %v5905 = vpop.f32.mrf.mxu0
  %v5906 = vadd.f32 0.0, %v5905
  %v5907 = vpop.f32.mrf.mxu0
  %v5908 = vpop.f32.mrf.mxu0
  %v5909 = vadd.f32 0.0, %v5908
  %v5910 = vpop.f32.mrf.mxu0
  %5911 = vmatprep.mubr.bf16.mxu0 0
  %5912 = vmatmul.mubr.bf16.gmra.mxu0 %v5762
  %v5913 = vpop.f32.mrf.mxu0
  %v5914 = vadd.f32 0.0, %v5913
  %v5915 = vpop.f32.mrf.mxu0
  %v5916 = vpop.f32.mrf.mxu0
  %v5917 = vadd.f32 0.0, %v5916
  %v5918 = vpop.f32.mrf.mxu0
  %5919 = vmatprep.mubr.bf16.mxu0 0
  %5920 = vmatmul.mubr.bf16.gmra.mxu0 %v5765
  %v5921 = vpop.f32.mrf.mxu0
  %v5922 = vadd.f32 0.0, %v5921
  %v5923 = vpop.f32.mrf.mxu0
  %v5924 = vpop.f32.mrf.mxu0
  %v5925 = vadd.f32 0.0, %v5924
  %v5926 = vpop.f32.mrf.mxu0
  %5927 = vmatprep.mubr.bf16.mxu0 0
  %5928 = vmatmul.mubr.bf16.gmra.mxu0 %v5768
  %v5929 = vpop.f32.mrf.mxu0
  %v5930 = vadd.f32 0.0, %v5929
  %v5931 = vpop.f32.mrf.mxu0
  %v5932 = vpop.f32.mrf.mxu0
  %v5933 = vadd.f32 0.0, %v5932
  %v5934 = vpop.f32.mrf.mxu0
  %5935 = vmatprep.mubr.bf16.mxu0 0
  %5936 = vmatmul.mubr.bf16.gmra.mxu0 %v5771
  %v5937 = vpop.f32.mrf.mxu0
  %v5938 = vadd.f32 0.0, %v5937
  %v5939 = vpop.f32.mrf.mxu0
  %v5940 = vpop.f32.mrf.mxu0
  %v5941 = vadd.f32 0.0, %v5940
  %v5942 = vpop.f32.mrf.mxu0
  %5943 = vmatprep.mubr.bf16.mxu0 0
  %5944 = vmatmul.mubr.bf16.gmra.mxu0 %v5774
  %v5945 = vpop.f32.mrf.mxu0
  %v5946 = vadd.f32 0.0, %v5945
  %v5947 = vpop.f32.mrf.mxu0
  %v5948 = vpop.f32.mrf.mxu0
  %v5949 = vadd.f32 0.0, %v5948
  %v5950 = vpop.f32.mrf.mxu0
  %5951 = vmatprep.mubr.bf16.mxu0 0
  %5952 = vmatmul.mubr.bf16.gmra.mxu0 %v5777
  %v5953 = vpop.f32.mrf.mxu0
  %v5954 = vadd.f32 0.0, %v5953
  %v5955 = vpop.f32.mrf.mxu0
  %v5956 = vpop.f32.mrf.mxu0
  %v5957 = vadd.f32 0.0, %v5956
  %v5958 = vpop.f32.mrf.mxu0
  %5959 = vmatprep.mubr.bf16.mxu0 0
  %5960 = vmatmul.mubr.bf16.gmra.mxu0 %v5780
  %v5961 = vpop.f32.mrf.mxu0
  %v5962 = vadd.f32 0.0, %v5961
  %v5963 = vpop.f32.mrf.mxu0
  %v5964 = vpop.f32.mrf.mxu0
  %v5965 = vadd.f32 0.0, %v5964
  %v5966 = vpop.f32.mrf.mxu0
  %5967 = vmatprep.mubr.bf16.mxu0 0
  %5968 = vmatmul.mubr.bf16.gmra.mxu0 %v5783
  %v5969 = vpop.f32.mrf.mxu0
  %v5970 = vadd.f32 0.0, %v5969
  %v5971 = vpop.f32.mrf.mxu0
  %v5972 = vpop.f32.mrf.mxu0
  %v5973 = vadd.f32 0.0, %v5972
  %v5974 = vpop.f32.mrf.mxu0
  %5975 = vmatprep.mubr.bf16.mxu0 0
  %5976 = vmatmul.mubr.bf16.gmra.mxu0 %v5786
  %v5977 = vpop.f32.mrf.mxu0
  %v5978 = vadd.f32 0.0, %v5977
  %v5979 = vpop.f32.mrf.mxu0
  %v5980 = vpop.f32.mrf.mxu0
  %v5981 = vadd.f32 0.0, %v5980
  %v5982 = vpop.f32.mrf.mxu0
  %5983 = vmatprep.mubr.bf16.mxu0 0
  %5984 = vmatmul.mubr.bf16.gmra.mxu0 %v5789
  %v5985 = vpop.f32.mrf.mxu0
  %v5986 = vadd.f32 0.0, %v5985
  %v5987 = vpop.f32.mrf.mxu0
  %v5988 = vpop.f32.mrf.mxu0
  %v5989 = vpop.f32.mrf.mxu0
  %5990 = vdwg.mxu0
  %v5991 = vadd.f32 %v5546, %v5826
  %v5992 = vadd.f32 %v5547, %v5829
  %v5993 = vadd.f32 %v5548, %v5834
  %v5994 = vadd.f32 %v5549, %v5837
  %v5995 = vadd.f32 %v5550, %v5842
  %v5996 = vadd.f32 %v5551, %v5845
  %v5997 = vadd.f32 %v5552, %v5850
  %v5998 = vadd.f32 %v5553, %v5853
  %v5999 = vadd.f32 %v5554, %v5858
  %v6000 = vadd.f32 %v5555, %v5861
  %v6001 = vadd.f32 %v5556, %v5866
  %v6002 = vadd.f32 %v5557, %v5869
  %v6003 = vadd.f32 %v5558, %v5874
  %v6004 = vadd.f32 %v5559, %v5877
  %v6005 = vadd.f32 %v5560, %v5882
  %v6006 = vadd.f32 %v5561, %v5885
  %v6007 = vadd.f32 %v5562, %v5890
  %v6008 = vadd.f32 %v5563, %v5893
  %v6009 = vadd.f32 %v5564, %v5898
  %v6010 = vadd.f32 %v5565, %v5901
  %v6011 = vadd.f32 %v5566, %v5906
  %v6012 = vadd.f32 %v5567, %v5909
  %v6013 = vadd.f32 %v5568, %v5914
  %v6014 = vadd.f32 %v5569, %v5917
  %v6015 = vadd.f32 %v5570, %v5922
  %v6016 = vadd.f32 %v5571, %v5925
  %v6017 = vadd.f32 %v5572, %v5930
  %v6018 = vadd.f32 %v5573, %v5933
  %v6019 = vadd.f32 %v5574, %v5938
  %v6020 = vadd.f32 %v5575, %v5941
  %v6021 = vadd.f32 %v5576, %v5946
  %v6022 = vadd.f32 %v5577, %v5949
  %v6023 = vadd.f32 %v5578, %v5954
  %v6024 = vadd.f32 %v5579, %v5957
  %v6025 = vadd.f32 %v5580, %v5962
  %v6026 = vadd.f32 %v5581, %v5965
  %v6027 = vadd.f32 %v5582, %v5970
  %v6028 = vadd.f32 %v5583, %v5973
  %v6029 = vadd.f32 %v5584, %v5978
  %v6030 = vadd.f32 %v5585, %v5981
  %v6031 = vadd.f32 %v5586, %v5986
  %v6032 = vld [vmem:[#allocation2 + $0x32] sm:$0xff]
  %v6033 = vld [vmem:[#allocation2 + $0x3a] sm:$0xff]
  %v6034 = vld [vmem:[#allocation2 + $0x42] sm:$0xff]
  %v6035 = vld [vmem:[#allocation2 + $0x4a] sm:$0xff]
  %v6036 = vld [vmem:[#allocation2 + $0x52] sm:$0xff]
  %v6037 = vld [vmem:[#allocation2 + $0x5a] sm:$0xff]
  %v6038 = vld [vmem:[#allocation2 + $0x62] sm:$0xff]
  %v6039 = vld [vmem:[#allocation2 + $0x6a] sm:$0xff]
  %v6040 = vld [vmem:[#allocation2 + $0x72] sm:$0xff]
  %v6041 = vld [vmem:[#allocation2 + $0x7a] sm:$0xff]
  %v6042 = vld [vmem:[#allocation2 + $0x82] sm:$0xff]
  %v6043 = vld [vmem:[#allocation2 + $0x8a] sm:$0xff]
  %v6044 = vld [vmem:[#allocation2 + $0x92] sm:$0xff]
  %v6045 = vld [vmem:[#allocation2 + $0x9a] sm:$0xff]
  %v6046 = vld [vmem:[#allocation2 + $0xa2] sm:$0xff]
  %v6047 = vld [vmem:[#allocation2 + $0xaa] sm:$0xff]
  %v6048 = vld [vmem:[#allocation2 + $0xb2] sm:$0xff]
  %v6049 = vld [vmem:[#allocation2 + $0xba] sm:$0xff]
  %v6050 = vld [vmem:[#allocation2 + $0xc2] sm:$0xff]
  %v6051 = vld [vmem:[#allocation2 + $0xca] sm:$0xff]
  %v6052 = vld [vmem:[#allocation2 + $0xd2] sm:$0xff]
  %v6053 = vld [vmem:[#allocation2 + $0xda] sm:$0xff]
  %v6054 = vld [vmem:[#allocation2 + $0xe2] sm:$0xff]
  %v6055 = vld [vmem:[#allocation2 + $0xea] sm:$0xff]
  %v6056 = vld [vmem:[#allocation2 + $0xf2] sm:$0xff]
  %v6057 = vld [vmem:[#allocation2 + $0xfa] sm:$0xff]
  %v6058 = vld [vmem:[#allocation2 + $0x102] sm:$0xff]
  %v6059 = vld [vmem:[#allocation2 + $0x10a] sm:$0xff]
  %v6060 = vld [vmem:[#allocation2 + $0x112] sm:$0xff]
  %v6061 = vld [vmem:[#allocation2 + $0x11a] sm:$0xff]
  %v6062 = vld [vmem:[#allocation2 + $0x122] sm:$0xff]
  %v6063 = vld [vmem:[#allocation2 + $0x12a] sm:$0xff]
  %v6064 = vld [vmem:[#allocation2 + $0x132] sm:$0xff]
  %v6065 = vld [vmem:[#allocation2 + $0x13a] sm:$0xff]
  %v6066 = vld [vmem:[#allocation2 + $0x142] sm:$0xff]
  %v6067 = vld [vmem:[#allocation2 + $0x14a] sm:$0xff]
  %v6068 = vld [vmem:[#allocation2 + $0x152] sm:$0xff]
  %v6069 = vld [vmem:[#allocation2 + $0x15a] sm:$0xff]
  %v6070 = vld [vmem:[#allocation2 + $0x162] sm:$0xff]
  %v6071 = vld [vmem:[#allocation2 + $0x16a] sm:$0xff]
  %v6072 = vld [vmem:[#allocation2 + $0x172] sm:$0xf]
  %v6073 = vpack.c.bf16 %v6033, %v6032
  %v6074 = vpack.c.bf16 %v6035, %v6034
  %v6075 = vpack.c.bf16 %v6037, %v6036
  %v6076 = vpack.c.bf16 %v6039, %v6038
  %v6077 = vpack.c.bf16 %v6041, %v6040
  %v6078 = vpack.c.bf16 %v6043, %v6042
  %v6079 = vpack.c.bf16 %v6045, %v6044
  %v6080 = vpack.c.bf16 %v6047, %v6046
  %v6081 = vpack.c.bf16 %v6049, %v6048
  %v6082 = vpack.c.bf16 %v6051, %v6050
  %v6083 = vpack.c.bf16 %v6053, %v6052
  %v6084 = vpack.c.bf16 %v6055, %v6054
  %v6085 = vpack.c.bf16 %v6057, %v6056
  %v6086 = vpack.c.bf16 %v6059, %v6058
  %v6087 = vpack.c.bf16 %v6061, %v6060
  %v6088 = vpack.c.bf16 %v6063, %v6062
  %v6089 = vpack.c.bf16 %v6065, %v6064
  %v6090 = vpack.c.bf16 %v6067, %v6066
  %v6091 = vpack.c.bf16 %v6069, %v6068
  %v6092 = vpack.c.bf16 %v6071, %v6070
  %v6093 = vpack.c.bf16 %v6072, %v6072
  %v6094 = vld [vmem:[%s5 + $0xd0] sm:$0xf]
  %v6095 = vld [vmem:[%s5 + $0xd4] sm:$0xf]
  %v6096 = vld [vmem:[%s5 + $0xd8] sm:$0xf]
  %v6097 = vld [vmem:[%s5 + $0xdc] sm:$0xf]
  %v6102 = vunpack.c.l.b16 %v6094
  %v6103 = vunpack.c.l.b16 %v6095
  %v6104 = vunpack.c.l.b16 %v6096
  %v6105 = vunpack.c.l.b16 %v6097
  %v6106 = vpack.c.b16 %v6103, %v6102
  %v6107 = vpack.c.b16 %v6105, %v6104
  %v6111 = vsel %vm1117, %v6073, 0
  %v6114 = vsel %vm1117, %v6074, 0
  %v6117 = vsel %vm1117, %v6075, 0
  %v6120 = vsel %vm1117, %v6076, 0
  %v6123 = vsel %vm1117, %v6077, 0
  %v6126 = vsel %vm1117, %v6078, 0
  %v6129 = vsel %vm1117, %v6079, 0
  %v6132 = vsel %vm1117, %v6080, 0
  %v6135 = vsel %vm1117, %v6081, 0
  %v6138 = vsel %vm1117, %v6082, 0
  %v6141 = vsel %vm1117, %v6083, 0
  %v6144 = vsel %vm1117, %v6084, 0
  %v6147 = vsel %vm1117, %v6085, 0
  %v6150 = vsel %vm1117, %v6086, 0
  %v6153 = vsel %vm1117, %v6087, 0
  %v6156 = vsel %vm1117, %v6088, 0
  %v6159 = vsel %vm1117, %v6089, 0
  %v6162 = vsel %vm1117, %v6090, 0
  %v6165 = vsel %vm1117, %v6091, 0
  %v6168 = vsel %vm1117, %v6092, 0
  %v6171 = vsel %vm1117, %v6093, 0
  %6173 = vmatprep.subr.bf16.mxu0 0
  %6174 = vmatpush1.bf16.msra.mxu0 0
  %6175 = vmatprep.subr.bf16.mxu0 0
  %6176 = vmatpush1.bf16.msra.mxu0 0
  %6177 = vmatprep.subr.bf16.mxu0 0
  %6178 = vmatpush1.bf16.msra.mxu0 0
  %6179 = vmatprep.subr.bf16.mxu0 0
  %6180 = vmatpush1.bf16.msra.mxu0 0
  %6181 = vmatprep.subr.bf16.mxu0 0
  %6182 = vmatpush1.bf16.msra.mxu0 0
  %6183 = vmatprep.subr.bf16.mxu0 0
  %6184 = vmatpush1.bf16.msra.mxu0 0
  %6185 = vmatprep.subr.bf16.mxu0 0
  %6186 = vmatpush1.bf16.msra.mxu0 %v6107
  %6187 = vmatprep.subr.bf16.mxu0 0
  %6188 = vmatpush1.bf16.msra.mxu0 %v6106
  %6189 = vmatprep.subr.bf16.mxu0 0
  %6190 = vmatpush2.bf16.msra.mxu0 0
  %6191 = vmatprep.subr.bf16.mxu0 0
  %6192 = vmatpush2.bf16.msra.mxu0 0
  %6193 = vmatprep.subr.bf16.mxu0 0
  %6194 = vmatpush2.bf16.msra.mxu0 0
  %6195 = vmatprep.subr.bf16.mxu0 0
  %6196 = vmatpush2.bf16.msra.mxu0 0
  %6197 = vmatprep.subr.bf16.mxu0 0
  %6198 = vmatpush2.bf16.msra.mxu0 0
  %6199 = vmatprep.subr.bf16.mxu0 0
  %6200 = vmatpush2.bf16.msra.mxu0 0
  %6201 = vmatprep.subr.bf16.mxu0 0
  %6202 = vmatpush2.bf16.msra.mxu0 0
  %6203 = vmatprep.subr.bf16.mxu0 0
  %6204 = vmatpush2.bf16.msra.mxu0 0
  %6205 = vmatprep.mubr.bf16.mxu0 0
  %6206 = vmatmul.mubr.bf16.gmra.mxu0 %v6111
  %v6207 = vpop.f32.mrf.mxu0
  %v6208 = vadd.f32 0.0, %v6207
  %v6209 = vpop.f32.mrf.mxu0
  %v6210 = vpop.f32.mrf.mxu0
  %v6211 = vadd.f32 0.0, %v6210
  %v6212 = vpop.f32.mrf.mxu0
  %6213 = vmatprep.mubr.bf16.mxu0 0
  %6214 = vmatmul.mubr.bf16.gmra.mxu0 %v6114
  %v6215 = vpop.f32.mrf.mxu0
  %v6216 = vadd.f32 0.0, %v6215
  %v6217 = vpop.f32.mrf.mxu0
  %v6218 = vpop.f32.mrf.mxu0
  %v6219 = vadd.f32 0.0, %v6218
  %v6220 = vpop.f32.mrf.mxu0
  %6221 = vmatprep.mubr.bf16.mxu0 0
  %6222 = vmatmul.mubr.bf16.gmra.mxu0 %v6117
  %v6223 = vpop.f32.mrf.mxu0
  %v6224 = vadd.f32 0.0, %v6223
  %v6225 = vpop.f32.mrf.mxu0
  %v6226 = vpop.f32.mrf.mxu0
  %v6227 = vadd.f32 0.0, %v6226
  %v6228 = vpop.f32.mrf.mxu0
  %6229 = vmatprep.mubr.bf16.mxu0 0
  %6230 = vmatmul.mubr.bf16.gmra.mxu0 %v6120
  %v6231 = vpop.f32.mrf.mxu0
  %v6232 = vadd.f32 0.0, %v6231
  %v6233 = vpop.f32.mrf.mxu0
  %v6234 = vpop.f32.mrf.mxu0
  %v6235 = vadd.f32 0.0, %v6234
  %v6236 = vpop.f32.mrf.mxu0
  %6237 = vmatprep.mubr.bf16.mxu0 0
  %6238 = vmatmul.mubr.bf16.gmra.mxu0 %v6123
  %v6239 = vpop.f32.mrf.mxu0
  %v6240 = vadd.f32 0.0, %v6239
  %v6241 = vpop.f32.mrf.mxu0
  %v6242 = vpop.f32.mrf.mxu0
  %v6243 = vadd.f32 0.0, %v6242
  %v6244 = vpop.f32.mrf.mxu0
  %6245 = vmatprep.mubr.bf16.mxu0 0
  %6246 = vmatmul.mubr.bf16.gmra.mxu0 %v6126
  %v6247 = vpop.f32.mrf.mxu0
  %v6248 = vadd.f32 0.0, %v6247
  %v6249 = vpop.f32.mrf.mxu0
  %v6250 = vpop.f32.mrf.mxu0
  %v6251 = vadd.f32 0.0, %v6250
  %v6252 = vpop.f32.mrf.mxu0
  %6253 = vmatprep.mubr.bf16.mxu0 0
  %6254 = vmatmul.mubr.bf16.gmra.mxu0 %v6129
  %v6255 = vpop.f32.mrf.mxu0
  %v6256 = vadd.f32 0.0, %v6255
  %v6257 = vpop.f32.mrf.mxu0
  %v6258 = vpop.f32.mrf.mxu0
  %v6259 = vadd.f32 0.0, %v6258
  %v6260 = vpop.f32.mrf.mxu0
  %6261 = vmatprep.mubr.bf16.mxu0 0
  %6262 = vmatmul.mubr.bf16.gmra.mxu0 %v6132
  %v6263 = vpop.f32.mrf.mxu0
  %v6264 = vadd.f32 0.0, %v6263
  %v6265 = vpop.f32.mrf.mxu0
  %v6266 = vpop.f32.mrf.mxu0
  %v6267 = vadd.f32 0.0, %v6266
  %v6268 = vpop.f32.mrf.mxu0
  %6269 = vmatprep.mubr.bf16.mxu0 0
  %6270 = vmatmul.mubr.bf16.gmra.mxu0 %v6135
  %v6271 = vpop.f32.mrf.mxu0
  %v6272 = vadd.f32 0.0, %v6271
  %v6273 = vpop.f32.mrf.mxu0
  %v6274 = vpop.f32.mrf.mxu0
  %v6275 = vadd.f32 0.0, %v6274
  %v6276 = vpop.f32.mrf.mxu0
  %6277 = vmatprep.mubr.bf16.mxu0 0
  %6278 = vmatmul.mubr.bf16.gmra.mxu0 %v6138
  %v6279 = vpop.f32.mrf.mxu0
  %v6280 = vadd.f32 0.0, %v6279
  %v6281 = vpop.f32.mrf.mxu0
  %v6282 = vpop.f32.mrf.mxu0
  %v6283 = vadd.f32 0.0, %v6282
  %v6284 = vpop.f32.mrf.mxu0
  %6285 = vmatprep.mubr.bf16.mxu0 0
  %6286 = vmatmul.mubr.bf16.gmra.mxu0 %v6141
  %v6287 = vpop.f32.mrf.mxu0
  %v6288 = vadd.f32 0.0, %v6287
  %v6289 = vpop.f32.mrf.mxu0
  %v6290 = vpop.f32.mrf.mxu0
  %v6291 = vadd.f32 0.0, %v6290
  %v6292 = vpop.f32.mrf.mxu0
  %6293 = vmatprep.mubr.bf16.mxu0 0
  %6294 = vmatmul.mubr.bf16.gmra.mxu0 %v6144
  %v6295 = vpop.f32.mrf.mxu0
  %v6296 = vadd.f32 0.0, %v6295
  %v6297 = vpop.f32.mrf.mxu0
  %v6298 = vpop.f32.mrf.mxu0
  %v6299 = vadd.f32 0.0, %v6298
  %v6300 = vpop.f32.mrf.mxu0
  %6301 = vmatprep.mubr.bf16.mxu0 0
  %6302 = vmatmul.mubr.bf16.gmra.mxu0 %v6147
  %v6303 = vpop.f32.mrf.mxu0
  %v6304 = vadd.f32 0.0, %v6303
  %v6305 = vpop.f32.mrf.mxu0
  %v6306 = vpop.f32.mrf.mxu0
  %v6307 = vadd.f32 0.0, %v6306
  %v6308 = vpop.f32.mrf.mxu0
  %6309 = vmatprep.mubr.bf16.mxu0 0
  %6310 = vmatmul.mubr.bf16.gmra.mxu0 %v6150
  %v6311 = vpop.f32.mrf.mxu0
  %v6312 = vadd.f32 0.0, %v6311
  %v6313 = vpop.f32.mrf.mxu0
  %v6314 = vpop.f32.mrf.mxu0
  %v6315 = vadd.f32 0.0, %v6314
  %v6316 = vpop.f32.mrf.mxu0
  %6317 = vmatprep.mubr.bf16.mxu0 0
  %6318 = vmatmul.mubr.bf16.gmra.mxu0 %v6153
  %v6319 = vpop.f32.mrf.mxu0
  %v6320 = vadd.f32 0.0, %v6319
  %v6321 = vpop.f32.mrf.mxu0
  %v6322 = vpop.f32.mrf.mxu0
  %v6323 = vadd.f32 0.0, %v6322
  %v6324 = vpop.f32.mrf.mxu0
  %6325 = vmatprep.mubr.bf16.mxu0 0
  %6326 = vmatmul.mubr.bf16.gmra.mxu0 %v6156
  %v6327 = vpop.f32.mrf.mxu0
  %v6328 = vadd.f32 0.0, %v6327
  %v6329 = vpop.f32.mrf.mxu0
  %v6330 = vpop.f32.mrf.mxu0
  %v6331 = vadd.f32 0.0, %v6330
  %v6332 = vpop.f32.mrf.mxu0
  %6333 = vmatprep.mubr.bf16.mxu0 0
  %6334 = vmatmul.mubr.bf16.gmra.mxu0 %v6159
  %v6335 = vpop.f32.mrf.mxu0
  %v6336 = vadd.f32 0.0, %v6335
  %v6337 = vpop.f32.mrf.mxu0
  %v6338 = vpop.f32.mrf.mxu0
  %v6339 = vadd.f32 0.0, %v6338
  %v6340 = vpop.f32.mrf.mxu0
  %6341 = vmatprep.mubr.bf16.mxu0 0
  %6342 = vmatmul.mubr.bf16.gmra.mxu0 %v6162
  %v6343 = vpop.f32.mrf.mxu0
  %v6344 = vadd.f32 0.0, %v6343
  %v6345 = vpop.f32.mrf.mxu0
  %v6346 = vpop.f32.mrf.mxu0
  %v6347 = vadd.f32 0.0, %v6346
  %v6348 = vpop.f32.mrf.mxu0
  %6349 = vmatprep.mubr.bf16.mxu0 0
  %6350 = vmatmul.mubr.bf16.gmra.mxu0 %v6165
  %v6351 = vpop.f32.mrf.mxu0
  %v6352 = vadd.f32 0.0, %v6351
  %v6353 = vpop.f32.mrf.mxu0
  %v6354 = vpop.f32.mrf.mxu0
  %v6355 = vadd.f32 0.0, %v6354
  %v6356 = vpop.f32.mrf.mxu0
  %6357 = vmatprep.mubr.bf16.mxu0 0
  %6358 = vmatmul.mubr.bf16.gmra.mxu0 %v6168
  %v6359 = vpop.f32.mrf.mxu0
  %v6360 = vadd.f32 0.0, %v6359
  %v6361 = vpop.f32.mrf.mxu0
  %v6362 = vpop.f32.mrf.mxu0
  %v6363 = vadd.f32 0.0, %v6362
  %v6364 = vpop.f32.mrf.mxu0
  %6365 = vmatprep.mubr.bf16.mxu0 0
  %6366 = vmatmul.mubr.bf16.gmra.mxu0 %v6171
  %v6367 = vpop.f32.mrf.mxu0
  %v6368 = vadd.f32 0.0, %v6367
  %v6369 = vpop.f32.mrf.mxu0
  %v6370 = vpop.f32.mrf.mxu0
  %v6371 = vpop.f32.mrf.mxu0
  %6372 = vdwg.mxu0
  %v6373 = vadd.f32 %v5991, %v6208
  %v6374 = vadd.f32 %v5992, %v6211
  %v6375 = vadd.f32 %v5993, %v6216
  %v6376 = vadd.f32 %v5994, %v6219
  %v6377 = vadd.f32 %v5995, %v6224
  %v6378 = vadd.f32 %v5996, %v6227
  %v6379 = vadd.f32 %v5997, %v6232
  %v6380 = vadd.f32 %v5998, %v6235
  %v6381 = vadd.f32 %v5999, %v6240
  %v6382 = vadd.f32 %v6000, %v6243
  %v6383 = vadd.f32 %v6001, %v6248
  %v6384 = vadd.f32 %v6002, %v6251
  %v6385 = vadd.f32 %v6003, %v6256
  %v6386 = vadd.f32 %v6004, %v6259
  %v6387 = vadd.f32 %v6005, %v6264
  %v6388 = vadd.f32 %v6006, %v6267
  %v6389 = vadd.f32 %v6007, %v6272
  %v6390 = vadd.f32 %v6008, %v6275
  %v6391 = vadd.f32 %v6009, %v6280
  %v6392 = vadd.f32 %v6010, %v6283
  %v6393 = vadd.f32 %v6011, %v6288
  %v6394 = vadd.f32 %v6012, %v6291
  %v6395 = vadd.f32 %v6013, %v6296
  %v6396 = vadd.f32 %v6014, %v6299
  %v6397 = vadd.f32 %v6015, %v6304
  %v6398 = vadd.f32 %v6016, %v6307
  %v6399 = vadd.f32 %v6017, %v6312
  %v6400 = vadd.f32 %v6018, %v6315
  %v6401 = vadd.f32 %v6019, %v6320
  %v6402 = vadd.f32 %v6020, %v6323
  %v6403 = vadd.f32 %v6021, %v6328
  %v6404 = vadd.f32 %v6022, %v6331
  %v6405 = vadd.f32 %v6023, %v6336
  %v6406 = vadd.f32 %v6024, %v6339
  %v6407 = vadd.f32 %v6025, %v6344
  %v6408 = vadd.f32 %v6026, %v6347
  %v6409 = vadd.f32 %v6027, %v6352
  %v6410 = vadd.f32 %v6028, %v6355
  %v6411 = vadd.f32 %v6029, %v6360
  %v6412 = vadd.f32 %v6030, %v6363
  %v6413 = vadd.f32 %v6031, %v6368
  %v6414 = vld [vmem:[%s5 + $0xe0] sm:$0xf]
  %v6415 = vld [vmem:[%s5 + $0xe4] sm:$0xf]
  %v6416 = vld [vmem:[%s5 + $0xe8] sm:$0xf]
  %v6417 = vld [vmem:[%s5 + $0xec] sm:$0xf]
  %6439 = vrot.lane.b32.xlu0 %v6073, 96
  %v6440 = vpop.permute.xlu0 %6439
  %6441 = vrot.lane.b32.xlu0 %v6074, 96
  %v6442 = vpop.permute.xlu0 %6441
  %6443 = vrot.lane.b32.xlu0 %v6075, 96
  %v6444 = vpop.permute.xlu0 %6443
  %6445 = vrot.lane.b32.xlu0 %v6076, 96
  %v6446 = vpop.permute.xlu0 %6445
  %6447 = vrot.lane.b32.xlu0 %v6077, 96
  %v6448 = vpop.permute.xlu0 %6447
  %6449 = vrot.lane.b32.xlu0 %v6078, 96
  %v6450 = vpop.permute.xlu0 %6449
  %6451 = vrot.lane.b32.xlu0 %v6079, 96
  %v6452 = vpop.permute.xlu0 %6451
  %6453 = vrot.lane.b32.xlu0 %v6080, 96
  %v6454 = vpop.permute.xlu0 %6453
  %6455 = vrot.lane.b32.xlu0 %v6081, 96
  %v6456 = vpop.permute.xlu0 %6455
  %6457 = vrot.lane.b32.xlu0 %v6082, 96
  %v6458 = vpop.permute.xlu0 %6457
  %6459 = vrot.lane.b32.xlu0 %v6083, 96
  %v6460 = vpop.permute.xlu0 %6459
  %6461 = vrot.lane.b32.xlu0 %v6084, 96
  %v6462 = vpop.permute.xlu0 %6461
  %6463 = vrot.lane.b32.xlu0 %v6085, 96
  %v6464 = vpop.permute.xlu0 %6463
  %6465 = vrot.lane.b32.xlu0 %v6086, 96
  %v6466 = vpop.permute.xlu0 %6465
  %6467 = vrot.lane.b32.xlu0 %v6087, 96
  %v6468 = vpop.permute.xlu0 %6467
  %6469 = vrot.lane.b32.xlu0 %v6088, 96
  %v6470 = vpop.permute.xlu0 %6469
  %6471 = vrot.lane.b32.xlu0 %v6089, 96
  %v6472 = vpop.permute.xlu0 %6471
  %6473 = vrot.lane.b32.xlu0 %v6090, 96
  %v6474 = vpop.permute.xlu0 %6473
  %6475 = vrot.lane.b32.xlu0 %v6091, 96
  %v6476 = vpop.permute.xlu0 %6475
  %6477 = vrot.lane.b32.xlu0 %v6092, 96
  %v6478 = vpop.permute.xlu0 %6477
  %6479 = vrot.lane.b32.xlu0 %v6093, 96
  %v6480 = vpop.permute.xlu0 %6479
  %v6485 = vunpack.c.l.b16 %v6414
  %v6486 = vunpack.c.l.b16 %v6415
  %v6487 = vunpack.c.l.b16 %v6416
  %v6488 = vunpack.c.l.b16 %v6417
  %v6489 = vpack.c.b16 %v6486, %v6485
  %v6490 = vpack.c.b16 %v6488, %v6487
  %v6494 = vsel %vm1117, %v6440, 0
  %v6497 = vsel %vm1117, %v6442, 0
  %v6500 = vsel %vm1117, %v6444, 0
  %v6503 = vsel %vm1117, %v6446, 0
  %v6506 = vsel %vm1117, %v6448, 0
  %v6509 = vsel %vm1117, %v6450, 0
  %v6512 = vsel %vm1117, %v6452, 0
  %v6515 = vsel %vm1117, %v6454, 0
  %v6518 = vsel %vm1117, %v6456, 0
  %v6521 = vsel %vm1117, %v6458, 0
  %v6524 = vsel %vm1117, %v6460, 0
  %v6527 = vsel %vm1117, %v6462, 0
  %v6530 = vsel %vm1117, %v6464, 0
  %v6533 = vsel %vm1117, %v6466, 0
  %v6536 = vsel %vm1117, %v6468, 0
  %v6539 = vsel %vm1117, %v6470, 0
  %v6542 = vsel %vm1117, %v6472, 0
  %v6545 = vsel %vm1117, %v6474, 0
  %v6548 = vsel %vm1117, %v6476, 0
  %v6551 = vsel %vm1117, %v6478, 0
  %v6554 = vsel %vm1117, %v6480, 0
  %6556 = vmatprep.subr.bf16.mxu0 0
  %6557 = vmatpush1.bf16.msra.mxu0 0
  %6558 = vmatprep.subr.bf16.mxu0 0
  %6559 = vmatpush1.bf16.msra.mxu0 0
  %6560 = vmatprep.subr.bf16.mxu0 0
  %6561 = vmatpush1.bf16.msra.mxu0 0
  %6562 = vmatprep.subr.bf16.mxu0 0
  %6563 = vmatpush1.bf16.msra.mxu0 0
  %6564 = vmatprep.subr.bf16.mxu0 0
  %6565 = vmatpush1.bf16.msra.mxu0 0
  %6566 = vmatprep.subr.bf16.mxu0 0
  %6567 = vmatpush1.bf16.msra.mxu0 0
  %6568 = vmatprep.subr.bf16.mxu0 0
  %6569 = vmatpush1.bf16.msra.mxu0 %v6490
  %6570 = vmatprep.subr.bf16.mxu0 0
  %6571 = vmatpush1.bf16.msra.mxu0 %v6489
  %6572 = vmatprep.subr.bf16.mxu0 0
  %6573 = vmatpush2.bf16.msra.mxu0 0
  %6574 = vmatprep.subr.bf16.mxu0 0
  %6575 = vmatpush2.bf16.msra.mxu0 0
  %6576 = vmatprep.subr.bf16.mxu0 0
  %6577 = vmatpush2.bf16.msra.mxu0 0
  %6578 = vmatprep.subr.bf16.mxu0 0
  %6579 = vmatpush2.bf16.msra.mxu0 0
  %6580 = vmatprep.subr.bf16.mxu0 0
  %6581 = vmatpush2.bf16.msra.mxu0 0
  %6582 = vmatprep.subr.bf16.mxu0 0
  %6583 = vmatpush2.bf16.msra.mxu0 0
  %6584 = vmatprep.subr.bf16.mxu0 0
  %6585 = vmatpush2.bf16.msra.mxu0 0
  %6586 = vmatprep.subr.bf16.mxu0 0
  %6587 = vmatpush2.bf16.msra.mxu0 0
  %6588 = vmatprep.mubr.bf16.mxu0 0
  %6589 = vmatmul.mubr.bf16.gmra.mxu0 %v6494
  %v6590 = vpop.f32.mrf.mxu0
  %v6591 = vadd.f32 0.0, %v6590
  %v6592 = vpop.f32.mrf.mxu0
  %v6593 = vpop.f32.mrf.mxu0
  %v6594 = vadd.f32 0.0, %v6593
  %v6595 = vpop.f32.mrf.mxu0
  %6596 = vmatprep.mubr.bf16.mxu0 0
  %6597 = vmatmul.mubr.bf16.gmra.mxu0 %v6497
  %v6598 = vpop.f32.mrf.mxu0
  %v6599 = vadd.f32 0.0, %v6598
  %v6600 = vpop.f32.mrf.mxu0
  %v6601 = vpop.f32.mrf.mxu0
  %v6602 = vadd.f32 0.0, %v6601
  %v6603 = vpop.f32.mrf.mxu0
  %6604 = vmatprep.mubr.bf16.mxu0 0
  %6605 = vmatmul.mubr.bf16.gmra.mxu0 %v6500
  %v6606 = vpop.f32.mrf.mxu0
  %v6607 = vadd.f32 0.0, %v6606
  %v6608 = vpop.f32.mrf.mxu0
  %v6609 = vpop.f32.mrf.mxu0
  %v6610 = vadd.f32 0.0, %v6609
  %v6611 = vpop.f32.mrf.mxu0
  %6612 = vmatprep.mubr.bf16.mxu0 0
  %6613 = vmatmul.mubr.bf16.gmra.mxu0 %v6503
  %v6614 = vpop.f32.mrf.mxu0
  %v6615 = vadd.f32 0.0, %v6614
  %v6616 = vpop.f32.mrf.mxu0
  %v6617 = vpop.f32.mrf.mxu0
  %v6618 = vadd.f32 0.0, %v6617
  %v6619 = vpop.f32.mrf.mxu0
  %6620 = vmatprep.mubr.bf16.mxu0 0
  %6621 = vmatmul.mubr.bf16.gmra.mxu0 %v6506
  %v6622 = vpop.f32.mrf.mxu0
  %v6623 = vadd.f32 0.0, %v6622
  %v6624 = vpop.f32.mrf.mxu0
  %v6625 = vpop.f32.mrf.mxu0
  %v6626 = vadd.f32 0.0, %v6625
  %v6627 = vpop.f32.mrf.mxu0
  %6628 = vmatprep.mubr.bf16.mxu0 0
  %6629 = vmatmul.mubr.bf16.gmra.mxu0 %v6509
  %v6630 = vpop.f32.mrf.mxu0
  %v6631 = vadd.f32 0.0, %v6630
  %v6632 = vpop.f32.mrf.mxu0
  %v6633 = vpop.f32.mrf.mxu0
  %v6634 = vadd.f32 0.0, %v6633
  %v6635 = vpop.f32.mrf.mxu0
  %6636 = vmatprep.mubr.bf16.mxu0 0
  %6637 = vmatmul.mubr.bf16.gmra.mxu0 %v6512
  %v6638 = vpop.f32.mrf.mxu0
  %v6639 = vadd.f32 0.0, %v6638
  %v6640 = vpop.f32.mrf.mxu0
  %v6641 = vpop.f32.mrf.mxu0
  %v6642 = vadd.f32 0.0, %v6641
  %v6643 = vpop.f32.mrf.mxu0
  %6644 = vmatprep.mubr.bf16.mxu0 0
  %6645 = vmatmul.mubr.bf16.gmra.mxu0 %v6515
  %v6646 = vpop.f32.mrf.mxu0
  %v6647 = vadd.f32 0.0, %v6646
  %v6648 = vpop.f32.mrf.mxu0
  %v6649 = vpop.f32.mrf.mxu0
  %v6650 = vadd.f32 0.0, %v6649
  %v6651 = vpop.f32.mrf.mxu0
  %6652 = vmatprep.mubr.bf16.mxu0 0
  %6653 = vmatmul.mubr.bf16.gmra.mxu0 %v6518
  %v6654 = vpop.f32.mrf.mxu0
  %v6655 = vadd.f32 0.0, %v6654
  %v6656 = vpop.f32.mrf.mxu0
  %v6657 = vpop.f32.mrf.mxu0
  %v6658 = vadd.f32 0.0, %v6657
  %v6659 = vpop.f32.mrf.mxu0
  %6660 = vmatprep.mubr.bf16.mxu0 0
  %6661 = vmatmul.mubr.bf16.gmra.mxu0 %v6521
  %v6662 = vpop.f32.mrf.mxu0
  %v6663 = vadd.f32 0.0, %v6662
  %v6664 = vpop.f32.mrf.mxu0
  %v6665 = vpop.f32.mrf.mxu0
  %v6666 = vadd.f32 0.0, %v6665
  %v6667 = vpop.f32.mrf.mxu0
  %6668 = vmatprep.mubr.bf16.mxu0 0
  %6669 = vmatmul.mubr.bf16.gmra.mxu0 %v6524
  %v6670 = vpop.f32.mrf.mxu0
  %v6671 = vadd.f32 0.0, %v6670
  %v6672 = vpop.f32.mrf.mxu0
  %v6673 = vpop.f32.mrf.mxu0
  %v6674 = vadd.f32 0.0, %v6673
  %v6675 = vpop.f32.mrf.mxu0
  %6676 = vmatprep.mubr.bf16.mxu0 0
  %6677 = vmatmul.mubr.bf16.gmra.mxu0 %v6527
  %v6678 = vpop.f32.mrf.mxu0
  %v6679 = vadd.f32 0.0, %v6678
  %v6680 = vpop.f32.mrf.mxu0
  %v6681 = vpop.f32.mrf.mxu0
  %v6682 = vadd.f32 0.0, %v6681
  %v6683 = vpop.f32.mrf.mxu0
  %6684 = vmatprep.mubr.bf16.mxu0 0
  %6685 = vmatmul.mubr.bf16.gmra.mxu0 %v6530
  %v6686 = vpop.f32.mrf.mxu0
  %v6687 = vadd.f32 0.0, %v6686
  %v6688 = vpop.f32.mrf.mxu0
  %v6689 = vpop.f32.mrf.mxu0
  %v6690 = vadd.f32 0.0, %v6689
  %v6691 = vpop.f32.mrf.mxu0
  %6692 = vmatprep.mubr.bf16.mxu0 0
  %6693 = vmatmul.mubr.bf16.gmra.mxu0 %v6533
  %v6694 = vpop.f32.mrf.mxu0
  %v6695 = vadd.f32 0.0, %v6694
  %v6696 = vpop.f32.mrf.mxu0
  %v6697 = vpop.f32.mrf.mxu0
  %v6698 = vadd.f32 0.0, %v6697
  %v6699 = vpop.f32.mrf.mxu0
  %6700 = vmatprep.mubr.bf16.mxu0 0
  %6701 = vmatmul.mubr.bf16.gmra.mxu0 %v6536
  %v6702 = vpop.f32.mrf.mxu0
  %v6703 = vadd.f32 0.0, %v6702
  %v6704 = vpop.f32.mrf.mxu0
  %v6705 = vpop.f32.mrf.mxu0
  %v6706 = vadd.f32 0.0, %v6705
  %v6707 = vpop.f32.mrf.mxu0
  %6708 = vmatprep.mubr.bf16.mxu0 0
  %6709 = vmatmul.mubr.bf16.gmra.mxu0 %v6539
  %v6710 = vpop.f32.mrf.mxu0
  %v6711 = vadd.f32 0.0, %v6710
  %v6712 = vpop.f32.mrf.mxu0
  %v6713 = vpop.f32.mrf.mxu0
  %v6714 = vadd.f32 0.0, %v6713
  %v6715 = vpop.f32.mrf.mxu0
  %6716 = vmatprep.mubr.bf16.mxu0 0
  %6717 = vmatmul.mubr.bf16.gmra.mxu0 %v6542
  %v6718 = vpop.f32.mrf.mxu0
  %v6719 = vadd.f32 0.0, %v6718
  %v6720 = vpop.f32.mrf.mxu0
  %v6721 = vpop.f32.mrf.mxu0
  %v6722 = vadd.f32 0.0, %v6721
  %v6723 = vpop.f32.mrf.mxu0
  %6724 = vmatprep.mubr.bf16.mxu0 0
  %6725 = vmatmul.mubr.bf16.gmra.mxu0 %v6545
  %v6726 = vpop.f32.mrf.mxu0
  %v6727 = vadd.f32 0.0, %v6726
  %v6728 = vpop.f32.mrf.mxu0
  %v6729 = vpop.f32.mrf.mxu0
  %v6730 = vadd.f32 0.0, %v6729
  %v6731 = vpop.f32.mrf.mxu0
  %6732 = vmatprep.mubr.bf16.mxu0 0
  %6733 = vmatmul.mubr.bf16.gmra.mxu0 %v6548
  %v6734 = vpop.f32.mrf.mxu0
  %v6735 = vadd.f32 0.0, %v6734
  %v6736 = vpop.f32.mrf.mxu0
  %v6737 = vpop.f32.mrf.mxu0
  %v6738 = vadd.f32 0.0, %v6737
  %v6739 = vpop.f32.mrf.mxu0
  %6740 = vmatprep.mubr.bf16.mxu0 0
  %6741 = vmatmul.mubr.bf16.gmra.mxu0 %v6551
  %v6742 = vpop.f32.mrf.mxu0
  %v6743 = vadd.f32 0.0, %v6742
  %v6744 = vpop.f32.mrf.mxu0
  %v6745 = vpop.f32.mrf.mxu0
  %v6746 = vadd.f32 0.0, %v6745
  %v6747 = vpop.f32.mrf.mxu0
  %6748 = vmatprep.mubr.bf16.mxu0 0
  %6749 = vmatmul.mubr.bf16.gmra.mxu0 %v6554
  %v6750 = vpop.f32.mrf.mxu0
  %v6751 = vadd.f32 0.0, %v6750
  %v6752 = vpop.f32.mrf.mxu0
  %v6753 = vpop.f32.mrf.mxu0
  %v6754 = vpop.f32.mrf.mxu0
  %6755 = vdwg.mxu0
  %v6756 = vadd.f32 %v6373, %v6591
  %v6757 = vadd.f32 %v6374, %v6594
  %v6758 = vadd.f32 %v6375, %v6599
  %v6759 = vadd.f32 %v6376, %v6602
  %v6760 = vadd.f32 %v6377, %v6607
  %v6761 = vadd.f32 %v6378, %v6610
  %v6762 = vadd.f32 %v6379, %v6615
  %v6763 = vadd.f32 %v6380, %v6618
  %v6764 = vadd.f32 %v6381, %v6623
  %v6765 = vadd.f32 %v6382, %v6626
  %v6766 = vadd.f32 %v6383, %v6631
  %v6767 = vadd.f32 %v6384, %v6634
  %v6768 = vadd.f32 %v6385, %v6639
  %v6769 = vadd.f32 %v6386, %v6642
  %v6770 = vadd.f32 %v6387, %v6647
  %v6771 = vadd.f32 %v6388, %v6650
  %v6772 = vadd.f32 %v6389, %v6655
  %v6773 = vadd.f32 %v6390, %v6658
  %v6774 = vadd.f32 %v6391, %v6663
  %v6775 = vadd.f32 %v6392, %v6666
  %v6776 = vadd.f32 %v6393, %v6671
  %v6777 = vadd.f32 %v6394, %v6674
  %v6778 = vadd.f32 %v6395, %v6679
  %v6779 = vadd.f32 %v6396, %v6682
  %v6780 = vadd.f32 %v6397, %v6687
  %v6781 = vadd.f32 %v6398, %v6690
  %v6782 = vadd.f32 %v6399, %v6695
  %v6783 = vadd.f32 %v6400, %v6698
  %v6784 = vadd.f32 %v6401, %v6703
  %v6785 = vadd.f32 %v6402, %v6706
  %v6786 = vadd.f32 %v6403, %v6711
  %v6787 = vadd.f32 %v6404, %v6714
  %v6788 = vadd.f32 %v6405, %v6719
  %v6789 = vadd.f32 %v6406, %v6722
  %v6790 = vadd.f32 %v6407, %v6727
  %v6791 = vadd.f32 %v6408, %v6730
  %v6792 = vadd.f32 %v6409, %v6735
  %v6793 = vadd.f32 %v6410, %v6738
  %v6794 = vadd.f32 %v6411, %v6743
  %v6795 = vadd.f32 %v6412, %v6746
  %v6796 = vadd.f32 %v6413, %v6751
  %v6797 = vld [vmem:[#allocation2 + $0x33] sm:$0xff]
  %v6798 = vld [vmem:[#allocation2 + $0x3b] sm:$0xff]
  %v6799 = vld [vmem:[#allocation2 + $0x43] sm:$0xff]
  %v6800 = vld [vmem:[#allocation2 + $0x4b] sm:$0xff]
  %v6801 = vld [vmem:[#allocation2 + $0x53] sm:$0xff]
  %v6802 = vld [vmem:[#allocation2 + $0x5b] sm:$0xff]
  %v6803 = vld [vmem:[#allocation2 + $0x63] sm:$0xff]
  %v6804 = vld [vmem:[#allocation2 + $0x6b] sm:$0xff]
  %v6805 = vld [vmem:[#allocation2 + $0x73] sm:$0xff]
  %v6806 = vld [vmem:[#allocation2 + $0x7b] sm:$0xff]
  %v6807 = vld [vmem:[#allocation2 + $0x83] sm:$0xff]
  %v6808 = vld [vmem:[#allocation2 + $0x8b] sm:$0xff]
  %v6809 = vld [vmem:[#allocation2 + $0x93] sm:$0xff]
  %v6810 = vld [vmem:[#allocation2 + $0x9b] sm:$0xff]
  %v6811 = vld [vmem:[#allocation2 + $0xa3] sm:$0xff]
  %v6812 = vld [vmem:[#allocation2 + $0xab] sm:$0xff]
  %v6813 = vld [vmem:[#allocation2 + $0xb3] sm:$0xff]
  %v6814 = vld [vmem:[#allocation2 + $0xbb] sm:$0xff]
  %v6815 = vld [vmem:[#allocation2 + $0xc3] sm:$0xff]
  %v6816 = vld [vmem:[#allocation2 + $0xcb] sm:$0xff]
  %v6817 = vld [vmem:[#allocation2 + $0xd3] sm:$0xff]
  %v6818 = vld [vmem:[#allocation2 + $0xdb] sm:$0xff]
  %v6819 = vld [vmem:[#allocation2 + $0xe3] sm:$0xff]
  %v6820 = vld [vmem:[#allocation2 + $0xeb] sm:$0xff]
  %v6821 = vld [vmem:[#allocation2 + $0xf3] sm:$0xff]
  %v6822 = vld [vmem:[#allocation2 + $0xfb] sm:$0xff]
  %v6823 = vld [vmem:[#allocation2 + $0x103] sm:$0xff]
  %v6824 = vld [vmem:[#allocation2 + $0x10b] sm:$0xff]
  %v6825 = vld [vmem:[#allocation2 + $0x113] sm:$0xff]
  %v6826 = vld [vmem:[#allocation2 + $0x11b] sm:$0xff]
  %v6827 = vld [vmem:[#allocation2 + $0x123] sm:$0xff]
  %v6828 = vld [vmem:[#allocation2 + $0x12b] sm:$0xff]
  %v6829 = vld [vmem:[#allocation2 + $0x133] sm:$0xff]
  %v6830 = vld [vmem:[#allocation2 + $0x13b] sm:$0xff]
  %v6831 = vld [vmem:[#allocation2 + $0x143] sm:$0xff]
  %v6832 = vld [vmem:[#allocation2 + $0x14b] sm:$0xff]
  %v6833 = vld [vmem:[#allocation2 + $0x153] sm:$0xff]
  %v6834 = vld [vmem:[#allocation2 + $0x15b] sm:$0xff]
  %v6835 = vld [vmem:[#allocation2 + $0x163] sm:$0xff]
  %v6836 = vld [vmem:[#allocation2 + $0x16b] sm:$0xff]
  %v6837 = vld [vmem:[#allocation2 + $0x173] sm:$0xf]
  %v6838 = vpack.c.bf16 %v6798, %v6797
  %v6839 = vpack.c.bf16 %v6800, %v6799
  %v6840 = vpack.c.bf16 %v6802, %v6801
  %v6841 = vpack.c.bf16 %v6804, %v6803
  %v6842 = vpack.c.bf16 %v6806, %v6805
  %v6843 = vpack.c.bf16 %v6808, %v6807
  %v6844 = vpack.c.bf16 %v6810, %v6809
  %v6845 = vpack.c.bf16 %v6812, %v6811
  %v6846 = vpack.c.bf16 %v6814, %v6813
  %v6847 = vpack.c.bf16 %v6816, %v6815
  %v6848 = vpack.c.bf16 %v6818, %v6817
  %v6849 = vpack.c.bf16 %v6820, %v6819
  %v6850 = vpack.c.bf16 %v6822, %v6821
  %v6851 = vpack.c.bf16 %v6824, %v6823
  %v6852 = vpack.c.bf16 %v6826, %v6825
  %v6853 = vpack.c.bf16 %v6828, %v6827
  %v6854 = vpack.c.bf16 %v6830, %v6829
  %v6855 = vpack.c.bf16 %v6832, %v6831
  %v6856 = vpack.c.bf16 %v6834, %v6833
  %v6857 = vpack.c.bf16 %v6836, %v6835
  %v6858 = vpack.c.bf16 %v6837, %v6837
  %v6859 = vld [vmem:[%s5 + $0xf0] sm:$0xf]
  %v6860 = vld [vmem:[%s5 + $0xf4] sm:$0xf]
  %v6861 = vld [vmem:[%s5 + $0xf8] sm:$0xf]
  %v6862 = vld [vmem:[%s5 + $0xfc] sm:$0xf]
  %v6867 = vunpack.c.l.b16 %v6859
  %v6868 = vunpack.c.l.b16 %v6860
  %v6869 = vunpack.c.l.b16 %v6861
  %v6870 = vunpack.c.l.b16 %v6862
  %v6871 = vpack.c.b16 %v6868, %v6867
  %v6872 = vpack.c.b16 %v6870, %v6869
  %v6876 = vsel %vm1117, %v6838, 0
  %v6879 = vsel %vm1117, %v6839, 0
  %v6882 = vsel %vm1117, %v6840, 0
  %v6885 = vsel %vm1117, %v6841, 0
  %v6888 = vsel %vm1117, %v6842, 0
  %v6891 = vsel %vm1117, %v6843, 0
  %v6894 = vsel %vm1117, %v6844, 0
  %v6897 = vsel %vm1117, %v6845, 0
  %v6900 = vsel %vm1117, %v6846, 0
  %v6903 = vsel %vm1117, %v6847, 0
  %v6906 = vsel %vm1117, %v6848, 0
  %v6909 = vsel %vm1117, %v6849, 0
  %v6912 = vsel %vm1117, %v6850, 0
  %v6915 = vsel %vm1117, %v6851, 0
  %v6918 = vsel %vm1117, %v6852, 0
  %v6921 = vsel %vm1117, %v6853, 0
  %v6924 = vsel %vm1117, %v6854, 0
  %v6927 = vsel %vm1117, %v6855, 0
  %v6930 = vsel %vm1117, %v6856, 0
  %v6933 = vsel %vm1117, %v6857, 0
  %v6936 = vsel %vm1117, %v6858, 0
  %6938 = vmatprep.subr.bf16.mxu0 0
  %6939 = vmatpush1.bf16.msra.mxu0 0
  %6940 = vmatprep.subr.bf16.mxu0 0
  %6941 = vmatpush1.bf16.msra.mxu0 0
  %6942 = vmatprep.subr.bf16.mxu0 0
  %6943 = vmatpush1.bf16.msra.mxu0 0
  %6944 = vmatprep.subr.bf16.mxu0 0
  %6945 = vmatpush1.bf16.msra.mxu0 0
  %6946 = vmatprep.subr.bf16.mxu0 0
  %6947 = vmatpush1.bf16.msra.mxu0 0
  %6948 = vmatprep.subr.bf16.mxu0 0
  %6949 = vmatpush1.bf16.msra.mxu0 0
  %6950 = vmatprep.subr.bf16.mxu0 0
  %6951 = vmatpush1.bf16.msra.mxu0 %v6872
  %6952 = vmatprep.subr.bf16.mxu0 0
  %6953 = vmatpush1.bf16.msra.mxu0 %v6871
  %6954 = vmatprep.subr.bf16.mxu0 0
  %6955 = vmatpush2.bf16.msra.mxu0 0
  %6956 = vmatprep.subr.bf16.mxu0 0
  %6957 = vmatpush2.bf16.msra.mxu0 0
  %6958 = vmatprep.subr.bf16.mxu0 0
  %6959 = vmatpush2.bf16.msra.mxu0 0
  %6960 = vmatprep.subr.bf16.mxu0 0
  %6961 = vmatpush2.bf16.msra.mxu0 0
  %6962 = vmatprep.subr.bf16.mxu0 0
  %6963 = vmatpush2.bf16.msra.mxu0 0
  %6964 = vmatprep.subr.bf16.mxu0 0
  %6965 = vmatpush2.bf16.msra.mxu0 0
  %6966 = vmatprep.subr.bf16.mxu0 0
  %6967 = vmatpush2.bf16.msra.mxu0 0
  %6968 = vmatprep.subr.bf16.mxu0 0
  %6969 = vmatpush2.bf16.msra.mxu0 0
  %6970 = vmatprep.mubr.bf16.mxu0 0
  %6971 = vmatmul.mubr.bf16.gmra.mxu0 %v6876
  %v6972 = vpop.f32.mrf.mxu0
  %v6973 = vadd.f32 0.0, %v6972
  %v6974 = vpop.f32.mrf.mxu0
  %v6975 = vpop.f32.mrf.mxu0
  %v6976 = vadd.f32 0.0, %v6975
  %v6977 = vpop.f32.mrf.mxu0
  %6978 = vmatprep.mubr.bf16.mxu0 0
  %6979 = vmatmul.mubr.bf16.gmra.mxu0 %v6879
  %v6980 = vpop.f32.mrf.mxu0
  %v6981 = vadd.f32 0.0, %v6980
  %v6982 = vpop.f32.mrf.mxu0
  %v6983 = vpop.f32.mrf.mxu0
  %v6984 = vadd.f32 0.0, %v6983
  %v6985 = vpop.f32.mrf.mxu0
  %6986 = vmatprep.mubr.bf16.mxu0 0
  %6987 = vmatmul.mubr.bf16.gmra.mxu0 %v6882
  %v6988 = vpop.f32.mrf.mxu0
  %v6989 = vadd.f32 0.0, %v6988
  %v6990 = vpop.f32.mrf.mxu0
  %v6991 = vpop.f32.mrf.mxu0
  %v6992 = vadd.f32 0.0, %v6991
  %v6993 = vpop.f32.mrf.mxu0
  %6994 = vmatprep.mubr.bf16.mxu0 0
  %6995 = vmatmul.mubr.bf16.gmra.mxu0 %v6885
  %v6996 = vpop.f32.mrf.mxu0
  %v6997 = vadd.f32 0.0, %v6996
  %v6998 = vpop.f32.mrf.mxu0
  %v6999 = vpop.f32.mrf.mxu0
  %v7000 = vadd.f32 0.0, %v6999
  %v7001 = vpop.f32.mrf.mxu0
  %7002 = vmatprep.mubr.bf16.mxu0 0
  %7003 = vmatmul.mubr.bf16.gmra.mxu0 %v6888
  %v7004 = vpop.f32.mrf.mxu0
  %v7005 = vadd.f32 0.0, %v7004
  %v7006 = vpop.f32.mrf.mxu0
  %v7007 = vpop.f32.mrf.mxu0
  %v7008 = vadd.f32 0.0, %v7007
  %v7009 = vpop.f32.mrf.mxu0
  %7010 = vmatprep.mubr.bf16.mxu0 0
  %7011 = vmatmul.mubr.bf16.gmra.mxu0 %v6891
  %v7012 = vpop.f32.mrf.mxu0
  %v7013 = vadd.f32 0.0, %v7012
  %v7014 = vpop.f32.mrf.mxu0
  %v7015 = vpop.f32.mrf.mxu0
  %v7016 = vadd.f32 0.0, %v7015
  %v7017 = vpop.f32.mrf.mxu0
  %7018 = vmatprep.mubr.bf16.mxu0 0
  %7019 = vmatmul.mubr.bf16.gmra.mxu0 %v6894
  %v7020 = vpop.f32.mrf.mxu0
  %v7021 = vadd.f32 0.0, %v7020
  %v7022 = vpop.f32.mrf.mxu0
  %v7023 = vpop.f32.mrf.mxu0
  %v7024 = vadd.f32 0.0, %v7023
  %v7025 = vpop.f32.mrf.mxu0
  %7026 = vmatprep.mubr.bf16.mxu0 0
  %7027 = vmatmul.mubr.bf16.gmra.mxu0 %v6897
  %v7028 = vpop.f32.mrf.mxu0
  %v7029 = vadd.f32 0.0, %v7028
  %v7030 = vpop.f32.mrf.mxu0
  %v7031 = vpop.f32.mrf.mxu0
  %v7032 = vadd.f32 0.0, %v7031
  %v7033 = vpop.f32.mrf.mxu0
  %7034 = vmatprep.mubr.bf16.mxu0 0
  %7035 = vmatmul.mubr.bf16.gmra.mxu0 %v6900
  %v7036 = vpop.f32.mrf.mxu0
  %v7037 = vadd.f32 0.0, %v7036
  %v7038 = vpop.f32.mrf.mxu0
  %v7039 = vpop.f32.mrf.mxu0
  %v7040 = vadd.f32 0.0, %v7039
  %v7041 = vpop.f32.mrf.mxu0
  %7042 = vmatprep.mubr.bf16.mxu0 0
  %7043 = vmatmul.mubr.bf16.gmra.mxu0 %v6903
  %v7044 = vpop.f32.mrf.mxu0
  %v7045 = vadd.f32 0.0, %v7044
  %v7046 = vpop.f32.mrf.mxu0
  %v7047 = vpop.f32.mrf.mxu0
  %v7048 = vadd.f32 0.0, %v7047
  %v7049 = vpop.f32.mrf.mxu0
  %7050 = vmatprep.mubr.bf16.mxu0 0
  %7051 = vmatmul.mubr.bf16.gmra.mxu0 %v6906
  %v7052 = vpop.f32.mrf.mxu0
  %v7053 = vadd.f32 0.0, %v7052
  %v7054 = vpop.f32.mrf.mxu0
  %v7055 = vpop.f32.mrf.mxu0
  %v7056 = vadd.f32 0.0, %v7055
  %v7057 = vpop.f32.mrf.mxu0
  %7058 = vmatprep.mubr.bf16.mxu0 0
  %7059 = vmatmul.mubr.bf16.gmra.mxu0 %v6909
  %v7060 = vpop.f32.mrf.mxu0
  %v7061 = vadd.f32 0.0, %v7060
  %v7062 = vpop.f32.mrf.mxu0
  %v7063 = vpop.f32.mrf.mxu0
  %v7064 = vadd.f32 0.0, %v7063
  %v7065 = vpop.f32.mrf.mxu0
  %7066 = vmatprep.mubr.bf16.mxu0 0
  %7067 = vmatmul.mubr.bf16.gmra.mxu0 %v6912
  %v7068 = vpop.f32.mrf.mxu0
  %v7069 = vadd.f32 0.0, %v7068
  %v7070 = vpop.f32.mrf.mxu0
  %v7071 = vpop.f32.mrf.mxu0
  %v7072 = vadd.f32 0.0, %v7071
  %v7073 = vpop.f32.mrf.mxu0
  %7074 = vmatprep.mubr.bf16.mxu0 0
  %7075 = vmatmul.mubr.bf16.gmra.mxu0 %v6915
  %v7076 = vpop.f32.mrf.mxu0
  %v7077 = vadd.f32 0.0, %v7076
  %v7078 = vpop.f32.mrf.mxu0
  %v7079 = vpop.f32.mrf.mxu0
  %v7080 = vadd.f32 0.0, %v7079
  %v7081 = vpop.f32.mrf.mxu0
  %7082 = vmatprep.mubr.bf16.mxu0 0
  %7083 = vmatmul.mubr.bf16.gmra.mxu0 %v6918
  %v7084 = vpop.f32.mrf.mxu0
  %v7085 = vadd.f32 0.0, %v7084
  %v7086 = vpop.f32.mrf.mxu0
  %v7087 = vpop.f32.mrf.mxu0
  %v7088 = vadd.f32 0.0, %v7087
  %v7089 = vpop.f32.mrf.mxu0
  %7090 = vmatprep.mubr.bf16.mxu0 0
  %7091 = vmatmul.mubr.bf16.gmra.mxu0 %v6921
  %v7092 = vpop.f32.mrf.mxu0
  %v7093 = vadd.f32 0.0, %v7092
  %v7094 = vpop.f32.mrf.mxu0
  %v7095 = vpop.f32.mrf.mxu0
  %v7096 = vadd.f32 0.0, %v7095
  %v7097 = vpop.f32.mrf.mxu0
  %7098 = vmatprep.mubr.bf16.mxu0 0
  %7099 = vmatmul.mubr.bf16.gmra.mxu0 %v6924
  %v7100 = vpop.f32.mrf.mxu0
  %v7101 = vadd.f32 0.0, %v7100
  %v7102 = vpop.f32.mrf.mxu0
  %v7103 = vpop.f32.mrf.mxu0
  %v7104 = vadd.f32 0.0, %v7103
  %v7105 = vpop.f32.mrf.mxu0
  %7106 = vmatprep.mubr.bf16.mxu0 0
  %7107 = vmatmul.mubr.bf16.gmra.mxu0 %v6927
  %v7108 = vpop.f32.mrf.mxu0
  %v7109 = vadd.f32 0.0, %v7108
  %v7110 = vpop.f32.mrf.mxu0
  %v7111 = vpop.f32.mrf.mxu0
  %v7112 = vadd.f32 0.0, %v7111
  %v7113 = vpop.f32.mrf.mxu0
  %7114 = vmatprep.mubr.bf16.mxu0 0
  %7115 = vmatmul.mubr.bf16.gmra.mxu0 %v6930
  %v7116 = vpop.f32.mrf.mxu0
  %v7117 = vadd.f32 0.0, %v7116
  %v7118 = vpop.f32.mrf.mxu0
  %v7119 = vpop.f32.mrf.mxu0
  %v7120 = vadd.f32 0.0, %v7119
  %v7121 = vpop.f32.mrf.mxu0
  %7122 = vmatprep.mubr.bf16.mxu0 0
  %7123 = vmatmul.mubr.bf16.gmra.mxu0 %v6933
  %v7124 = vpop.f32.mrf.mxu0
  %v7125 = vadd.f32 0.0, %v7124
  %v7126 = vpop.f32.mrf.mxu0
  %v7127 = vpop.f32.mrf.mxu0
  %v7128 = vadd.f32 0.0, %v7127
  %v7129 = vpop.f32.mrf.mxu0
  %7130 = vmatprep.mubr.bf16.mxu0 0
  %7131 = vmatmul.mubr.bf16.gmra.mxu0 %v6936
  %v7132 = vpop.f32.mrf.mxu0
  %v7133 = vadd.f32 0.0, %v7132
  %v7134 = vpop.f32.mrf.mxu0
  %v7135 = vpop.f32.mrf.mxu0
  %v7136 = vpop.f32.mrf.mxu0
  %7137 = vdwg.mxu0
  %v7138 = vadd.f32 %v6756, %v6973
  %v7139 = vadd.f32 %v6757, %v6976
  %v7140 = vadd.f32 %v6758, %v6981
  %v7141 = vadd.f32 %v6759, %v6984
  %v7142 = vadd.f32 %v6760, %v6989
  %v7143 = vadd.f32 %v6761, %v6992
  %v7144 = vadd.f32 %v6762, %v6997
  %v7145 = vadd.f32 %v6763, %v7000
  %v7146 = vadd.f32 %v6764, %v7005
  %v7147 = vadd.f32 %v6765, %v7008
  %v7148 = vadd.f32 %v6766, %v7013
  %v7149 = vadd.f32 %v6767, %v7016
  %v7150 = vadd.f32 %v6768, %v7021
  %v7151 = vadd.f32 %v6769, %v7024
  %v7152 = vadd.f32 %v6770, %v7029
  %v7153 = vadd.f32 %v6771, %v7032
  %v7154 = vadd.f32 %v6772, %v7037
  %v7155 = vadd.f32 %v6773, %v7040
  %v7156 = vadd.f32 %v6774, %v7045
  %v7157 = vadd.f32 %v6775, %v7048
  %v7158 = vadd.f32 %v6776, %v7053
  %v7159 = vadd.f32 %v6777, %v7056
  %v7160 = vadd.f32 %v6778, %v7061
  %v7161 = vadd.f32 %v6779, %v7064
  %v7162 = vadd.f32 %v6780, %v7069
  %v7163 = vadd.f32 %v6781, %v7072
  %v7164 = vadd.f32 %v6782, %v7077
  %v7165 = vadd.f32 %v6783, %v7080
  %v7166 = vadd.f32 %v6784, %v7085
  %v7167 = vadd.f32 %v6785, %v7088
  %v7168 = vadd.f32 %v6786, %v7093
  %v7169 = vadd.f32 %v6787, %v7096
  %v7170 = vadd.f32 %v6788, %v7101
  %v7171 = vadd.f32 %v6789, %v7104
  %v7172 = vadd.f32 %v6790, %v7109
  %v7173 = vadd.f32 %v6791, %v7112
  %v7174 = vadd.f32 %v6792, %v7117
  %v7175 = vadd.f32 %v6793, %v7120
  %v7176 = vadd.f32 %v6794, %v7125
  %v7177 = vadd.f32 %v6795, %v7128
  %v7178 = vadd.f32 %v6796, %v7133
  %v7179 = vld [vmem:[%s6] sm:$0x1]
  %v7181 = vlaneseq
  %v7182 = vshrl.u32 %v7181, 7
  %v7183 = vsub.s32 0, %v7182
  %v7184 = vrot.slane %v7179, %v7183
  %v7186 = vmul.f32 %v7138, %v7184
  %v7187 = vmul.f32 %v7139, %v7184
  %v7188 = vmul.f32 %v7140, %v7184
  %v7189 = vmul.f32 %v7141, %v7184
  %v7190 = vmul.f32 %v7142, %v7184
  %v7191 = vmul.f32 %v7143, %v7184
  %v7192 = vmul.f32 %v7144, %v7184
  %v7193 = vmul.f32 %v7145, %v7184
  %v7194 = vmul.f32 %v7146, %v7184
  %v7195 = vmul.f32 %v7147, %v7184
  %v7196 = vmul.f32 %v7148, %v7184
  %v7197 = vmul.f32 %v7149, %v7184
  %v7198 = vmul.f32 %v7150, %v7184
  %v7199 = vmul.f32 %v7151, %v7184
  %v7200 = vmul.f32 %v7152, %v7184
  %v7201 = vmul.f32 %v7153, %v7184
  %v7202 = vmul.f32 %v7154, %v7184
  %v7203 = vmul.f32 %v7155, %v7184
  %v7204 = vmul.f32 %v7156, %v7184
  %v7205 = vmul.f32 %v7157, %v7184
  %v7206 = vmul.f32 %v7158, %v7184
  %v7207 = vmul.f32 %v7159, %v7184
  %v7208 = vmul.f32 %v7160, %v7184
  %v7209 = vmul.f32 %v7161, %v7184
  %v7210 = vmul.f32 %v7162, %v7184
  %v7211 = vmul.f32 %v7163, %v7184
  %v7212 = vmul.f32 %v7164, %v7184
  %v7213 = vmul.f32 %v7165, %v7184
  %v7214 = vmul.f32 %v7166, %v7184
  %v7215 = vmul.f32 %v7167, %v7184
  %v7216 = vmul.f32 %v7168, %v7184
  %v7217 = vmul.f32 %v7169, %v7184
  %v7218 = vmul.f32 %v7170, %v7184
  %v7219 = vmul.f32 %v7171, %v7184
  %v7220 = vmul.f32 %v7172, %v7184
  %v7221 = vmul.f32 %v7173, %v7184
  %v7222 = vmul.f32 %v7174, %v7184
  %v7223 = vmul.f32 %v7175, %v7184
  %v7224 = vmul.f32 %v7176, %v7184
  %v7225 = vmul.f32 %v7177, %v7184
  %v7226 = vmul.f32 %v7178, %v7184
  %v7227 = vld [vmem:[%s7] sm:$0x1]
  %v7229 = vlaneseq
  %v7230 = vshrl.u32 %v7229, 7
  %v7231 = vsub.s32 0, %v7230
  %v7232 = vrot.slane %v7227, %v7231
  %v7234 = vadd.f32 %v7186, %v7232
  %v7235 = vadd.f32 %v7187, %v7232
  %v7236 = vadd.f32 %v7188, %v7232
  %v7237 = vadd.f32 %v7189, %v7232
  %v7238 = vadd.f32 %v7190, %v7232
  %v7239 = vadd.f32 %v7191, %v7232
  %v7240 = vadd.f32 %v7192, %v7232
  %v7241 = vadd.f32 %v7193, %v7232
  %v7242 = vadd.f32 %v7194, %v7232
  %v7243 = vadd.f32 %v7195, %v7232
  %v7244 = vadd.f32 %v7196, %v7232
  %v7245 = vadd.f32 %v7197, %v7232
  %v7246 = vadd.f32 %v7198, %v7232
  %v7247 = vadd.f32 %v7199, %v7232
  %v7248 = vadd.f32 %v7200, %v7232
  %v7249 = vadd.f32 %v7201, %v7232
  %v7250 = vadd.f32 %v7202, %v7232
  %v7251 = vadd.f32 %v7203, %v7232
  %v7252 = vadd.f32 %v7204, %v7232
  %v7253 = vadd.f32 %v7205, %v7232
  %v7254 = vadd.f32 %v7206, %v7232
  %v7255 = vadd.f32 %v7207, %v7232
  %v7256 = vadd.f32 %v7208, %v7232
  %v7257 = vadd.f32 %v7209, %v7232
  %v7258 = vadd.f32 %v7210, %v7232
  %v7259 = vadd.f32 %v7211, %v7232
  %v7260 = vadd.f32 %v7212, %v7232
  %v7261 = vadd.f32 %v7213, %v7232
  %v7262 = vadd.f32 %v7214, %v7232
  %v7263 = vadd.f32 %v7215, %v7232
  %v7264 = vadd.f32 %v7216, %v7232
  %v7265 = vadd.f32 %v7217, %v7232
  %v7266 = vadd.f32 %v7218, %v7232
  %v7267 = vadd.f32 %v7219, %v7232
  %v7268 = vadd.f32 %v7220, %v7232
  %v7269 = vadd.f32 %v7221, %v7232
  %v7270 = vadd.f32 %v7222, %v7232
  %v7271 = vadd.f32 %v7223, %v7232
  %v7272 = vadd.f32 %v7224, %v7232
  %v7273 = vadd.f32 %v7225, %v7232
  %v7274 = vadd.f32 %v7226, %v7232
  %v7275 = vmax.f32 %v7234, 0.0
  %v7276 = vmax.f32 %v7235, 0.0
  %v7277 = vmax.f32 %v7236, 0.0
  %v7278 = vmax.f32 %v7237, 0.0
  %v7279 = vmax.f32 %v7238, 0.0
  %v7280 = vmax.f32 %v7239, 0.0
  %v7281 = vmax.f32 %v7240, 0.0
  %v7282 = vmax.f32 %v7241, 0.0
  %v7283 = vmax.f32 %v7242, 0.0
  %v7284 = vmax.f32 %v7243, 0.0
  %v7285 = vmax.f32 %v7244, 0.0
  %v7286 = vmax.f32 %v7245, 0.0
  %v7287 = vmax.f32 %v7246, 0.0
  %v7288 = vmax.f32 %v7247, 0.0
  %v7289 = vmax.f32 %v7248, 0.0
  %v7290 = vmax.f32 %v7249, 0.0
  %v7291 = vmax.f32 %v7250, 0.0
  %v7292 = vmax.f32 %v7251, 0.0
  %v7293 = vmax.f32 %v7252, 0.0
  %v7294 = vmax.f32 %v7253, 0.0
  %v7295 = vmax.f32 %v7254, 0.0
  %v7296 = vmax.f32 %v7255, 0.0
  %v7297 = vmax.f32 %v7256, 0.0
  %v7298 = vmax.f32 %v7257, 0.0
  %v7299 = vmax.f32 %v7258, 0.0
  %v7300 = vmax.f32 %v7259, 0.0
  %v7301 = vmax.f32 %v7260, 0.0
  %v7302 = vmax.f32 %v7261, 0.0
  %v7303 = vmax.f32 %v7262, 0.0
  %v7304 = vmax.f32 %v7263, 0.0
  %v7305 = vmax.f32 %v7264, 0.0
  %v7306 = vmax.f32 %v7265, 0.0
  %v7307 = vmax.f32 %v7266, 0.0
  %v7308 = vmax.f32 %v7267, 0.0
  %v7309 = vmax.f32 %v7268, 0.0
  %v7310 = vmax.f32 %v7269, 0.0
  %v7311 = vmax.f32 %v7270, 0.0
  %v7312 = vmax.f32 %v7271, 0.0
  %v7313 = vmax.f32 %v7272, 0.0
  %v7314 = vmax.f32 %v7273, 0.0
  %v7315 = vmax.f32 %v7274, 0.0
  %v7316 = vmul.f32 %v7275, %v544
  %v7317 = vmul.f32 %v7276, %v549
  %v7318 = vmul.f32 %v7277, %v554
  %v7319 = vmul.f32 %v7278, %v559
  %v7320 = vmul.f32 %v7279, %v564
  %v7321 = vmul.f32 %v7280, %v569
  %v7322 = vmul.f32 %v7281, %v574
  %v7323 = vmul.f32 %v7282, %v579
  %v7324 = vmul.f32 %v7283, %v584
  %v7325 = vmul.f32 %v7284, %v589
  %v7326 = vmul.f32 %v7285, %v594
  %v7327 = vmul.f32 %v7286, %v599
  %v7328 = vmul.f32 %v7287, %v604
  %v7329 = vmul.f32 %v7288, %v609
  %v7330 = vmul.f32 %v7289, %v614
  %v7331 = vmul.f32 %v7290, %v619
  %v7332 = vmul.f32 %v7291, %v624
  %v7333 = vmul.f32 %v7292, %v629
  %v7334 = vmul.f32 %v7293, %v634
  %v7335 = vmul.f32 %v7294, %v639
  %v7336 = vmul.f32 %v7295, %v644
  %v7337 = vmul.f32 %v7296, %v649
  %v7338 = vmul.f32 %v7297, %v654
  %v7339 = vmul.f32 %v7298, %v659
  %v7340 = vmul.f32 %v7299, %v664
  %v7341 = vmul.f32 %v7300, %v669
  %v7342 = vmul.f32 %v7301, %v674
  %v7343 = vmul.f32 %v7302, %v679
  %v7344 = vmul.f32 %v7303, %v684
  %v7345 = vmul.f32 %v7304, %v689
  %v7346 = vmul.f32 %v7305, %v694
  %v7347 = vmul.f32 %v7306, %v699
  %v7348 = vmul.f32 %v7307, %v704
  %v7349 = vmul.f32 %v7308, %v709
  %v7350 = vmul.f32 %v7309, %v714
  %v7351 = vmul.f32 %v7310, %v719
  %v7352 = vmul.f32 %v7311, %v724
  %v7353 = vmul.f32 %v7312, %v729
  %v7354 = vmul.f32 %v7313, %v734
  %v7355 = vmul.f32 %v7314, %v739
  %v7356 = vmul.f32 %v7315, %v744
  %7357 = vst [vmem:[#allocation3 + $0x20] sm:$0xff] %v7316
  %7358 = vst [vmem:[#allocation3 + $0x28] sm:$0xff] %v7317
  %7359 = vst [vmem:[#allocation3 + $0x30] sm:$0xff] %v7318
  %7360 = vst [vmem:[#allocation3 + $0x38] sm:$0xff] %v7319
  %7361 = vst [vmem:[#allocation3 + $0x40] sm:$0xff] %v7320
  %7362 = vst [vmem:[#allocation3 + $0x48] sm:$0xff] %v7321
  %7363 = vst [vmem:[#allocation3 + $0x50] sm:$0xff] %v7322
  %7364 = vst [vmem:[#allocation3 + $0x58] sm:$0xff] %v7323
  %7365 = vst [vmem:[#allocation3 + $0x60] sm:$0xff] %v7324
  %7366 = vst [vmem:[#allocation3 + $0x68] sm:$0xff] %v7325
  %7367 = vst [vmem:[#allocation3 + $0x70] sm:$0xff] %v7326
  %7368 = vst [vmem:[#allocation3 + $0x78] sm:$0xff] %v7327
  %7369 = vst [vmem:[#allocation3 + $0x80] sm:$0xff] %v7328
  %7370 = vst [vmem:[#allocation3 + $0x88] sm:$0xff] %v7329
  %7371 = vst [vmem:[#allocation3 + $0x90] sm:$0xff] %v7330
  %7372 = vst [vmem:[#allocation3 + $0x98] sm:$0xff] %v7331
  %7373 = vst [vmem:[#allocation3 + $0xa0] sm:$0xff] %v7332
  %7374 = vst [vmem:[#allocation3 + $0xa8] sm:$0xff] %v7333
  %7375 = vst [vmem:[#allocation3 + $0xb0] sm:$0xff] %v7334
  %7376 = vst [vmem:[#allocation3 + $0xb8] sm:$0xff] %v7335
  %7377 = vst [vmem:[#allocation3 + $0xc0] sm:$0xff] %v7336
  %7378 = vst [vmem:[#allocation3 + $0xc8] sm:$0xff] %v7337
  %7379 = vst [vmem:[#allocation3 + $0xd0] sm:$0xff] %v7338
  %7380 = vst [vmem:[#allocation3 + $0xd8] sm:$0xff] %v7339
  %7381 = vst [vmem:[#allocation3 + $0xe0] sm:$0xff] %v7340
  %7382 = vst [vmem:[#allocation3 + $0xe8] sm:$0xff] %v7341
  %7383 = vst [vmem:[#allocation3 + $0xf0] sm:$0xff] %v7342
  %7384 = vst [vmem:[#allocation3 + $0xf8] sm:$0xff] %v7343
  %7385 = vst [vmem:[#allocation3 + $0x100] sm:$0xff] %v7344
  %7386 = vst [vmem:[#allocation3 + $0x108] sm:$0xff] %v7345
  %7387 = vst [vmem:[#allocation3 + $0x110] sm:$0xff] %v7346
  %7388 = vst [vmem:[#allocation3 + $0x118] sm:$0xff] %v7347
  %7389 = vst [vmem:[#allocation3 + $0x120] sm:$0xff] %v7348
  %7390 = vst [vmem:[#allocation3 + $0x128] sm:$0xff] %v7349
  %7391 = vst [vmem:[#allocation3 + $0x130] sm:$0xff] %v7350
  %7392 = vst [vmem:[#allocation3 + $0x138] sm:$0xff] %v7351
  %7393 = vst [vmem:[#allocation3 + $0x140] sm:$0xff] %v7352
  %7394 = vst [vmem:[#allocation3 + $0x148] sm:$0xff] %v7353
  %7395 = vst [vmem:[#allocation3 + $0x150] sm:$0xff] %v7354
  %7396 = vst [vmem:[#allocation3 + $0x158] sm:$0xff] %v7355
  %7397 = vst [vmem:[#allocation3 + $0x160] sm:$0xf] %v7356
  %v7398 = vld [vmem:[#allocation3 + $0xd] sm:$0xff]
  %v7399 = vld [vmem:[#allocation3 + $0x15] sm:$0xff]
  %v7400 = vld [vmem:[#allocation3 + $0x1d] sm:$0xff]
  %v7401 = vld [vmem:[#allocation3 + $0x25] sm:$0xff]
  %v7402 = vld [vmem:[#allocation3 + $0x2d] sm:$0xff]
  %v7403 = vld [vmem:[#allocation3 + $0x35] sm:$0xff]
  %v7404 = vld [vmem:[#allocation3 + $0x3d] sm:$0xff]
  %v7405 = vld [vmem:[#allocation3 + $0x45] sm:$0xff]
  %v7406 = vld [vmem:[#allocation3 + $0x4d] sm:$0xff]
  %v7407 = vld [vmem:[#allocation3 + $0x55] sm:$0xff]
  %v7408 = vld [vmem:[#allocation3 + $0x5d] sm:$0xff]
  %v7409 = vld [vmem:[#allocation3 + $0x65] sm:$0xff]
  %v7410 = vld [vmem:[#allocation3 + $0x6d] sm:$0xff]
  %v7411 = vld [vmem:[#allocation3 + $0x75] sm:$0xff]
  %v7412 = vld [vmem:[#allocation3 + $0x7d] sm:$0xff]
  %v7413 = vld [vmem:[#allocation3 + $0x85] sm:$0xff]
  %v7414 = vld [vmem:[#allocation3 + $0x8d] sm:$0xff]
  %v7415 = vld [vmem:[#allocation3 + $0x95] sm:$0xff]
  %v7416 = vld [vmem:[#allocation3 + $0x9d] sm:$0xff]
  %v7417 = vld [vmem:[#allocation3 + $0xa5] sm:$0xff]
  %v7418 = vld [vmem:[#allocation3 + $0xad] sm:$0xff]
  %v7419 = vld [vmem:[#allocation3 + $0xb5] sm:$0xff]
  %v7420 = vld [vmem:[#allocation3 + $0xbd] sm:$0xff]
  %v7421 = vld [vmem:[#allocation3 + $0xc5] sm:$0xff]
  %v7422 = vld [vmem:[#allocation3 + $0xcd] sm:$0xff]
  %v7423 = vld [vmem:[#allocation3 + $0xd5] sm:$0xff]
  %v7424 = vld [vmem:[#allocation3 + $0xdd] sm:$0xff]
  %v7425 = vld [vmem:[#allocation3 + $0xe5] sm:$0xff]
  %v7426 = vld [vmem:[#allocation3 + $0xed] sm:$0xff]
  %v7427 = vld [vmem:[#allocation3 + $0xf5] sm:$0xff]
  %v7428 = vld [vmem:[#allocation3 + $0xfd] sm:$0xff]
  %v7429 = vld [vmem:[#allocation3 + $0x105] sm:$0xff]
  %v7430 = vld [vmem:[#allocation3 + $0x10d] sm:$0xff]
  %v7431 = vld [vmem:[#allocation3 + $0x115] sm:$0xff]
  %v7432 = vld [vmem:[#allocation3 + $0x11d] sm:$0xff]
  %v7433 = vld [vmem:[#allocation3 + $0x125] sm:$0xff]
  %v7434 = vld [vmem:[#allocation3 + $0x12d] sm:$0xff]
  %v7435 = vld [vmem:[#allocation3 + $0x135] sm:$0xff]
  %v7436 = vld [vmem:[#allocation3 + $0x13d] sm:$0xff]
  %v7437 = vld [vmem:[#allocation3 + $0x145] sm:$0xff]
  %v7438 = vld [vmem:[#allocation3 + $0x14d] sm:$0xf]
  %v7439 = vpack.c.bf16 %v7399, %v7398
  %v7440 = vpack.c.bf16 %v7401, %v7400
  %v7441 = vpack.c.bf16 %v7403, %v7402
  %v7442 = vpack.c.bf16 %v7405, %v7404
  %v7443 = vpack.c.bf16 %v7407, %v7406
  %v7444 = vpack.c.bf16 %v7409, %v7408
  %v7445 = vpack.c.bf16 %v7411, %v7410
  %v7446 = vpack.c.bf16 %v7413, %v7412
  %v7447 = vpack.c.bf16 %v7415, %v7414
  %v7448 = vpack.c.bf16 %v7417, %v7416
  %v7449 = vpack.c.bf16 %v7419, %v7418
  %v7450 = vpack.c.bf16 %v7421, %v7420
  %v7451 = vpack.c.bf16 %v7423, %v7422
  %v7452 = vpack.c.bf16 %v7425, %v7424
  %v7453 = vpack.c.bf16 %v7427, %v7426
  %v7454 = vpack.c.bf16 %v7429, %v7428
  %v7455 = vpack.c.bf16 %v7431, %v7430
  %v7456 = vpack.c.bf16 %v7433, %v7432
  %v7457 = vpack.c.bf16 %v7435, %v7434
  %v7458 = vpack.c.bf16 %v7437, %v7436
  %v7459 = vpack.c.bf16 %v7438, %v7438
  %v7460 = vld [vmem:[%s8] sm:$0xf]
  %v7461 = vld [vmem:[%s8 + $0x4] sm:$0xf]
  %v7462 = vld [vmem:[%s8 + $0x8] sm:$0xf]
  %v7463 = vld [vmem:[%s8 + $0xc] sm:$0xf]
  %v7464 = vld [vmem:[#allocation3 + $0xe] sm:$0xff]
  %v7465 = vld [vmem:[#allocation3 + $0x16] sm:$0xff]
  %v7466 = vld [vmem:[#allocation3 + $0x1e] sm:$0xff]
  %v7467 = vld [vmem:[#allocation3 + $0x26] sm:$0xff]
  %v7468 = vld [vmem:[#allocation3 + $0x2e] sm:$0xff]
  %v7469 = vld [vmem:[#allocation3 + $0x36] sm:$0xff]
  %v7470 = vld [vmem:[#allocation3 + $0x3e] sm:$0xff]
  %v7471 = vld [vmem:[#allocation3 + $0x46] sm:$0xff]
  %v7472 = vld [vmem:[#allocation3 + $0x4e] sm:$0xff]
  %v7473 = vld [vmem:[#allocation3 + $0x56] sm:$0xff]
  %v7474 = vld [vmem:[#allocation3 + $0x5e] sm:$0xff]
  %v7475 = vld [vmem:[#allocation3 + $0x66] sm:$0xff]
  %v7476 = vld [vmem:[#allocation3 + $0x6e] sm:$0xff]
  %v7477 = vld [vmem:[#allocation3 + $0x76] sm:$0xff]
  %v7478 = vld [vmem:[#allocation3 + $0x7e] sm:$0xff]
  %v7479 = vld [vmem:[#allocation3 + $0x86] sm:$0xff]
  %v7480 = vld [vmem:[#allocation3 + $0x8e] sm:$0xff]
  %v7481 = vld [vmem:[#allocation3 + $0x96] sm:$0xff]
  %v7482 = vld [vmem:[#allocation3 + $0x9e] sm:$0xff]
  %v7483 = vld [vmem:[#allocation3 + $0xa6] sm:$0xff]
  %v7484 = vld [vmem:[#allocation3 + $0xae] sm:$0xff]
  %v7485 = vld [vmem:[#allocation3 + $0xb6] sm:$0xff]
  %v7486 = vld [vmem:[#allocation3 + $0xbe] sm:$0xff]
  %v7487 = vld [vmem:[#allocation3 + $0xc6] sm:$0xff]
  %v7488 = vld [vmem:[#allocation3 + $0xce] sm:$0xff]
  %v7489 = vld [vmem:[#allocation3 + $0xd6] sm:$0xff]
  %v7490 = vld [vmem:[#allocation3 + $0xde] sm:$0xff]
  %v7491 = vld [vmem:[#allocation3 + $0xe6] sm:$0xff]
  %v7492 = vld [vmem:[#allocation3 + $0xee] sm:$0xff]
  %v7493 = vld [vmem:[#allocation3 + $0xf6] sm:$0xff]
  %v7494 = vld [vmem:[#allocation3 + $0xfe] sm:$0xff]
  %v7495 = vld [vmem:[#allocation3 + $0x106] sm:$0xff]
  %v7496 = vld [vmem:[#allocation3 + $0x10e] sm:$0xff]
  %v7497 = vld [vmem:[#allocation3 + $0x116] sm:$0xff]
  %v7498 = vld [vmem:[#allocation3 + $0x11e] sm:$0xff]
  %v7499 = vld [vmem:[#allocation3 + $0x126] sm:$0xff]
  %v7500 = vld [vmem:[#allocation3 + $0x12e] sm:$0xff]
  %v7501 = vld [vmem:[#allocation3 + $0x136] sm:$0xff]
  %v7502 = vld [vmem:[#allocation3 + $0x13e] sm:$0xff]
  %v7503 = vld [vmem:[#allocation3 + $0x146] sm:$0xff]
  %v7504 = vld [vmem:[#allocation3 + $0x14e] sm:$0xf]
  %v7505 = vpack.c.bf16 %v7465, %v7464
  %v7506 = vpack.c.bf16 %v7467, %v7466
  %v7507 = vpack.c.bf16 %v7469, %v7468
  %v7508 = vpack.c.bf16 %v7471, %v7470
  %v7509 = vpack.c.bf16 %v7473, %v7472
  %v7510 = vpack.c.bf16 %v7475, %v7474
  %v7511 = vpack.c.bf16 %v7477, %v7476
  %v7512 = vpack.c.bf16 %v7479, %v7478
  %v7513 = vpack.c.bf16 %v7481, %v7480
  %v7514 = vpack.c.bf16 %v7483, %v7482
  %v7515 = vpack.c.bf16 %v7485, %v7484
  %v7516 = vpack.c.bf16 %v7487, %v7486
  %v7517 = vpack.c.bf16 %v7489, %v7488
  %v7518 = vpack.c.bf16 %v7491, %v7490
  %v7519 = vpack.c.bf16 %v7493, %v7492
  %v7520 = vpack.c.bf16 %v7495, %v7494
  %v7521 = vpack.c.bf16 %v7497, %v7496
  %v7522 = vpack.c.bf16 %v7499, %v7498
  %v7523 = vpack.c.bf16 %v7501, %v7500
  %v7524 = vpack.c.bf16 %v7503, %v7502
  %v7525 = vpack.c.bf16 %v7504, %v7504
  %v7526 = vld [vmem:[%s8 + $0x10] sm:$0xf]
  %v7527 = vld [vmem:[%s8 + $0x14] sm:$0xf]
  %v7528 = vld [vmem:[%s8 + $0x18] sm:$0xf]
  %v7529 = vld [vmem:[%s8 + $0x1c] sm:$0xf]
  %7551 = vrot.lane.b32.xlu0 %v7505, 64
  %v7552 = vpop.permute.xlu0 %7551
  %7553 = vrot.lane.b32.xlu0 %v7506, 64
  %v7554 = vpop.permute.xlu0 %7553
  %7555 = vrot.lane.b32.xlu0 %v7507, 64
  %v7556 = vpop.permute.xlu0 %7555
  %7557 = vrot.lane.b32.xlu0 %v7508, 64
  %v7558 = vpop.permute.xlu0 %7557
  %7559 = vrot.lane.b32.xlu0 %v7509, 64
  %v7560 = vpop.permute.xlu0 %7559
  %7561 = vrot.lane.b32.xlu0 %v7510, 64
  %v7562 = vpop.permute.xlu0 %7561
  %7563 = vrot.lane.b32.xlu0 %v7511, 64
  %v7564 = vpop.permute.xlu0 %7563
  %7565 = vrot.lane.b32.xlu0 %v7512, 64
  %v7566 = vpop.permute.xlu0 %7565
  %7567 = vrot.lane.b32.xlu0 %v7513, 64
  %v7568 = vpop.permute.xlu0 %7567
  %7569 = vrot.lane.b32.xlu0 %v7514, 64
  %v7570 = vpop.permute.xlu0 %7569
  %7571 = vrot.lane.b32.xlu0 %v7515, 64
  %v7572 = vpop.permute.xlu0 %7571
  %7573 = vrot.lane.b32.xlu0 %v7516, 64
  %v7574 = vpop.permute.xlu0 %7573
  %7575 = vrot.lane.b32.xlu0 %v7517, 64
  %v7576 = vpop.permute.xlu0 %7575
  %7577 = vrot.lane.b32.xlu0 %v7518, 64
  %v7578 = vpop.permute.xlu0 %7577
  %7579 = vrot.lane.b32.xlu0 %v7519, 64
  %v7580 = vpop.permute.xlu0 %7579
  %7581 = vrot.lane.b32.xlu0 %v7520, 64
  %v7582 = vpop.permute.xlu0 %7581
  %7583 = vrot.lane.b32.xlu0 %v7521, 64
  %v7584 = vpop.permute.xlu0 %7583
  %7585 = vrot.lane.b32.xlu0 %v7522, 64
  %v7586 = vpop.permute.xlu0 %7585
  %7587 = vrot.lane.b32.xlu0 %v7523, 64
  %v7588 = vpop.permute.xlu0 %7587
  %7589 = vrot.lane.b32.xlu0 %v7524, 64
  %v7590 = vpop.permute.xlu0 %7589
  %7591 = vrot.lane.b32.xlu0 %v7525, 64
  %v7592 = vpop.permute.xlu0 %7591
  %v7597 = vunpack.c.l.b16 %v7526
  %v7598 = vunpack.c.l.b16 %v7527
  %v7599 = vunpack.c.l.b16 %v7528
  %v7600 = vunpack.c.l.b16 %v7529
  %v7601 = vpack.c.b16 %v7598, %v7597
  %v7602 = vpack.c.b16 %v7600, %v7599
  %v7606 = vsel %vm1117, %v7552, 0
  %v7609 = vsel %vm1117, %v7554, 0
  %v7612 = vsel %vm1117, %v7556, 0
  %v7615 = vsel %vm1117, %v7558, 0
  %v7618 = vsel %vm1117, %v7560, 0
  %v7621 = vsel %vm1117, %v7562, 0
  %v7624 = vsel %vm1117, %v7564, 0
  %v7627 = vsel %vm1117, %v7566, 0
  %v7630 = vsel %vm1117, %v7568, 0
  %v7633 = vsel %vm1117, %v7570, 0
  %v7636 = vsel %vm1117, %v7572, 0
  %v7639 = vsel %vm1117, %v7574, 0
  %v7642 = vsel %vm1117, %v7576, 0
  %v7645 = vsel %vm1117, %v7578, 0
  %v7648 = vsel %vm1117, %v7580, 0
  %v7651 = vsel %vm1117, %v7582, 0
  %v7654 = vsel %vm1117, %v7584, 0
  %v7657 = vsel %vm1117, %v7586, 0
  %v7660 = vsel %vm1117, %v7588, 0
  %v7663 = vsel %vm1117, %v7590, 0
  %v7666 = vsel %vm1117, %v7592, 0
  %7668 = vmatprep.subr.bf16.mxu0 0
  %7669 = vmatpush1.bf16.msra.mxu0 0
  %7670 = vmatprep.subr.bf16.mxu0 0
  %7671 = vmatpush1.bf16.msra.mxu0 0
  %7672 = vmatprep.subr.bf16.mxu0 0
  %7673 = vmatpush1.bf16.msra.mxu0 0
  %7674 = vmatprep.subr.bf16.mxu0 0
  %7675 = vmatpush1.bf16.msra.mxu0 0
  %7676 = vmatprep.subr.bf16.mxu0 0
  %7677 = vmatpush1.bf16.msra.mxu0 0
  %7678 = vmatprep.subr.bf16.mxu0 0
  %7679 = vmatpush1.bf16.msra.mxu0 0
  %7680 = vmatprep.subr.bf16.mxu0 0
  %7681 = vmatpush1.bf16.msra.mxu0 %v7602
  %7682 = vmatprep.subr.bf16.mxu0 0
  %7683 = vmatpush1.bf16.msra.mxu0 %v7601
  %7684 = vmatprep.subr.bf16.mxu0 0
  %7685 = vmatpush2.bf16.msra.mxu0 0
  %7686 = vmatprep.subr.bf16.mxu0 0
  %7687 = vmatpush2.bf16.msra.mxu0 0
  %7688 = vmatprep.subr.bf16.mxu0 0
  %7689 = vmatpush2.bf16.msra.mxu0 0
  %7690 = vmatprep.subr.bf16.mxu0 0
  %7691 = vmatpush2.bf16.msra.mxu0 0
  %7692 = vmatprep.subr.bf16.mxu0 0
  %7693 = vmatpush2.bf16.msra.mxu0 0
  %7694 = vmatprep.subr.bf16.mxu0 0
  %7695 = vmatpush2.bf16.msra.mxu0 0
  %7696 = vmatprep.subr.bf16.mxu0 0
  %7697 = vmatpush2.bf16.msra.mxu0 0
  %7698 = vmatprep.subr.bf16.mxu0 0
  %7699 = vmatpush2.bf16.msra.mxu0 0
  %7700 = vmatprep.mubr.bf16.mxu0 0
  %7701 = vmatmul.mubr.bf16.gmra.mxu0 %v7606
  %v7702 = vpop.f32.mrf.mxu0
  %v7703 = vadd.f32 0.0, %v7702
  %v7704 = vpop.f32.mrf.mxu0
  %v7705 = vpop.f32.mrf.mxu0
  %v7706 = vadd.f32 0.0, %v7705
  %v7707 = vpop.f32.mrf.mxu0
  %7708 = vmatprep.mubr.bf16.mxu0 0
  %7709 = vmatmul.mubr.bf16.gmra.mxu0 %v7609
  %v7710 = vpop.f32.mrf.mxu0
  %v7711 = vadd.f32 0.0, %v7710
  %v7712 = vpop.f32.mrf.mxu0
  %v7713 = vpop.f32.mrf.mxu0
  %v7714 = vadd.f32 0.0, %v7713
  %v7715 = vpop.f32.mrf.mxu0
  %7716 = vmatprep.mubr.bf16.mxu0 0
  %7717 = vmatmul.mubr.bf16.gmra.mxu0 %v7612
  %v7718 = vpop.f32.mrf.mxu0
  %v7719 = vadd.f32 0.0, %v7718
  %v7720 = vpop.f32.mrf.mxu0
  %v7721 = vpop.f32.mrf.mxu0
  %v7722 = vadd.f32 0.0, %v7721
  %v7723 = vpop.f32.mrf.mxu0
  %7724 = vmatprep.mubr.bf16.mxu0 0
  %7725 = vmatmul.mubr.bf16.gmra.mxu0 %v7615
  %v7726 = vpop.f32.mrf.mxu0
  %v7727 = vadd.f32 0.0, %v7726
  %v7728 = vpop.f32.mrf.mxu0
  %v7729 = vpop.f32.mrf.mxu0
  %v7730 = vadd.f32 0.0, %v7729
  %v7731 = vpop.f32.mrf.mxu0
  %7732 = vmatprep.mubr.bf16.mxu0 0
  %7733 = vmatmul.mubr.bf16.gmra.mxu0 %v7618
  %v7734 = vpop.f32.mrf.mxu0
  %v7735 = vadd.f32 0.0, %v7734
  %v7736 = vpop.f32.mrf.mxu0
  %v7737 = vpop.f32.mrf.mxu0
  %v7738 = vadd.f32 0.0, %v7737
  %v7739 = vpop.f32.mrf.mxu0
  %7740 = vmatprep.mubr.bf16.mxu0 0
  %7741 = vmatmul.mubr.bf16.gmra.mxu0 %v7621
  %v7742 = vpop.f32.mrf.mxu0
  %v7743 = vadd.f32 0.0, %v7742
  %v7744 = vpop.f32.mrf.mxu0
  %v7745 = vpop.f32.mrf.mxu0
  %v7746 = vadd.f32 0.0, %v7745
  %v7747 = vpop.f32.mrf.mxu0
  %7748 = vmatprep.mubr.bf16.mxu0 0
  %7749 = vmatmul.mubr.bf16.gmra.mxu0 %v7624
  %v7750 = vpop.f32.mrf.mxu0
  %v7751 = vadd.f32 0.0, %v7750
  %v7752 = vpop.f32.mrf.mxu0
  %v7753 = vpop.f32.mrf.mxu0
  %v7754 = vadd.f32 0.0, %v7753
  %v7755 = vpop.f32.mrf.mxu0
  %7756 = vmatprep.mubr.bf16.mxu0 0
  %7757 = vmatmul.mubr.bf16.gmra.mxu0 %v7627
  %v7758 = vpop.f32.mrf.mxu0
  %v7759 = vadd.f32 0.0, %v7758
  %v7760 = vpop.f32.mrf.mxu0
  %v7761 = vpop.f32.mrf.mxu0
  %v7762 = vadd.f32 0.0, %v7761
  %v7763 = vpop.f32.mrf.mxu0
  %7764 = vmatprep.mubr.bf16.mxu0 0
  %7765 = vmatmul.mubr.bf16.gmra.mxu0 %v7630
  %v7766 = vpop.f32.mrf.mxu0
  %v7767 = vadd.f32 0.0, %v7766
  %v7768 = vpop.f32.mrf.mxu0
  %v7769 = vpop.f32.mrf.mxu0
  %v7770 = vadd.f32 0.0, %v7769
  %v7771 = vpop.f32.mrf.mxu0
  %7772 = vmatprep.mubr.bf16.mxu0 0
  %7773 = vmatmul.mubr.bf16.gmra.mxu0 %v7633
  %v7774 = vpop.f32.mrf.mxu0
  %v7775 = vadd.f32 0.0, %v7774
  %v7776 = vpop.f32.mrf.mxu0
  %v7777 = vpop.f32.mrf.mxu0
  %v7778 = vadd.f32 0.0, %v7777
  %v7779 = vpop.f32.mrf.mxu0
  %7780 = vmatprep.mubr.bf16.mxu0 0
  %7781 = vmatmul.mubr.bf16.gmra.mxu0 %v7636
  %v7782 = vpop.f32.mrf.mxu0
  %v7783 = vadd.f32 0.0, %v7782
  %v7784 = vpop.f32.mrf.mxu0
  %v7785 = vpop.f32.mrf.mxu0
  %v7786 = vadd.f32 0.0, %v7785
  %v7787 = vpop.f32.mrf.mxu0
  %7788 = vmatprep.mubr.bf16.mxu0 0
  %7789 = vmatmul.mubr.bf16.gmra.mxu0 %v7639
  %v7790 = vpop.f32.mrf.mxu0
  %v7791 = vadd.f32 0.0, %v7790
  %v7792 = vpop.f32.mrf.mxu0
  %v7793 = vpop.f32.mrf.mxu0
  %v7794 = vadd.f32 0.0, %v7793
  %v7795 = vpop.f32.mrf.mxu0
  %7796 = vmatprep.mubr.bf16.mxu0 0
  %7797 = vmatmul.mubr.bf16.gmra.mxu0 %v7642
  %v7798 = vpop.f32.mrf.mxu0
  %v7799 = vadd.f32 0.0, %v7798
  %v7800 = vpop.f32.mrf.mxu0
  %v7801 = vpop.f32.mrf.mxu0
  %v7802 = vadd.f32 0.0, %v7801
  %v7803 = vpop.f32.mrf.mxu0
  %7804 = vmatprep.mubr.bf16.mxu0 0
  %7805 = vmatmul.mubr.bf16.gmra.mxu0 %v7645
  %v7806 = vpop.f32.mrf.mxu0
  %v7807 = vadd.f32 0.0, %v7806
  %v7808 = vpop.f32.mrf.mxu0
  %v7809 = vpop.f32.mrf.mxu0
  %v7810 = vadd.f32 0.0, %v7809
  %v7811 = vpop.f32.mrf.mxu0
  %7812 = vmatprep.mubr.bf16.mxu0 0
  %7813 = vmatmul.mubr.bf16.gmra.mxu0 %v7648
  %v7814 = vpop.f32.mrf.mxu0
  %v7815 = vadd.f32 0.0, %v7814
  %v7816 = vpop.f32.mrf.mxu0
  %v7817 = vpop.f32.mrf.mxu0
  %v7818 = vadd.f32 0.0, %v7817
  %v7819 = vpop.f32.mrf.mxu0
  %7820 = vmatprep.mubr.bf16.mxu0 0
  %7821 = vmatmul.mubr.bf16.gmra.mxu0 %v7651
  %v7822 = vpop.f32.mrf.mxu0
  %v7823 = vadd.f32 0.0, %v7822
  %v7824 = vpop.f32.mrf.mxu0
  %v7825 = vpop.f32.mrf.mxu0
  %v7826 = vadd.f32 0.0, %v7825
  %v7827 = vpop.f32.mrf.mxu0
  %7828 = vmatprep.mubr.bf16.mxu0 0
  %7829 = vmatmul.mubr.bf16.gmra.mxu0 %v7654
  %v7830 = vpop.f32.mrf.mxu0
  %v7831 = vadd.f32 0.0, %v7830
  %v7832 = vpop.f32.mrf.mxu0
  %v7833 = vpop.f32.mrf.mxu0
  %v7834 = vadd.f32 0.0, %v7833
  %v7835 = vpop.f32.mrf.mxu0
  %7836 = vmatprep.mubr.bf16.mxu0 0
  %7837 = vmatmul.mubr.bf16.gmra.mxu0 %v7657
  %v7838 = vpop.f32.mrf.mxu0
  %v7839 = vadd.f32 0.0, %v7838
  %v7840 = vpop.f32.mrf.mxu0
  %v7841 = vpop.f32.mrf.mxu0
  %v7842 = vadd.f32 0.0, %v7841
  %v7843 = vpop.f32.mrf.mxu0
  %7844 = vmatprep.mubr.bf16.mxu0 0
  %7845 = vmatmul.mubr.bf16.gmra.mxu0 %v7660
  %v7846 = vpop.f32.mrf.mxu0
  %v7847 = vadd.f32 0.0, %v7846
  %v7848 = vpop.f32.mrf.mxu0
  %v7849 = vpop.f32.mrf.mxu0
  %v7850 = vadd.f32 0.0, %v7849
  %v7851 = vpop.f32.mrf.mxu0
  %7852 = vmatprep.mubr.bf16.mxu0 0
  %7853 = vmatmul.mubr.bf16.gmra.mxu0 %v7663
  %v7854 = vpop.f32.mrf.mxu0
  %v7855 = vadd.f32 0.0, %v7854
  %v7856 = vpop.f32.mrf.mxu0
  %v7857 = vpop.f32.mrf.mxu0
  %v7858 = vadd.f32 0.0, %v7857
  %v7859 = vpop.f32.mrf.mxu0
  %7860 = vmatprep.mubr.bf16.mxu0 0
  %7861 = vmatmul.mubr.bf16.gmra.mxu0 %v7666
  %v7862 = vpop.f32.mrf.mxu0
  %v7863 = vadd.f32 0.0, %v7862
  %v7864 = vpop.f32.mrf.mxu0
  %v7865 = vpop.f32.mrf.mxu0
  %v7866 = vpop.f32.mrf.mxu0
  %7867 = vdwg.mxu0
  %7889 = vrot.lane.b32.xlu0 %v7439, 32
  %v7890 = vpop.permute.xlu0 %7889
  %7891 = vrot.lane.b32.xlu0 %v7440, 32
  %v7892 = vpop.permute.xlu0 %7891
  %7893 = vrot.lane.b32.xlu0 %v7441, 32
  %v7894 = vpop.permute.xlu0 %7893
  %7895 = vrot.lane.b32.xlu0 %v7442, 32
  %v7896 = vpop.permute.xlu0 %7895
  %7897 = vrot.lane.b32.xlu0 %v7443, 32
  %v7898 = vpop.permute.xlu0 %7897
  %7899 = vrot.lane.b32.xlu0 %v7444, 32
  %v7900 = vpop.permute.xlu0 %7899
  %7901 = vrot.lane.b32.xlu0 %v7445, 32
  %v7902 = vpop.permute.xlu0 %7901
  %7903 = vrot.lane.b32.xlu0 %v7446, 32
  %v7904 = vpop.permute.xlu0 %7903
  %7905 = vrot.lane.b32.xlu0 %v7447, 32
  %v7906 = vpop.permute.xlu0 %7905
  %7907 = vrot.lane.b32.xlu0 %v7448, 32
  %v7908 = vpop.permute.xlu0 %7907
  %7909 = vrot.lane.b32.xlu0 %v7449, 32
  %v7910 = vpop.permute.xlu0 %7909
  %7911 = vrot.lane.b32.xlu0 %v7450, 32
  %v7912 = vpop.permute.xlu0 %7911
  %7913 = vrot.lane.b32.xlu0 %v7451, 32
  %v7914 = vpop.permute.xlu0 %7913
  %7915 = vrot.lane.b32.xlu0 %v7452, 32
  %v7916 = vpop.permute.xlu0 %7915
  %7917 = vrot.lane.b32.xlu0 %v7453, 32
  %v7918 = vpop.permute.xlu0 %7917
  %7919 = vrot.lane.b32.xlu0 %v7454, 32
  %v7920 = vpop.permute.xlu0 %7919
  %7921 = vrot.lane.b32.xlu0 %v7455, 32
  %v7922 = vpop.permute.xlu0 %7921
  %7923 = vrot.lane.b32.xlu0 %v7456, 32
  %v7924 = vpop.permute.xlu0 %7923
  %7925 = vrot.lane.b32.xlu0 %v7457, 32
  %v7926 = vpop.permute.xlu0 %7925
  %7927 = vrot.lane.b32.xlu0 %v7458, 32
  %v7928 = vpop.permute.xlu0 %7927
  %7929 = vrot.lane.b32.xlu0 %v7459, 32
  %v7930 = vpop.permute.xlu0 %7929
  %v7935 = vunpack.c.l.b16 %v7460
  %v7936 = vunpack.c.l.b16 %v7461
  %v7937 = vunpack.c.l.b16 %v7462
  %v7938 = vunpack.c.l.b16 %v7463
  %v7939 = vpack.c.b16 %v7936, %v7935
  %v7940 = vpack.c.b16 %v7938, %v7937
  %v7944 = vsel %vm1117, %v7890, 0
  %v7947 = vsel %vm1117, %v7892, 0
  %v7950 = vsel %vm1117, %v7894, 0
  %v7953 = vsel %vm1117, %v7896, 0
  %v7956 = vsel %vm1117, %v7898, 0
  %v7959 = vsel %vm1117, %v7900, 0
  %v7962 = vsel %vm1117, %v7902, 0
  %v7965 = vsel %vm1117, %v7904, 0
  %v7968 = vsel %vm1117, %v7906, 0
  %v7971 = vsel %vm1117, %v7908, 0
  %v7974 = vsel %vm1117, %v7910, 0
  %v7977 = vsel %vm1117, %v7912, 0
  %v7980 = vsel %vm1117, %v7914, 0
  %v7983 = vsel %vm1117, %v7916, 0
  %v7986 = vsel %vm1117, %v7918, 0
  %v7989 = vsel %vm1117, %v7920, 0
  %v7992 = vsel %vm1117, %v7922, 0
  %v7995 = vsel %vm1117, %v7924, 0
  %v7998 = vsel %vm1117, %v7926, 0
  %v8001 = vsel %vm1117, %v7928, 0
  %v8004 = vsel %vm1117, %v7930, 0
  %8006 = vmatprep.subr.bf16.mxu0 0
  %8007 = vmatpush1.bf16.msra.mxu0 0
  %8008 = vmatprep.subr.bf16.mxu0 0
  %8009 = vmatpush1.bf16.msra.mxu0 0
  %8010 = vmatprep.subr.bf16.mxu0 0
  %8011 = vmatpush1.bf16.msra.mxu0 0
  %8012 = vmatprep.subr.bf16.mxu0 0
  %8013 = vmatpush1.bf16.msra.mxu0 0
  %8014 = vmatprep.subr.bf16.mxu0 0
  %8015 = vmatpush1.bf16.msra.mxu0 0
  %8016 = vmatprep.subr.bf16.mxu0 0
  %8017 = vmatpush1.bf16.msra.mxu0 0
  %8018 = vmatprep.subr.bf16.mxu0 0
  %8019 = vmatpush1.bf16.msra.mxu0 %v7940
  %8020 = vmatprep.subr.bf16.mxu0 0
  %8021 = vmatpush1.bf16.msra.mxu0 %v7939
  %8022 = vmatprep.subr.bf16.mxu0 0
  %8023 = vmatpush2.bf16.msra.mxu0 0
  %8024 = vmatprep.subr.bf16.mxu0 0
  %8025 = vmatpush2.bf16.msra.mxu0 0
  %8026 = vmatprep.subr.bf16.mxu0 0
  %8027 = vmatpush2.bf16.msra.mxu0 0
  %8028 = vmatprep.subr.bf16.mxu0 0
  %8029 = vmatpush2.bf16.msra.mxu0 0
  %8030 = vmatprep.subr.bf16.mxu0 0
  %8031 = vmatpush2.bf16.msra.mxu0 0
  %8032 = vmatprep.subr.bf16.mxu0 0
  %8033 = vmatpush2.bf16.msra.mxu0 0
  %8034 = vmatprep.subr.bf16.mxu0 0
  %8035 = vmatpush2.bf16.msra.mxu0 0
  %8036 = vmatprep.subr.bf16.mxu0 0
  %8037 = vmatpush2.bf16.msra.mxu0 0
  %8038 = vmatprep.mubr.bf16.mxu0 0
  %8039 = vmatmul.mubr.bf16.gmra.mxu0 %v7944
  %v8040 = vpop.f32.mrf.mxu0
  %v8041 = vadd.f32 %v7703, %v8040
  %v8042 = vpop.f32.mrf.mxu0
  %v8043 = vpop.f32.mrf.mxu0
  %v8044 = vadd.f32 %v7706, %v8043
  %v8045 = vpop.f32.mrf.mxu0
  %8046 = vmatprep.mubr.bf16.mxu0 0
  %8047 = vmatmul.mubr.bf16.gmra.mxu0 %v7947
  %v8048 = vpop.f32.mrf.mxu0
  %v8049 = vadd.f32 %v7711, %v8048
  %v8050 = vpop.f32.mrf.mxu0
  %v8051 = vpop.f32.mrf.mxu0
  %v8052 = vadd.f32 %v7714, %v8051
  %v8053 = vpop.f32.mrf.mxu0
  %8054 = vmatprep.mubr.bf16.mxu0 0
  %8055 = vmatmul.mubr.bf16.gmra.mxu0 %v7950
  %v8056 = vpop.f32.mrf.mxu0
  %v8057 = vadd.f32 %v7719, %v8056
  %v8058 = vpop.f32.mrf.mxu0
  %v8059 = vpop.f32.mrf.mxu0
  %v8060 = vadd.f32 %v7722, %v8059
  %v8061 = vpop.f32.mrf.mxu0
  %8062 = vmatprep.mubr.bf16.mxu0 0
  %8063 = vmatmul.mubr.bf16.gmra.mxu0 %v7953
  %v8064 = vpop.f32.mrf.mxu0
  %v8065 = vadd.f32 %v7727, %v8064
  %v8066 = vpop.f32.mrf.mxu0
  %v8067 = vpop.f32.mrf.mxu0
  %v8068 = vadd.f32 %v7730, %v8067
  %v8069 = vpop.f32.mrf.mxu0
  %8070 = vmatprep.mubr.bf16.mxu0 0
  %8071 = vmatmul.mubr.bf16.gmra.mxu0 %v7956
  %v8072 = vpop.f32.mrf.mxu0
  %v8073 = vadd.f32 %v7735, %v8072
  %v8074 = vpop.f32.mrf.mxu0
  %v8075 = vpop.f32.mrf.mxu0
  %v8076 = vadd.f32 %v7738, %v8075
  %v8077 = vpop.f32.mrf.mxu0
  %8078 = vmatprep.mubr.bf16.mxu0 0
  %8079 = vmatmul.mubr.bf16.gmra.mxu0 %v7959
  %v8080 = vpop.f32.mrf.mxu0
  %v8081 = vadd.f32 %v7743, %v8080
  %v8082 = vpop.f32.mrf.mxu0
  %v8083 = vpop.f32.mrf.mxu0
  %v8084 = vadd.f32 %v7746, %v8083
  %v8085 = vpop.f32.mrf.mxu0
  %8086 = vmatprep.mubr.bf16.mxu0 0
  %8087 = vmatmul.mubr.bf16.gmra.mxu0 %v7962
  %v8088 = vpop.f32.mrf.mxu0
  %v8089 = vadd.f32 %v7751, %v8088
  %v8090 = vpop.f32.mrf.mxu0
  %v8091 = vpop.f32.mrf.mxu0
  %v8092 = vadd.f32 %v7754, %v8091
  %v8093 = vpop.f32.mrf.mxu0
  %8094 = vmatprep.mubr.bf16.mxu0 0
  %8095 = vmatmul.mubr.bf16.gmra.mxu0 %v7965
  %v8096 = vpop.f32.mrf.mxu0
  %v8097 = vadd.f32 %v7759, %v8096
  %v8098 = vpop.f32.mrf.mxu0
  %v8099 = vpop.f32.mrf.mxu0
  %v8100 = vadd.f32 %v7762, %v8099
  %v8101 = vpop.f32.mrf.mxu0
  %8102 = vmatprep.mubr.bf16.mxu0 0
  %8103 = vmatmul.mubr.bf16.gmra.mxu0 %v7968
  %v8104 = vpop.f32.mrf.mxu0
  %v8105 = vadd.f32 %v7767, %v8104
  %v8106 = vpop.f32.mrf.mxu0
  %v8107 = vpop.f32.mrf.mxu0
  %v8108 = vadd.f32 %v7770, %v8107
  %v8109 = vpop.f32.mrf.mxu0
  %8110 = vmatprep.mubr.bf16.mxu0 0
  %8111 = vmatmul.mubr.bf16.gmra.mxu0 %v7971
  %v8112 = vpop.f32.mrf.mxu0
  %v8113 = vadd.f32 %v7775, %v8112
  %v8114 = vpop.f32.mrf.mxu0
  %v8115 = vpop.f32.mrf.mxu0
  %v8116 = vadd.f32 %v7778, %v8115
  %v8117 = vpop.f32.mrf.mxu0
  %8118 = vmatprep.mubr.bf16.mxu0 0
  %8119 = vmatmul.mubr.bf16.gmra.mxu0 %v7974
  %v8120 = vpop.f32.mrf.mxu0
  %v8121 = vadd.f32 %v7783, %v8120
  %v8122 = vpop.f32.mrf.mxu0
  %v8123 = vpop.f32.mrf.mxu0
  %v8124 = vadd.f32 %v7786, %v8123
  %v8125 = vpop.f32.mrf.mxu0
  %8126 = vmatprep.mubr.bf16.mxu0 0
  %8127 = vmatmul.mubr.bf16.gmra.mxu0 %v7977
  %v8128 = vpop.f32.mrf.mxu0
  %v8129 = vadd.f32 %v7791, %v8128
  %v8130 = vpop.f32.mrf.mxu0
  %v8131 = vpop.f32.mrf.mxu0
  %v8132 = vadd.f32 %v7794, %v8131
  %v8133 = vpop.f32.mrf.mxu0
  %8134 = vmatprep.mubr.bf16.mxu0 0
  %8135 = vmatmul.mubr.bf16.gmra.mxu0 %v7980
  %v8136 = vpop.f32.mrf.mxu0
  %v8137 = vadd.f32 %v7799, %v8136
  %v8138 = vpop.f32.mrf.mxu0
  %v8139 = vpop.f32.mrf.mxu0
  %v8140 = vadd.f32 %v7802, %v8139
  %v8141 = vpop.f32.mrf.mxu0
  %8142 = vmatprep.mubr.bf16.mxu0 0
  %8143 = vmatmul.mubr.bf16.gmra.mxu0 %v7983
  %v8144 = vpop.f32.mrf.mxu0
  %v8145 = vadd.f32 %v7807, %v8144
  %v8146 = vpop.f32.mrf.mxu0
  %v8147 = vpop.f32.mrf.mxu0
  %v8148 = vadd.f32 %v7810, %v8147
  %v8149 = vpop.f32.mrf.mxu0
  %8150 = vmatprep.mubr.bf16.mxu0 0
  %8151 = vmatmul.mubr.bf16.gmra.mxu0 %v7986
  %v8152 = vpop.f32.mrf.mxu0
  %v8153 = vadd.f32 %v7815, %v8152
  %v8154 = vpop.f32.mrf.mxu0
  %v8155 = vpop.f32.mrf.mxu0
  %v8156 = vadd.f32 %v7818, %v8155
  %v8157 = vpop.f32.mrf.mxu0
  %8158 = vmatprep.mubr.bf16.mxu0 0
  %8159 = vmatmul.mubr.bf16.gmra.mxu0 %v7989
  %v8160 = vpop.f32.mrf.mxu0
  %v8161 = vadd.f32 %v7823, %v8160
  %v8162 = vpop.f32.mrf.mxu0
  %v8163 = vpop.f32.mrf.mxu0
  %v8164 = vadd.f32 %v7826, %v8163
  %v8165 = vpop.f32.mrf.mxu0
  %8166 = vmatprep.mubr.bf16.mxu0 0
  %8167 = vmatmul.mubr.bf16.gmra.mxu0 %v7992
  %v8168 = vpop.f32.mrf.mxu0
  %v8169 = vadd.f32 %v7831, %v8168
  %v8170 = vpop.f32.mrf.mxu0
  %v8171 = vpop.f32.mrf.mxu0
  %v8172 = vadd.f32 %v7834, %v8171
  %v8173 = vpop.f32.mrf.mxu0
  %8174 = vmatprep.mubr.bf16.mxu0 0
  %8175 = vmatmul.mubr.bf16.gmra.mxu0 %v7995
  %v8176 = vpop.f32.mrf.mxu0
  %v8177 = vadd.f32 %v7839, %v8176
  %v8178 = vpop.f32.mrf.mxu0
  %v8179 = vpop.f32.mrf.mxu0
  %v8180 = vadd.f32 %v7842, %v8179
  %v8181 = vpop.f32.mrf.mxu0
  %8182 = vmatprep.mubr.bf16.mxu0 0
  %8183 = vmatmul.mubr.bf16.gmra.mxu0 %v7998
  %v8184 = vpop.f32.mrf.mxu0
  %v8185 = vadd.f32 %v7847, %v8184
  %v8186 = vpop.f32.mrf.mxu0
  %v8187 = vpop.f32.mrf.mxu0
  %v8188 = vadd.f32 %v7850, %v8187
  %v8189 = vpop.f32.mrf.mxu0
  %8190 = vmatprep.mubr.bf16.mxu0 0
  %8191 = vmatmul.mubr.bf16.gmra.mxu0 %v8001
  %v8192 = vpop.f32.mrf.mxu0
  %v8193 = vadd.f32 %v7855, %v8192
  %v8194 = vpop.f32.mrf.mxu0
  %v8195 = vpop.f32.mrf.mxu0
  %v8196 = vadd.f32 %v7858, %v8195
  %v8197 = vpop.f32.mrf.mxu0
  %8198 = vmatprep.mubr.bf16.mxu0 0
  %8199 = vmatmul.mubr.bf16.gmra.mxu0 %v8004
  %v8200 = vpop.f32.mrf.mxu0
  %v8201 = vadd.f32 %v7863, %v8200
  %v8202 = vpop.f32.mrf.mxu0
  %v8203 = vpop.f32.mrf.mxu0
  %v8204 = vpop.f32.mrf.mxu0
  %8205 = vdwg.mxu0
  %v8206 = vld [vmem:[%s8 + $0x20] sm:$0xf]
  %v8207 = vld [vmem:[%s8 + $0x24] sm:$0xf]
  %v8208 = vld [vmem:[%s8 + $0x28] sm:$0xf]
  %v8209 = vld [vmem:[%s8 + $0x2c] sm:$0xf]
  %8210 = vrot.lane.b32.xlu0 %v7505, 32
  %v8211 = vpop.permute.xlu0 %8210
  %8212 = vrot.lane.b32.xlu0 %v7506, 32
  %v8213 = vpop.permute.xlu0 %8212
  %8214 = vrot.lane.b32.xlu0 %v7507, 32
  %v8215 = vpop.permute.xlu0 %8214
  %8216 = vrot.lane.b32.xlu0 %v7508, 32
  %v8217 = vpop.permute.xlu0 %8216
  %8218 = vrot.lane.b32.xlu0 %v7509, 32
  %v8219 = vpop.permute.xlu0 %8218
  %8220 = vrot.lane.b32.xlu0 %v7510, 32
  %v8221 = vpop.permute.xlu0 %8220
  %8222 = vrot.lane.b32.xlu0 %v7511, 32
  %v8223 = vpop.permute.xlu0 %8222
  %8224 = vrot.lane.b32.xlu0 %v7512, 32
  %v8225 = vpop.permute.xlu0 %8224
  %8226 = vrot.lane.b32.xlu0 %v7513, 32
  %v8227 = vpop.permute.xlu0 %8226
  %8228 = vrot.lane.b32.xlu0 %v7514, 32
  %v8229 = vpop.permute.xlu0 %8228
  %8230 = vrot.lane.b32.xlu0 %v7515, 32
  %v8231 = vpop.permute.xlu0 %8230
  %8232 = vrot.lane.b32.xlu0 %v7516, 32
  %v8233 = vpop.permute.xlu0 %8232
  %8234 = vrot.lane.b32.xlu0 %v7517, 32
  %v8235 = vpop.permute.xlu0 %8234
  %8236 = vrot.lane.b32.xlu0 %v7518, 32
  %v8237 = vpop.permute.xlu0 %8236
  %8238 = vrot.lane.b32.xlu0 %v7519, 32
  %v8239 = vpop.permute.xlu0 %8238
  %8240 = vrot.lane.b32.xlu0 %v7520, 32
  %v8241 = vpop.permute.xlu0 %8240
  %8242 = vrot.lane.b32.xlu0 %v7521, 32
  %v8243 = vpop.permute.xlu0 %8242
  %8244 = vrot.lane.b32.xlu0 %v7522, 32
  %v8245 = vpop.permute.xlu0 %8244
  %8246 = vrot.lane.b32.xlu0 %v7523, 32
  %v8247 = vpop.permute.xlu0 %8246
  %8248 = vrot.lane.b32.xlu0 %v7524, 32
  %v8249 = vpop.permute.xlu0 %8248
  %8250 = vrot.lane.b32.xlu0 %v7525, 32
  %v8251 = vpop.permute.xlu0 %8250
  %v8256 = vunpack.c.l.b16 %v8206
  %v8257 = vunpack.c.l.b16 %v8207
  %v8258 = vunpack.c.l.b16 %v8208
  %v8259 = vunpack.c.l.b16 %v8209
  %v8260 = vpack.c.b16 %v8257, %v8256
  %v8261 = vpack.c.b16 %v8259, %v8258
  %v8265 = vsel %vm1117, %v8211, 0
  %v8268 = vsel %vm1117, %v8213, 0
  %v8271 = vsel %vm1117, %v8215, 0
  %v8274 = vsel %vm1117, %v8217, 0
  %v8277 = vsel %vm1117, %v8219, 0
  %v8280 = vsel %vm1117, %v8221, 0
  %v8283 = vsel %vm1117, %v8223, 0
  %v8286 = vsel %vm1117, %v8225, 0
  %v8289 = vsel %vm1117, %v8227, 0
  %v8292 = vsel %vm1117, %v8229, 0
  %v8295 = vsel %vm1117, %v8231, 0
  %v8298 = vsel %vm1117, %v8233, 0
  %v8301 = vsel %vm1117, %v8235, 0
  %v8304 = vsel %vm1117, %v8237, 0
  %v8307 = vsel %vm1117, %v8239, 0
  %v8310 = vsel %vm1117, %v8241, 0
  %v8313 = vsel %vm1117, %v8243, 0
  %v8316 = vsel %vm1117, %v8245, 0
  %v8319 = vsel %vm1117, %v8247, 0
  %v8322 = vsel %vm1117, %v8249, 0
  %v8325 = vsel %vm1117, %v8251, 0
  %8327 = vmatprep.subr.bf16.mxu0 0
  %8328 = vmatpush1.bf16.msra.mxu0 0
  %8329 = vmatprep.subr.bf16.mxu0 0
  %8330 = vmatpush1.bf16.msra.mxu0 0
  %8331 = vmatprep.subr.bf16.mxu0 0
  %8332 = vmatpush1.bf16.msra.mxu0 0
  %8333 = vmatprep.subr.bf16.mxu0 0
  %8334 = vmatpush1.bf16.msra.mxu0 0
  %8335 = vmatprep.subr.bf16.mxu0 0
  %8336 = vmatpush1.bf16.msra.mxu0 0
  %8337 = vmatprep.subr.bf16.mxu0 0
  %8338 = vmatpush1.bf16.msra.mxu0 0
  %8339 = vmatprep.subr.bf16.mxu0 0
  %8340 = vmatpush1.bf16.msra.mxu0 %v8261
  %8341 = vmatprep.subr.bf16.mxu0 0
  %8342 = vmatpush1.bf16.msra.mxu0 %v8260
  %8343 = vmatprep.subr.bf16.mxu0 0
  %8344 = vmatpush2.bf16.msra.mxu0 0
  %8345 = vmatprep.subr.bf16.mxu0 0
  %8346 = vmatpush2.bf16.msra.mxu0 0
  %8347 = vmatprep.subr.bf16.mxu0 0
  %8348 = vmatpush2.bf16.msra.mxu0 0
  %8349 = vmatprep.subr.bf16.mxu0 0
  %8350 = vmatpush2.bf16.msra.mxu0 0
  %8351 = vmatprep.subr.bf16.mxu0 0
  %8352 = vmatpush2.bf16.msra.mxu0 0
  %8353 = vmatprep.subr.bf16.mxu0 0
  %8354 = vmatpush2.bf16.msra.mxu0 0
  %8355 = vmatprep.subr.bf16.mxu0 0
  %8356 = vmatpush2.bf16.msra.mxu0 0
  %8357 = vmatprep.subr.bf16.mxu0 0
  %8358 = vmatpush2.bf16.msra.mxu0 0
  %8359 = vmatprep.mubr.bf16.mxu0 0
  %8360 = vmatmul.mubr.bf16.gmra.mxu0 %v8265
  %v8361 = vpop.f32.mrf.mxu0
  %v8362 = vadd.f32 0.0, %v8361
  %v8363 = vpop.f32.mrf.mxu0
  %v8364 = vpop.f32.mrf.mxu0
  %v8365 = vadd.f32 0.0, %v8364
  %v8366 = vpop.f32.mrf.mxu0
  %8367 = vmatprep.mubr.bf16.mxu0 0
  %8368 = vmatmul.mubr.bf16.gmra.mxu0 %v8268
  %v8369 = vpop.f32.mrf.mxu0
  %v8370 = vadd.f32 0.0, %v8369
  %v8371 = vpop.f32.mrf.mxu0
  %v8372 = vpop.f32.mrf.mxu0
  %v8373 = vadd.f32 0.0, %v8372
  %v8374 = vpop.f32.mrf.mxu0
  %8375 = vmatprep.mubr.bf16.mxu0 0
  %8376 = vmatmul.mubr.bf16.gmra.mxu0 %v8271
  %v8377 = vpop.f32.mrf.mxu0
  %v8378 = vadd.f32 0.0, %v8377
  %v8379 = vpop.f32.mrf.mxu0
  %v8380 = vpop.f32.mrf.mxu0
  %v8381 = vadd.f32 0.0, %v8380
  %v8382 = vpop.f32.mrf.mxu0
  %8383 = vmatprep.mubr.bf16.mxu0 0
  %8384 = vmatmul.mubr.bf16.gmra.mxu0 %v8274
  %v8385 = vpop.f32.mrf.mxu0
  %v8386 = vadd.f32 0.0, %v8385
  %v8387 = vpop.f32.mrf.mxu0
  %v8388 = vpop.f32.mrf.mxu0
  %v8389 = vadd.f32 0.0, %v8388
  %v8390 = vpop.f32.mrf.mxu0
  %8391 = vmatprep.mubr.bf16.mxu0 0
  %8392 = vmatmul.mubr.bf16.gmra.mxu0 %v8277
  %v8393 = vpop.f32.mrf.mxu0
  %v8394 = vadd.f32 0.0, %v8393
  %v8395 = vpop.f32.mrf.mxu0
  %v8396 = vpop.f32.mrf.mxu0
  %v8397 = vadd.f32 0.0, %v8396
  %v8398 = vpop.f32.mrf.mxu0
  %8399 = vmatprep.mubr.bf16.mxu0 0
  %8400 = vmatmul.mubr.bf16.gmra.mxu0 %v8280
  %v8401 = vpop.f32.mrf.mxu0
  %v8402 = vadd.f32 0.0, %v8401
  %v8403 = vpop.f32.mrf.mxu0
  %v8404 = vpop.f32.mrf.mxu0
  %v8405 = vadd.f32 0.0, %v8404
  %v8406 = vpop.f32.mrf.mxu0
  %8407 = vmatprep.mubr.bf16.mxu0 0
  %8408 = vmatmul.mubr.bf16.gmra.mxu0 %v8283
  %v8409 = vpop.f32.mrf.mxu0
  %v8410 = vadd.f32 0.0, %v8409
  %v8411 = vpop.f32.mrf.mxu0
  %v8412 = vpop.f32.mrf.mxu0
  %v8413 = vadd.f32 0.0, %v8412
  %v8414 = vpop.f32.mrf.mxu0
  %8415 = vmatprep.mubr.bf16.mxu0 0
  %8416 = vmatmul.mubr.bf16.gmra.mxu0 %v8286
  %v8417 = vpop.f32.mrf.mxu0
  %v8418 = vadd.f32 0.0, %v8417
  %v8419 = vpop.f32.mrf.mxu0
  %v8420 = vpop.f32.mrf.mxu0
  %v8421 = vadd.f32 0.0, %v8420
  %v8422 = vpop.f32.mrf.mxu0
  %8423 = vmatprep.mubr.bf16.mxu0 0
  %8424 = vmatmul.mubr.bf16.gmra.mxu0 %v8289
  %v8425 = vpop.f32.mrf.mxu0
  %v8426 = vadd.f32 0.0, %v8425
  %v8427 = vpop.f32.mrf.mxu0
  %v8428 = vpop.f32.mrf.mxu0
  %v8429 = vadd.f32 0.0, %v8428
  %v8430 = vpop.f32.mrf.mxu0
  %8431 = vmatprep.mubr.bf16.mxu0 0
  %8432 = vmatmul.mubr.bf16.gmra.mxu0 %v8292
  %v8433 = vpop.f32.mrf.mxu0
  %v8434 = vadd.f32 0.0, %v8433
  %v8435 = vpop.f32.mrf.mxu0
  %v8436 = vpop.f32.mrf.mxu0
  %v8437 = vadd.f32 0.0, %v8436
  %v8438 = vpop.f32.mrf.mxu0
  %8439 = vmatprep.mubr.bf16.mxu0 0
  %8440 = vmatmul.mubr.bf16.gmra.mxu0 %v8295
  %v8441 = vpop.f32.mrf.mxu0
  %v8442 = vadd.f32 0.0, %v8441
  %v8443 = vpop.f32.mrf.mxu0
  %v8444 = vpop.f32.mrf.mxu0
  %v8445 = vadd.f32 0.0, %v8444
  %v8446 = vpop.f32.mrf.mxu0
  %8447 = vmatprep.mubr.bf16.mxu0 0
  %8448 = vmatmul.mubr.bf16.gmra.mxu0 %v8298
  %v8449 = vpop.f32.mrf.mxu0
  %v8450 = vadd.f32 0.0, %v8449
  %v8451 = vpop.f32.mrf.mxu0
  %v8452 = vpop.f32.mrf.mxu0
  %v8453 = vadd.f32 0.0, %v8452
  %v8454 = vpop.f32.mrf.mxu0
  %8455 = vmatprep.mubr.bf16.mxu0 0
  %8456 = vmatmul.mubr.bf16.gmra.mxu0 %v8301
  %v8457 = vpop.f32.mrf.mxu0
  %v8458 = vadd.f32 0.0, %v8457
  %v8459 = vpop.f32.mrf.mxu0
  %v8460 = vpop.f32.mrf.mxu0
  %v8461 = vadd.f32 0.0, %v8460
  %v8462 = vpop.f32.mrf.mxu0
  %8463 = vmatprep.mubr.bf16.mxu0 0
  %8464 = vmatmul.mubr.bf16.gmra.mxu0 %v8304
  %v8465 = vpop.f32.mrf.mxu0
  %v8466 = vadd.f32 0.0, %v8465
  %v8467 = vpop.f32.mrf.mxu0
  %v8468 = vpop.f32.mrf.mxu0
  %v8469 = vadd.f32 0.0, %v8468
  %v8470 = vpop.f32.mrf.mxu0
  %8471 = vmatprep.mubr.bf16.mxu0 0
  %8472 = vmatmul.mubr.bf16.gmra.mxu0 %v8307
  %v8473 = vpop.f32.mrf.mxu0
  %v8474 = vadd.f32 0.0, %v8473
  %v8475 = vpop.f32.mrf.mxu0
  %v8476 = vpop.f32.mrf.mxu0
  %v8477 = vadd.f32 0.0, %v8476
  %v8478 = vpop.f32.mrf.mxu0
  %8479 = vmatprep.mubr.bf16.mxu0 0
  %8480 = vmatmul.mubr.bf16.gmra.mxu0 %v8310
  %v8481 = vpop.f32.mrf.mxu0
  %v8482 = vadd.f32 0.0, %v8481
  %v8483 = vpop.f32.mrf.mxu0
  %v8484 = vpop.f32.mrf.mxu0
  %v8485 = vadd.f32 0.0, %v8484
  %v8486 = vpop.f32.mrf.mxu0
  %8487 = vmatprep.mubr.bf16.mxu0 0
  %8488 = vmatmul.mubr.bf16.gmra.mxu0 %v8313
  %v8489 = vpop.f32.mrf.mxu0
  %v8490 = vadd.f32 0.0, %v8489
  %v8491 = vpop.f32.mrf.mxu0
  %v8492 = vpop.f32.mrf.mxu0
  %v8493 = vadd.f32 0.0, %v8492
  %v8494 = vpop.f32.mrf.mxu0
  %8495 = vmatprep.mubr.bf16.mxu0 0
  %8496 = vmatmul.mubr.bf16.gmra.mxu0 %v8316
  %v8497 = vpop.f32.mrf.mxu0
  %v8498 = vadd.f32 0.0, %v8497
  %v8499 = vpop.f32.mrf.mxu0
  %v8500 = vpop.f32.mrf.mxu0
  %v8501 = vadd.f32 0.0, %v8500
  %v8502 = vpop.f32.mrf.mxu0
  %8503 = vmatprep.mubr.bf16.mxu0 0
  %8504 = vmatmul.mubr.bf16.gmra.mxu0 %v8319
  %v8505 = vpop.f32.mrf.mxu0
  %v8506 = vadd.f32 0.0, %v8505
  %v8507 = vpop.f32.mrf.mxu0
  %v8508 = vpop.f32.mrf.mxu0
  %v8509 = vadd.f32 0.0, %v8508
  %v8510 = vpop.f32.mrf.mxu0
  %8511 = vmatprep.mubr.bf16.mxu0 0
  %8512 = vmatmul.mubr.bf16.gmra.mxu0 %v8322
  %v8513 = vpop.f32.mrf.mxu0
  %v8514 = vadd.f32 0.0, %v8513
  %v8515 = vpop.f32.mrf.mxu0
  %v8516 = vpop.f32.mrf.mxu0
  %v8517 = vadd.f32 0.0, %v8516
  %v8518 = vpop.f32.mrf.mxu0
  %8519 = vmatprep.mubr.bf16.mxu0 0
  %8520 = vmatmul.mubr.bf16.gmra.mxu0 %v8325
  %v8521 = vpop.f32.mrf.mxu0
  %v8522 = vadd.f32 0.0, %v8521
  %v8523 = vpop.f32.mrf.mxu0
  %v8524 = vpop.f32.mrf.mxu0
  %v8525 = vpop.f32.mrf.mxu0
  %8526 = vdwg.mxu0
  %v8527 = vadd.f32 %v8041, %v8362
  %v8528 = vadd.f32 %v8044, %v8365
  %v8529 = vadd.f32 %v8049, %v8370
  %v8530 = vadd.f32 %v8052, %v8373
  %v8531 = vadd.f32 %v8057, %v8378
  %v8532 = vadd.f32 %v8060, %v8381
  %v8533 = vadd.f32 %v8065, %v8386
  %v8534 = vadd.f32 %v8068, %v8389
  %v8535 = vadd.f32 %v8073, %v8394
  %v8536 = vadd.f32 %v8076, %v8397
  %v8537 = vadd.f32 %v8081, %v8402
  %v8538 = vadd.f32 %v8084, %v8405
  %v8539 = vadd.f32 %v8089, %v8410
  %v8540 = vadd.f32 %v8092, %v8413
  %v8541 = vadd.f32 %v8097, %v8418
  %v8542 = vadd.f32 %v8100, %v8421
  %v8543 = vadd.f32 %v8105, %v8426
  %v8544 = vadd.f32 %v8108, %v8429
  %v8545 = vadd.f32 %v8113, %v8434
  %v8546 = vadd.f32 %v8116, %v8437
  %v8547 = vadd.f32 %v8121, %v8442
  %v8548 = vadd.f32 %v8124, %v8445
  %v8549 = vadd.f32 %v8129, %v8450
  %v8550 = vadd.f32 %v8132, %v8453
  %v8551 = vadd.f32 %v8137, %v8458
  %v8552 = vadd.f32 %v8140, %v8461
  %v8553 = vadd.f32 %v8145, %v8466
  %v8554 = vadd.f32 %v8148, %v8469
  %v8555 = vadd.f32 %v8153, %v8474
  %v8556 = vadd.f32 %v8156, %v8477
  %v8557 = vadd.f32 %v8161, %v8482
  %v8558 = vadd.f32 %v8164, %v8485
  %v8559 = vadd.f32 %v8169, %v8490
  %v8560 = vadd.f32 %v8172, %v8493
  %v8561 = vadd.f32 %v8177, %v8498
  %v8562 = vadd.f32 %v8180, %v8501
  %v8563 = vadd.f32 %v8185, %v8506
  %v8564 = vadd.f32 %v8188, %v8509
  %v8565 = vadd.f32 %v8193, %v8514
  %v8566 = vadd.f32 %v8196, %v8517
  %v8567 = vadd.f32 %v8201, %v8522
  %v8568 = vld [vmem:[#allocation3 + $0xf] sm:$0xff]
  %v8569 = vld [vmem:[#allocation3 + $0x17] sm:$0xff]
  %v8570 = vld [vmem:[#allocation3 + $0x1f] sm:$0xff]
  %v8571 = vld [vmem:[#allocation3 + $0x27] sm:$0xff]
  %v8572 = vld [vmem:[#allocation3 + $0x2f] sm:$0xff]
  %v8573 = vld [vmem:[#allocation3 + $0x37] sm:$0xff]
  %v8574 = vld [vmem:[#allocation3 + $0x3f] sm:$0xff]
  %v8575 = vld [vmem:[#allocation3 + $0x47] sm:$0xff]
  %v8576 = vld [vmem:[#allocation3 + $0x4f] sm:$0xff]
  %v8577 = vld [vmem:[#allocation3 + $0x57] sm:$0xff]
  %v8578 = vld [vmem:[#allocation3 + $0x5f] sm:$0xff]
  %v8579 = vld [vmem:[#allocation3 + $0x67] sm:$0xff]
  %v8580 = vld [vmem:[#allocation3 + $0x6f] sm:$0xff]
  %v8581 = vld [vmem:[#allocation3 + $0x77] sm:$0xff]
  %v8582 = vld [vmem:[#allocation3 + $0x7f] sm:$0xff]
  %v8583 = vld [vmem:[#allocation3 + $0x87] sm:$0xff]
  %v8584 = vld [vmem:[#allocation3 + $0x8f] sm:$0xff]
  %v8585 = vld [vmem:[#allocation3 + $0x97] sm:$0xff]
  %v8586 = vld [vmem:[#allocation3 + $0x9f] sm:$0xff]
  %v8587 = vld [vmem:[#allocation3 + $0xa7] sm:$0xff]
  %v8588 = vld [vmem:[#allocation3 + $0xaf] sm:$0xff]
  %v8589 = vld [vmem:[#allocation3 + $0xb7] sm:$0xff]
  %v8590 = vld [vmem:[#allocation3 + $0xbf] sm:$0xff]
  %v8591 = vld [vmem:[#allocation3 + $0xc7] sm:$0xff]
  %v8592 = vld [vmem:[#allocation3 + $0xcf] sm:$0xff]
  %v8593 = vld [vmem:[#allocation3 + $0xd7] sm:$0xff]
  %v8594 = vld [vmem:[#allocation3 + $0xdf] sm:$0xff]
  %v8595 = vld [vmem:[#allocation3 + $0xe7] sm:$0xff]
  %v8596 = vld [vmem:[#allocation3 + $0xef] sm:$0xff]
  %v8597 = vld [vmem:[#allocation3 + $0xf7] sm:$0xff]
  %v8598 = vld [vmem:[#allocation3 + $0xff] sm:$0xff]
  %v8599 = vld [vmem:[#allocation3 + $0x107] sm:$0xff]
  %v8600 = vld [vmem:[#allocation3 + $0x10f] sm:$0xff]
  %v8601 = vld [vmem:[#allocation3 + $0x117] sm:$0xff]
  %v8602 = vld [vmem:[#allocation3 + $0x11f] sm:$0xff]
  %v8603 = vld [vmem:[#allocation3 + $0x127] sm:$0xff]
  %v8604 = vld [vmem:[#allocation3 + $0x12f] sm:$0xff]
  %v8605 = vld [vmem:[#allocation3 + $0x137] sm:$0xff]
  %v8606 = vld [vmem:[#allocation3 + $0x13f] sm:$0xff]
  %v8607 = vld [vmem:[#allocation3 + $0x147] sm:$0xff]
  %v8608 = vld [vmem:[#allocation3 + $0x14f] sm:$0xf]
  %v8609 = vpack.c.bf16 %v8569, %v8568
  %v8610 = vpack.c.bf16 %v8571, %v8570
  %v8611 = vpack.c.bf16 %v8573, %v8572
  %v8612 = vpack.c.bf16 %v8575, %v8574
  %v8613 = vpack.c.bf16 %v8577, %v8576
  %v8614 = vpack.c.bf16 %v8579, %v8578
  %v8615 = vpack.c.bf16 %v8581, %v8580
  %v8616 = vpack.c.bf16 %v8583, %v8582
  %v8617 = vpack.c.bf16 %v8585, %v8584
  %v8618 = vpack.c.bf16 %v8587, %v8586
  %v8619 = vpack.c.bf16 %v8589, %v8588
  %v8620 = vpack.c.bf16 %v8591, %v8590
  %v8621 = vpack.c.bf16 %v8593, %v8592
  %v8622 = vpack.c.bf16 %v8595, %v8594
  %v8623 = vpack.c.bf16 %v8597, %v8596
  %v8624 = vpack.c.bf16 %v8599, %v8598
  %v8625 = vpack.c.bf16 %v8601, %v8600
  %v8626 = vpack.c.bf16 %v8603, %v8602
  %v8627 = vpack.c.bf16 %v8605, %v8604
  %v8628 = vpack.c.bf16 %v8607, %v8606
  %v8629 = vpack.c.bf16 %v8608, %v8608
  %v8630 = vld [vmem:[%s8 + $0x30] sm:$0xf]
  %v8631 = vld [vmem:[%s8 + $0x34] sm:$0xf]
  %v8632 = vld [vmem:[%s8 + $0x38] sm:$0xf]
  %v8633 = vld [vmem:[%s8 + $0x3c] sm:$0xf]
  %8655 = vrot.lane.b32.xlu0 %v8609, 64
  %v8656 = vpop.permute.xlu0 %8655
  %8657 = vrot.lane.b32.xlu0 %v8610, 64
  %v8658 = vpop.permute.xlu0 %8657
  %8659 = vrot.lane.b32.xlu0 %v8611, 64
  %v8660 = vpop.permute.xlu0 %8659
  %8661 = vrot.lane.b32.xlu0 %v8612, 64
  %v8662 = vpop.permute.xlu0 %8661
  %8663 = vrot.lane.b32.xlu0 %v8613, 64
  %v8664 = vpop.permute.xlu0 %8663
  %8665 = vrot.lane.b32.xlu0 %v8614, 64
  %v8666 = vpop.permute.xlu0 %8665
  %8667 = vrot.lane.b32.xlu0 %v8615, 64
  %v8668 = vpop.permute.xlu0 %8667
  %8669 = vrot.lane.b32.xlu0 %v8616, 64
  %v8670 = vpop.permute.xlu0 %8669
  %8671 = vrot.lane.b32.xlu0 %v8617, 64
  %v8672 = vpop.permute.xlu0 %8671
  %8673 = vrot.lane.b32.xlu0 %v8618, 64
  %v8674 = vpop.permute.xlu0 %8673
  %8675 = vrot.lane.b32.xlu0 %v8619, 64
  %v8676 = vpop.permute.xlu0 %8675
  %8677 = vrot.lane.b32.xlu0 %v8620, 64
  %v8678 = vpop.permute.xlu0 %8677
  %8679 = vrot.lane.b32.xlu0 %v8621, 64
  %v8680 = vpop.permute.xlu0 %8679
  %8681 = vrot.lane.b32.xlu0 %v8622, 64
  %v8682 = vpop.permute.xlu0 %8681
  %8683 = vrot.lane.b32.xlu0 %v8623, 64
  %v8684 = vpop.permute.xlu0 %8683
  %8685 = vrot.lane.b32.xlu0 %v8624, 64
  %v8686 = vpop.permute.xlu0 %8685
  %8687 = vrot.lane.b32.xlu0 %v8625, 64
  %v8688 = vpop.permute.xlu0 %8687
  %8689 = vrot.lane.b32.xlu0 %v8626, 64
  %v8690 = vpop.permute.xlu0 %8689
  %8691 = vrot.lane.b32.xlu0 %v8627, 64
  %v8692 = vpop.permute.xlu0 %8691
  %8693 = vrot.lane.b32.xlu0 %v8628, 64
  %v8694 = vpop.permute.xlu0 %8693
  %8695 = vrot.lane.b32.xlu0 %v8629, 64
  %v8696 = vpop.permute.xlu0 %8695
  %v8701 = vunpack.c.l.b16 %v8630
  %v8702 = vunpack.c.l.b16 %v8631
  %v8703 = vunpack.c.l.b16 %v8632
  %v8704 = vunpack.c.l.b16 %v8633
  %v8705 = vpack.c.b16 %v8702, %v8701
  %v8706 = vpack.c.b16 %v8704, %v8703
  %v8710 = vsel %vm1117, %v8656, 0
  %v8713 = vsel %vm1117, %v8658, 0
  %v8716 = vsel %vm1117, %v8660, 0
  %v8719 = vsel %vm1117, %v8662, 0
  %v8722 = vsel %vm1117, %v8664, 0
  %v8725 = vsel %vm1117, %v8666, 0
  %v8728 = vsel %vm1117, %v8668, 0
  %v8731 = vsel %vm1117, %v8670, 0
  %v8734 = vsel %vm1117, %v8672, 0
  %v8737 = vsel %vm1117, %v8674, 0
  %v8740 = vsel %vm1117, %v8676, 0
  %v8743 = vsel %vm1117, %v8678, 0
  %v8746 = vsel %vm1117, %v8680, 0
  %v8749 = vsel %vm1117, %v8682, 0
  %v8752 = vsel %vm1117, %v8684, 0
  %v8755 = vsel %vm1117, %v8686, 0
  %v8758 = vsel %vm1117, %v8688, 0
  %v8761 = vsel %vm1117, %v8690, 0
  %v8764 = vsel %vm1117, %v8692, 0
  %v8767 = vsel %vm1117, %v8694, 0
  %v8770 = vsel %vm1117, %v8696, 0
  %8772 = vmatprep.subr.bf16.mxu0 0
  %8773 = vmatpush1.bf16.msra.mxu0 0
  %8774 = vmatprep.subr.bf16.mxu0 0
  %8775 = vmatpush1.bf16.msra.mxu0 0
  %8776 = vmatprep.subr.bf16.mxu0 0
  %8777 = vmatpush1.bf16.msra.mxu0 0
  %8778 = vmatprep.subr.bf16.mxu0 0
  %8779 = vmatpush1.bf16.msra.mxu0 0
  %8780 = vmatprep.subr.bf16.mxu0 0
  %8781 = vmatpush1.bf16.msra.mxu0 0
  %8782 = vmatprep.subr.bf16.mxu0 0
  %8783 = vmatpush1.bf16.msra.mxu0 0
  %8784 = vmatprep.subr.bf16.mxu0 0
  %8785 = vmatpush1.bf16.msra.mxu0 %v8706
  %8786 = vmatprep.subr.bf16.mxu0 0
  %8787 = vmatpush1.bf16.msra.mxu0 %v8705
  %8788 = vmatprep.subr.bf16.mxu0 0
  %8789 = vmatpush2.bf16.msra.mxu0 0
  %8790 = vmatprep.subr.bf16.mxu0 0
  %8791 = vmatpush2.bf16.msra.mxu0 0
  %8792 = vmatprep.subr.bf16.mxu0 0
  %8793 = vmatpush2.bf16.msra.mxu0 0
  %8794 = vmatprep.subr.bf16.mxu0 0
  %8795 = vmatpush2.bf16.msra.mxu0 0
  %8796 = vmatprep.subr.bf16.mxu0 0
  %8797 = vmatpush2.bf16.msra.mxu0 0
  %8798 = vmatprep.subr.bf16.mxu0 0
  %8799 = vmatpush2.bf16.msra.mxu0 0
  %8800 = vmatprep.subr.bf16.mxu0 0
  %8801 = vmatpush2.bf16.msra.mxu0 0
  %8802 = vmatprep.subr.bf16.mxu0 0
  %8803 = vmatpush2.bf16.msra.mxu0 0
  %8804 = vmatprep.mubr.bf16.mxu0 0
  %8805 = vmatmul.mubr.bf16.gmra.mxu0 %v8710
  %v8806 = vpop.f32.mrf.mxu0
  %v8807 = vadd.f32 0.0, %v8806
  %v8808 = vpop.f32.mrf.mxu0
  %v8809 = vpop.f32.mrf.mxu0
  %v8810 = vadd.f32 0.0, %v8809
  %v8811 = vpop.f32.mrf.mxu0
  %8812 = vmatprep.mubr.bf16.mxu0 0
  %8813 = vmatmul.mubr.bf16.gmra.mxu0 %v8713
  %v8814 = vpop.f32.mrf.mxu0
  %v8815 = vadd.f32 0.0, %v8814
  %v8816 = vpop.f32.mrf.mxu0
  %v8817 = vpop.f32.mrf.mxu0
  %v8818 = vadd.f32 0.0, %v8817
  %v8819 = vpop.f32.mrf.mxu0
  %8820 = vmatprep.mubr.bf16.mxu0 0
  %8821 = vmatmul.mubr.bf16.gmra.mxu0 %v8716
  %v8822 = vpop.f32.mrf.mxu0
  %v8823 = vadd.f32 0.0, %v8822
  %v8824 = vpop.f32.mrf.mxu0
  %v8825 = vpop.f32.mrf.mxu0
  %v8826 = vadd.f32 0.0, %v8825
  %v8827 = vpop.f32.mrf.mxu0
  %8828 = vmatprep.mubr.bf16.mxu0 0
  %8829 = vmatmul.mubr.bf16.gmra.mxu0 %v8719
  %v8830 = vpop.f32.mrf.mxu0
  %v8831 = vadd.f32 0.0, %v8830
  %v8832 = vpop.f32.mrf.mxu0
  %v8833 = vpop.f32.mrf.mxu0
  %v8834 = vadd.f32 0.0, %v8833
  %v8835 = vpop.f32.mrf.mxu0
  %8836 = vmatprep.mubr.bf16.mxu0 0
  %8837 = vmatmul.mubr.bf16.gmra.mxu0 %v8722
  %v8838 = vpop.f32.mrf.mxu0
  %v8839 = vadd.f32 0.0, %v8838
  %v8840 = vpop.f32.mrf.mxu0
  %v8841 = vpop.f32.mrf.mxu0
  %v8842 = vadd.f32 0.0, %v8841
  %v8843 = vpop.f32.mrf.mxu0
  %8844 = vmatprep.mubr.bf16.mxu0 0
  %8845 = vmatmul.mubr.bf16.gmra.mxu0 %v8725
  %v8846 = vpop.f32.mrf.mxu0
  %v8847 = vadd.f32 0.0, %v8846
  %v8848 = vpop.f32.mrf.mxu0
  %v8849 = vpop.f32.mrf.mxu0
  %v8850 = vadd.f32 0.0, %v8849
  %v8851 = vpop.f32.mrf.mxu0
  %8852 = vmatprep.mubr.bf16.mxu0 0
  %8853 = vmatmul.mubr.bf16.gmra.mxu0 %v8728
  %v8854 = vpop.f32.mrf.mxu0
  %v8855 = vadd.f32 0.0, %v8854
  %v8856 = vpop.f32.mrf.mxu0
  %v8857 = vpop.f32.mrf.mxu0
  %v8858 = vadd.f32 0.0, %v8857
  %v8859 = vpop.f32.mrf.mxu0
  %8860 = vmatprep.mubr.bf16.mxu0 0
  %8861 = vmatmul.mubr.bf16.gmra.mxu0 %v8731
  %v8862 = vpop.f32.mrf.mxu0
  %v8863 = vadd.f32 0.0, %v8862
  %v8864 = vpop.f32.mrf.mxu0
  %v8865 = vpop.f32.mrf.mxu0
  %v8866 = vadd.f32 0.0, %v8865
  %v8867 = vpop.f32.mrf.mxu0
  %8868 = vmatprep.mubr.bf16.mxu0 0
  %8869 = vmatmul.mubr.bf16.gmra.mxu0 %v8734
  %v8870 = vpop.f32.mrf.mxu0
  %v8871 = vadd.f32 0.0, %v8870
  %v8872 = vpop.f32.mrf.mxu0
  %v8873 = vpop.f32.mrf.mxu0
  %v8874 = vadd.f32 0.0, %v8873
  %v8875 = vpop.f32.mrf.mxu0
  %8876 = vmatprep.mubr.bf16.mxu0 0
  %8877 = vmatmul.mubr.bf16.gmra.mxu0 %v8737
  %v8878 = vpop.f32.mrf.mxu0
  %v8879 = vadd.f32 0.0, %v8878
  %v8880 = vpop.f32.mrf.mxu0
  %v8881 = vpop.f32.mrf.mxu0
  %v8882 = vadd.f32 0.0, %v8881
  %v8883 = vpop.f32.mrf.mxu0
  %8884 = vmatprep.mubr.bf16.mxu0 0
  %8885 = vmatmul.mubr.bf16.gmra.mxu0 %v8740
  %v8886 = vpop.f32.mrf.mxu0
  %v8887 = vadd.f32 0.0, %v8886
  %v8888 = vpop.f32.mrf.mxu0
  %v8889 = vpop.f32.mrf.mxu0
  %v8890 = vadd.f32 0.0, %v8889
  %v8891 = vpop.f32.mrf.mxu0
  %8892 = vmatprep.mubr.bf16.mxu0 0
  %8893 = vmatmul.mubr.bf16.gmra.mxu0 %v8743
  %v8894 = vpop.f32.mrf.mxu0
  %v8895 = vadd.f32 0.0, %v8894
  %v8896 = vpop.f32.mrf.mxu0
  %v8897 = vpop.f32.mrf.mxu0
  %v8898 = vadd.f32 0.0, %v8897
  %v8899 = vpop.f32.mrf.mxu0
  %8900 = vmatprep.mubr.bf16.mxu0 0
  %8901 = vmatmul.mubr.bf16.gmra.mxu0 %v8746
  %v8902 = vpop.f32.mrf.mxu0
  %v8903 = vadd.f32 0.0, %v8902
  %v8904 = vpop.f32.mrf.mxu0
  %v8905 = vpop.f32.mrf.mxu0
  %v8906 = vadd.f32 0.0, %v8905
  %v8907 = vpop.f32.mrf.mxu0
  %8908 = vmatprep.mubr.bf16.mxu0 0
  %8909 = vmatmul.mubr.bf16.gmra.mxu0 %v8749
  %v8910 = vpop.f32.mrf.mxu0
  %v8911 = vadd.f32 0.0, %v8910
  %v8912 = vpop.f32.mrf.mxu0
  %v8913 = vpop.f32.mrf.mxu0
  %v8914 = vadd.f32 0.0, %v8913
  %v8915 = vpop.f32.mrf.mxu0
  %8916 = vmatprep.mubr.bf16.mxu0 0
  %8917 = vmatmul.mubr.bf16.gmra.mxu0 %v8752
  %v8918 = vpop.f32.mrf.mxu0
  %v8919 = vadd.f32 0.0, %v8918
  %v8920 = vpop.f32.mrf.mxu0
  %v8921 = vpop.f32.mrf.mxu0
  %v8922 = vadd.f32 0.0, %v8921
  %v8923 = vpop.f32.mrf.mxu0
  %8924 = vmatprep.mubr.bf16.mxu0 0
  %8925 = vmatmul.mubr.bf16.gmra.mxu0 %v8755
  %v8926 = vpop.f32.mrf.mxu0
  %v8927 = vadd.f32 0.0, %v8926
  %v8928 = vpop.f32.mrf.mxu0
  %v8929 = vpop.f32.mrf.mxu0
  %v8930 = vadd.f32 0.0, %v8929
  %v8931 = vpop.f32.mrf.mxu0
  %8932 = vmatprep.mubr.bf16.mxu0 0
  %8933 = vmatmul.mubr.bf16.gmra.mxu0 %v8758
  %v8934 = vpop.f32.mrf.mxu0
  %v8935 = vadd.f32 0.0, %v8934
  %v8936 = vpop.f32.mrf.mxu0
  %v8937 = vpop.f32.mrf.mxu0
  %v8938 = vadd.f32 0.0, %v8937
  %v8939 = vpop.f32.mrf.mxu0
  %8940 = vmatprep.mubr.bf16.mxu0 0
  %8941 = vmatmul.mubr.bf16.gmra.mxu0 %v8761
  %v8942 = vpop.f32.mrf.mxu0
  %v8943 = vadd.f32 0.0, %v8942
  %v8944 = vpop.f32.mrf.mxu0
  %v8945 = vpop.f32.mrf.mxu0
  %v8946 = vadd.f32 0.0, %v8945
  %v8947 = vpop.f32.mrf.mxu0
  %8948 = vmatprep.mubr.bf16.mxu0 0
  %8949 = vmatmul.mubr.bf16.gmra.mxu0 %v8764
  %v8950 = vpop.f32.mrf.mxu0
  %v8951 = vadd.f32 0.0, %v8950
  %v8952 = vpop.f32.mrf.mxu0
  %v8953 = vpop.f32.mrf.mxu0
  %v8954 = vadd.f32 0.0, %v8953
  %v8955 = vpop.f32.mrf.mxu0
  %8956 = vmatprep.mubr.bf16.mxu0 0
  %8957 = vmatmul.mubr.bf16.gmra.mxu0 %v8767
  %v8958 = vpop.f32.mrf.mxu0
  %v8959 = vadd.f32 0.0, %v8958
  %v8960 = vpop.f32.mrf.mxu0
  %v8961 = vpop.f32.mrf.mxu0
  %v8962 = vadd.f32 0.0, %v8961
  %v8963 = vpop.f32.mrf.mxu0
  %8964 = vmatprep.mubr.bf16.mxu0 0
  %8965 = vmatmul.mubr.bf16.gmra.mxu0 %v8770
  %v8966 = vpop.f32.mrf.mxu0
  %v8967 = vadd.f32 0.0, %v8966
  %v8968 = vpop.f32.mrf.mxu0
  %v8969 = vpop.f32.mrf.mxu0
  %v8970 = vpop.f32.mrf.mxu0
  %8971 = vdwg.mxu0
  %v8972 = vadd.f32 %v8527, %v8807
  %v8973 = vadd.f32 %v8528, %v8810
  %v8974 = vadd.f32 %v8529, %v8815
  %v8975 = vadd.f32 %v8530, %v8818
  %v8976 = vadd.f32 %v8531, %v8823
  %v8977 = vadd.f32 %v8532, %v8826
  %v8978 = vadd.f32 %v8533, %v8831
  %v8979 = vadd.f32 %v8534, %v8834
  %v8980 = vadd.f32 %v8535, %v8839
  %v8981 = vadd.f32 %v8536, %v8842
  %v8982 = vadd.f32 %v8537, %v8847
  %v8983 = vadd.f32 %v8538, %v8850
  %v8984 = vadd.f32 %v8539, %v8855
  %v8985 = vadd.f32 %v8540, %v8858
  %v8986 = vadd.f32 %v8541, %v8863
  %v8987 = vadd.f32 %v8542, %v8866
  %v8988 = vadd.f32 %v8543, %v8871
  %v8989 = vadd.f32 %v8544, %v8874
  %v8990 = vadd.f32 %v8545, %v8879
  %v8991 = vadd.f32 %v8546, %v8882
  %v8992 = vadd.f32 %v8547, %v8887
  %v8993 = vadd.f32 %v8548, %v8890
  %v8994 = vadd.f32 %v8549, %v8895
  %v8995 = vadd.f32 %v8550, %v8898
  %v8996 = vadd.f32 %v8551, %v8903
  %v8997 = vadd.f32 %v8552, %v8906
  %v8998 = vadd.f32 %v8553, %v8911
  %v8999 = vadd.f32 %v8554, %v8914
  %v9000 = vadd.f32 %v8555, %v8919
  %v9001 = vadd.f32 %v8556, %v8922
  %v9002 = vadd.f32 %v8557, %v8927
  %v9003 = vadd.f32 %v8558, %v8930
  %v9004 = vadd.f32 %v8559, %v8935
  %v9005 = vadd.f32 %v8560, %v8938
  %v9006 = vadd.f32 %v8561, %v8943
  %v9007 = vadd.f32 %v8562, %v8946
  %v9008 = vadd.f32 %v8563, %v8951
  %v9009 = vadd.f32 %v8564, %v8954
  %v9010 = vadd.f32 %v8565, %v8959
  %v9011 = vadd.f32 %v8566, %v8962
  %v9012 = vadd.f32 %v8567, %v8967
  %v9013 = vld [vmem:[#allocation3 + $0x1f] sm:$0xff]
  %v9014 = vld [vmem:[#allocation3 + $0x27] sm:$0xff]
  %v9015 = vld [vmem:[#allocation3 + $0x2f] sm:$0xff]
  %v9016 = vld [vmem:[#allocation3 + $0x37] sm:$0xff]
  %v9017 = vld [vmem:[#allocation3 + $0x3f] sm:$0xff]
  %v9018 = vld [vmem:[#allocation3 + $0x47] sm:$0xff]
  %v9019 = vld [vmem:[#allocation3 + $0x4f] sm:$0xff]
  %v9020 = vld [vmem:[#allocation3 + $0x57] sm:$0xff]
  %v9021 = vld [vmem:[#allocation3 + $0x5f] sm:$0xff]
  %v9022 = vld [vmem:[#allocation3 + $0x67] sm:$0xff]
  %v9023 = vld [vmem:[#allocation3 + $0x6f] sm:$0xff]
  %v9024 = vld [vmem:[#allocation3 + $0x77] sm:$0xff]
  %v9025 = vld [vmem:[#allocation3 + $0x7f] sm:$0xff]
  %v9026 = vld [vmem:[#allocation3 + $0x87] sm:$0xff]
  %v9027 = vld [vmem:[#allocation3 + $0x8f] sm:$0xff]
  %v9028 = vld [vmem:[#allocation3 + $0x97] sm:$0xff]
  %v9029 = vld [vmem:[#allocation3 + $0x9f] sm:$0xff]
  %v9030 = vld [vmem:[#allocation3 + $0xa7] sm:$0xff]
  %v9031 = vld [vmem:[#allocation3 + $0xaf] sm:$0xff]
  %v9032 = vld [vmem:[#allocation3 + $0xb7] sm:$0xff]
  %v9033 = vld [vmem:[#allocation3 + $0xbf] sm:$0xff]
  %v9034 = vld [vmem:[#allocation3 + $0xc7] sm:$0xff]
  %v9035 = vld [vmem:[#allocation3 + $0xcf] sm:$0xff]
  %v9036 = vld [vmem:[#allocation3 + $0xd7] sm:$0xff]
  %v9037 = vld [vmem:[#allocation3 + $0xdf] sm:$0xff]
  %v9038 = vld [vmem:[#allocation3 + $0xe7] sm:$0xff]
  %v9039 = vld [vmem:[#allocation3 + $0xef] sm:$0xff]
  %v9040 = vld [vmem:[#allocation3 + $0xf7] sm:$0xff]
  %v9041 = vld [vmem:[#allocation3 + $0xff] sm:$0xff]
  %v9042 = vld [vmem:[#allocation3 + $0x107] sm:$0xff]
  %v9043 = vld [vmem:[#allocation3 + $0x10f] sm:$0xff]
  %v9044 = vld [vmem:[#allocation3 + $0x117] sm:$0xff]
  %v9045 = vld [vmem:[#allocation3 + $0x11f] sm:$0xff]
  %v9046 = vld [vmem:[#allocation3 + $0x127] sm:$0xff]
  %v9047 = vld [vmem:[#allocation3 + $0x12f] sm:$0xff]
  %v9048 = vld [vmem:[#allocation3 + $0x137] sm:$0xff]
  %v9049 = vld [vmem:[#allocation3 + $0x13f] sm:$0xff]
  %v9050 = vld [vmem:[#allocation3 + $0x147] sm:$0xff]
  %v9051 = vld [vmem:[#allocation3 + $0x14f] sm:$0xff]
  %v9052 = vld [vmem:[#allocation3 + $0x157] sm:$0xff]
  %v9053 = vld [vmem:[#allocation3 + $0x15f] sm:$0xf]
  %v9054 = vpack.c.bf16 %v9014, %v9013
  %v9055 = vpack.c.bf16 %v9016, %v9015
  %v9056 = vpack.c.bf16 %v9018, %v9017
  %v9057 = vpack.c.bf16 %v9020, %v9019
  %v9058 = vpack.c.bf16 %v9022, %v9021
  %v9059 = vpack.c.bf16 %v9024, %v9023
  %v9060 = vpack.c.bf16 %v9026, %v9025
  %v9061 = vpack.c.bf16 %v9028, %v9027
  %v9062 = vpack.c.bf16 %v9030, %v9029
  %v9063 = vpack.c.bf16 %v9032, %v9031
  %v9064 = vpack.c.bf16 %v9034, %v9033
  %v9065 = vpack.c.bf16 %v9036, %v9035
  %v9066 = vpack.c.bf16 %v9038, %v9037
  %v9067 = vpack.c.bf16 %v9040, %v9039
  %v9068 = vpack.c.bf16 %v9042, %v9041
  %v9069 = vpack.c.bf16 %v9044, %v9043
  %v9070 = vpack.c.bf16 %v9046, %v9045
  %v9071 = vpack.c.bf16 %v9048, %v9047
  %v9072 = vpack.c.bf16 %v9050, %v9049
  %v9073 = vpack.c.bf16 %v9052, %v9051
  %v9074 = vpack.c.bf16 %v9053, %v9053
  %v9075 = vld [vmem:[%s8 + $0x40] sm:$0xf]
  %v9076 = vld [vmem:[%s8 + $0x44] sm:$0xf]
  %v9077 = vld [vmem:[%s8 + $0x48] sm:$0xf]
  %v9078 = vld [vmem:[%s8 + $0x4c] sm:$0xf]
  %9100 = vrot.lane.b32.xlu0 %v9054, 96
  %v9101 = vpop.permute.xlu0 %9100
  %9102 = vrot.lane.b32.xlu0 %v9055, 96
  %v9103 = vpop.permute.xlu0 %9102
  %9104 = vrot.lane.b32.xlu0 %v9056, 96
  %v9105 = vpop.permute.xlu0 %9104
  %9106 = vrot.lane.b32.xlu0 %v9057, 96
  %v9107 = vpop.permute.xlu0 %9106
  %9108 = vrot.lane.b32.xlu0 %v9058, 96
  %v9109 = vpop.permute.xlu0 %9108
  %9110 = vrot.lane.b32.xlu0 %v9059, 96
  %v9111 = vpop.permute.xlu0 %9110
  %9112 = vrot.lane.b32.xlu0 %v9060, 96
  %v9113 = vpop.permute.xlu0 %9112
  %9114 = vrot.lane.b32.xlu0 %v9061, 96
  %v9115 = vpop.permute.xlu0 %9114
  %9116 = vrot.lane.b32.xlu0 %v9062, 96
  %v9117 = vpop.permute.xlu0 %9116
  %9118 = vrot.lane.b32.xlu0 %v9063, 96
  %v9119 = vpop.permute.xlu0 %9118
  %9120 = vrot.lane.b32.xlu0 %v9064, 96
  %v9121 = vpop.permute.xlu0 %9120
  %9122 = vrot.lane.b32.xlu0 %v9065, 96
  %v9123 = vpop.permute.xlu0 %9122
  %9124 = vrot.lane.b32.xlu0 %v9066, 96
  %v9125 = vpop.permute.xlu0 %9124
  %9126 = vrot.lane.b32.xlu0 %v9067, 96
  %v9127 = vpop.permute.xlu0 %9126
  %9128 = vrot.lane.b32.xlu0 %v9068, 96
  %v9129 = vpop.permute.xlu0 %9128
  %9130 = vrot.lane.b32.xlu0 %v9069, 96
  %v9131 = vpop.permute.xlu0 %9130
  %9132 = vrot.lane.b32.xlu0 %v9070, 96
  %v9133 = vpop.permute.xlu0 %9132
  %9134 = vrot.lane.b32.xlu0 %v9071, 96
  %v9135 = vpop.permute.xlu0 %9134
  %9136 = vrot.lane.b32.xlu0 %v9072, 96
  %v9137 = vpop.permute.xlu0 %9136
  %9138 = vrot.lane.b32.xlu0 %v9073, 96
  %v9139 = vpop.permute.xlu0 %9138
  %9140 = vrot.lane.b32.xlu0 %v9074, 96
  %v9141 = vpop.permute.xlu0 %9140
  %v9146 = vunpack.c.l.b16 %v9075
  %v9147 = vunpack.c.l.b16 %v9076
  %v9148 = vunpack.c.l.b16 %v9077
  %v9149 = vunpack.c.l.b16 %v9078
  %v9150 = vpack.c.b16 %v9147, %v9146
  %v9151 = vpack.c.b16 %v9149, %v9148
  %v9155 = vsel %vm1117, %v9101, 0
  %v9158 = vsel %vm1117, %v9103, 0
  %v9161 = vsel %vm1117, %v9105, 0
  %v9164 = vsel %vm1117, %v9107, 0
  %v9167 = vsel %vm1117, %v9109, 0
  %v9170 = vsel %vm1117, %v9111, 0
  %v9173 = vsel %vm1117, %v9113, 0
  %v9176 = vsel %vm1117, %v9115, 0
  %v9179 = vsel %vm1117, %v9117, 0
  %v9182 = vsel %vm1117, %v9119, 0
  %v9185 = vsel %vm1117, %v9121, 0
  %v9188 = vsel %vm1117, %v9123, 0
  %v9191 = vsel %vm1117, %v9125, 0
  %v9194 = vsel %vm1117, %v9127, 0
  %v9197 = vsel %vm1117, %v9129, 0
  %v9200 = vsel %vm1117, %v9131, 0
  %v9203 = vsel %vm1117, %v9133, 0
  %v9206 = vsel %vm1117, %v9135, 0
  %v9209 = vsel %vm1117, %v9137, 0
  %v9212 = vsel %vm1117, %v9139, 0
  %v9215 = vsel %vm1117, %v9141, 0
  %9217 = vmatprep.subr.bf16.mxu0 0
  %9218 = vmatpush1.bf16.msra.mxu0 0
  %9219 = vmatprep.subr.bf16.mxu0 0
  %9220 = vmatpush1.bf16.msra.mxu0 0
  %9221 = vmatprep.subr.bf16.mxu0 0
  %9222 = vmatpush1.bf16.msra.mxu0 0
  %9223 = vmatprep.subr.bf16.mxu0 0
  %9224 = vmatpush1.bf16.msra.mxu0 0
  %9225 = vmatprep.subr.bf16.mxu0 0
  %9226 = vmatpush1.bf16.msra.mxu0 0
  %9227 = vmatprep.subr.bf16.mxu0 0
  %9228 = vmatpush1.bf16.msra.mxu0 0
  %9229 = vmatprep.subr.bf16.mxu0 0
  %9230 = vmatpush1.bf16.msra.mxu0 %v9151
  %9231 = vmatprep.subr.bf16.mxu0 0
  %9232 = vmatpush1.bf16.msra.mxu0 %v9150
  %9233 = vmatprep.subr.bf16.mxu0 0
  %9234 = vmatpush2.bf16.msra.mxu0 0
  %9235 = vmatprep.subr.bf16.mxu0 0
  %9236 = vmatpush2.bf16.msra.mxu0 0
  %9237 = vmatprep.subr.bf16.mxu0 0
  %9238 = vmatpush2.bf16.msra.mxu0 0
  %9239 = vmatprep.subr.bf16.mxu0 0
  %9240 = vmatpush2.bf16.msra.mxu0 0
  %9241 = vmatprep.subr.bf16.mxu0 0
  %9242 = vmatpush2.bf16.msra.mxu0 0
  %9243 = vmatprep.subr.bf16.mxu0 0
  %9244 = vmatpush2.bf16.msra.mxu0 0
  %9245 = vmatprep.subr.bf16.mxu0 0
  %9246 = vmatpush2.bf16.msra.mxu0 0
  %9247 = vmatprep.subr.bf16.mxu0 0
  %9248 = vmatpush2.bf16.msra.mxu0 0
  %9249 = vmatprep.mubr.bf16.mxu0 0
  %9250 = vmatmul.mubr.bf16.gmra.mxu0 %v9155
  %v9251 = vpop.f32.mrf.mxu0
  %v9252 = vadd.f32 0.0, %v9251
  %v9253 = vpop.f32.mrf.mxu0
  %v9254 = vpop.f32.mrf.mxu0
  %v9255 = vadd.f32 0.0, %v9254
  %v9256 = vpop.f32.mrf.mxu0
  %9257 = vmatprep.mubr.bf16.mxu0 0
  %9258 = vmatmul.mubr.bf16.gmra.mxu0 %v9158
  %v9259 = vpop.f32.mrf.mxu0
  %v9260 = vadd.f32 0.0, %v9259
  %v9261 = vpop.f32.mrf.mxu0
  %v9262 = vpop.f32.mrf.mxu0
  %v9263 = vadd.f32 0.0, %v9262
  %v9264 = vpop.f32.mrf.mxu0
  %9265 = vmatprep.mubr.bf16.mxu0 0
  %9266 = vmatmul.mubr.bf16.gmra.mxu0 %v9161
  %v9267 = vpop.f32.mrf.mxu0
  %v9268 = vadd.f32 0.0, %v9267
  %v9269 = vpop.f32.mrf.mxu0
  %v9270 = vpop.f32.mrf.mxu0
  %v9271 = vadd.f32 0.0, %v9270
  %v9272 = vpop.f32.mrf.mxu0
  %9273 = vmatprep.mubr.bf16.mxu0 0
  %9274 = vmatmul.mubr.bf16.gmra.mxu0 %v9164
  %v9275 = vpop.f32.mrf.mxu0
  %v9276 = vadd.f32 0.0, %v9275
  %v9277 = vpop.f32.mrf.mxu0
  %v9278 = vpop.f32.mrf.mxu0
  %v9279 = vadd.f32 0.0, %v9278
  %v9280 = vpop.f32.mrf.mxu0
  %9281 = vmatprep.mubr.bf16.mxu0 0
  %9282 = vmatmul.mubr.bf16.gmra.mxu0 %v9167
  %v9283 = vpop.f32.mrf.mxu0
  %v9284 = vadd.f32 0.0, %v9283
  %v9285 = vpop.f32.mrf.mxu0
  %v9286 = vpop.f32.mrf.mxu0
  %v9287 = vadd.f32 0.0, %v9286
  %v9288 = vpop.f32.mrf.mxu0
  %9289 = vmatprep.mubr.bf16.mxu0 0
  %9290 = vmatmul.mubr.bf16.gmra.mxu0 %v9170
  %v9291 = vpop.f32.mrf.mxu0
  %v9292 = vadd.f32 0.0, %v9291
  %v9293 = vpop.f32.mrf.mxu0
  %v9294 = vpop.f32.mrf.mxu0
  %v9295 = vadd.f32 0.0, %v9294
  %v9296 = vpop.f32.mrf.mxu0
  %9297 = vmatprep.mubr.bf16.mxu0 0
  %9298 = vmatmul.mubr.bf16.gmra.mxu0 %v9173
  %v9299 = vpop.f32.mrf.mxu0
  %v9300 = vadd.f32 0.0, %v9299
  %v9301 = vpop.f32.mrf.mxu0
  %v9302 = vpop.f32.mrf.mxu0
  %v9303 = vadd.f32 0.0, %v9302
  %v9304 = vpop.f32.mrf.mxu0
  %9305 = vmatprep.mubr.bf16.mxu0 0
  %9306 = vmatmul.mubr.bf16.gmra.mxu0 %v9176
  %v9307 = vpop.f32.mrf.mxu0
  %v9308 = vadd.f32 0.0, %v9307
  %v9309 = vpop.f32.mrf.mxu0
  %v9310 = vpop.f32.mrf.mxu0
  %v9311 = vadd.f32 0.0, %v9310
  %v9312 = vpop.f32.mrf.mxu0
  %9313 = vmatprep.mubr.bf16.mxu0 0
  %9314 = vmatmul.mubr.bf16.gmra.mxu0 %v9179
  %v9315 = vpop.f32.mrf.mxu0
  %v9316 = vadd.f32 0.0, %v9315
  %v9317 = vpop.f32.mrf.mxu0
  %v9318 = vpop.f32.mrf.mxu0
  %v9319 = vadd.f32 0.0, %v9318
  %v9320 = vpop.f32.mrf.mxu0
  %9321 = vmatprep.mubr.bf16.mxu0 0
  %9322 = vmatmul.mubr.bf16.gmra.mxu0 %v9182
  %v9323 = vpop.f32.mrf.mxu0
  %v9324 = vadd.f32 0.0, %v9323
  %v9325 = vpop.f32.mrf.mxu0
  %v9326 = vpop.f32.mrf.mxu0
  %v9327 = vadd.f32 0.0, %v9326
  %v9328 = vpop.f32.mrf.mxu0
  %9329 = vmatprep.mubr.bf16.mxu0 0
  %9330 = vmatmul.mubr.bf16.gmra.mxu0 %v9185
  %v9331 = vpop.f32.mrf.mxu0
  %v9332 = vadd.f32 0.0, %v9331
  %v9333 = vpop.f32.mrf.mxu0
  %v9334 = vpop.f32.mrf.mxu0
  %v9335 = vadd.f32 0.0, %v9334
  %v9336 = vpop.f32.mrf.mxu0
  %9337 = vmatprep.mubr.bf16.mxu0 0
  %9338 = vmatmul.mubr.bf16.gmra.mxu0 %v9188
  %v9339 = vpop.f32.mrf.mxu0
  %v9340 = vadd.f32 0.0, %v9339
  %v9341 = vpop.f32.mrf.mxu0
  %v9342 = vpop.f32.mrf.mxu0
  %v9343 = vadd.f32 0.0, %v9342
  %v9344 = vpop.f32.mrf.mxu0
  %9345 = vmatprep.mubr.bf16.mxu0 0
  %9346 = vmatmul.mubr.bf16.gmra.mxu0 %v9191
  %v9347 = vpop.f32.mrf.mxu0
  %v9348 = vadd.f32 0.0, %v9347
  %v9349 = vpop.f32.mrf.mxu0
  %v9350 = vpop.f32.mrf.mxu0
  %v9351 = vadd.f32 0.0, %v9350
  %v9352 = vpop.f32.mrf.mxu0
  %9353 = vmatprep.mubr.bf16.mxu0 0
  %9354 = vmatmul.mubr.bf16.gmra.mxu0 %v9194
  %v9355 = vpop.f32.mrf.mxu0
  %v9356 = vadd.f32 0.0, %v9355
  %v9357 = vpop.f32.mrf.mxu0
  %v9358 = vpop.f32.mrf.mxu0
  %v9359 = vadd.f32 0.0, %v9358
  %v9360 = vpop.f32.mrf.mxu0
  %9361 = vmatprep.mubr.bf16.mxu0 0
  %9362 = vmatmul.mubr.bf16.gmra.mxu0 %v9197
  %v9363 = vpop.f32.mrf.mxu0
  %v9364 = vadd.f32 0.0, %v9363
  %v9365 = vpop.f32.mrf.mxu0
  %v9366 = vpop.f32.mrf.mxu0
  %v9367 = vadd.f32 0.0, %v9366
  %v9368 = vpop.f32.mrf.mxu0
  %9369 = vmatprep.mubr.bf16.mxu0 0
  %9370 = vmatmul.mubr.bf16.gmra.mxu0 %v9200
  %v9371 = vpop.f32.mrf.mxu0
  %v9372 = vadd.f32 0.0, %v9371
  %v9373 = vpop.f32.mrf.mxu0
  %v9374 = vpop.f32.mrf.mxu0
  %v9375 = vadd.f32 0.0, %v9374
  %v9376 = vpop.f32.mrf.mxu0
  %9377 = vmatprep.mubr.bf16.mxu0 0
  %9378 = vmatmul.mubr.bf16.gmra.mxu0 %v9203
  %v9379 = vpop.f32.mrf.mxu0
  %v9380 = vadd.f32 0.0, %v9379
  %v9381 = vpop.f32.mrf.mxu0
  %v9382 = vpop.f32.mrf.mxu0
  %v9383 = vadd.f32 0.0, %v9382
  %v9384 = vpop.f32.mrf.mxu0
  %9385 = vmatprep.mubr.bf16.mxu0 0
  %9386 = vmatmul.mubr.bf16.gmra.mxu0 %v9206
  %v9387 = vpop.f32.mrf.mxu0
  %v9388 = vadd.f32 0.0, %v9387
  %v9389 = vpop.f32.mrf.mxu0
  %v9390 = vpop.f32.mrf.mxu0
  %v9391 = vadd.f32 0.0, %v9390
  %v9392 = vpop.f32.mrf.mxu0
  %9393 = vmatprep.mubr.bf16.mxu0 0
  %9394 = vmatmul.mubr.bf16.gmra.mxu0 %v9209
  %v9395 = vpop.f32.mrf.mxu0
  %v9396 = vadd.f32 0.0, %v9395
  %v9397 = vpop.f32.mrf.mxu0
  %v9398 = vpop.f32.mrf.mxu0
  %v9399 = vadd.f32 0.0, %v9398
  %v9400 = vpop.f32.mrf.mxu0
  %9401 = vmatprep.mubr.bf16.mxu0 0
  %9402 = vmatmul.mubr.bf16.gmra.mxu0 %v9212
  %v9403 = vpop.f32.mrf.mxu0
  %v9404 = vadd.f32 0.0, %v9403
  %v9405 = vpop.f32.mrf.mxu0
  %v9406 = vpop.f32.mrf.mxu0
  %v9407 = vadd.f32 0.0, %v9406
  %v9408 = vpop.f32.mrf.mxu0
  %9409 = vmatprep.mubr.bf16.mxu0 0
  %9410 = vmatmul.mubr.bf16.gmra.mxu0 %v9215
  %v9411 = vpop.f32.mrf.mxu0
  %v9412 = vadd.f32 0.0, %v9411
  %v9413 = vpop.f32.mrf.mxu0
  %v9414 = vpop.f32.mrf.mxu0
  %v9415 = vpop.f32.mrf.mxu0
  %9416 = vdwg.mxu0
  %v9417 = vadd.f32 %v8972, %v9252
  %v9418 = vadd.f32 %v8973, %v9255
  %v9419 = vadd.f32 %v8974, %v9260
  %v9420 = vadd.f32 %v8975, %v9263
  %v9421 = vadd.f32 %v8976, %v9268
  %v9422 = vadd.f32 %v8977, %v9271
  %v9423 = vadd.f32 %v8978, %v9276
  %v9424 = vadd.f32 %v8979, %v9279
  %v9425 = vadd.f32 %v8980, %v9284
  %v9426 = vadd.f32 %v8981, %v9287
  %v9427 = vadd.f32 %v8982, %v9292
  %v9428 = vadd.f32 %v8983, %v9295
  %v9429 = vadd.f32 %v8984, %v9300
  %v9430 = vadd.f32 %v8985, %v9303
  %v9431 = vadd.f32 %v8986, %v9308
  %v9432 = vadd.f32 %v8987, %v9311
  %v9433 = vadd.f32 %v8988, %v9316
  %v9434 = vadd.f32 %v8989, %v9319
  %v9435 = vadd.f32 %v8990, %v9324
  %v9436 = vadd.f32 %v8991, %v9327
  %v9437 = vadd.f32 %v8992, %v9332
  %v9438 = vadd.f32 %v8993, %v9335
  %v9439 = vadd.f32 %v8994, %v9340
  %v9440 = vadd.f32 %v8995, %v9343
  %v9441 = vadd.f32 %v8996, %v9348
  %v9442 = vadd.f32 %v8997, %v9351
  %v9443 = vadd.f32 %v8998, %v9356
  %v9444 = vadd.f32 %v8999, %v9359
  %v9445 = vadd.f32 %v9000, %v9364
  %v9446 = vadd.f32 %v9001, %v9367
  %v9447 = vadd.f32 %v9002, %v9372
  %v9448 = vadd.f32 %v9003, %v9375
  %v9449 = vadd.f32 %v9004, %v9380
  %v9450 = vadd.f32 %v9005, %v9383
  %v9451 = vadd.f32 %v9006, %v9388
  %v9452 = vadd.f32 %v9007, %v9391
  %v9453 = vadd.f32 %v9008, %v9396
  %v9454 = vadd.f32 %v9009, %v9399
  %v9455 = vadd.f32 %v9010, %v9404
  %v9456 = vadd.f32 %v9011, %v9407
  %v9457 = vadd.f32 %v9012, %v9412
  %v9458 = vld [vmem:[#allocation3 + $0x20] sm:$0xff]
  %v9459 = vld [vmem:[#allocation3 + $0x28] sm:$0xff]
  %v9460 = vld [vmem:[#allocation3 + $0x30] sm:$0xff]
  %v9461 = vld [vmem:[#allocation3 + $0x38] sm:$0xff]
  %v9462 = vld [vmem:[#allocation3 + $0x40] sm:$0xff]
  %v9463 = vld [vmem:[#allocation3 + $0x48] sm:$0xff]
  %v9464 = vld [vmem:[#allocation3 + $0x50] sm:$0xff]
  %v9465 = vld [vmem:[#allocation3 + $0x58] sm:$0xff]
  %v9466 = vld [vmem:[#allocation3 + $0x60] sm:$0xff]
  %v9467 = vld [vmem:[#allocation3 + $0x68] sm:$0xff]
  %v9468 = vld [vmem:[#allocation3 + $0x70] sm:$0xff]
  %v9469 = vld [vmem:[#allocation3 + $0x78] sm:$0xff]
  %v9470 = vld [vmem:[#allocation3 + $0x80] sm:$0xff]
  %v9471 = vld [vmem:[#allocation3 + $0x88] sm:$0xff]
  %v9472 = vld [vmem:[#allocation3 + $0x90] sm:$0xff]
  %v9473 = vld [vmem:[#allocation3 + $0x98] sm:$0xff]
  %v9474 = vld [vmem:[#allocation3 + $0xa0] sm:$0xff]
  %v9475 = vld [vmem:[#allocation3 + $0xa8] sm:$0xff]
  %v9476 = vld [vmem:[#allocation3 + $0xb0] sm:$0xff]
  %v9477 = vld [vmem:[#allocation3 + $0xb8] sm:$0xff]
  %v9478 = vld [vmem:[#allocation3 + $0xc0] sm:$0xff]
  %v9479 = vld [vmem:[#allocation3 + $0xc8] sm:$0xff]
  %v9480 = vld [vmem:[#allocation3 + $0xd0] sm:$0xff]
  %v9481 = vld [vmem:[#allocation3 + $0xd8] sm:$0xff]
  %v9482 = vld [vmem:[#allocation3 + $0xe0] sm:$0xff]
  %v9483 = vld [vmem:[#allocation3 + $0xe8] sm:$0xff]
  %v9484 = vld [vmem:[#allocation3 + $0xf0] sm:$0xff]
  %v9485 = vld [vmem:[#allocation3 + $0xf8] sm:$0xff]
  %v9486 = vld [vmem:[#allocation3 + $0x100] sm:$0xff]
  %v9487 = vld [vmem:[#allocation3 + $0x108] sm:$0xff]
  %v9488 = vld [vmem:[#allocation3 + $0x110] sm:$0xff]
  %v9489 = vld [vmem:[#allocation3 + $0x118] sm:$0xff]
  %v9490 = vld [vmem:[#allocation3 + $0x120] sm:$0xff]
  %v9491 = vld [vmem:[#allocation3 + $0x128] sm:$0xff]
  %v9492 = vld [vmem:[#allocation3 + $0x130] sm:$0xff]
  %v9493 = vld [vmem:[#allocation3 + $0x138] sm:$0xff]
  %v9494 = vld [vmem:[#allocation3 + $0x140] sm:$0xff]
  %v9495 = vld [vmem:[#allocation3 + $0x148] sm:$0xff]
  %v9496 = vld [vmem:[#allocation3 + $0x150] sm:$0xff]
  %v9497 = vld [vmem:[#allocation3 + $0x158] sm:$0xff]
  %v9498 = vld [vmem:[#allocation3 + $0x160] sm:$0xf]
  %v9499 = vpack.c.bf16 %v9459, %v9458
  %v9500 = vpack.c.bf16 %v9461, %v9460
  %v9501 = vpack.c.bf16 %v9463, %v9462
  %v9502 = vpack.c.bf16 %v9465, %v9464
  %v9503 = vpack.c.bf16 %v9467, %v9466
  %v9504 = vpack.c.bf16 %v9469, %v9468
  %v9505 = vpack.c.bf16 %v9471, %v9470
  %v9506 = vpack.c.bf16 %v9473, %v9472
  %v9507 = vpack.c.bf16 %v9475, %v9474
  %v9508 = vpack.c.bf16 %v9477, %v9476
  %v9509 = vpack.c.bf16 %v9479, %v9478
  %v9510 = vpack.c.bf16 %v9481, %v9480
  %v9511 = vpack.c.bf16 %v9483, %v9482
  %v9512 = vpack.c.bf16 %v9485, %v9484
  %v9513 = vpack.c.bf16 %v9487, %v9486
  %v9514 = vpack.c.bf16 %v9489, %v9488
  %v9515 = vpack.c.bf16 %v9491, %v9490
  %v9516 = vpack.c.bf16 %v9493, %v9492
  %v9517 = vpack.c.bf16 %v9495, %v9494
  %v9518 = vpack.c.bf16 %v9497, %v9496
  %v9519 = vpack.c.bf16 %v9498, %v9498
  %v9520 = vld [vmem:[%s8 + $0x50] sm:$0xf]
  %v9521 = vld [vmem:[%s8 + $0x54] sm:$0xf]
  %v9522 = vld [vmem:[%s8 + $0x58] sm:$0xf]
  %v9523 = vld [vmem:[%s8 + $0x5c] sm:$0xf]
  %v9528 = vunpack.c.l.b16 %v9520
  %v9529 = vunpack.c.l.b16 %v9521
  %v9530 = vunpack.c.l.b16 %v9522
  %v9531 = vunpack.c.l.b16 %v9523
  %v9532 = vpack.c.b16 %v9529, %v9528
  %v9533 = vpack.c.b16 %v9531, %v9530
  %v9537 = vsel %vm1117, %v9499, 0
  %v9540 = vsel %vm1117, %v9500, 0
  %v9543 = vsel %vm1117, %v9501, 0
  %v9546 = vsel %vm1117, %v9502, 0
  %v9549 = vsel %vm1117, %v9503, 0
  %v9552 = vsel %vm1117, %v9504, 0
  %v9555 = vsel %vm1117, %v9505, 0
  %v9558 = vsel %vm1117, %v9506, 0
  %v9561 = vsel %vm1117, %v9507, 0
  %v9564 = vsel %vm1117, %v9508, 0
  %v9567 = vsel %vm1117, %v9509, 0
  %v9570 = vsel %vm1117, %v9510, 0
  %v9573 = vsel %vm1117, %v9511, 0
  %v9576 = vsel %vm1117, %v9512, 0
  %v9579 = vsel %vm1117, %v9513, 0
  %v9582 = vsel %vm1117, %v9514, 0
  %v9585 = vsel %vm1117, %v9515, 0
  %v9588 = vsel %vm1117, %v9516, 0
  %v9591 = vsel %vm1117, %v9517, 0
  %v9594 = vsel %vm1117, %v9518, 0
  %v9597 = vsel %vm1117, %v9519, 0
  %9599 = vmatprep.subr.bf16.mxu0 0
  %9600 = vmatpush1.bf16.msra.mxu0 0
  %9601 = vmatprep.subr.bf16.mxu0 0
  %9602 = vmatpush1.bf16.msra.mxu0 0
  %9603 = vmatprep.subr.bf16.mxu0 0
  %9604 = vmatpush1.bf16.msra.mxu0 0
  %9605 = vmatprep.subr.bf16.mxu0 0
  %9606 = vmatpush1.bf16.msra.mxu0 0
  %9607 = vmatprep.subr.bf16.mxu0 0
  %9608 = vmatpush1.bf16.msra.mxu0 0
  %9609 = vmatprep.subr.bf16.mxu0 0
  %9610 = vmatpush1.bf16.msra.mxu0 0
  %9611 = vmatprep.subr.bf16.mxu0 0
  %9612 = vmatpush1.bf16.msra.mxu0 %v9533
  %9613 = vmatprep.subr.bf16.mxu0 0
  %9614 = vmatpush1.bf16.msra.mxu0 %v9532
  %9615 = vmatprep.subr.bf16.mxu0 0
  %9616 = vmatpush2.bf16.msra.mxu0 0
  %9617 = vmatprep.subr.bf16.mxu0 0
  %9618 = vmatpush2.bf16.msra.mxu0 0
  %9619 = vmatprep.subr.bf16.mxu0 0
  %9620 = vmatpush2.bf16.msra.mxu0 0
  %9621 = vmatprep.subr.bf16.mxu0 0
  %9622 = vmatpush2.bf16.msra.mxu0 0
  %9623 = vmatprep.subr.bf16.mxu0 0
  %9624 = vmatpush2.bf16.msra.mxu0 0
  %9625 = vmatprep.subr.bf16.mxu0 0
  %9626 = vmatpush2.bf16.msra.mxu0 0
  %9627 = vmatprep.subr.bf16.mxu0 0
  %9628 = vmatpush2.bf16.msra.mxu0 0
  %9629 = vmatprep.subr.bf16.mxu0 0
  %9630 = vmatpush2.bf16.msra.mxu0 0
  %9631 = vmatprep.mubr.bf16.mxu0 0
  %9632 = vmatmul.mubr.bf16.gmra.mxu0 %v9537
  %v9633 = vpop.f32.mrf.mxu0
  %v9634 = vadd.f32 0.0, %v9633
  %v9635 = vpop.f32.mrf.mxu0
  %v9636 = vpop.f32.mrf.mxu0
  %v9637 = vadd.f32 0.0, %v9636
  %v9638 = vpop.f32.mrf.mxu0
  %9639 = vmatprep.mubr.bf16.mxu0 0
  %9640 = vmatmul.mubr.bf16.gmra.mxu0 %v9540
  %v9641 = vpop.f32.mrf.mxu0
  %v9642 = vadd.f32 0.0, %v9641
  %v9643 = vpop.f32.mrf.mxu0
  %v9644 = vpop.f32.mrf.mxu0
  %v9645 = vadd.f32 0.0, %v9644
  %v9646 = vpop.f32.mrf.mxu0
  %9647 = vmatprep.mubr.bf16.mxu0 0
  %9648 = vmatmul.mubr.bf16.gmra.mxu0 %v9543
  %v9649 = vpop.f32.mrf.mxu0
  %v9650 = vadd.f32 0.0, %v9649
  %v9651 = vpop.f32.mrf.mxu0
  %v9652 = vpop.f32.mrf.mxu0
  %v9653 = vadd.f32 0.0, %v9652
  %v9654 = vpop.f32.mrf.mxu0
  %9655 = vmatprep.mubr.bf16.mxu0 0
  %9656 = vmatmul.mubr.bf16.gmra.mxu0 %v9546
  %v9657 = vpop.f32.mrf.mxu0
  %v9658 = vadd.f32 0.0, %v9657
  %v9659 = vpop.f32.mrf.mxu0
  %v9660 = vpop.f32.mrf.mxu0
  %v9661 = vadd.f32 0.0, %v9660
  %v9662 = vpop.f32.mrf.mxu0
  %9663 = vmatprep.mubr.bf16.mxu0 0
  %9664 = vmatmul.mubr.bf16.gmra.mxu0 %v9549
  %v9665 = vpop.f32.mrf.mxu0
  %v9666 = vadd.f32 0.0, %v9665
  %v9667 = vpop.f32.mrf.mxu0
  %v9668 = vpop.f32.mrf.mxu0
  %v9669 = vadd.f32 0.0, %v9668
  %v9670 = vpop.f32.mrf.mxu0
  %9671 = vmatprep.mubr.bf16.mxu0 0
  %9672 = vmatmul.mubr.bf16.gmra.mxu0 %v9552
  %v9673 = vpop.f32.mrf.mxu0
  %v9674 = vadd.f32 0.0, %v9673
  %v9675 = vpop.f32.mrf.mxu0
  %v9676 = vpop.f32.mrf.mxu0
  %v9677 = vadd.f32 0.0, %v9676
  %v9678 = vpop.f32.mrf.mxu0
  %9679 = vmatprep.mubr.bf16.mxu0 0
  %9680 = vmatmul.mubr.bf16.gmra.mxu0 %v9555
  %v9681 = vpop.f32.mrf.mxu0
  %v9682 = vadd.f32 0.0, %v9681
  %v9683 = vpop.f32.mrf.mxu0
  %v9684 = vpop.f32.mrf.mxu0
  %v9685 = vadd.f32 0.0, %v9684
  %v9686 = vpop.f32.mrf.mxu0
  %9687 = vmatprep.mubr.bf16.mxu0 0
  %9688 = vmatmul.mubr.bf16.gmra.mxu0 %v9558
  %v9689 = vpop.f32.mrf.mxu0
  %v9690 = vadd.f32 0.0, %v9689
  %v9691 = vpop.f32.mrf.mxu0
  %v9692 = vpop.f32.mrf.mxu0
  %v9693 = vadd.f32 0.0, %v9692
  %v9694 = vpop.f32.mrf.mxu0
  %9695 = vmatprep.mubr.bf16.mxu0 0
  %9696 = vmatmul.mubr.bf16.gmra.mxu0 %v9561
  %v9697 = vpop.f32.mrf.mxu0
  %v9698 = vadd.f32 0.0, %v9697
  %v9699 = vpop.f32.mrf.mxu0
  %v9700 = vpop.f32.mrf.mxu0
  %v9701 = vadd.f32 0.0, %v9700
  %v9702 = vpop.f32.mrf.mxu0
  %9703 = vmatprep.mubr.bf16.mxu0 0
  %9704 = vmatmul.mubr.bf16.gmra.mxu0 %v9564
  %v9705 = vpop.f32.mrf.mxu0
  %v9706 = vadd.f32 0.0, %v9705
  %v9707 = vpop.f32.mrf.mxu0
  %v9708 = vpop.f32.mrf.mxu0
  %v9709 = vadd.f32 0.0, %v9708
  %v9710 = vpop.f32.mrf.mxu0
  %9711 = vmatprep.mubr.bf16.mxu0 0
  %9712 = vmatmul.mubr.bf16.gmra.mxu0 %v9567
  %v9713 = vpop.f32.mrf.mxu0
  %v9714 = vadd.f32 0.0, %v9713
  %v9715 = vpop.f32.mrf.mxu0
  %v9716 = vpop.f32.mrf.mxu0
  %v9717 = vadd.f32 0.0, %v9716
  %v9718 = vpop.f32.mrf.mxu0
  %9719 = vmatprep.mubr.bf16.mxu0 0
  %9720 = vmatmul.mubr.bf16.gmra.mxu0 %v9570
  %v9721 = vpop.f32.mrf.mxu0
  %v9722 = vadd.f32 0.0, %v9721
  %v9723 = vpop.f32.mrf.mxu0
  %v9724 = vpop.f32.mrf.mxu0
  %v9725 = vadd.f32 0.0, %v9724
  %v9726 = vpop.f32.mrf.mxu0
  %9727 = vmatprep.mubr.bf16.mxu0 0
  %9728 = vmatmul.mubr.bf16.gmra.mxu0 %v9573
  %v9729 = vpop.f32.mrf.mxu0
  %v9730 = vadd.f32 0.0, %v9729
  %v9731 = vpop.f32.mrf.mxu0
  %v9732 = vpop.f32.mrf.mxu0
  %v9733 = vadd.f32 0.0, %v9732
  %v9734 = vpop.f32.mrf.mxu0
  %9735 = vmatprep.mubr.bf16.mxu0 0
  %9736 = vmatmul.mubr.bf16.gmra.mxu0 %v9576
  %v9737 = vpop.f32.mrf.mxu0
  %v9738 = vadd.f32 0.0, %v9737
  %v9739 = vpop.f32.mrf.mxu0
  %v9740 = vpop.f32.mrf.mxu0
  %v9741 = vadd.f32 0.0, %v9740
  %v9742 = vpop.f32.mrf.mxu0
  %9743 = vmatprep.mubr.bf16.mxu0 0
  %9744 = vmatmul.mubr.bf16.gmra.mxu0 %v9579
  %v9745 = vpop.f32.mrf.mxu0
  %v9746 = vadd.f32 0.0, %v9745
  %v9747 = vpop.f32.mrf.mxu0
  %v9748 = vpop.f32.mrf.mxu0
  %v9749 = vadd.f32 0.0, %v9748
  %v9750 = vpop.f32.mrf.mxu0
  %9751 = vmatprep.mubr.bf16.mxu0 0
  %9752 = vmatmul.mubr.bf16.gmra.mxu0 %v9582
  %v9753 = vpop.f32.mrf.mxu0
  %v9754 = vadd.f32 0.0, %v9753
  %v9755 = vpop.f32.mrf.mxu0
  %v9756 = vpop.f32.mrf.mxu0
  %v9757 = vadd.f32 0.0, %v9756
  %v9758 = vpop.f32.mrf.mxu0
  %9759 = vmatprep.mubr.bf16.mxu0 0
  %9760 = vmatmul.mubr.bf16.gmra.mxu0 %v9585
  %v9761 = vpop.f32.mrf.mxu0
  %v9762 = vadd.f32 0.0, %v9761
  %v9763 = vpop.f32.mrf.mxu0
  %v9764 = vpop.f32.mrf.mxu0
  %v9765 = vadd.f32 0.0, %v9764
  %v9766 = vpop.f32.mrf.mxu0
  %9767 = vmatprep.mubr.bf16.mxu0 0
  %9768 = vmatmul.mubr.bf16.gmra.mxu0 %v9588
  %v9769 = vpop.f32.mrf.mxu0
  %v9770 = vadd.f32 0.0, %v9769
  %v9771 = vpop.f32.mrf.mxu0
  %v9772 = vpop.f32.mrf.mxu0
  %v9773 = vadd.f32 0.0, %v9772
  %v9774 = vpop.f32.mrf.mxu0
  %9775 = vmatprep.mubr.bf16.mxu0 0
  %9776 = vmatmul.mubr.bf16.gmra.mxu0 %v9591
  %v9777 = vpop.f32.mrf.mxu0
  %v9778 = vadd.f32 0.0, %v9777
  %v9779 = vpop.f32.mrf.mxu0
  %v9780 = vpop.f32.mrf.mxu0
  %v9781 = vadd.f32 0.0, %v9780
  %v9782 = vpop.f32.mrf.mxu0
  %9783 = vmatprep.mubr.bf16.mxu0 0
  %9784 = vmatmul.mubr.bf16.gmra.mxu0 %v9594
  %v9785 = vpop.f32.mrf.mxu0
  %v9786 = vadd.f32 0.0, %v9785
  %v9787 = vpop.f32.mrf.mxu0
  %v9788 = vpop.f32.mrf.mxu0
  %v9789 = vadd.f32 0.0, %v9788
  %v9790 = vpop.f32.mrf.mxu0
  %9791 = vmatprep.mubr.bf16.mxu0 0
  %9792 = vmatmul.mubr.bf16.gmra.mxu0 %v9597
  %v9793 = vpop.f32.mrf.mxu0
  %v9794 = vadd.f32 0.0, %v9793
  %v9795 = vpop.f32.mrf.mxu0
  %v9796 = vpop.f32.mrf.mxu0
  %v9797 = vpop.f32.mrf.mxu0
  %9798 = vdwg.mxu0
  %v9799 = vadd.f32 %v9417, %v9634
  %v9800 = vadd.f32 %v9418, %v9637
  %v9801 = vadd.f32 %v9419, %v9642
  %v9802 = vadd.f32 %v9420, %v9645
  %v9803 = vadd.f32 %v9421, %v9650
  %v9804 = vadd.f32 %v9422, %v9653
  %v9805 = vadd.f32 %v9423, %v9658
  %v9806 = vadd.f32 %v9424, %v9661
  %v9807 = vadd.f32 %v9425, %v9666
  %v9808 = vadd.f32 %v9426, %v9669
  %v9809 = vadd.f32 %v9427, %v9674
  %v9810 = vadd.f32 %v9428, %v9677
  %v9811 = vadd.f32 %v9429, %v9682
  %v9812 = vadd.f32 %v9430, %v9685
  %v9813 = vadd.f32 %v9431, %v9690
  %v9814 = vadd.f32 %v9432, %v9693
  %v9815 = vadd.f32 %v9433, %v9698
  %v9816 = vadd.f32 %v9434, %v9701
  %v9817 = vadd.f32 %v9435, %v9706
  %v9818 = vadd.f32 %v9436, %v9709
  %v9819 = vadd.f32 %v9437, %v9714
  %v9820 = vadd.f32 %v9438, %v9717
  %v9821 = vadd.f32 %v9439, %v9722
  %v9822 = vadd.f32 %v9440, %v9725
  %v9823 = vadd.f32 %v9441, %v9730
  %v9824 = vadd.f32 %v9442, %v9733
  %v9825 = vadd.f32 %v9443, %v9738
  %v9826 = vadd.f32 %v9444, %v9741
  %v9827 = vadd.f32 %v9445, %v9746
  %v9828 = vadd.f32 %v9446, %v9749
  %v9829 = vadd.f32 %v9447, %v9754
  %v9830 = vadd.f32 %v9448, %v9757
  %v9831 = vadd.f32 %v9449, %v9762
  %v9832 = vadd.f32 %v9450, %v9765
  %v9833 = vadd.f32 %v9451, %v9770
  %v9834 = vadd.f32 %v9452, %v9773
  %v9835 = vadd.f32 %v9453, %v9778
  %v9836 = vadd.f32 %v9454, %v9781
  %v9837 = vadd.f32 %v9455, %v9786
  %v9838 = vadd.f32 %v9456, %v9789
  %v9839 = vadd.f32 %v9457, %v9794
  %v9840 = vld [vmem:[%s8 + $0x60] sm:$0xf]
  %v9841 = vld [vmem:[%s8 + $0x64] sm:$0xf]
  %v9842 = vld [vmem:[%s8 + $0x68] sm:$0xf]
  %v9843 = vld [vmem:[%s8 + $0x6c] sm:$0xf]
  %9865 = vrot.lane.b32.xlu0 %v9499, 96
  %v9866 = vpop.permute.xlu0 %9865
  %9867 = vrot.lane.b32.xlu0 %v9500, 96
  %v9868 = vpop.permute.xlu0 %9867
  %9869 = vrot.lane.b32.xlu0 %v9501, 96
  %v9870 = vpop.permute.xlu0 %9869
  %9871 = vrot.lane.b32.xlu0 %v9502, 96
  %v9872 = vpop.permute.xlu0 %9871
  %9873 = vrot.lane.b32.xlu0 %v9503, 96
  %v9874 = vpop.permute.xlu0 %9873
  %9875 = vrot.lane.b32.xlu0 %v9504, 96
  %v9876 = vpop.permute.xlu0 %9875
  %9877 = vrot.lane.b32.xlu0 %v9505, 96
  %v9878 = vpop.permute.xlu0 %9877
  %9879 = vrot.lane.b32.xlu0 %v9506, 96
  %v9880 = vpop.permute.xlu0 %9879
  %9881 = vrot.lane.b32.xlu0 %v9507, 96
  %v9882 = vpop.permute.xlu0 %9881
  %9883 = vrot.lane.b32.xlu0 %v9508, 96
  %v9884 = vpop.permute.xlu0 %9883
  %9885 = vrot.lane.b32.xlu0 %v9509, 96
  %v9886 = vpop.permute.xlu0 %9885
  %9887 = vrot.lane.b32.xlu0 %v9510, 96
  %v9888 = vpop.permute.xlu0 %9887
  %9889 = vrot.lane.b32.xlu0 %v9511, 96
  %v9890 = vpop.permute.xlu0 %9889
  %9891 = vrot.lane.b32.xlu0 %v9512, 96
  %v9892 = vpop.permute.xlu0 %9891
  %9893 = vrot.lane.b32.xlu0 %v9513, 96
  %v9894 = vpop.permute.xlu0 %9893
  %9895 = vrot.lane.b32.xlu0 %v9514, 96
  %v9896 = vpop.permute.xlu0 %9895
  %9897 = vrot.lane.b32.xlu0 %v9515, 96
  %v9898 = vpop.permute.xlu0 %9897
  %9899 = vrot.lane.b32.xlu0 %v9516, 96
  %v9900 = vpop.permute.xlu0 %9899
  %9901 = vrot.lane.b32.xlu0 %v9517, 96
  %v9902 = vpop.permute.xlu0 %9901
  %9903 = vrot.lane.b32.xlu0 %v9518, 96
  %v9904 = vpop.permute.xlu0 %9903
  %9905 = vrot.lane.b32.xlu0 %v9519, 96
  %v9906 = vpop.permute.xlu0 %9905
  %v9911 = vunpack.c.l.b16 %v9840
  %v9912 = vunpack.c.l.b16 %v9841
  %v9913 = vunpack.c.l.b16 %v9842
  %v9914 = vunpack.c.l.b16 %v9843
  %v9915 = vpack.c.b16 %v9912, %v9911
  %v9916 = vpack.c.b16 %v9914, %v9913
  %v9920 = vsel %vm1117, %v9866, 0
  %v9923 = vsel %vm1117, %v9868, 0
  %v9926 = vsel %vm1117, %v9870, 0
  %v9929 = vsel %vm1117, %v9872, 0
  %v9932 = vsel %vm1117, %v9874, 0
  %v9935 = vsel %vm1117, %v9876, 0
  %v9938 = vsel %vm1117, %v9878, 0
  %v9941 = vsel %vm1117, %v9880, 0
  %v9944 = vsel %vm1117, %v9882, 0
  %v9947 = vsel %vm1117, %v9884, 0
  %v9950 = vsel %vm1117, %v9886, 0
  %v9953 = vsel %vm1117, %v9888, 0
  %v9956 = vsel %vm1117, %v9890, 0
  %v9959 = vsel %vm1117, %v9892, 0
  %v9962 = vsel %vm1117, %v9894, 0
  %v9965 = vsel %vm1117, %v9896, 0
  %v9968 = vsel %vm1117, %v9898, 0
  %v9971 = vsel %vm1117, %v9900, 0
  %v9974 = vsel %vm1117, %v9902, 0
  %v9977 = vsel %vm1117, %v9904, 0
  %v9980 = vsel %vm1117, %v9906, 0
  %9982 = vmatprep.subr.bf16.mxu0 0
  %9983 = vmatpush1.bf16.msra.mxu0 0
  %9984 = vmatprep.subr.bf16.mxu0 0
  %9985 = vmatpush1.bf16.msra.mxu0 0
  %9986 = vmatprep.subr.bf16.mxu0 0
  %9987 = vmatpush1.bf16.msra.mxu0 0
  %9988 = vmatprep.subr.bf16.mxu0 0
  %9989 = vmatpush1.bf16.msra.mxu0 0
  %9990 = vmatprep.subr.bf16.mxu0 0
  %9991 = vmatpush1.bf16.msra.mxu0 0
  %9992 = vmatprep.subr.bf16.mxu0 0
  %9993 = vmatpush1.bf16.msra.mxu0 0
  %9994 = vmatprep.subr.bf16.mxu0 0
  %9995 = vmatpush1.bf16.msra.mxu0 %v9916
  %9996 = vmatprep.subr.bf16.mxu0 0
  %9997 = vmatpush1.bf16.msra.mxu0 %v9915
  %9998 = vmatprep.subr.bf16.mxu0 0
  %9999 = vmatpush2.bf16.msra.mxu0 0
  %10000 = vmatprep.subr.bf16.mxu0 0
  %10001 = vmatpush2.bf16.msra.mxu0 0
  %10002 = vmatprep.subr.bf16.mxu0 0
  %10003 = vmatpush2.bf16.msra.mxu0 0
  %10004 = vmatprep.subr.bf16.mxu0 0
  %10005 = vmatpush2.bf16.msra.mxu0 0
  %10006 = vmatprep.subr.bf16.mxu0 0
  %10007 = vmatpush2.bf16.msra.mxu0 0
  %10008 = vmatprep.subr.bf16.mxu0 0
  %10009 = vmatpush2.bf16.msra.mxu0 0
  %10010 = vmatprep.subr.bf16.mxu0 0
  %10011 = vmatpush2.bf16.msra.mxu0 0
  %10012 = vmatprep.subr.bf16.mxu0 0
  %10013 = vmatpush2.bf16.msra.mxu0 0
  %10014 = vmatprep.mubr.bf16.mxu0 0
  %10015 = vmatmul.mubr.bf16.gmra.mxu0 %v9920
  %v10016 = vpop.f32.mrf.mxu0
  %v10017 = vadd.f32 0.0, %v10016
  %v10018 = vpop.f32.mrf.mxu0
  %v10019 = vpop.f32.mrf.mxu0
  %v10020 = vadd.f32 0.0, %v10019
  %v10021 = vpop.f32.mrf.mxu0
  %10022 = vmatprep.mubr.bf16.mxu0 0
  %10023 = vmatmul.mubr.bf16.gmra.mxu0 %v9923
  %v10024 = vpop.f32.mrf.mxu0
  %v10025 = vadd.f32 0.0, %v10024
  %v10026 = vpop.f32.mrf.mxu0
  %v10027 = vpop.f32.mrf.mxu0
  %v10028 = vadd.f32 0.0, %v10027
  %v10029 = vpop.f32.mrf.mxu0
  %10030 = vmatprep.mubr.bf16.mxu0 0
  %10031 = vmatmul.mubr.bf16.gmra.mxu0 %v9926
  %v10032 = vpop.f32.mrf.mxu0
  %v10033 = vadd.f32 0.0, %v10032
  %v10034 = vpop.f32.mrf.mxu0
  %v10035 = vpop.f32.mrf.mxu0
  %v10036 = vadd.f32 0.0, %v10035
  %v10037 = vpop.f32.mrf.mxu0
  %10038 = vmatprep.mubr.bf16.mxu0 0
  %10039 = vmatmul.mubr.bf16.gmra.mxu0 %v9929
  %v10040 = vpop.f32.mrf.mxu0
  %v10041 = vadd.f32 0.0, %v10040
  %v10042 = vpop.f32.mrf.mxu0
  %v10043 = vpop.f32.mrf.mxu0
  %v10044 = vadd.f32 0.0, %v10043
  %v10045 = vpop.f32.mrf.mxu0
  %10046 = vmatprep.mubr.bf16.mxu0 0
  %10047 = vmatmul.mubr.bf16.gmra.mxu0 %v9932
  %v10048 = vpop.f32.mrf.mxu0
  %v10049 = vadd.f32 0.0, %v10048
  %v10050 = vpop.f32.mrf.mxu0
  %v10051 = vpop.f32.mrf.mxu0
  %v10052 = vadd.f32 0.0, %v10051
  %v10053 = vpop.f32.mrf.mxu0
  %10054 = vmatprep.mubr.bf16.mxu0 0
  %10055 = vmatmul.mubr.bf16.gmra.mxu0 %v9935
  %v10056 = vpop.f32.mrf.mxu0
  %v10057 = vadd.f32 0.0, %v10056
  %v10058 = vpop.f32.mrf.mxu0
  %v10059 = vpop.f32.mrf.mxu0
  %v10060 = vadd.f32 0.0, %v10059
  %v10061 = vpop.f32.mrf.mxu0
  %10062 = vmatprep.mubr.bf16.mxu0 0
  %10063 = vmatmul.mubr.bf16.gmra.mxu0 %v9938
  %v10064 = vpop.f32.mrf.mxu0
  %v10065 = vadd.f32 0.0, %v10064
  %v10066 = vpop.f32.mrf.mxu0
  %v10067 = vpop.f32.mrf.mxu0
  %v10068 = vadd.f32 0.0, %v10067
  %v10069 = vpop.f32.mrf.mxu0
  %10070 = vmatprep.mubr.bf16.mxu0 0
  %10071 = vmatmul.mubr.bf16.gmra.mxu0 %v9941
  %v10072 = vpop.f32.mrf.mxu0
  %v10073 = vadd.f32 0.0, %v10072
  %v10074 = vpop.f32.mrf.mxu0
  %v10075 = vpop.f32.mrf.mxu0
  %v10076 = vadd.f32 0.0, %v10075
  %v10077 = vpop.f32.mrf.mxu0
  %10078 = vmatprep.mubr.bf16.mxu0 0
  %10079 = vmatmul.mubr.bf16.gmra.mxu0 %v9944
  %v10080 = vpop.f32.mrf.mxu0
  %v10081 = vadd.f32 0.0, %v10080
  %v10082 = vpop.f32.mrf.mxu0
  %v10083 = vpop.f32.mrf.mxu0
  %v10084 = vadd.f32 0.0, %v10083
  %v10085 = vpop.f32.mrf.mxu0
  %10086 = vmatprep.mubr.bf16.mxu0 0
  %10087 = vmatmul.mubr.bf16.gmra.mxu0 %v9947
  %v10088 = vpop.f32.mrf.mxu0
  %v10089 = vadd.f32 0.0, %v10088
  %v10090 = vpop.f32.mrf.mxu0
  %v10091 = vpop.f32.mrf.mxu0
  %v10092 = vadd.f32 0.0, %v10091
  %v10093 = vpop.f32.mrf.mxu0
  %10094 = vmatprep.mubr.bf16.mxu0 0
  %10095 = vmatmul.mubr.bf16.gmra.mxu0 %v9950
  %v10096 = vpop.f32.mrf.mxu0
  %v10097 = vadd.f32 0.0, %v10096
  %v10098 = vpop.f32.mrf.mxu0
  %v10099 = vpop.f32.mrf.mxu0
  %v10100 = vadd.f32 0.0, %v10099
  %v10101 = vpop.f32.mrf.mxu0
  %10102 = vmatprep.mubr.bf16.mxu0 0
  %10103 = vmatmul.mubr.bf16.gmra.mxu0 %v9953
  %v10104 = vpop.f32.mrf.mxu0
  %v10105 = vadd.f32 0.0, %v10104
  %v10106 = vpop.f32.mrf.mxu0
  %v10107 = vpop.f32.mrf.mxu0
  %v10108 = vadd.f32 0.0, %v10107
  %v10109 = vpop.f32.mrf.mxu0
  %10110 = vmatprep.mubr.bf16.mxu0 0
  %10111 = vmatmul.mubr.bf16.gmra.mxu0 %v9956
  %v10112 = vpop.f32.mrf.mxu0
  %v10113 = vadd.f32 0.0, %v10112
  %v10114 = vpop.f32.mrf.mxu0
  %v10115 = vpop.f32.mrf.mxu0
  %v10116 = vadd.f32 0.0, %v10115
  %v10117 = vpop.f32.mrf.mxu0
  %10118 = vmatprep.mubr.bf16.mxu0 0
  %10119 = vmatmul.mubr.bf16.gmra.mxu0 %v9959
  %v10120 = vpop.f32.mrf.mxu0
  %v10121 = vadd.f32 0.0, %v10120
  %v10122 = vpop.f32.mrf.mxu0
  %v10123 = vpop.f32.mrf.mxu0
  %v10124 = vadd.f32 0.0, %v10123
  %v10125 = vpop.f32.mrf.mxu0
  %10126 = vmatprep.mubr.bf16.mxu0 0
  %10127 = vmatmul.mubr.bf16.gmra.mxu0 %v9962
  %v10128 = vpop.f32.mrf.mxu0
  %v10129 = vadd.f32 0.0, %v10128
  %v10130 = vpop.f32.mrf.mxu0
  %v10131 = vpop.f32.mrf.mxu0
  %v10132 = vadd.f32 0.0, %v10131
  %v10133 = vpop.f32.mrf.mxu0
  %10134 = vmatprep.mubr.bf16.mxu0 0
  %10135 = vmatmul.mubr.bf16.gmra.mxu0 %v9965
  %v10136 = vpop.f32.mrf.mxu0
  %v10137 = vadd.f32 0.0, %v10136
  %v10138 = vpop.f32.mrf.mxu0
  %v10139 = vpop.f32.mrf.mxu0
  %v10140 = vadd.f32 0.0, %v10139
  %v10141 = vpop.f32.mrf.mxu0
  %10142 = vmatprep.mubr.bf16.mxu0 0
  %10143 = vmatmul.mubr.bf16.gmra.mxu0 %v9968
  %v10144 = vpop.f32.mrf.mxu0
  %v10145 = vadd.f32 0.0, %v10144
  %v10146 = vpop.f32.mrf.mxu0
  %v10147 = vpop.f32.mrf.mxu0
  %v10148 = vadd.f32 0.0, %v10147
  %v10149 = vpop.f32.mrf.mxu0
  %10150 = vmatprep.mubr.bf16.mxu0 0
  %10151 = vmatmul.mubr.bf16.gmra.mxu0 %v9971
  %v10152 = vpop.f32.mrf.mxu0
  %v10153 = vadd.f32 0.0, %v10152
  %v10154 = vpop.f32.mrf.mxu0
  %v10155 = vpop.f32.mrf.mxu0
  %v10156 = vadd.f32 0.0, %v10155
  %v10157 = vpop.f32.mrf.mxu0
  %10158 = vmatprep.mubr.bf16.mxu0 0
  %10159 = vmatmul.mubr.bf16.gmra.mxu0 %v9974
  %v10160 = vpop.f32.mrf.mxu0
  %v10161 = vadd.f32 0.0, %v10160
  %v10162 = vpop.f32.mrf.mxu0
  %v10163 = vpop.f32.mrf.mxu0
  %v10164 = vadd.f32 0.0, %v10163
  %v10165 = vpop.f32.mrf.mxu0
  %10166 = vmatprep.mubr.bf16.mxu0 0
  %10167 = vmatmul.mubr.bf16.gmra.mxu0 %v9977
  %v10168 = vpop.f32.mrf.mxu0
  %v10169 = vadd.f32 0.0, %v10168
  %v10170 = vpop.f32.mrf.mxu0
  %v10171 = vpop.f32.mrf.mxu0
  %v10172 = vadd.f32 0.0, %v10171
  %v10173 = vpop.f32.mrf.mxu0
  %10174 = vmatprep.mubr.bf16.mxu0 0
  %10175 = vmatmul.mubr.bf16.gmra.mxu0 %v9980
  %v10176 = vpop.f32.mrf.mxu0
  %v10177 = vadd.f32 0.0, %v10176
  %v10178 = vpop.f32.mrf.mxu0
  %v10179 = vpop.f32.mrf.mxu0
  %v10180 = vpop.f32.mrf.mxu0
  %10181 = vdwg.mxu0
  %v10182 = vadd.f32 %v9799, %v10017
  %v10183 = vadd.f32 %v9800, %v10020
  %v10184 = vadd.f32 %v9801, %v10025
  %v10185 = vadd.f32 %v9802, %v10028
  %v10186 = vadd.f32 %v9803, %v10033
  %v10187 = vadd.f32 %v9804, %v10036
  %v10188 = vadd.f32 %v9805, %v10041
  %v10189 = vadd.f32 %v9806, %v10044
  %v10190 = vadd.f32 %v9807, %v10049
  %v10191 = vadd.f32 %v9808, %v10052
  %v10192 = vadd.f32 %v9809, %v10057
  %v10193 = vadd.f32 %v9810, %v10060
  %v10194 = vadd.f32 %v9811, %v10065
  %v10195 = vadd.f32 %v9812, %v10068
  %v10196 = vadd.f32 %v9813, %v10073
  %v10197 = vadd.f32 %v9814, %v10076
  %v10198 = vadd.f32 %v9815, %v10081
  %v10199 = vadd.f32 %v9816, %v10084
  %v10200 = vadd.f32 %v9817, %v10089
  %v10201 = vadd.f32 %v9818, %v10092
  %v10202 = vadd.f32 %v9819, %v10097
  %v10203 = vadd.f32 %v9820, %v10100
  %v10204 = vadd.f32 %v9821, %v10105
  %v10205 = vadd.f32 %v9822, %v10108
  %v10206 = vadd.f32 %v9823, %v10113
  %v10207 = vadd.f32 %v9824, %v10116
  %v10208 = vadd.f32 %v9825, %v10121
  %v10209 = vadd.f32 %v9826, %v10124
  %v10210 = vadd.f32 %v9827, %v10129
  %v10211 = vadd.f32 %v9828, %v10132
  %v10212 = vadd.f32 %v9829, %v10137
  %v10213 = vadd.f32 %v9830, %v10140
  %v10214 = vadd.f32 %v9831, %v10145
  %v10215 = vadd.f32 %v9832, %v10148
  %v10216 = vadd.f32 %v9833, %v10153
  %v10217 = vadd.f32 %v9834, %v10156
  %v10218 = vadd.f32 %v9835, %v10161
  %v10219 = vadd.f32 %v9836, %v10164
  %v10220 = vadd.f32 %v9837, %v10169
  %v10221 = vadd.f32 %v9838, %v10172
  %v10222 = vadd.f32 %v9839, %v10177
  %v10223 = vld [vmem:[#allocation3 + $0x21] sm:$0xff]
  %v10224 = vld [vmem:[#allocation3 + $0x29] sm:$0xff]
  %v10225 = vld [vmem:[#allocation3 + $0x31] sm:$0xff]
  %v10226 = vld [vmem:[#allocation3 + $0x39] sm:$0xff]
  %v10227 = vld [vmem:[#allocation3 + $0x41] sm:$0xff]
  %v10228 = vld [vmem:[#allocation3 + $0x49] sm:$0xff]
  %v10229 = vld [vmem:[#allocation3 + $0x51] sm:$0xff]
  %v10230 = vld [vmem:[#allocation3 + $0x59] sm:$0xff]
  %v10231 = vld [vmem:[#allocation3 + $0x61] sm:$0xff]
  %v10232 = vld [vmem:[#allocation3 + $0x69] sm:$0xff]
  %v10233 = vld [vmem:[#allocation3 + $0x71] sm:$0xff]
  %v10234 = vld [vmem:[#allocation3 + $0x79] sm:$0xff]
  %v10235 = vld [vmem:[#allocation3 + $0x81] sm:$0xff]
  %v10236 = vld [vmem:[#allocation3 + $0x89] sm:$0xff]
  %v10237 = vld [vmem:[#allocation3 + $0x91] sm:$0xff]
  %v10238 = vld [vmem:[#allocation3 + $0x99] sm:$0xff]
  %v10239 = vld [vmem:[#allocation3 + $0xa1] sm:$0xff]
  %v10240 = vld [vmem:[#allocation3 + $0xa9] sm:$0xff]
  %v10241 = vld [vmem:[#allocation3 + $0xb1] sm:$0xff]
  %v10242 = vld [vmem:[#allocation3 + $0xb9] sm:$0xff]
  %v10243 = vld [vmem:[#allocation3 + $0xc1] sm:$0xff]
  %v10244 = vld [vmem:[#allocation3 + $0xc9] sm:$0xff]
  %v10245 = vld [vmem:[#allocation3 + $0xd1] sm:$0xff]
  %v10246 = vld [vmem:[#allocation3 + $0xd9] sm:$0xff]
  %v10247 = vld [vmem:[#allocation3 + $0xe1] sm:$0xff]
  %v10248 = vld [vmem:[#allocation3 + $0xe9] sm:$0xff]
  %v10249 = vld [vmem:[#allocation3 + $0xf1] sm:$0xff]
  %v10250 = vld [vmem:[#allocation3 + $0xf9] sm:$0xff]
  %v10251 = vld [vmem:[#allocation3 + $0x101] sm:$0xff]
  %v10252 = vld [vmem:[#allocation3 + $0x109] sm:$0xff]
  %v10253 = vld [vmem:[#allocation3 + $0x111] sm:$0xff]
  %v10254 = vld [vmem:[#allocation3 + $0x119] sm:$0xff]
  %v10255 = vld [vmem:[#allocation3 + $0x121] sm:$0xff]
  %v10256 = vld [vmem:[#allocation3 + $0x129] sm:$0xff]
  %v10257 = vld [vmem:[#allocation3 + $0x131] sm:$0xff]
  %v10258 = vld [vmem:[#allocation3 + $0x139] sm:$0xff]
  %v10259 = vld [vmem:[#allocation3 + $0x141] sm:$0xff]
  %v10260 = vld [vmem:[#allocation3 + $0x149] sm:$0xff]
  %v10261 = vld [vmem:[#allocation3 + $0x151] sm:$0xff]
  %v10262 = vld [vmem:[#allocation3 + $0x159] sm:$0xff]
  %v10263 = vld [vmem:[#allocation3 + $0x161] sm:$0xf]
  %v10264 = vpack.c.bf16 %v10224, %v10223
  %v10265 = vpack.c.bf16 %v10226, %v10225
  %v10266 = vpack.c.bf16 %v10228, %v10227
  %v10267 = vpack.c.bf16 %v10230, %v10229
  %v10268 = vpack.c.bf16 %v10232, %v10231
  %v10269 = vpack.c.bf16 %v10234, %v10233
  %v10270 = vpack.c.bf16 %v10236, %v10235
  %v10271 = vpack.c.bf16 %v10238, %v10237
  %v10272 = vpack.c.bf16 %v10240, %v10239
  %v10273 = vpack.c.bf16 %v10242, %v10241
  %v10274 = vpack.c.bf16 %v10244, %v10243
  %v10275 = vpack.c.bf16 %v10246, %v10245
  %v10276 = vpack.c.bf16 %v10248, %v10247
  %v10277 = vpack.c.bf16 %v10250, %v10249
  %v10278 = vpack.c.bf16 %v10252, %v10251
  %v10279 = vpack.c.bf16 %v10254, %v10253
  %v10280 = vpack.c.bf16 %v10256, %v10255
  %v10281 = vpack.c.bf16 %v10258, %v10257
  %v10282 = vpack.c.bf16 %v10260, %v10259
  %v10283 = vpack.c.bf16 %v10262, %v10261
  %v10284 = vpack.c.bf16 %v10263, %v10263
  %v10285 = vld [vmem:[%s8 + $0x70] sm:$0xf]
  %v10286 = vld [vmem:[%s8 + $0x74] sm:$0xf]
  %v10287 = vld [vmem:[%s8 + $0x78] sm:$0xf]
  %v10288 = vld [vmem:[%s8 + $0x7c] sm:$0xf]
  %v10293 = vunpack.c.l.b16 %v10285
  %v10294 = vunpack.c.l.b16 %v10286
  %v10295 = vunpack.c.l.b16 %v10287
  %v10296 = vunpack.c.l.b16 %v10288
  %v10297 = vpack.c.b16 %v10294, %v10293
  %v10298 = vpack.c.b16 %v10296, %v10295
  %v10302 = vsel %vm1117, %v10264, 0
  %v10305 = vsel %vm1117, %v10265, 0
  %v10308 = vsel %vm1117, %v10266, 0
  %v10311 = vsel %vm1117, %v10267, 0
  %v10314 = vsel %vm1117, %v10268, 0
  %v10317 = vsel %vm1117, %v10269, 0
  %v10320 = vsel %vm1117, %v10270, 0
  %v10323 = vsel %vm1117, %v10271, 0
  %v10326 = vsel %vm1117, %v10272, 0
  %v10329 = vsel %vm1117, %v10273, 0
  %v10332 = vsel %vm1117, %v10274, 0
  %v10335 = vsel %vm1117, %v10275, 0
  %v10338 = vsel %vm1117, %v10276, 0
  %v10341 = vsel %vm1117, %v10277, 0
  %v10344 = vsel %vm1117, %v10278, 0
  %v10347 = vsel %vm1117, %v10279, 0
  %v10350 = vsel %vm1117, %v10280, 0
  %v10353 = vsel %vm1117, %v10281, 0
  %v10356 = vsel %vm1117, %v10282, 0
  %v10359 = vsel %vm1117, %v10283, 0
  %v10362 = vsel %vm1117, %v10284, 0
  %10364 = vmatprep.subr.bf16.mxu0 0
  %10365 = vmatpush1.bf16.msra.mxu0 0
  %10366 = vmatprep.subr.bf16.mxu0 0
  %10367 = vmatpush1.bf16.msra.mxu0 0
  %10368 = vmatprep.subr.bf16.mxu0 0
  %10369 = vmatpush1.bf16.msra.mxu0 0
  %10370 = vmatprep.subr.bf16.mxu0 0
  %10371 = vmatpush1.bf16.msra.mxu0 0
  %10372 = vmatprep.subr.bf16.mxu0 0
  %10373 = vmatpush1.bf16.msra.mxu0 0
  %10374 = vmatprep.subr.bf16.mxu0 0
  %10375 = vmatpush1.bf16.msra.mxu0 0
  %10376 = vmatprep.subr.bf16.mxu0 0
  %10377 = vmatpush1.bf16.msra.mxu0 %v10298
  %10378 = vmatprep.subr.bf16.mxu0 0
  %10379 = vmatpush1.bf16.msra.mxu0 %v10297
  %10380 = vmatprep.subr.bf16.mxu0 0
  %10381 = vmatpush2.bf16.msra.mxu0 0
  %10382 = vmatprep.subr.bf16.mxu0 0
  %10383 = vmatpush2.bf16.msra.mxu0 0
  %10384 = vmatprep.subr.bf16.mxu0 0
  %10385 = vmatpush2.bf16.msra.mxu0 0
  %10386 = vmatprep.subr.bf16.mxu0 0
  %10387 = vmatpush2.bf16.msra.mxu0 0
  %10388 = vmatprep.subr.bf16.mxu0 0
  %10389 = vmatpush2.bf16.msra.mxu0 0
  %10390 = vmatprep.subr.bf16.mxu0 0
  %10391 = vmatpush2.bf16.msra.mxu0 0
  %10392 = vmatprep.subr.bf16.mxu0 0
  %10393 = vmatpush2.bf16.msra.mxu0 0
  %10394 = vmatprep.subr.bf16.mxu0 0
  %10395 = vmatpush2.bf16.msra.mxu0 0
  %10396 = vmatprep.mubr.bf16.mxu0 0
  %10397 = vmatmul.mubr.bf16.gmra.mxu0 %v10302
  %v10398 = vpop.f32.mrf.mxu0
  %v10399 = vadd.f32 0.0, %v10398
  %v10400 = vpop.f32.mrf.mxu0
  %v10401 = vpop.f32.mrf.mxu0
  %v10402 = vadd.f32 0.0, %v10401
  %v10403 = vpop.f32.mrf.mxu0
  %10404 = vmatprep.mubr.bf16.mxu0 0
  %10405 = vmatmul.mubr.bf16.gmra.mxu0 %v10305
  %v10406 = vpop.f32.mrf.mxu0
  %v10407 = vadd.f32 0.0, %v10406
  %v10408 = vpop.f32.mrf.mxu0
  %v10409 = vpop.f32.mrf.mxu0
  %v10410 = vadd.f32 0.0, %v10409
  %v10411 = vpop.f32.mrf.mxu0
  %10412 = vmatprep.mubr.bf16.mxu0 0
  %10413 = vmatmul.mubr.bf16.gmra.mxu0 %v10308
  %v10414 = vpop.f32.mrf.mxu0
  %v10415 = vadd.f32 0.0, %v10414
  %v10416 = vpop.f32.mrf.mxu0
  %v10417 = vpop.f32.mrf.mxu0
  %v10418 = vadd.f32 0.0, %v10417
  %v10419 = vpop.f32.mrf.mxu0
  %10420 = vmatprep.mubr.bf16.mxu0 0
  %10421 = vmatmul.mubr.bf16.gmra.mxu0 %v10311
  %v10422 = vpop.f32.mrf.mxu0
  %v10423 = vadd.f32 0.0, %v10422
  %v10424 = vpop.f32.mrf.mxu0
  %v10425 = vpop.f32.mrf.mxu0
  %v10426 = vadd.f32 0.0, %v10425
  %v10427 = vpop.f32.mrf.mxu0
  %10428 = vmatprep.mubr.bf16.mxu0 0
  %10429 = vmatmul.mubr.bf16.gmra.mxu0 %v10314
  %v10430 = vpop.f32.mrf.mxu0
  %v10431 = vadd.f32 0.0, %v10430
  %v10432 = vpop.f32.mrf.mxu0
  %v10433 = vpop.f32.mrf.mxu0
  %v10434 = vadd.f32 0.0, %v10433
  %v10435 = vpop.f32.mrf.mxu0
  %10436 = vmatprep.mubr.bf16.mxu0 0
  %10437 = vmatmul.mubr.bf16.gmra.mxu0 %v10317
  %v10438 = vpop.f32.mrf.mxu0
  %v10439 = vadd.f32 0.0, %v10438
  %v10440 = vpop.f32.mrf.mxu0
  %v10441 = vpop.f32.mrf.mxu0
  %v10442 = vadd.f32 0.0, %v10441
  %v10443 = vpop.f32.mrf.mxu0
  %10444 = vmatprep.mubr.bf16.mxu0 0
  %10445 = vmatmul.mubr.bf16.gmra.mxu0 %v10320
  %v10446 = vpop.f32.mrf.mxu0
  %v10447 = vadd.f32 0.0, %v10446
  %v10448 = vpop.f32.mrf.mxu0
  %v10449 = vpop.f32.mrf.mxu0
  %v10450 = vadd.f32 0.0, %v10449
  %v10451 = vpop.f32.mrf.mxu0
  %10452 = vmatprep.mubr.bf16.mxu0 0
  %10453 = vmatmul.mubr.bf16.gmra.mxu0 %v10323
  %v10454 = vpop.f32.mrf.mxu0
  %v10455 = vadd.f32 0.0, %v10454
  %v10456 = vpop.f32.mrf.mxu0
  %v10457 = vpop.f32.mrf.mxu0
  %v10458 = vadd.f32 0.0, %v10457
  %v10459 = vpop.f32.mrf.mxu0
  %10460 = vmatprep.mubr.bf16.mxu0 0
  %10461 = vmatmul.mubr.bf16.gmra.mxu0 %v10326
  %v10462 = vpop.f32.mrf.mxu0
  %v10463 = vadd.f32 0.0, %v10462
  %v10464 = vpop.f32.mrf.mxu0
  %v10465 = vpop.f32.mrf.mxu0
  %v10466 = vadd.f32 0.0, %v10465
  %v10467 = vpop.f32.mrf.mxu0
  %10468 = vmatprep.mubr.bf16.mxu0 0
  %10469 = vmatmul.mubr.bf16.gmra.mxu0 %v10329
  %v10470 = vpop.f32.mrf.mxu0
  %v10471 = vadd.f32 0.0, %v10470
  %v10472 = vpop.f32.mrf.mxu0
  %v10473 = vpop.f32.mrf.mxu0
  %v10474 = vadd.f32 0.0, %v10473
  %v10475 = vpop.f32.mrf.mxu0
  %10476 = vmatprep.mubr.bf16.mxu0 0
  %10477 = vmatmul.mubr.bf16.gmra.mxu0 %v10332
  %v10478 = vpop.f32.mrf.mxu0
  %v10479 = vadd.f32 0.0, %v10478
  %v10480 = vpop.f32.mrf.mxu0
  %v10481 = vpop.f32.mrf.mxu0
  %v10482 = vadd.f32 0.0, %v10481
  %v10483 = vpop.f32.mrf.mxu0
  %10484 = vmatprep.mubr.bf16.mxu0 0
  %10485 = vmatmul.mubr.bf16.gmra.mxu0 %v10335
  %v10486 = vpop.f32.mrf.mxu0
  %v10487 = vadd.f32 0.0, %v10486
  %v10488 = vpop.f32.mrf.mxu0
  %v10489 = vpop.f32.mrf.mxu0
  %v10490 = vadd.f32 0.0, %v10489
  %v10491 = vpop.f32.mrf.mxu0
  %10492 = vmatprep.mubr.bf16.mxu0 0
  %10493 = vmatmul.mubr.bf16.gmra.mxu0 %v10338
  %v10494 = vpop.f32.mrf.mxu0
  %v10495 = vadd.f32 0.0, %v10494
  %v10496 = vpop.f32.mrf.mxu0
  %v10497 = vpop.f32.mrf.mxu0
  %v10498 = vadd.f32 0.0, %v10497
  %v10499 = vpop.f32.mrf.mxu0
  %10500 = vmatprep.mubr.bf16.mxu0 0
  %10501 = vmatmul.mubr.bf16.gmra.mxu0 %v10341
  %v10502 = vpop.f32.mrf.mxu0
  %v10503 = vadd.f32 0.0, %v10502
  %v10504 = vpop.f32.mrf.mxu0
  %v10505 = vpop.f32.mrf.mxu0
  %v10506 = vadd.f32 0.0, %v10505
  %v10507 = vpop.f32.mrf.mxu0
  %10508 = vmatprep.mubr.bf16.mxu0 0
  %10509 = vmatmul.mubr.bf16.gmra.mxu0 %v10344
  %v10510 = vpop.f32.mrf.mxu0
  %v10511 = vadd.f32 0.0, %v10510
  %v10512 = vpop.f32.mrf.mxu0
  %v10513 = vpop.f32.mrf.mxu0
  %v10514 = vadd.f32 0.0, %v10513
  %v10515 = vpop.f32.mrf.mxu0
  %10516 = vmatprep.mubr.bf16.mxu0 0
  %10517 = vmatmul.mubr.bf16.gmra.mxu0 %v10347
  %v10518 = vpop.f32.mrf.mxu0
  %v10519 = vadd.f32 0.0, %v10518
  %v10520 = vpop.f32.mrf.mxu0
  %v10521 = vpop.f32.mrf.mxu0
  %v10522 = vadd.f32 0.0, %v10521
  %v10523 = vpop.f32.mrf.mxu0
  %10524 = vmatprep.mubr.bf16.mxu0 0
  %10525 = vmatmul.mubr.bf16.gmra.mxu0 %v10350
  %v10526 = vpop.f32.mrf.mxu0
  %v10527 = vadd.f32 0.0, %v10526
  %v10528 = vpop.f32.mrf.mxu0
  %v10529 = vpop.f32.mrf.mxu0
  %v10530 = vadd.f32 0.0, %v10529
  %v10531 = vpop.f32.mrf.mxu0
  %10532 = vmatprep.mubr.bf16.mxu0 0
  %10533 = vmatmul.mubr.bf16.gmra.mxu0 %v10353
  %v10534 = vpop.f32.mrf.mxu0
  %v10535 = vadd.f32 0.0, %v10534
  %v10536 = vpop.f32.mrf.mxu0
  %v10537 = vpop.f32.mrf.mxu0
  %v10538 = vadd.f32 0.0, %v10537
  %v10539 = vpop.f32.mrf.mxu0
  %10540 = vmatprep.mubr.bf16.mxu0 0
  %10541 = vmatmul.mubr.bf16.gmra.mxu0 %v10356
  %v10542 = vpop.f32.mrf.mxu0
  %v10543 = vadd.f32 0.0, %v10542
  %v10544 = vpop.f32.mrf.mxu0
  %v10545 = vpop.f32.mrf.mxu0
  %v10546 = vadd.f32 0.0, %v10545
  %v10547 = vpop.f32.mrf.mxu0
  %10548 = vmatprep.mubr.bf16.mxu0 0
  %10549 = vmatmul.mubr.bf16.gmra.mxu0 %v10359
  %v10550 = vpop.f32.mrf.mxu0
  %v10551 = vadd.f32 0.0, %v10550
  %v10552 = vpop.f32.mrf.mxu0
  %v10553 = vpop.f32.mrf.mxu0
  %v10554 = vadd.f32 0.0, %v10553
  %v10555 = vpop.f32.mrf.mxu0
  %10556 = vmatprep.mubr.bf16.mxu0 0
  %10557 = vmatmul.mubr.bf16.gmra.mxu0 %v10362
  %v10558 = vpop.f32.mrf.mxu0
  %v10559 = vadd.f32 0.0, %v10558
  %v10560 = vpop.f32.mrf.mxu0
  %v10561 = vpop.f32.mrf.mxu0
  %v10562 = vpop.f32.mrf.mxu0
  %10563 = vdwg.mxu0
  %v10564 = vadd.f32 %v10182, %v10399
  %v10565 = vadd.f32 %v10183, %v10402
  %v10566 = vadd.f32 %v10184, %v10407
  %v10567 = vadd.f32 %v10185, %v10410
  %v10568 = vadd.f32 %v10186, %v10415
  %v10569 = vadd.f32 %v10187, %v10418
  %v10570 = vadd.f32 %v10188, %v10423
  %v10571 = vadd.f32 %v10189, %v10426
  %v10572 = vadd.f32 %v10190, %v10431
  %v10573 = vadd.f32 %v10191, %v10434
  %v10574 = vadd.f32 %v10192, %v10439
  %v10575 = vadd.f32 %v10193, %v10442
  %v10576 = vadd.f32 %v10194, %v10447
  %v10577 = vadd.f32 %v10195, %v10450
  %v10578 = vadd.f32 %v10196, %v10455
  %v10579 = vadd.f32 %v10197, %v10458
  %v10580 = vadd.f32 %v10198, %v10463
  %v10581 = vadd.f32 %v10199, %v10466
  %v10582 = vadd.f32 %v10200, %v10471
  %v10583 = vadd.f32 %v10201, %v10474
  %v10584 = vadd.f32 %v10202, %v10479
  %v10585 = vadd.f32 %v10203, %v10482
  %v10586 = vadd.f32 %v10204, %v10487
  %v10587 = vadd.f32 %v10205, %v10490
  %v10588 = vadd.f32 %v10206, %v10495
  %v10589 = vadd.f32 %v10207, %v10498
  %v10590 = vadd.f32 %v10208, %v10503
  %v10591 = vadd.f32 %v10209, %v10506
  %v10592 = vadd.f32 %v10210, %v10511
  %v10593 = vadd.f32 %v10211, %v10514
  %v10594 = vadd.f32 %v10212, %v10519
  %v10595 = vadd.f32 %v10213, %v10522
  %v10596 = vadd.f32 %v10214, %v10527
  %v10597 = vadd.f32 %v10215, %v10530
  %v10598 = vadd.f32 %v10216, %v10535
  %v10599 = vadd.f32 %v10217, %v10538
  %v10600 = vadd.f32 %v10218, %v10543
  %v10601 = vadd.f32 %v10219, %v10546
  %v10602 = vadd.f32 %v10220, %v10551
  %v10603 = vadd.f32 %v10221, %v10554
  %v10604 = vadd.f32 %v10222, %v10559
  %v10605 = vld [vmem:[%s8 + $0x80] sm:$0xf]
  %v10606 = vld [vmem:[%s8 + $0x84] sm:$0xf]
  %v10607 = vld [vmem:[%s8 + $0x88] sm:$0xf]
  %v10608 = vld [vmem:[%s8 + $0x8c] sm:$0xf]
  %10609 = vrot.lane.b32.xlu0 %v9054, 32
  %v10610 = vpop.permute.xlu0 %10609
  %10611 = vrot.lane.b32.xlu0 %v9055, 32
  %v10612 = vpop.permute.xlu0 %10611
  %10613 = vrot.lane.b32.xlu0 %v9056, 32
  %v10614 = vpop.permute.xlu0 %10613
  %10615 = vrot.lane.b32.xlu0 %v9057, 32
  %v10616 = vpop.permute.xlu0 %10615
  %10617 = vrot.lane.b32.xlu0 %v9058, 32
  %v10618 = vpop.permute.xlu0 %10617
  %10619 = vrot.lane.b32.xlu0 %v9059, 32
  %v10620 = vpop.permute.xlu0 %10619
  %10621 = vrot.lane.b32.xlu0 %v9060, 32
  %v10622 = vpop.permute.xlu0 %10621
  %10623 = vrot.lane.b32.xlu0 %v9061, 32
  %v10624 = vpop.permute.xlu0 %10623
  %10625 = vrot.lane.b32.xlu0 %v9062, 32
  %v10626 = vpop.permute.xlu0 %10625
  %10627 = vrot.lane.b32.xlu0 %v9063, 32
  %v10628 = vpop.permute.xlu0 %10627
  %10629 = vrot.lane.b32.xlu0 %v9064, 32
  %v10630 = vpop.permute.xlu0 %10629
  %10631 = vrot.lane.b32.xlu0 %v9065, 32
  %v10632 = vpop.permute.xlu0 %10631
  %10633 = vrot.lane.b32.xlu0 %v9066, 32
  %v10634 = vpop.permute.xlu0 %10633
  %10635 = vrot.lane.b32.xlu0 %v9067, 32
  %v10636 = vpop.permute.xlu0 %10635
  %10637 = vrot.lane.b32.xlu0 %v9068, 32
  %v10638 = vpop.permute.xlu0 %10637
  %10639 = vrot.lane.b32.xlu0 %v9069, 32
  %v10640 = vpop.permute.xlu0 %10639
  %10641 = vrot.lane.b32.xlu0 %v9070, 32
  %v10642 = vpop.permute.xlu0 %10641
  %10643 = vrot.lane.b32.xlu0 %v9071, 32
  %v10644 = vpop.permute.xlu0 %10643
  %10645 = vrot.lane.b32.xlu0 %v9072, 32
  %v10646 = vpop.permute.xlu0 %10645
  %10647 = vrot.lane.b32.xlu0 %v9073, 32
  %v10648 = vpop.permute.xlu0 %10647
  %10649 = vrot.lane.b32.xlu0 %v9074, 32
  %v10650 = vpop.permute.xlu0 %10649
  %v10655 = vunpack.c.l.b16 %v10605
  %v10656 = vunpack.c.l.b16 %v10606
  %v10657 = vunpack.c.l.b16 %v10607
  %v10658 = vunpack.c.l.b16 %v10608
  %v10659 = vpack.c.b16 %v10656, %v10655
  %v10660 = vpack.c.b16 %v10658, %v10657
  %v10664 = vsel %vm1117, %v10610, 0
  %v10667 = vsel %vm1117, %v10612, 0
  %v10670 = vsel %vm1117, %v10614, 0
  %v10673 = vsel %vm1117, %v10616, 0
  %v10676 = vsel %vm1117, %v10618, 0
  %v10679 = vsel %vm1117, %v10620, 0
  %v10682 = vsel %vm1117, %v10622, 0
  %v10685 = vsel %vm1117, %v10624, 0
  %v10688 = vsel %vm1117, %v10626, 0
  %v10691 = vsel %vm1117, %v10628, 0
  %v10694 = vsel %vm1117, %v10630, 0
  %v10697 = vsel %vm1117, %v10632, 0
  %v10700 = vsel %vm1117, %v10634, 0
  %v10703 = vsel %vm1117, %v10636, 0
  %v10706 = vsel %vm1117, %v10638, 0
  %v10709 = vsel %vm1117, %v10640, 0
  %v10712 = vsel %vm1117, %v10642, 0
  %v10715 = vsel %vm1117, %v10644, 0
  %v10718 = vsel %vm1117, %v10646, 0
  %v10721 = vsel %vm1117, %v10648, 0
  %v10724 = vsel %vm1117, %v10650, 0
  %10726 = vmatprep.subr.bf16.mxu0 0
  %10727 = vmatpush1.bf16.msra.mxu0 0
  %10728 = vmatprep.subr.bf16.mxu0 0
  %10729 = vmatpush1.bf16.msra.mxu0 0
  %10730 = vmatprep.subr.bf16.mxu0 0
  %10731 = vmatpush1.bf16.msra.mxu0 0
  %10732 = vmatprep.subr.bf16.mxu0 0
  %10733 = vmatpush1.bf16.msra.mxu0 0
  %10734 = vmatprep.subr.bf16.mxu0 0
  %10735 = vmatpush1.bf16.msra.mxu0 0
  %10736 = vmatprep.subr.bf16.mxu0 0
  %10737 = vmatpush1.bf16.msra.mxu0 0
  %10738 = vmatprep.subr.bf16.mxu0 0
  %10739 = vmatpush1.bf16.msra.mxu0 %v10660
  %10740 = vmatprep.subr.bf16.mxu0 0
  %10741 = vmatpush1.bf16.msra.mxu0 %v10659
  %10742 = vmatprep.subr.bf16.mxu0 0
  %10743 = vmatpush2.bf16.msra.mxu0 0
  %10744 = vmatprep.subr.bf16.mxu0 0
  %10745 = vmatpush2.bf16.msra.mxu0 0
  %10746 = vmatprep.subr.bf16.mxu0 0
  %10747 = vmatpush2.bf16.msra.mxu0 0
  %10748 = vmatprep.subr.bf16.mxu0 0
  %10749 = vmatpush2.bf16.msra.mxu0 0
  %10750 = vmatprep.subr.bf16.mxu0 0
  %10751 = vmatpush2.bf16.msra.mxu0 0
  %10752 = vmatprep.subr.bf16.mxu0 0
  %10753 = vmatpush2.bf16.msra.mxu0 0
  %10754 = vmatprep.subr.bf16.mxu0 0
  %10755 = vmatpush2.bf16.msra.mxu0 0
  %10756 = vmatprep.subr.bf16.mxu0 0
  %10757 = vmatpush2.bf16.msra.mxu0 0
  %10758 = vmatprep.mubr.bf16.mxu0 0
  %10759 = vmatmul.mubr.bf16.gmra.mxu0 %v10664
  %v10760 = vpop.f32.mrf.mxu0
  %v10761 = vadd.f32 0.0, %v10760
  %v10762 = vpop.f32.mrf.mxu0
  %v10763 = vpop.f32.mrf.mxu0
  %v10764 = vadd.f32 0.0, %v10763
  %v10765 = vpop.f32.mrf.mxu0
  %10766 = vmatprep.mubr.bf16.mxu0 0
  %10767 = vmatmul.mubr.bf16.gmra.mxu0 %v10667
  %v10768 = vpop.f32.mrf.mxu0
  %v10769 = vadd.f32 0.0, %v10768
  %v10770 = vpop.f32.mrf.mxu0
  %v10771 = vpop.f32.mrf.mxu0
  %v10772 = vadd.f32 0.0, %v10771
  %v10773 = vpop.f32.mrf.mxu0
  %10774 = vmatprep.mubr.bf16.mxu0 0
  %10775 = vmatmul.mubr.bf16.gmra.mxu0 %v10670
  %v10776 = vpop.f32.mrf.mxu0
  %v10777 = vadd.f32 0.0, %v10776
  %v10778 = vpop.f32.mrf.mxu0
  %v10779 = vpop.f32.mrf.mxu0
  %v10780 = vadd.f32 0.0, %v10779
  %v10781 = vpop.f32.mrf.mxu0
  %10782 = vmatprep.mubr.bf16.mxu0 0
  %10783 = vmatmul.mubr.bf16.gmra.mxu0 %v10673
  %v10784 = vpop.f32.mrf.mxu0
  %v10785 = vadd.f32 0.0, %v10784
  %v10786 = vpop.f32.mrf.mxu0
  %v10787 = vpop.f32.mrf.mxu0
  %v10788 = vadd.f32 0.0, %v10787
  %v10789 = vpop.f32.mrf.mxu0
  %10790 = vmatprep.mubr.bf16.mxu0 0
  %10791 = vmatmul.mubr.bf16.gmra.mxu0 %v10676
  %v10792 = vpop.f32.mrf.mxu0
  %v10793 = vadd.f32 0.0, %v10792
  %v10794 = vpop.f32.mrf.mxu0
  %v10795 = vpop.f32.mrf.mxu0
  %v10796 = vadd.f32 0.0, %v10795
  %v10797 = vpop.f32.mrf.mxu0
  %10798 = vmatprep.mubr.bf16.mxu0 0
  %10799 = vmatmul.mubr.bf16.gmra.mxu0 %v10679
  %v10800 = vpop.f32.mrf.mxu0
  %v10801 = vadd.f32 0.0, %v10800
  %v10802 = vpop.f32.mrf.mxu0
  %v10803 = vpop.f32.mrf.mxu0
  %v10804 = vadd.f32 0.0, %v10803
  %v10805 = vpop.f32.mrf.mxu0
  %10806 = vmatprep.mubr.bf16.mxu0 0
  %10807 = vmatmul.mubr.bf16.gmra.mxu0 %v10682
  %v10808 = vpop.f32.mrf.mxu0
  %v10809 = vadd.f32 0.0, %v10808
  %v10810 = vpop.f32.mrf.mxu0
  %v10811 = vpop.f32.mrf.mxu0
  %v10812 = vadd.f32 0.0, %v10811
  %v10813 = vpop.f32.mrf.mxu0
  %10814 = vmatprep.mubr.bf16.mxu0 0
  %10815 = vmatmul.mubr.bf16.gmra.mxu0 %v10685
  %v10816 = vpop.f32.mrf.mxu0
  %v10817 = vadd.f32 0.0, %v10816
  %v10818 = vpop.f32.mrf.mxu0
  %v10819 = vpop.f32.mrf.mxu0
  %v10820 = vadd.f32 0.0, %v10819
  %v10821 = vpop.f32.mrf.mxu0
  %10822 = vmatprep.mubr.bf16.mxu0 0
  %10823 = vmatmul.mubr.bf16.gmra.mxu0 %v10688
  %v10824 = vpop.f32.mrf.mxu0
  %v10825 = vadd.f32 0.0, %v10824
  %v10826 = vpop.f32.mrf.mxu0
  %v10827 = vpop.f32.mrf.mxu0
  %v10828 = vadd.f32 0.0, %v10827
  %v10829 = vpop.f32.mrf.mxu0
  %10830 = vmatprep.mubr.bf16.mxu0 0
  %10831 = vmatmul.mubr.bf16.gmra.mxu0 %v10691
  %v10832 = vpop.f32.mrf.mxu0
  %v10833 = vadd.f32 0.0, %v10832
  %v10834 = vpop.f32.mrf.mxu0
  %v10835 = vpop.f32.mrf.mxu0
  %v10836 = vadd.f32 0.0, %v10835
  %v10837 = vpop.f32.mrf.mxu0
  %10838 = vmatprep.mubr.bf16.mxu0 0
  %10839 = vmatmul.mubr.bf16.gmra.mxu0 %v10694
  %v10840 = vpop.f32.mrf.mxu0
  %v10841 = vadd.f32 0.0, %v10840
  %v10842 = vpop.f32.mrf.mxu0
  %v10843 = vpop.f32.mrf.mxu0
  %v10844 = vadd.f32 0.0, %v10843
  %v10845 = vpop.f32.mrf.mxu0
  %10846 = vmatprep.mubr.bf16.mxu0 0
  %10847 = vmatmul.mubr.bf16.gmra.mxu0 %v10697
  %v10848 = vpop.f32.mrf.mxu0
  %v10849 = vadd.f32 0.0, %v10848
  %v10850 = vpop.f32.mrf.mxu0
  %v10851 = vpop.f32.mrf.mxu0
  %v10852 = vadd.f32 0.0, %v10851
  %v10853 = vpop.f32.mrf.mxu0
  %10854 = vmatprep.mubr.bf16.mxu0 0
  %10855 = vmatmul.mubr.bf16.gmra.mxu0 %v10700
  %v10856 = vpop.f32.mrf.mxu0
  %v10857 = vadd.f32 0.0, %v10856
  %v10858 = vpop.f32.mrf.mxu0
  %v10859 = vpop.f32.mrf.mxu0
  %v10860 = vadd.f32 0.0, %v10859
  %v10861 = vpop.f32.mrf.mxu0
  %10862 = vmatprep.mubr.bf16.mxu0 0
  %10863 = vmatmul.mubr.bf16.gmra.mxu0 %v10703
  %v10864 = vpop.f32.mrf.mxu0
  %v10865 = vadd.f32 0.0, %v10864
  %v10866 = vpop.f32.mrf.mxu0
  %v10867 = vpop.f32.mrf.mxu0
  %v10868 = vadd.f32 0.0, %v10867
  %v10869 = vpop.f32.mrf.mxu0
  %10870 = vmatprep.mubr.bf16.mxu0 0
  %10871 = vmatmul.mubr.bf16.gmra.mxu0 %v10706
  %v10872 = vpop.f32.mrf.mxu0
  %v10873 = vadd.f32 0.0, %v10872
  %v10874 = vpop.f32.mrf.mxu0
  %v10875 = vpop.f32.mrf.mxu0
  %v10876 = vadd.f32 0.0, %v10875
  %v10877 = vpop.f32.mrf.mxu0
  %10878 = vmatprep.mubr.bf16.mxu0 0
  %10879 = vmatmul.mubr.bf16.gmra.mxu0 %v10709
  %v10880 = vpop.f32.mrf.mxu0
  %v10881 = vadd.f32 0.0, %v10880
  %v10882 = vpop.f32.mrf.mxu0
  %v10883 = vpop.f32.mrf.mxu0
  %v10884 = vadd.f32 0.0, %v10883
  %v10885 = vpop.f32.mrf.mxu0
  %10886 = vmatprep.mubr.bf16.mxu0 0
  %10887 = vmatmul.mubr.bf16.gmra.mxu0 %v10712
  %v10888 = vpop.f32.mrf.mxu0
  %v10889 = vadd.f32 0.0, %v10888
  %v10890 = vpop.f32.mrf.mxu0
  %v10891 = vpop.f32.mrf.mxu0
  %v10892 = vadd.f32 0.0, %v10891
  %v10893 = vpop.f32.mrf.mxu0
  %10894 = vmatprep.mubr.bf16.mxu0 0
  %10895 = vmatmul.mubr.bf16.gmra.mxu0 %v10715
  %v10896 = vpop.f32.mrf.mxu0
  %v10897 = vadd.f32 0.0, %v10896
  %v10898 = vpop.f32.mrf.mxu0
  %v10899 = vpop.f32.mrf.mxu0
  %v10900 = vadd.f32 0.0, %v10899
  %v10901 = vpop.f32.mrf.mxu0
  %10902 = vmatprep.mubr.bf16.mxu0 0
  %10903 = vmatmul.mubr.bf16.gmra.mxu0 %v10718
  %v10904 = vpop.f32.mrf.mxu0
  %v10905 = vadd.f32 0.0, %v10904
  %v10906 = vpop.f32.mrf.mxu0
  %v10907 = vpop.f32.mrf.mxu0
  %v10908 = vadd.f32 0.0, %v10907
  %v10909 = vpop.f32.mrf.mxu0
  %10910 = vmatprep.mubr.bf16.mxu0 0
  %10911 = vmatmul.mubr.bf16.gmra.mxu0 %v10721
  %v10912 = vpop.f32.mrf.mxu0
  %v10913 = vadd.f32 0.0, %v10912
  %v10914 = vpop.f32.mrf.mxu0
  %v10915 = vpop.f32.mrf.mxu0
  %v10916 = vadd.f32 0.0, %v10915
  %v10917 = vpop.f32.mrf.mxu0
  %10918 = vmatprep.mubr.bf16.mxu0 0
  %10919 = vmatmul.mubr.bf16.gmra.mxu0 %v10724
  %v10920 = vpop.f32.mrf.mxu0
  %v10921 = vadd.f32 0.0, %v10920
  %v10922 = vpop.f32.mrf.mxu0
  %v10923 = vpop.f32.mrf.mxu0
  %v10924 = vpop.f32.mrf.mxu0
  %10925 = vdwg.mxu0
  %v10926 = vadd.f32 %v10564, %v10761
  %v10927 = vadd.f32 %v10565, %v10764
  %v10928 = vadd.f32 %v10566, %v10769
  %v10929 = vadd.f32 %v10567, %v10772
  %v10930 = vadd.f32 %v10568, %v10777
  %v10931 = vadd.f32 %v10569, %v10780
  %v10932 = vadd.f32 %v10570, %v10785
  %v10933 = vadd.f32 %v10571, %v10788
  %v10934 = vadd.f32 %v10572, %v10793
  %v10935 = vadd.f32 %v10573, %v10796
  %v10936 = vadd.f32 %v10574, %v10801
  %v10937 = vadd.f32 %v10575, %v10804
  %v10938 = vadd.f32 %v10576, %v10809
  %v10939 = vadd.f32 %v10577, %v10812
  %v10940 = vadd.f32 %v10578, %v10817
  %v10941 = vadd.f32 %v10579, %v10820
  %v10942 = vadd.f32 %v10580, %v10825
  %v10943 = vadd.f32 %v10581, %v10828
  %v10944 = vadd.f32 %v10582, %v10833
  %v10945 = vadd.f32 %v10583, %v10836
  %v10946 = vadd.f32 %v10584, %v10841
  %v10947 = vadd.f32 %v10585, %v10844
  %v10948 = vadd.f32 %v10586, %v10849
  %v10949 = vadd.f32 %v10587, %v10852
  %v10950 = vadd.f32 %v10588, %v10857
  %v10951 = vadd.f32 %v10589, %v10860
  %v10952 = vadd.f32 %v10590, %v10865
  %v10953 = vadd.f32 %v10591, %v10868
  %v10954 = vadd.f32 %v10592, %v10873
  %v10955 = vadd.f32 %v10593, %v10876
  %v10956 = vadd.f32 %v10594, %v10881
  %v10957 = vadd.f32 %v10595, %v10884
  %v10958 = vadd.f32 %v10596, %v10889
  %v10959 = vadd.f32 %v10597, %v10892
  %v10960 = vadd.f32 %v10598, %v10897
  %v10961 = vadd.f32 %v10599, %v10900
  %v10962 = vadd.f32 %v10600, %v10905
  %v10963 = vadd.f32 %v10601, %v10908
  %v10964 = vadd.f32 %v10602, %v10913
  %v10965 = vadd.f32 %v10603, %v10916
  %v10966 = vadd.f32 %v10604, %v10921
  %v10967 = vld [vmem:[%s8 + $0x90] sm:$0xf]
  %v10968 = vld [vmem:[%s8 + $0x94] sm:$0xf]
  %v10969 = vld [vmem:[%s8 + $0x98] sm:$0xf]
  %v10970 = vld [vmem:[%s8 + $0x9c] sm:$0xf]
  %10971 = vrot.lane.b32.xlu0 %v9499, 64
  %v10972 = vpop.permute.xlu0 %10971
  %10973 = vrot.lane.b32.xlu0 %v9500, 64
  %v10974 = vpop.permute.xlu0 %10973
  %10975 = vrot.lane.b32.xlu0 %v9501, 64
  %v10976 = vpop.permute.xlu0 %10975
  %10977 = vrot.lane.b32.xlu0 %v9502, 64
  %v10978 = vpop.permute.xlu0 %10977
  %10979 = vrot.lane.b32.xlu0 %v9503, 64
  %v10980 = vpop.permute.xlu0 %10979
  %10981 = vrot.lane.b32.xlu0 %v9504, 64
  %v10982 = vpop.permute.xlu0 %10981
  %10983 = vrot.lane.b32.xlu0 %v9505, 64
  %v10984 = vpop.permute.xlu0 %10983
  %10985 = vrot.lane.b32.xlu0 %v9506, 64
  %v10986 = vpop.permute.xlu0 %10985
  %10987 = vrot.lane.b32.xlu0 %v9507, 64
  %v10988 = vpop.permute.xlu0 %10987
  %10989 = vrot.lane.b32.xlu0 %v9508, 64
  %v10990 = vpop.permute.xlu0 %10989
  %10991 = vrot.lane.b32.xlu0 %v9509, 64
  %v10992 = vpop.permute.xlu0 %10991
  %10993 = vrot.lane.b32.xlu0 %v9510, 64
  %v10994 = vpop.permute.xlu0 %10993
  %10995 = vrot.lane.b32.xlu0 %v9511, 64
  %v10996 = vpop.permute.xlu0 %10995
  %10997 = vrot.lane.b32.xlu0 %v9512, 64
  %v10998 = vpop.permute.xlu0 %10997
  %10999 = vrot.lane.b32.xlu0 %v9513, 64
  %v11000 = vpop.permute.xlu0 %10999
  %11001 = vrot.lane.b32.xlu0 %v9514, 64
  %v11002 = vpop.permute.xlu0 %11001
  %11003 = vrot.lane.b32.xlu0 %v9515, 64
  %v11004 = vpop.permute.xlu0 %11003
  %11005 = vrot.lane.b32.xlu0 %v9516, 64
  %v11006 = vpop.permute.xlu0 %11005
  %11007 = vrot.lane.b32.xlu0 %v9517, 64
  %v11008 = vpop.permute.xlu0 %11007
  %11009 = vrot.lane.b32.xlu0 %v9518, 64
  %v11010 = vpop.permute.xlu0 %11009
  %11011 = vrot.lane.b32.xlu0 %v9519, 64
  %v11012 = vpop.permute.xlu0 %11011
  %v11017 = vunpack.c.l.b16 %v10967
  %v11018 = vunpack.c.l.b16 %v10968
  %v11019 = vunpack.c.l.b16 %v10969
  %v11020 = vunpack.c.l.b16 %v10970
  %v11021 = vpack.c.b16 %v11018, %v11017
  %v11022 = vpack.c.b16 %v11020, %v11019
  %v11026 = vsel %vm1117, %v10972, 0
  %v11029 = vsel %vm1117, %v10974, 0
  %v11032 = vsel %vm1117, %v10976, 0
  %v11035 = vsel %vm1117, %v10978, 0
  %v11038 = vsel %vm1117, %v10980, 0
  %v11041 = vsel %vm1117, %v10982, 0
  %v11044 = vsel %vm1117, %v10984, 0
  %v11047 = vsel %vm1117, %v10986, 0
  %v11050 = vsel %vm1117, %v10988, 0
  %v11053 = vsel %vm1117, %v10990, 0
  %v11056 = vsel %vm1117, %v10992, 0
  %v11059 = vsel %vm1117, %v10994, 0
  %v11062 = vsel %vm1117, %v10996, 0
  %v11065 = vsel %vm1117, %v10998, 0
  %v11068 = vsel %vm1117, %v11000, 0
  %v11071 = vsel %vm1117, %v11002, 0
  %v11074 = vsel %vm1117, %v11004, 0
  %v11077 = vsel %vm1117, %v11006, 0
  %v11080 = vsel %vm1117, %v11008, 0
  %v11083 = vsel %vm1117, %v11010, 0
  %v11086 = vsel %vm1117, %v11012, 0
  %11088 = vmatprep.subr.bf16.mxu0 0
  %11089 = vmatpush1.bf16.msra.mxu0 0
  %11090 = vmatprep.subr.bf16.mxu0 0
  %11091 = vmatpush1.bf16.msra.mxu0 0
  %11092 = vmatprep.subr.bf16.mxu0 0
  %11093 = vmatpush1.bf16.msra.mxu0 0
  %11094 = vmatprep.subr.bf16.mxu0 0
  %11095 = vmatpush1.bf16.msra.mxu0 0
  %11096 = vmatprep.subr.bf16.mxu0 0
  %11097 = vmatpush1.bf16.msra.mxu0 0
  %11098 = vmatprep.subr.bf16.mxu0 0
  %11099 = vmatpush1.bf16.msra.mxu0 0
  %11100 = vmatprep.subr.bf16.mxu0 0
  %11101 = vmatpush1.bf16.msra.mxu0 %v11022
  %11102 = vmatprep.subr.bf16.mxu0 0
  %11103 = vmatpush1.bf16.msra.mxu0 %v11021
  %11104 = vmatprep.subr.bf16.mxu0 0
  %11105 = vmatpush2.bf16.msra.mxu0 0
  %11106 = vmatprep.subr.bf16.mxu0 0
  %11107 = vmatpush2.bf16.msra.mxu0 0
  %11108 = vmatprep.subr.bf16.mxu0 0
  %11109 = vmatpush2.bf16.msra.mxu0 0
  %11110 = vmatprep.subr.bf16.mxu0 0
  %11111 = vmatpush2.bf16.msra.mxu0 0
  %11112 = vmatprep.subr.bf16.mxu0 0
  %11113 = vmatpush2.bf16.msra.mxu0 0
  %11114 = vmatprep.subr.bf16.mxu0 0
  %11115 = vmatpush2.bf16.msra.mxu0 0
  %11116 = vmatprep.subr.bf16.mxu0 0
  %11117 = vmatpush2.bf16.msra.mxu0 0
  %11118 = vmatprep.subr.bf16.mxu0 0
  %11119 = vmatpush2.bf16.msra.mxu0 0
  %11120 = vmatprep.mubr.bf16.mxu0 0
  %11121 = vmatmul.mubr.bf16.gmra.mxu0 %v11026
  %v11122 = vpop.f32.mrf.mxu0
  %v11123 = vadd.f32 0.0, %v11122
  %v11124 = vpop.f32.mrf.mxu0
  %v11125 = vpop.f32.mrf.mxu0
  %v11126 = vadd.f32 0.0, %v11125
  %v11127 = vpop.f32.mrf.mxu0
  %11128 = vmatprep.mubr.bf16.mxu0 0
  %11129 = vmatmul.mubr.bf16.gmra.mxu0 %v11029
  %v11130 = vpop.f32.mrf.mxu0
  %v11131 = vadd.f32 0.0, %v11130
  %v11132 = vpop.f32.mrf.mxu0
  %v11133 = vpop.f32.mrf.mxu0
  %v11134 = vadd.f32 0.0, %v11133
  %v11135 = vpop.f32.mrf.mxu0
  %11136 = vmatprep.mubr.bf16.mxu0 0
  %11137 = vmatmul.mubr.bf16.gmra.mxu0 %v11032
  %v11138 = vpop.f32.mrf.mxu0
  %v11139 = vadd.f32 0.0, %v11138
  %v11140 = vpop.f32.mrf.mxu0
  %v11141 = vpop.f32.mrf.mxu0
  %v11142 = vadd.f32 0.0, %v11141
  %v11143 = vpop.f32.mrf.mxu0
  %11144 = vmatprep.mubr.bf16.mxu0 0
  %11145 = vmatmul.mubr.bf16.gmra.mxu0 %v11035
  %v11146 = vpop.f32.mrf.mxu0
  %v11147 = vadd.f32 0.0, %v11146
  %v11148 = vpop.f32.mrf.mxu0
  %v11149 = vpop.f32.mrf.mxu0
  %v11150 = vadd.f32 0.0, %v11149
  %v11151 = vpop.f32.mrf.mxu0
  %11152 = vmatprep.mubr.bf16.mxu0 0
  %11153 = vmatmul.mubr.bf16.gmra.mxu0 %v11038
  %v11154 = vpop.f32.mrf.mxu0
  %v11155 = vadd.f32 0.0, %v11154
  %v11156 = vpop.f32.mrf.mxu0
  %v11157 = vpop.f32.mrf.mxu0
  %v11158 = vadd.f32 0.0, %v11157
  %v11159 = vpop.f32.mrf.mxu0
  %11160 = vmatprep.mubr.bf16.mxu0 0
  %11161 = vmatmul.mubr.bf16.gmra.mxu0 %v11041
  %v11162 = vpop.f32.mrf.mxu0
  %v11163 = vadd.f32 0.0, %v11162
  %v11164 = vpop.f32.mrf.mxu0
  %v11165 = vpop.f32.mrf.mxu0
  %v11166 = vadd.f32 0.0, %v11165
  %v11167 = vpop.f32.mrf.mxu0
  %11168 = vmatprep.mubr.bf16.mxu0 0
  %11169 = vmatmul.mubr.bf16.gmra.mxu0 %v11044
  %v11170 = vpop.f32.mrf.mxu0
  %v11171 = vadd.f32 0.0, %v11170
  %v11172 = vpop.f32.mrf.mxu0
  %v11173 = vpop.f32.mrf.mxu0
  %v11174 = vadd.f32 0.0, %v11173
  %v11175 = vpop.f32.mrf.mxu0
  %11176 = vmatprep.mubr.bf16.mxu0 0
  %11177 = vmatmul.mubr.bf16.gmra.mxu0 %v11047
  %v11178 = vpop.f32.mrf.mxu0
  %v11179 = vadd.f32 0.0, %v11178
  %v11180 = vpop.f32.mrf.mxu0
  %v11181 = vpop.f32.mrf.mxu0
  %v11182 = vadd.f32 0.0, %v11181
  %v11183 = vpop.f32.mrf.mxu0
  %11184 = vmatprep.mubr.bf16.mxu0 0
  %11185 = vmatmul.mubr.bf16.gmra.mxu0 %v11050
  %v11186 = vpop.f32.mrf.mxu0
  %v11187 = vadd.f32 0.0, %v11186
  %v11188 = vpop.f32.mrf.mxu0
  %v11189 = vpop.f32.mrf.mxu0
  %v11190 = vadd.f32 0.0, %v11189
  %v11191 = vpop.f32.mrf.mxu0
  %11192 = vmatprep.mubr.bf16.mxu0 0
  %11193 = vmatmul.mubr.bf16.gmra.mxu0 %v11053
  %v11194 = vpop.f32.mrf.mxu0
  %v11195 = vadd.f32 0.0, %v11194
  %v11196 = vpop.f32.mrf.mxu0
  %v11197 = vpop.f32.mrf.mxu0
  %v11198 = vadd.f32 0.0, %v11197
  %v11199 = vpop.f32.mrf.mxu0
  %11200 = vmatprep.mubr.bf16.mxu0 0
  %11201 = vmatmul.mubr.bf16.gmra.mxu0 %v11056
  %v11202 = vpop.f32.mrf.mxu0
  %v11203 = vadd.f32 0.0, %v11202
  %v11204 = vpop.f32.mrf.mxu0
  %v11205 = vpop.f32.mrf.mxu0
  %v11206 = vadd.f32 0.0, %v11205
  %v11207 = vpop.f32.mrf.mxu0
  %11208 = vmatprep.mubr.bf16.mxu0 0
  %11209 = vmatmul.mubr.bf16.gmra.mxu0 %v11059
  %v11210 = vpop.f32.mrf.mxu0
  %v11211 = vadd.f32 0.0, %v11210
  %v11212 = vpop.f32.mrf.mxu0
  %v11213 = vpop.f32.mrf.mxu0
  %v11214 = vadd.f32 0.0, %v11213
  %v11215 = vpop.f32.mrf.mxu0
  %11216 = vmatprep.mubr.bf16.mxu0 0
  %11217 = vmatmul.mubr.bf16.gmra.mxu0 %v11062
  %v11218 = vpop.f32.mrf.mxu0
  %v11219 = vadd.f32 0.0, %v11218
  %v11220 = vpop.f32.mrf.mxu0
  %v11221 = vpop.f32.mrf.mxu0
  %v11222 = vadd.f32 0.0, %v11221
  %v11223 = vpop.f32.mrf.mxu0
  %11224 = vmatprep.mubr.bf16.mxu0 0
  %11225 = vmatmul.mubr.bf16.gmra.mxu0 %v11065
  %v11226 = vpop.f32.mrf.mxu0
  %v11227 = vadd.f32 0.0, %v11226
  %v11228 = vpop.f32.mrf.mxu0
  %v11229 = vpop.f32.mrf.mxu0
  %v11230 = vadd.f32 0.0, %v11229
  %v11231 = vpop.f32.mrf.mxu0
  %11232 = vmatprep.mubr.bf16.mxu0 0
  %11233 = vmatmul.mubr.bf16.gmra.mxu0 %v11068
  %v11234 = vpop.f32.mrf.mxu0
  %v11235 = vadd.f32 0.0, %v11234
  %v11236 = vpop.f32.mrf.mxu0
  %v11237 = vpop.f32.mrf.mxu0
  %v11238 = vadd.f32 0.0, %v11237
  %v11239 = vpop.f32.mrf.mxu0
  %11240 = vmatprep.mubr.bf16.mxu0 0
  %11241 = vmatmul.mubr.bf16.gmra.mxu0 %v11071
  %v11242 = vpop.f32.mrf.mxu0
  %v11243 = vadd.f32 0.0, %v11242
  %v11244 = vpop.f32.mrf.mxu0
  %v11245 = vpop.f32.mrf.mxu0
  %v11246 = vadd.f32 0.0, %v11245
  %v11247 = vpop.f32.mrf.mxu0
  %11248 = vmatprep.mubr.bf16.mxu0 0
  %11249 = vmatmul.mubr.bf16.gmra.mxu0 %v11074
  %v11250 = vpop.f32.mrf.mxu0
  %v11251 = vadd.f32 0.0, %v11250
  %v11252 = vpop.f32.mrf.mxu0
  %v11253 = vpop.f32.mrf.mxu0
  %v11254 = vadd.f32 0.0, %v11253
  %v11255 = vpop.f32.mrf.mxu0
  %11256 = vmatprep.mubr.bf16.mxu0 0
  %11257 = vmatmul.mubr.bf16.gmra.mxu0 %v11077
  %v11258 = vpop.f32.mrf.mxu0
  %v11259 = vadd.f32 0.0, %v11258
  %v11260 = vpop.f32.mrf.mxu0
  %v11261 = vpop.f32.mrf.mxu0
  %v11262 = vadd.f32 0.0, %v11261
  %v11263 = vpop.f32.mrf.mxu0
  %11264 = vmatprep.mubr.bf16.mxu0 0
  %11265 = vmatmul.mubr.bf16.gmra.mxu0 %v11080
  %v11266 = vpop.f32.mrf.mxu0
  %v11267 = vadd.f32 0.0, %v11266
  %v11268 = vpop.f32.mrf.mxu0
  %v11269 = vpop.f32.mrf.mxu0
  %v11270 = vadd.f32 0.0, %v11269
  %v11271 = vpop.f32.mrf.mxu0
  %11272 = vmatprep.mubr.bf16.mxu0 0
  %11273 = vmatmul.mubr.bf16.gmra.mxu0 %v11083
  %v11274 = vpop.f32.mrf.mxu0
  %v11275 = vadd.f32 0.0, %v11274
  %v11276 = vpop.f32.mrf.mxu0
  %v11277 = vpop.f32.mrf.mxu0
  %v11278 = vadd.f32 0.0, %v11277
  %v11279 = vpop.f32.mrf.mxu0
  %11280 = vmatprep.mubr.bf16.mxu0 0
  %11281 = vmatmul.mubr.bf16.gmra.mxu0 %v11086
  %v11282 = vpop.f32.mrf.mxu0
  %v11283 = vadd.f32 0.0, %v11282
  %v11284 = vpop.f32.mrf.mxu0
  %v11285 = vpop.f32.mrf.mxu0
  %v11286 = vpop.f32.mrf.mxu0
  %11287 = vdwg.mxu0
  %v11288 = vadd.f32 %v10926, %v11123
  %v11289 = vadd.f32 %v10927, %v11126
  %v11290 = vadd.f32 %v10928, %v11131
  %v11291 = vadd.f32 %v10929, %v11134
  %v11292 = vadd.f32 %v10930, %v11139
  %v11293 = vadd.f32 %v10931, %v11142
  %v11294 = vadd.f32 %v10932, %v11147
  %v11295 = vadd.f32 %v10933, %v11150
  %v11296 = vadd.f32 %v10934, %v11155
  %v11297 = vadd.f32 %v10935, %v11158
  %v11298 = vadd.f32 %v10936, %v11163
  %v11299 = vadd.f32 %v10937, %v11166
  %v11300 = vadd.f32 %v10938, %v11171
  %v11301 = vadd.f32 %v10939, %v11174
  %v11302 = vadd.f32 %v10940, %v11179
  %v11303 = vadd.f32 %v10941, %v11182
  %v11304 = vadd.f32 %v10942, %v11187
  %v11305 = vadd.f32 %v10943, %v11190
  %v11306 = vadd.f32 %v10944, %v11195
  %v11307 = vadd.f32 %v10945, %v11198
  %v11308 = vadd.f32 %v10946, %v11203
  %v11309 = vadd.f32 %v10947, %v11206
  %v11310 = vadd.f32 %v10948, %v11211
  %v11311 = vadd.f32 %v10949, %v11214
  %v11312 = vadd.f32 %v10950, %v11219
  %v11313 = vadd.f32 %v10951, %v11222
  %v11314 = vadd.f32 %v10952, %v11227
  %v11315 = vadd.f32 %v10953, %v11230
  %v11316 = vadd.f32 %v10954, %v11235
  %v11317 = vadd.f32 %v10955, %v11238
  %v11318 = vadd.f32 %v10956, %v11243
  %v11319 = vadd.f32 %v10957, %v11246
  %v11320 = vadd.f32 %v10958, %v11251
  %v11321 = vadd.f32 %v10959, %v11254
  %v11322 = vadd.f32 %v10960, %v11259
  %v11323 = vadd.f32 %v10961, %v11262
  %v11324 = vadd.f32 %v10962, %v11267
  %v11325 = vadd.f32 %v10963, %v11270
  %v11326 = vadd.f32 %v10964, %v11275
  %v11327 = vadd.f32 %v10965, %v11278
  %v11328 = vadd.f32 %v10966, %v11283
  %v11329 = vld [vmem:[%s8 + $0xa0] sm:$0xf]
  %v11330 = vld [vmem:[%s8 + $0xa4] sm:$0xf]
  %v11331 = vld [vmem:[%s8 + $0xa8] sm:$0xf]
  %v11332 = vld [vmem:[%s8 + $0xac] sm:$0xf]
  %11333 = vrot.lane.b32.xlu0 %v9499, 32
  %v11334 = vpop.permute.xlu0 %11333
  %11335 = vrot.lane.b32.xlu0 %v9500, 32
  %v11336 = vpop.permute.xlu0 %11335
  %11337 = vrot.lane.b32.xlu0 %v9501, 32
  %v11338 = vpop.permute.xlu0 %11337
  %11339 = vrot.lane.b32.xlu0 %v9502, 32
  %v11340 = vpop.permute.xlu0 %11339
  %11341 = vrot.lane.b32.xlu0 %v9503, 32
  %v11342 = vpop.permute.xlu0 %11341
  %11343 = vrot.lane.b32.xlu0 %v9504, 32
  %v11344 = vpop.permute.xlu0 %11343
  %11345 = vrot.lane.b32.xlu0 %v9505, 32
  %v11346 = vpop.permute.xlu0 %11345
  %11347 = vrot.lane.b32.xlu0 %v9506, 32
  %v11348 = vpop.permute.xlu0 %11347
  %11349 = vrot.lane.b32.xlu0 %v9507, 32
  %v11350 = vpop.permute.xlu0 %11349
  %11351 = vrot.lane.b32.xlu0 %v9508, 32
  %v11352 = vpop.permute.xlu0 %11351
  %11353 = vrot.lane.b32.xlu0 %v9509, 32
  %v11354 = vpop.permute.xlu0 %11353
  %11355 = vrot.lane.b32.xlu0 %v9510, 32
  %v11356 = vpop.permute.xlu0 %11355
  %11357 = vrot.lane.b32.xlu0 %v9511, 32
  %v11358 = vpop.permute.xlu0 %11357
  %11359 = vrot.lane.b32.xlu0 %v9512, 32
  %v11360 = vpop.permute.xlu0 %11359
  %11361 = vrot.lane.b32.xlu0 %v9513, 32
  %v11362 = vpop.permute.xlu0 %11361
  %11363 = vrot.lane.b32.xlu0 %v9514, 32
  %v11364 = vpop.permute.xlu0 %11363
  %11365 = vrot.lane.b32.xlu0 %v9515, 32
  %v11366 = vpop.permute.xlu0 %11365
  %11367 = vrot.lane.b32.xlu0 %v9516, 32
  %v11368 = vpop.permute.xlu0 %11367
  %11369 = vrot.lane.b32.xlu0 %v9517, 32
  %v11370 = vpop.permute.xlu0 %11369
  %11371 = vrot.lane.b32.xlu0 %v9518, 32
  %v11372 = vpop.permute.xlu0 %11371
  %11373 = vrot.lane.b32.xlu0 %v9519, 32
  %v11374 = vpop.permute.xlu0 %11373
  %v11379 = vunpack.c.l.b16 %v11329
  %v11380 = vunpack.c.l.b16 %v11330
  %v11381 = vunpack.c.l.b16 %v11331
  %v11382 = vunpack.c.l.b16 %v11332
  %v11383 = vpack.c.b16 %v11380, %v11379
  %v11384 = vpack.c.b16 %v11382, %v11381
  %v11388 = vsel %vm1117, %v11334, 0
  %v11391 = vsel %vm1117, %v11336, 0
  %v11394 = vsel %vm1117, %v11338, 0
  %v11397 = vsel %vm1117, %v11340, 0
  %v11400 = vsel %vm1117, %v11342, 0
  %v11403 = vsel %vm1117, %v11344, 0
  %v11406 = vsel %vm1117, %v11346, 0
  %v11409 = vsel %vm1117, %v11348, 0
  %v11412 = vsel %vm1117, %v11350, 0
  %v11415 = vsel %vm1117, %v11352, 0
  %v11418 = vsel %vm1117, %v11354, 0
  %v11421 = vsel %vm1117, %v11356, 0
  %v11424 = vsel %vm1117, %v11358, 0
  %v11427 = vsel %vm1117, %v11360, 0
  %v11430 = vsel %vm1117, %v11362, 0
  %v11433 = vsel %vm1117, %v11364, 0
  %v11436 = vsel %vm1117, %v11366, 0
  %v11439 = vsel %vm1117, %v11368, 0
  %v11442 = vsel %vm1117, %v11370, 0
  %v11445 = vsel %vm1117, %v11372, 0
  %v11448 = vsel %vm1117, %v11374, 0
  %11450 = vmatprep.subr.bf16.mxu0 0
  %11451 = vmatpush1.bf16.msra.mxu0 0
  %11452 = vmatprep.subr.bf16.mxu0 0
  %11453 = vmatpush1.bf16.msra.mxu0 0
  %11454 = vmatprep.subr.bf16.mxu0 0
  %11455 = vmatpush1.bf16.msra.mxu0 0
  %11456 = vmatprep.subr.bf16.mxu0 0
  %11457 = vmatpush1.bf16.msra.mxu0 0
  %11458 = vmatprep.subr.bf16.mxu0 0
  %11459 = vmatpush1.bf16.msra.mxu0 0
  %11460 = vmatprep.subr.bf16.mxu0 0
  %11461 = vmatpush1.bf16.msra.mxu0 0
  %11462 = vmatprep.subr.bf16.mxu0 0
  %11463 = vmatpush1.bf16.msra.mxu0 %v11384
  %11464 = vmatprep.subr.bf16.mxu0 0
  %11465 = vmatpush1.bf16.msra.mxu0 %v11383
  %11466 = vmatprep.subr.bf16.mxu0 0
  %11467 = vmatpush2.bf16.msra.mxu0 0
  %11468 = vmatprep.subr.bf16.mxu0 0
  %11469 = vmatpush2.bf16.msra.mxu0 0
  %11470 = vmatprep.subr.bf16.mxu0 0
  %11471 = vmatpush2.bf16.msra.mxu0 0
  %11472 = vmatprep.subr.bf16.mxu0 0
  %11473 = vmatpush2.bf16.msra.mxu0 0
  %11474 = vmatprep.subr.bf16.mxu0 0
  %11475 = vmatpush2.bf16.msra.mxu0 0
  %11476 = vmatprep.subr.bf16.mxu0 0
  %11477 = vmatpush2.bf16.msra.mxu0 0
  %11478 = vmatprep.subr.bf16.mxu0 0
  %11479 = vmatpush2.bf16.msra.mxu0 0
  %11480 = vmatprep.subr.bf16.mxu0 0
  %11481 = vmatpush2.bf16.msra.mxu0 0
  %11482 = vmatprep.mubr.bf16.mxu0 0
  %11483 = vmatmul.mubr.bf16.gmra.mxu0 %v11388
  %v11484 = vpop.f32.mrf.mxu0
  %v11485 = vadd.f32 0.0, %v11484
  %v11486 = vpop.f32.mrf.mxu0
  %v11487 = vpop.f32.mrf.mxu0
  %v11488 = vadd.f32 0.0, %v11487
  %v11489 = vpop.f32.mrf.mxu0
  %11490 = vmatprep.mubr.bf16.mxu0 0
  %11491 = vmatmul.mubr.bf16.gmra.mxu0 %v11391
  %v11492 = vpop.f32.mrf.mxu0
  %v11493 = vadd.f32 0.0, %v11492
  %v11494 = vpop.f32.mrf.mxu0
  %v11495 = vpop.f32.mrf.mxu0
  %v11496 = vadd.f32 0.0, %v11495
  %v11497 = vpop.f32.mrf.mxu0
  %11498 = vmatprep.mubr.bf16.mxu0 0
  %11499 = vmatmul.mubr.bf16.gmra.mxu0 %v11394
  %v11500 = vpop.f32.mrf.mxu0
  %v11501 = vadd.f32 0.0, %v11500
  %v11502 = vpop.f32.mrf.mxu0
  %v11503 = vpop.f32.mrf.mxu0
  %v11504 = vadd.f32 0.0, %v11503
  %v11505 = vpop.f32.mrf.mxu0
  %11506 = vmatprep.mubr.bf16.mxu0 0
  %11507 = vmatmul.mubr.bf16.gmra.mxu0 %v11397
  %v11508 = vpop.f32.mrf.mxu0
  %v11509 = vadd.f32 0.0, %v11508
  %v11510 = vpop.f32.mrf.mxu0
  %v11511 = vpop.f32.mrf.mxu0
  %v11512 = vadd.f32 0.0, %v11511
  %v11513 = vpop.f32.mrf.mxu0
  %11514 = vmatprep.mubr.bf16.mxu0 0
  %11515 = vmatmul.mubr.bf16.gmra.mxu0 %v11400
  %v11516 = vpop.f32.mrf.mxu0
  %v11517 = vadd.f32 0.0, %v11516
  %v11518 = vpop.f32.mrf.mxu0
  %v11519 = vpop.f32.mrf.mxu0
  %v11520 = vadd.f32 0.0, %v11519
  %v11521 = vpop.f32.mrf.mxu0
  %11522 = vmatprep.mubr.bf16.mxu0 0
  %11523 = vmatmul.mubr.bf16.gmra.mxu0 %v11403
  %v11524 = vpop.f32.mrf.mxu0
  %v11525 = vadd.f32 0.0, %v11524
  %v11526 = vpop.f32.mrf.mxu0
  %v11527 = vpop.f32.mrf.mxu0
  %v11528 = vadd.f32 0.0, %v11527
  %v11529 = vpop.f32.mrf.mxu0
  %11530 = vmatprep.mubr.bf16.mxu0 0
  %11531 = vmatmul.mubr.bf16.gmra.mxu0 %v11406
  %v11532 = vpop.f32.mrf.mxu0
  %v11533 = vadd.f32 0.0, %v11532
  %v11534 = vpop.f32.mrf.mxu0
  %v11535 = vpop.f32.mrf.mxu0
  %v11536 = vadd.f32 0.0, %v11535
  %v11537 = vpop.f32.mrf.mxu0
  %11538 = vmatprep.mubr.bf16.mxu0 0
  %11539 = vmatmul.mubr.bf16.gmra.mxu0 %v11409
  %v11540 = vpop.f32.mrf.mxu0
  %v11541 = vadd.f32 0.0, %v11540
  %v11542 = vpop.f32.mrf.mxu0
  %v11543 = vpop.f32.mrf.mxu0
  %v11544 = vadd.f32 0.0, %v11543
  %v11545 = vpop.f32.mrf.mxu0
  %11546 = vmatprep.mubr.bf16.mxu0 0
  %11547 = vmatmul.mubr.bf16.gmra.mxu0 %v11412
  %v11548 = vpop.f32.mrf.mxu0
  %v11549 = vadd.f32 0.0, %v11548
  %v11550 = vpop.f32.mrf.mxu0
  %v11551 = vpop.f32.mrf.mxu0
  %v11552 = vadd.f32 0.0, %v11551
  %v11553 = vpop.f32.mrf.mxu0
  %11554 = vmatprep.mubr.bf16.mxu0 0
  %11555 = vmatmul.mubr.bf16.gmra.mxu0 %v11415
  %v11556 = vpop.f32.mrf.mxu0
  %v11557 = vadd.f32 0.0, %v11556
  %v11558 = vpop.f32.mrf.mxu0
  %v11559 = vpop.f32.mrf.mxu0
  %v11560 = vadd.f32 0.0, %v11559
  %v11561 = vpop.f32.mrf.mxu0
  %11562 = vmatprep.mubr.bf16.mxu0 0
  %11563 = vmatmul.mubr.bf16.gmra.mxu0 %v11418
  %v11564 = vpop.f32.mrf.mxu0
  %v11565 = vadd.f32 0.0, %v11564
  %v11566 = vpop.f32.mrf.mxu0
  %v11567 = vpop.f32.mrf.mxu0
  %v11568 = vadd.f32 0.0, %v11567
  %v11569 = vpop.f32.mrf.mxu0
  %11570 = vmatprep.mubr.bf16.mxu0 0
  %11571 = vmatmul.mubr.bf16.gmra.mxu0 %v11421
  %v11572 = vpop.f32.mrf.mxu0
  %v11573 = vadd.f32 0.0, %v11572
  %v11574 = vpop.f32.mrf.mxu0
  %v11575 = vpop.f32.mrf.mxu0
  %v11576 = vadd.f32 0.0, %v11575
  %v11577 = vpop.f32.mrf.mxu0
  %11578 = vmatprep.mubr.bf16.mxu0 0
  %11579 = vmatmul.mubr.bf16.gmra.mxu0 %v11424
  %v11580 = vpop.f32.mrf.mxu0
  %v11581 = vadd.f32 0.0, %v11580
  %v11582 = vpop.f32.mrf.mxu0
  %v11583 = vpop.f32.mrf.mxu0
  %v11584 = vadd.f32 0.0, %v11583
  %v11585 = vpop.f32.mrf.mxu0
  %11586 = vmatprep.mubr.bf16.mxu0 0
  %11587 = vmatmul.mubr.bf16.gmra.mxu0 %v11427
  %v11588 = vpop.f32.mrf.mxu0
  %v11589 = vadd.f32 0.0, %v11588
  %v11590 = vpop.f32.mrf.mxu0
  %v11591 = vpop.f32.mrf.mxu0
  %v11592 = vadd.f32 0.0, %v11591
  %v11593 = vpop.f32.mrf.mxu0
  %11594 = vmatprep.mubr.bf16.mxu0 0
  %11595 = vmatmul.mubr.bf16.gmra.mxu0 %v11430
  %v11596 = vpop.f32.mrf.mxu0
  %v11597 = vadd.f32 0.0, %v11596
  %v11598 = vpop.f32.mrf.mxu0
  %v11599 = vpop.f32.mrf.mxu0
  %v11600 = vadd.f32 0.0, %v11599
  %v11601 = vpop.f32.mrf.mxu0
  %11602 = vmatprep.mubr.bf16.mxu0 0
  %11603 = vmatmul.mubr.bf16.gmra.mxu0 %v11433
  %v11604 = vpop.f32.mrf.mxu0
  %v11605 = vadd.f32 0.0, %v11604
  %v11606 = vpop.f32.mrf.mxu0
  %v11607 = vpop.f32.mrf.mxu0
  %v11608 = vadd.f32 0.0, %v11607
  %v11609 = vpop.f32.mrf.mxu0
  %11610 = vmatprep.mubr.bf16.mxu0 0
  %11611 = vmatmul.mubr.bf16.gmra.mxu0 %v11436
  %v11612 = vpop.f32.mrf.mxu0
  %v11613 = vadd.f32 0.0, %v11612
  %v11614 = vpop.f32.mrf.mxu0
  %v11615 = vpop.f32.mrf.mxu0
  %v11616 = vadd.f32 0.0, %v11615
  %v11617 = vpop.f32.mrf.mxu0
  %11618 = vmatprep.mubr.bf16.mxu0 0
  %11619 = vmatmul.mubr.bf16.gmra.mxu0 %v11439
  %v11620 = vpop.f32.mrf.mxu0
  %v11621 = vadd.f32 0.0, %v11620
  %v11622 = vpop.f32.mrf.mxu0
  %v11623 = vpop.f32.mrf.mxu0
  %v11624 = vadd.f32 0.0, %v11623
  %v11625 = vpop.f32.mrf.mxu0
  %11626 = vmatprep.mubr.bf16.mxu0 0
  %11627 = vmatmul.mubr.bf16.gmra.mxu0 %v11442
  %v11628 = vpop.f32.mrf.mxu0
  %v11629 = vadd.f32 0.0, %v11628
  %v11630 = vpop.f32.mrf.mxu0
  %v11631 = vpop.f32.mrf.mxu0
  %v11632 = vadd.f32 0.0, %v11631
  %v11633 = vpop.f32.mrf.mxu0
  %11634 = vmatprep.mubr.bf16.mxu0 0
  %11635 = vmatmul.mubr.bf16.gmra.mxu0 %v11445
  %v11636 = vpop.f32.mrf.mxu0
  %v11637 = vadd.f32 0.0, %v11636
  %v11638 = vpop.f32.mrf.mxu0
  %v11639 = vpop.f32.mrf.mxu0
  %v11640 = vadd.f32 0.0, %v11639
  %v11641 = vpop.f32.mrf.mxu0
  %11642 = vmatprep.mubr.bf16.mxu0 0
  %11643 = vmatmul.mubr.bf16.gmra.mxu0 %v11448
  %v11644 = vpop.f32.mrf.mxu0
  %v11645 = vadd.f32 0.0, %v11644
  %v11646 = vpop.f32.mrf.mxu0
  %v11647 = vpop.f32.mrf.mxu0
  %v11648 = vpop.f32.mrf.mxu0
  %11649 = vdwg.mxu0
  %v11650 = vadd.f32 %v11288, %v11485
  %v11651 = vadd.f32 %v11289, %v11488
  %v11652 = vadd.f32 %v11290, %v11493
  %v11653 = vadd.f32 %v11291, %v11496
  %v11654 = vadd.f32 %v11292, %v11501
  %v11655 = vadd.f32 %v11293, %v11504
  %v11656 = vadd.f32 %v11294, %v11509
  %v11657 = vadd.f32 %v11295, %v11512
  %v11658 = vadd.f32 %v11296, %v11517
  %v11659 = vadd.f32 %v11297, %v11520
  %v11660 = vadd.f32 %v11298, %v11525
  %v11661 = vadd.f32 %v11299, %v11528
  %v11662 = vadd.f32 %v11300, %v11533
  %v11663 = vadd.f32 %v11301, %v11536
  %v11664 = vadd.f32 %v11302, %v11541
  %v11665 = vadd.f32 %v11303, %v11544
  %v11666 = vadd.f32 %v11304, %v11549
  %v11667 = vadd.f32 %v11305, %v11552
  %v11668 = vadd.f32 %v11306, %v11557
  %v11669 = vadd.f32 %v11307, %v11560
  %v11670 = vadd.f32 %v11308, %v11565
  %v11671 = vadd.f32 %v11309, %v11568
  %v11672 = vadd.f32 %v11310, %v11573
  %v11673 = vadd.f32 %v11311, %v11576
  %v11674 = vadd.f32 %v11312, %v11581
  %v11675 = vadd.f32 %v11313, %v11584
  %v11676 = vadd.f32 %v11314, %v11589
  %v11677 = vadd.f32 %v11315, %v11592
  %v11678 = vadd.f32 %v11316, %v11597
  %v11679 = vadd.f32 %v11317, %v11600
  %v11680 = vadd.f32 %v11318, %v11605
  %v11681 = vadd.f32 %v11319, %v11608
  %v11682 = vadd.f32 %v11320, %v11613
  %v11683 = vadd.f32 %v11321, %v11616
  %v11684 = vadd.f32 %v11322, %v11621
  %v11685 = vadd.f32 %v11323, %v11624
  %v11686 = vadd.f32 %v11324, %v11629
  %v11687 = vadd.f32 %v11325, %v11632
  %v11688 = vadd.f32 %v11326, %v11637
  %v11689 = vadd.f32 %v11327, %v11640
  %v11690 = vadd.f32 %v11328, %v11645
  %v11691 = vld [vmem:[%s8 + $0xb0] sm:$0xf]
  %v11692 = vld [vmem:[%s8 + $0xb4] sm:$0xf]
  %v11693 = vld [vmem:[%s8 + $0xb8] sm:$0xf]
  %v11694 = vld [vmem:[%s8 + $0xbc] sm:$0xf]
  %11716 = vrot.lane.b32.xlu0 %v10264, 64
  %v11717 = vpop.permute.xlu0 %11716
  %11718 = vrot.lane.b32.xlu0 %v10265, 64
  %v11719 = vpop.permute.xlu0 %11718
  %11720 = vrot.lane.b32.xlu0 %v10266, 64
  %v11721 = vpop.permute.xlu0 %11720
  %11722 = vrot.lane.b32.xlu0 %v10267, 64
  %v11723 = vpop.permute.xlu0 %11722
  %11724 = vrot.lane.b32.xlu0 %v10268, 64
  %v11725 = vpop.permute.xlu0 %11724
  %11726 = vrot.lane.b32.xlu0 %v10269, 64
  %v11727 = vpop.permute.xlu0 %11726
  %11728 = vrot.lane.b32.xlu0 %v10270, 64
  %v11729 = vpop.permute.xlu0 %11728
  %11730 = vrot.lane.b32.xlu0 %v10271, 64
  %v11731 = vpop.permute.xlu0 %11730
  %11732 = vrot.lane.b32.xlu0 %v10272, 64
  %v11733 = vpop.permute.xlu0 %11732
  %11734 = vrot.lane.b32.xlu0 %v10273, 64
  %v11735 = vpop.permute.xlu0 %11734
  %11736 = vrot.lane.b32.xlu0 %v10274, 64
  %v11737 = vpop.permute.xlu0 %11736
  %11738 = vrot.lane.b32.xlu0 %v10275, 64
  %v11739 = vpop.permute.xlu0 %11738
  %11740 = vrot.lane.b32.xlu0 %v10276, 64
  %v11741 = vpop.permute.xlu0 %11740
  %11742 = vrot.lane.b32.xlu0 %v10277, 64
  %v11743 = vpop.permute.xlu0 %11742
  %11744 = vrot.lane.b32.xlu0 %v10278, 64
  %v11745 = vpop.permute.xlu0 %11744
  %11746 = vrot.lane.b32.xlu0 %v10279, 64
  %v11747 = vpop.permute.xlu0 %11746
  %11748 = vrot.lane.b32.xlu0 %v10280, 64
  %v11749 = vpop.permute.xlu0 %11748
  %11750 = vrot.lane.b32.xlu0 %v10281, 64
  %v11751 = vpop.permute.xlu0 %11750
  %11752 = vrot.lane.b32.xlu0 %v10282, 64
  %v11753 = vpop.permute.xlu0 %11752
  %11754 = vrot.lane.b32.xlu0 %v10283, 64
  %v11755 = vpop.permute.xlu0 %11754
  %11756 = vrot.lane.b32.xlu0 %v10284, 64
  %v11757 = vpop.permute.xlu0 %11756
  %v11762 = vunpack.c.l.b16 %v11691
  %v11763 = vunpack.c.l.b16 %v11692
  %v11764 = vunpack.c.l.b16 %v11693
  %v11765 = vunpack.c.l.b16 %v11694
  %v11766 = vpack.c.b16 %v11763, %v11762
  %v11767 = vpack.c.b16 %v11765, %v11764
  %v11771 = vsel %vm1117, %v11717, 0
  %v11774 = vsel %vm1117, %v11719, 0
  %v11777 = vsel %vm1117, %v11721, 0
  %v11780 = vsel %vm1117, %v11723, 0
  %v11783 = vsel %vm1117, %v11725, 0
  %v11786 = vsel %vm1117, %v11727, 0
  %v11789 = vsel %vm1117, %v11729, 0
  %v11792 = vsel %vm1117, %v11731, 0
  %v11795 = vsel %vm1117, %v11733, 0
  %v11798 = vsel %vm1117, %v11735, 0
  %v11801 = vsel %vm1117, %v11737, 0
  %v11804 = vsel %vm1117, %v11739, 0
  %v11807 = vsel %vm1117, %v11741, 0
  %v11810 = vsel %vm1117, %v11743, 0
  %v11813 = vsel %vm1117, %v11745, 0
  %v11816 = vsel %vm1117, %v11747, 0
  %v11819 = vsel %vm1117, %v11749, 0
  %v11822 = vsel %vm1117, %v11751, 0
  %v11825 = vsel %vm1117, %v11753, 0
  %v11828 = vsel %vm1117, %v11755, 0
  %v11831 = vsel %vm1117, %v11757, 0
  %11833 = vmatprep.subr.bf16.mxu0 0
  %11834 = vmatpush1.bf16.msra.mxu0 0
  %11835 = vmatprep.subr.bf16.mxu0 0
  %11836 = vmatpush1.bf16.msra.mxu0 0
  %11837 = vmatprep.subr.bf16.mxu0 0
  %11838 = vmatpush1.bf16.msra.mxu0 0
  %11839 = vmatprep.subr.bf16.mxu0 0
  %11840 = vmatpush1.bf16.msra.mxu0 0
  %11841 = vmatprep.subr.bf16.mxu0 0
  %11842 = vmatpush1.bf16.msra.mxu0 0
  %11843 = vmatprep.subr.bf16.mxu0 0
  %11844 = vmatpush1.bf16.msra.mxu0 0
  %11845 = vmatprep.subr.bf16.mxu0 0
  %11846 = vmatpush1.bf16.msra.mxu0 %v11767
  %11847 = vmatprep.subr.bf16.mxu0 0
  %11848 = vmatpush1.bf16.msra.mxu0 %v11766
  %11849 = vmatprep.subr.bf16.mxu0 0
  %11850 = vmatpush2.bf16.msra.mxu0 0
  %11851 = vmatprep.subr.bf16.mxu0 0
  %11852 = vmatpush2.bf16.msra.mxu0 0
  %11853 = vmatprep.subr.bf16.mxu0 0
  %11854 = vmatpush2.bf16.msra.mxu0 0
  %11855 = vmatprep.subr.bf16.mxu0 0
  %11856 = vmatpush2.bf16.msra.mxu0 0
  %11857 = vmatprep.subr.bf16.mxu0 0
  %11858 = vmatpush2.bf16.msra.mxu0 0
  %11859 = vmatprep.subr.bf16.mxu0 0
  %11860 = vmatpush2.bf16.msra.mxu0 0
  %11861 = vmatprep.subr.bf16.mxu0 0
  %11862 = vmatpush2.bf16.msra.mxu0 0
  %11863 = vmatprep.subr.bf16.mxu0 0
  %11864 = vmatpush2.bf16.msra.mxu0 0
  %11865 = vmatprep.mubr.bf16.mxu0 0
  %11866 = vmatmul.mubr.bf16.gmra.mxu0 %v11771
  %v11867 = vpop.f32.mrf.mxu0
  %v11868 = vadd.f32 0.0, %v11867
  %v11869 = vpop.f32.mrf.mxu0
  %v11870 = vpop.f32.mrf.mxu0
  %v11871 = vadd.f32 0.0, %v11870
  %v11872 = vpop.f32.mrf.mxu0
  %11873 = vmatprep.mubr.bf16.mxu0 0
  %11874 = vmatmul.mubr.bf16.gmra.mxu0 %v11774
  %v11875 = vpop.f32.mrf.mxu0
  %v11876 = vadd.f32 0.0, %v11875
  %v11877 = vpop.f32.mrf.mxu0
  %v11878 = vpop.f32.mrf.mxu0
  %v11879 = vadd.f32 0.0, %v11878
  %v11880 = vpop.f32.mrf.mxu0
  %11881 = vmatprep.mubr.bf16.mxu0 0
  %11882 = vmatmul.mubr.bf16.gmra.mxu0 %v11777
  %v11883 = vpop.f32.mrf.mxu0
  %v11884 = vadd.f32 0.0, %v11883
  %v11885 = vpop.f32.mrf.mxu0
  %v11886 = vpop.f32.mrf.mxu0
  %v11887 = vadd.f32 0.0, %v11886
  %v11888 = vpop.f32.mrf.mxu0
  %11889 = vmatprep.mubr.bf16.mxu0 0
  %11890 = vmatmul.mubr.bf16.gmra.mxu0 %v11780
  %v11891 = vpop.f32.mrf.mxu0
  %v11892 = vadd.f32 0.0, %v11891
  %v11893 = vpop.f32.mrf.mxu0
  %v11894 = vpop.f32.mrf.mxu0
  %v11895 = vadd.f32 0.0, %v11894
  %v11896 = vpop.f32.mrf.mxu0
  %11897 = vmatprep.mubr.bf16.mxu0 0
  %11898 = vmatmul.mubr.bf16.gmra.mxu0 %v11783
  %v11899 = vpop.f32.mrf.mxu0
  %v11900 = vadd.f32 0.0, %v11899
  %v11901 = vpop.f32.mrf.mxu0
  %v11902 = vpop.f32.mrf.mxu0
  %v11903 = vadd.f32 0.0, %v11902
  %v11904 = vpop.f32.mrf.mxu0
  %11905 = vmatprep.mubr.bf16.mxu0 0
  %11906 = vmatmul.mubr.bf16.gmra.mxu0 %v11786
  %v11907 = vpop.f32.mrf.mxu0
  %v11908 = vadd.f32 0.0, %v11907
  %v11909 = vpop.f32.mrf.mxu0
  %v11910 = vpop.f32.mrf.mxu0
  %v11911 = vadd.f32 0.0, %v11910
  %v11912 = vpop.f32.mrf.mxu0
  %11913 = vmatprep.mubr.bf16.mxu0 0
  %11914 = vmatmul.mubr.bf16.gmra.mxu0 %v11789
  %v11915 = vpop.f32.mrf.mxu0
  %v11916 = vadd.f32 0.0, %v11915
  %v11917 = vpop.f32.mrf.mxu0
  %v11918 = vpop.f32.mrf.mxu0
  %v11919 = vadd.f32 0.0, %v11918
  %v11920 = vpop.f32.mrf.mxu0
  %11921 = vmatprep.mubr.bf16.mxu0 0
  %11922 = vmatmul.mubr.bf16.gmra.mxu0 %v11792
  %v11923 = vpop.f32.mrf.mxu0
  %v11924 = vadd.f32 0.0, %v11923
  %v11925 = vpop.f32.mrf.mxu0
  %v11926 = vpop.f32.mrf.mxu0
  %v11927 = vadd.f32 0.0, %v11926
  %v11928 = vpop.f32.mrf.mxu0
  %11929 = vmatprep.mubr.bf16.mxu0 0
  %11930 = vmatmul.mubr.bf16.gmra.mxu0 %v11795
  %v11931 = vpop.f32.mrf.mxu0
  %v11932 = vadd.f32 0.0, %v11931
  %v11933 = vpop.f32.mrf.mxu0
  %v11934 = vpop.f32.mrf.mxu0
  %v11935 = vadd.f32 0.0, %v11934
  %v11936 = vpop.f32.mrf.mxu0
  %11937 = vmatprep.mubr.bf16.mxu0 0
  %11938 = vmatmul.mubr.bf16.gmra.mxu0 %v11798
  %v11939 = vpop.f32.mrf.mxu0
  %v11940 = vadd.f32 0.0, %v11939
  %v11941 = vpop.f32.mrf.mxu0
  %v11942 = vpop.f32.mrf.mxu0
  %v11943 = vadd.f32 0.0, %v11942
  %v11944 = vpop.f32.mrf.mxu0
  %11945 = vmatprep.mubr.bf16.mxu0 0
  %11946 = vmatmul.mubr.bf16.gmra.mxu0 %v11801
  %v11947 = vpop.f32.mrf.mxu0
  %v11948 = vadd.f32 0.0, %v11947
  %v11949 = vpop.f32.mrf.mxu0
  %v11950 = vpop.f32.mrf.mxu0
  %v11951 = vadd.f32 0.0, %v11950
  %v11952 = vpop.f32.mrf.mxu0
  %11953 = vmatprep.mubr.bf16.mxu0 0
  %11954 = vmatmul.mubr.bf16.gmra.mxu0 %v11804
  %v11955 = vpop.f32.mrf.mxu0
  %v11956 = vadd.f32 0.0, %v11955
  %v11957 = vpop.f32.mrf.mxu0
  %v11958 = vpop.f32.mrf.mxu0
  %v11959 = vadd.f32 0.0, %v11958
  %v11960 = vpop.f32.mrf.mxu0
  %11961 = vmatprep.mubr.bf16.mxu0 0
  %11962 = vmatmul.mubr.bf16.gmra.mxu0 %v11807
  %v11963 = vpop.f32.mrf.mxu0
  %v11964 = vadd.f32 0.0, %v11963
  %v11965 = vpop.f32.mrf.mxu0
  %v11966 = vpop.f32.mrf.mxu0
  %v11967 = vadd.f32 0.0, %v11966
  %v11968 = vpop.f32.mrf.mxu0
  %11969 = vmatprep.mubr.bf16.mxu0 0
  %11970 = vmatmul.mubr.bf16.gmra.mxu0 %v11810
  %v11971 = vpop.f32.mrf.mxu0
  %v11972 = vadd.f32 0.0, %v11971
  %v11973 = vpop.f32.mrf.mxu0
  %v11974 = vpop.f32.mrf.mxu0
  %v11975 = vadd.f32 0.0, %v11974
  %v11976 = vpop.f32.mrf.mxu0
  %11977 = vmatprep.mubr.bf16.mxu0 0
  %11978 = vmatmul.mubr.bf16.gmra.mxu0 %v11813
  %v11979 = vpop.f32.mrf.mxu0
  %v11980 = vadd.f32 0.0, %v11979
  %v11981 = vpop.f32.mrf.mxu0
  %v11982 = vpop.f32.mrf.mxu0
  %v11983 = vadd.f32 0.0, %v11982
  %v11984 = vpop.f32.mrf.mxu0
  %11985 = vmatprep.mubr.bf16.mxu0 0
  %11986 = vmatmul.mubr.bf16.gmra.mxu0 %v11816
  %v11987 = vpop.f32.mrf.mxu0
  %v11988 = vadd.f32 0.0, %v11987
  %v11989 = vpop.f32.mrf.mxu0
  %v11990 = vpop.f32.mrf.mxu0
  %v11991 = vadd.f32 0.0, %v11990
  %v11992 = vpop.f32.mrf.mxu0
  %11993 = vmatprep.mubr.bf16.mxu0 0
  %11994 = vmatmul.mubr.bf16.gmra.mxu0 %v11819
  %v11995 = vpop.f32.mrf.mxu0
  %v11996 = vadd.f32 0.0, %v11995
  %v11997 = vpop.f32.mrf.mxu0
  %v11998 = vpop.f32.mrf.mxu0
  %v11999 = vadd.f32 0.0, %v11998
  %v12000 = vpop.f32.mrf.mxu0
  %12001 = vmatprep.mubr.bf16.mxu0 0
  %12002 = vmatmul.mubr.bf16.gmra.mxu0 %v11822
  %v12003 = vpop.f32.mrf.mxu0
  %v12004 = vadd.f32 0.0, %v12003
  %v12005 = vpop.f32.mrf.mxu0
  %v12006 = vpop.f32.mrf.mxu0
  %v12007 = vadd.f32 0.0, %v12006
  %v12008 = vpop.f32.mrf.mxu0
  %12009 = vmatprep.mubr.bf16.mxu0 0
  %12010 = vmatmul.mubr.bf16.gmra.mxu0 %v11825
  %v12011 = vpop.f32.mrf.mxu0
  %v12012 = vadd.f32 0.0, %v12011
  %v12013 = vpop.f32.mrf.mxu0
  %v12014 = vpop.f32.mrf.mxu0
  %v12015 = vadd.f32 0.0, %v12014
  %v12016 = vpop.f32.mrf.mxu0
  %12017 = vmatprep.mubr.bf16.mxu0 0
  %12018 = vmatmul.mubr.bf16.gmra.mxu0 %v11828
  %v12019 = vpop.f32.mrf.mxu0
  %v12020 = vadd.f32 0.0, %v12019
  %v12021 = vpop.f32.mrf.mxu0
  %v12022 = vpop.f32.mrf.mxu0
  %v12023 = vadd.f32 0.0, %v12022
  %v12024 = vpop.f32.mrf.mxu0
  %12025 = vmatprep.mubr.bf16.mxu0 0
  %12026 = vmatmul.mubr.bf16.gmra.mxu0 %v11831
  %v12027 = vpop.f32.mrf.mxu0
  %v12028 = vadd.f32 0.0, %v12027
  %v12029 = vpop.f32.mrf.mxu0
  %v12030 = vpop.f32.mrf.mxu0
  %v12031 = vpop.f32.mrf.mxu0
  %12032 = vdwg.mxu0
  %v12033 = vadd.f32 %v11650, %v11868
  %v12034 = vadd.f32 %v11651, %v11871
  %v12035 = vadd.f32 %v11652, %v11876
  %v12036 = vadd.f32 %v11653, %v11879
  %v12037 = vadd.f32 %v11654, %v11884
  %v12038 = vadd.f32 %v11655, %v11887
  %v12039 = vadd.f32 %v11656, %v11892
  %v12040 = vadd.f32 %v11657, %v11895
  %v12041 = vadd.f32 %v11658, %v11900
  %v12042 = vadd.f32 %v11659, %v11903
  %v12043 = vadd.f32 %v11660, %v11908
  %v12044 = vadd.f32 %v11661, %v11911
  %v12045 = vadd.f32 %v11662, %v11916
  %v12046 = vadd.f32 %v11663, %v11919
  %v12047 = vadd.f32 %v11664, %v11924
  %v12048 = vadd.f32 %v11665, %v11927
  %v12049 = vadd.f32 %v11666, %v11932
  %v12050 = vadd.f32 %v11667, %v11935
  %v12051 = vadd.f32 %v11668, %v11940
  %v12052 = vadd.f32 %v11669, %v11943
  %v12053 = vadd.f32 %v11670, %v11948
  %v12054 = vadd.f32 %v11671, %v11951
  %v12055 = vadd.f32 %v11672, %v11956
  %v12056 = vadd.f32 %v11673, %v11959
  %v12057 = vadd.f32 %v11674, %v11964
  %v12058 = vadd.f32 %v11675, %v11967
  %v12059 = vadd.f32 %v11676, %v11972
  %v12060 = vadd.f32 %v11677, %v11975
  %v12061 = vadd.f32 %v11678, %v11980
  %v12062 = vadd.f32 %v11679, %v11983
  %v12063 = vadd.f32 %v11680, %v11988
  %v12064 = vadd.f32 %v11681, %v11991
  %v12065 = vadd.f32 %v11682, %v11996
  %v12066 = vadd.f32 %v11683, %v11999
  %v12067 = vadd.f32 %v11684, %v12004
  %v12068 = vadd.f32 %v11685, %v12007
  %v12069 = vadd.f32 %v11686, %v12012
  %v12070 = vadd.f32 %v11687, %v12015
  %v12071 = vadd.f32 %v11688, %v12020
  %v12072 = vadd.f32 %v11689, %v12023
  %v12073 = vadd.f32 %v11690, %v12028
  %v12074 = vld [vmem:[#allocation3 + $0x31] sm:$0xff]
  %v12075 = vld [vmem:[#allocation3 + $0x39] sm:$0xff]
  %v12076 = vld [vmem:[#allocation3 + $0x41] sm:$0xff]
  %v12077 = vld [vmem:[#allocation3 + $0x49] sm:$0xff]
  %v12078 = vld [vmem:[#allocation3 + $0x51] sm:$0xff]
  %v12079 = vld [vmem:[#allocation3 + $0x59] sm:$0xff]
  %v12080 = vld [vmem:[#allocation3 + $0x61] sm:$0xff]
  %v12081 = vld [vmem:[#allocation3 + $0x69] sm:$0xff]
  %v12082 = vld [vmem:[#allocation3 + $0x71] sm:$0xff]
  %v12083 = vld [vmem:[#allocation3 + $0x79] sm:$0xff]
  %v12084 = vld [vmem:[#allocation3 + $0x81] sm:$0xff]
  %v12085 = vld [vmem:[#allocation3 + $0x89] sm:$0xff]
  %v12086 = vld [vmem:[#allocation3 + $0x91] sm:$0xff]
  %v12087 = vld [vmem:[#allocation3 + $0x99] sm:$0xff]
  %v12088 = vld [vmem:[#allocation3 + $0xa1] sm:$0xff]
  %v12089 = vld [vmem:[#allocation3 + $0xa9] sm:$0xff]
  %v12090 = vld [vmem:[#allocation3 + $0xb1] sm:$0xff]
  %v12091 = vld [vmem:[#allocation3 + $0xb9] sm:$0xff]
  %v12092 = vld [vmem:[#allocation3 + $0xc1] sm:$0xff]
  %v12093 = vld [vmem:[#allocation3 + $0xc9] sm:$0xff]
  %v12094 = vld [vmem:[#allocation3 + $0xd1] sm:$0xff]
  %v12095 = vld [vmem:[#allocation3 + $0xd9] sm:$0xff]
  %v12096 = vld [vmem:[#allocation3 + $0xe1] sm:$0xff]
  %v12097 = vld [vmem:[#allocation3 + $0xe9] sm:$0xff]
  %v12098 = vld [vmem:[#allocation3 + $0xf1] sm:$0xff]
  %v12099 = vld [vmem:[#allocation3 + $0xf9] sm:$0xff]
  %v12100 = vld [vmem:[#allocation3 + $0x101] sm:$0xff]
  %v12101 = vld [vmem:[#allocation3 + $0x109] sm:$0xff]
  %v12102 = vld [vmem:[#allocation3 + $0x111] sm:$0xff]
  %v12103 = vld [vmem:[#allocation3 + $0x119] sm:$0xff]
  %v12104 = vld [vmem:[#allocation3 + $0x121] sm:$0xff]
  %v12105 = vld [vmem:[#allocation3 + $0x129] sm:$0xff]
  %v12106 = vld [vmem:[#allocation3 + $0x131] sm:$0xff]
  %v12107 = vld [vmem:[#allocation3 + $0x139] sm:$0xff]
  %v12108 = vld [vmem:[#allocation3 + $0x141] sm:$0xff]
  %v12109 = vld [vmem:[#allocation3 + $0x149] sm:$0xff]
  %v12110 = vld [vmem:[#allocation3 + $0x151] sm:$0xff]
  %v12111 = vld [vmem:[#allocation3 + $0x159] sm:$0xff]
  %v12112 = vld [vmem:[#allocation3 + $0x161] sm:$0xff]
  %v12113 = vld [vmem:[#allocation3 + $0x169] sm:$0xff]
  %v12114 = vld [vmem:[#allocation3 + $0x171] sm:$0xf]
  %v12115 = vpack.c.bf16 %v12075, %v12074
  %v12116 = vpack.c.bf16 %v12077, %v12076
  %v12117 = vpack.c.bf16 %v12079, %v12078
  %v12118 = vpack.c.bf16 %v12081, %v12080
  %v12119 = vpack.c.bf16 %v12083, %v12082
  %v12120 = vpack.c.bf16 %v12085, %v12084
  %v12121 = vpack.c.bf16 %v12087, %v12086
  %v12122 = vpack.c.bf16 %v12089, %v12088
  %v12123 = vpack.c.bf16 %v12091, %v12090
  %v12124 = vpack.c.bf16 %v12093, %v12092
  %v12125 = vpack.c.bf16 %v12095, %v12094
  %v12126 = vpack.c.bf16 %v12097, %v12096
  %v12127 = vpack.c.bf16 %v12099, %v12098
  %v12128 = vpack.c.bf16 %v12101, %v12100
  %v12129 = vpack.c.bf16 %v12103, %v12102
  %v12130 = vpack.c.bf16 %v12105, %v12104
  %v12131 = vpack.c.bf16 %v12107, %v12106
  %v12132 = vpack.c.bf16 %v12109, %v12108
  %v12133 = vpack.c.bf16 %v12111, %v12110
  %v12134 = vpack.c.bf16 %v12113, %v12112
  %v12135 = vpack.c.bf16 %v12114, %v12114
  %v12136 = vld [vmem:[%s8 + $0xc0] sm:$0xf]
  %v12137 = vld [vmem:[%s8 + $0xc4] sm:$0xf]
  %v12138 = vld [vmem:[%s8 + $0xc8] sm:$0xf]
  %v12139 = vld [vmem:[%s8 + $0xcc] sm:$0xf]
  %12161 = vrot.lane.b32.xlu0 %v12115, 96
  %v12162 = vpop.permute.xlu0 %12161
  %12163 = vrot.lane.b32.xlu0 %v12116, 96
  %v12164 = vpop.permute.xlu0 %12163
  %12165 = vrot.lane.b32.xlu0 %v12117, 96
  %v12166 = vpop.permute.xlu0 %12165
  %12167 = vrot.lane.b32.xlu0 %v12118, 96
  %v12168 = vpop.permute.xlu0 %12167
  %12169 = vrot.lane.b32.xlu0 %v12119, 96
  %v12170 = vpop.permute.xlu0 %12169
  %12171 = vrot.lane.b32.xlu0 %v12120, 96
  %v12172 = vpop.permute.xlu0 %12171
  %12173 = vrot.lane.b32.xlu0 %v12121, 96
  %v12174 = vpop.permute.xlu0 %12173
  %12175 = vrot.lane.b32.xlu0 %v12122, 96
  %v12176 = vpop.permute.xlu0 %12175
  %12177 = vrot.lane.b32.xlu0 %v12123, 96
  %v12178 = vpop.permute.xlu0 %12177
  %12179 = vrot.lane.b32.xlu0 %v12124, 96
  %v12180 = vpop.permute.xlu0 %12179
  %12181 = vrot.lane.b32.xlu0 %v12125, 96
  %v12182 = vpop.permute.xlu0 %12181
  %12183 = vrot.lane.b32.xlu0 %v12126, 96
  %v12184 = vpop.permute.xlu0 %12183
  %12185 = vrot.lane.b32.xlu0 %v12127, 96
  %v12186 = vpop.permute.xlu0 %12185
  %12187 = vrot.lane.b32.xlu0 %v12128, 96
  %v12188 = vpop.permute.xlu0 %12187
  %12189 = vrot.lane.b32.xlu0 %v12129, 96
  %v12190 = vpop.permute.xlu0 %12189
  %12191 = vrot.lane.b32.xlu0 %v12130, 96
  %v12192 = vpop.permute.xlu0 %12191
  %12193 = vrot.lane.b32.xlu0 %v12131, 96
  %v12194 = vpop.permute.xlu0 %12193
  %12195 = vrot.lane.b32.xlu0 %v12132, 96
  %v12196 = vpop.permute.xlu0 %12195
  %12197 = vrot.lane.b32.xlu0 %v12133, 96
  %v12198 = vpop.permute.xlu0 %12197
  %12199 = vrot.lane.b32.xlu0 %v12134, 96
  %v12200 = vpop.permute.xlu0 %12199
  %12201 = vrot.lane.b32.xlu0 %v12135, 96
  %v12202 = vpop.permute.xlu0 %12201
  %v12207 = vunpack.c.l.b16 %v12136
  %v12208 = vunpack.c.l.b16 %v12137
  %v12209 = vunpack.c.l.b16 %v12138
  %v12210 = vunpack.c.l.b16 %v12139
  %v12211 = vpack.c.b16 %v12208, %v12207
  %v12212 = vpack.c.b16 %v12210, %v12209
  %v12216 = vsel %vm1117, %v12162, 0
  %v12219 = vsel %vm1117, %v12164, 0
  %v12222 = vsel %vm1117, %v12166, 0
  %v12225 = vsel %vm1117, %v12168, 0
  %v12228 = vsel %vm1117, %v12170, 0
  %v12231 = vsel %vm1117, %v12172, 0
  %v12234 = vsel %vm1117, %v12174, 0
  %v12237 = vsel %vm1117, %v12176, 0
  %v12240 = vsel %vm1117, %v12178, 0
  %v12243 = vsel %vm1117, %v12180, 0
  %v12246 = vsel %vm1117, %v12182, 0
  %v12249 = vsel %vm1117, %v12184, 0
  %v12252 = vsel %vm1117, %v12186, 0
  %v12255 = vsel %vm1117, %v12188, 0
  %v12258 = vsel %vm1117, %v12190, 0
  %v12261 = vsel %vm1117, %v12192, 0
  %v12264 = vsel %vm1117, %v12194, 0
  %v12267 = vsel %vm1117, %v12196, 0
  %v12270 = vsel %vm1117, %v12198, 0
  %v12273 = vsel %vm1117, %v12200, 0
  %v12276 = vsel %vm1117, %v12202, 0
  %12278 = vmatprep.subr.bf16.mxu0 0
  %12279 = vmatpush1.bf16.msra.mxu0 0
  %12280 = vmatprep.subr.bf16.mxu0 0
  %12281 = vmatpush1.bf16.msra.mxu0 0
  %12282 = vmatprep.subr.bf16.mxu0 0
  %12283 = vmatpush1.bf16.msra.mxu0 0
  %12284 = vmatprep.subr.bf16.mxu0 0
  %12285 = vmatpush1.bf16.msra.mxu0 0
  %12286 = vmatprep.subr.bf16.mxu0 0
  %12287 = vmatpush1.bf16.msra.mxu0 0
  %12288 = vmatprep.subr.bf16.mxu0 0
  %12289 = vmatpush1.bf16.msra.mxu0 0
  %12290 = vmatprep.subr.bf16.mxu0 0
  %12291 = vmatpush1.bf16.msra.mxu0 %v12212
  %12292 = vmatprep.subr.bf16.mxu0 0
  %12293 = vmatpush1.bf16.msra.mxu0 %v12211
  %12294 = vmatprep.subr.bf16.mxu0 0
  %12295 = vmatpush2.bf16.msra.mxu0 0
  %12296 = vmatprep.subr.bf16.mxu0 0
  %12297 = vmatpush2.bf16.msra.mxu0 0
  %12298 = vmatprep.subr.bf16.mxu0 0
  %12299 = vmatpush2.bf16.msra.mxu0 0
  %12300 = vmatprep.subr.bf16.mxu0 0
  %12301 = vmatpush2.bf16.msra.mxu0 0
  %12302 = vmatprep.subr.bf16.mxu0 0
  %12303 = vmatpush2.bf16.msra.mxu0 0
  %12304 = vmatprep.subr.bf16.mxu0 0
  %12305 = vmatpush2.bf16.msra.mxu0 0
  %12306 = vmatprep.subr.bf16.mxu0 0
  %12307 = vmatpush2.bf16.msra.mxu0 0
  %12308 = vmatprep.subr.bf16.mxu0 0
  %12309 = vmatpush2.bf16.msra.mxu0 0
  %12310 = vmatprep.mubr.bf16.mxu0 0
  %12311 = vmatmul.mubr.bf16.gmra.mxu0 %v12216
  %v12312 = vpop.f32.mrf.mxu0
  %v12313 = vadd.f32 0.0, %v12312
  %v12314 = vpop.f32.mrf.mxu0
  %v12315 = vpop.f32.mrf.mxu0
  %v12316 = vadd.f32 0.0, %v12315
  %v12317 = vpop.f32.mrf.mxu0
  %12318 = vmatprep.mubr.bf16.mxu0 0
  %12319 = vmatmul.mubr.bf16.gmra.mxu0 %v12219
  %v12320 = vpop.f32.mrf.mxu0
  %v12321 = vadd.f32 0.0, %v12320
  %v12322 = vpop.f32.mrf.mxu0
  %v12323 = vpop.f32.mrf.mxu0
  %v12324 = vadd.f32 0.0, %v12323
  %v12325 = vpop.f32.mrf.mxu0
  %12326 = vmatprep.mubr.bf16.mxu0 0
  %12327 = vmatmul.mubr.bf16.gmra.mxu0 %v12222
  %v12328 = vpop.f32.mrf.mxu0
  %v12329 = vadd.f32 0.0, %v12328
  %v12330 = vpop.f32.mrf.mxu0
  %v12331 = vpop.f32.mrf.mxu0
  %v12332 = vadd.f32 0.0, %v12331
  %v12333 = vpop.f32.mrf.mxu0
  %12334 = vmatprep.mubr.bf16.mxu0 0
  %12335 = vmatmul.mubr.bf16.gmra.mxu0 %v12225
  %v12336 = vpop.f32.mrf.mxu0
  %v12337 = vadd.f32 0.0, %v12336
  %v12338 = vpop.f32.mrf.mxu0
  %v12339 = vpop.f32.mrf.mxu0
  %v12340 = vadd.f32 0.0, %v12339
  %v12341 = vpop.f32.mrf.mxu0
  %12342 = vmatprep.mubr.bf16.mxu0 0
  %12343 = vmatmul.mubr.bf16.gmra.mxu0 %v12228
  %v12344 = vpop.f32.mrf.mxu0
  %v12345 = vadd.f32 0.0, %v12344
  %v12346 = vpop.f32.mrf.mxu0
  %v12347 = vpop.f32.mrf.mxu0
  %v12348 = vadd.f32 0.0, %v12347
  %v12349 = vpop.f32.mrf.mxu0
  %12350 = vmatprep.mubr.bf16.mxu0 0
  %12351 = vmatmul.mubr.bf16.gmra.mxu0 %v12231
  %v12352 = vpop.f32.mrf.mxu0
  %v12353 = vadd.f32 0.0, %v12352
  %v12354 = vpop.f32.mrf.mxu0
  %v12355 = vpop.f32.mrf.mxu0
  %v12356 = vadd.f32 0.0, %v12355
  %v12357 = vpop.f32.mrf.mxu0
  %12358 = vmatprep.mubr.bf16.mxu0 0
  %12359 = vmatmul.mubr.bf16.gmra.mxu0 %v12234
  %v12360 = vpop.f32.mrf.mxu0
  %v12361 = vadd.f32 0.0, %v12360
  %v12362 = vpop.f32.mrf.mxu0
  %v12363 = vpop.f32.mrf.mxu0
  %v12364 = vadd.f32 0.0, %v12363
  %v12365 = vpop.f32.mrf.mxu0
  %12366 = vmatprep.mubr.bf16.mxu0 0
  %12367 = vmatmul.mubr.bf16.gmra.mxu0 %v12237
  %v12368 = vpop.f32.mrf.mxu0
  %v12369 = vadd.f32 0.0, %v12368
  %v12370 = vpop.f32.mrf.mxu0
  %v12371 = vpop.f32.mrf.mxu0
  %v12372 = vadd.f32 0.0, %v12371
  %v12373 = vpop.f32.mrf.mxu0
  %12374 = vmatprep.mubr.bf16.mxu0 0
  %12375 = vmatmul.mubr.bf16.gmra.mxu0 %v12240
  %v12376 = vpop.f32.mrf.mxu0
  %v12377 = vadd.f32 0.0, %v12376
  %v12378 = vpop.f32.mrf.mxu0
  %v12379 = vpop.f32.mrf.mxu0
  %v12380 = vadd.f32 0.0, %v12379
  %v12381 = vpop.f32.mrf.mxu0
  %12382 = vmatprep.mubr.bf16.mxu0 0
  %12383 = vmatmul.mubr.bf16.gmra.mxu0 %v12243
  %v12384 = vpop.f32.mrf.mxu0
  %v12385 = vadd.f32 0.0, %v12384
  %v12386 = vpop.f32.mrf.mxu0
  %v12387 = vpop.f32.mrf.mxu0
  %v12388 = vadd.f32 0.0, %v12387
  %v12389 = vpop.f32.mrf.mxu0
  %12390 = vmatprep.mubr.bf16.mxu0 0
  %12391 = vmatmul.mubr.bf16.gmra.mxu0 %v12246
  %v12392 = vpop.f32.mrf.mxu0
  %v12393 = vadd.f32 0.0, %v12392
  %v12394 = vpop.f32.mrf.mxu0
  %v12395 = vpop.f32.mrf.mxu0
  %v12396 = vadd.f32 0.0, %v12395
  %v12397 = vpop.f32.mrf.mxu0
  %12398 = vmatprep.mubr.bf16.mxu0 0
  %12399 = vmatmul.mubr.bf16.gmra.mxu0 %v12249
  %v12400 = vpop.f32.mrf.mxu0
  %v12401 = vadd.f32 0.0, %v12400
  %v12402 = vpop.f32.mrf.mxu0
  %v12403 = vpop.f32.mrf.mxu0
  %v12404 = vadd.f32 0.0, %v12403
  %v12405 = vpop.f32.mrf.mxu0
  %12406 = vmatprep.mubr.bf16.mxu0 0
  %12407 = vmatmul.mubr.bf16.gmra.mxu0 %v12252
  %v12408 = vpop.f32.mrf.mxu0
  %v12409 = vadd.f32 0.0, %v12408
  %v12410 = vpop.f32.mrf.mxu0
  %v12411 = vpop.f32.mrf.mxu0
  %v12412 = vadd.f32 0.0, %v12411
  %v12413 = vpop.f32.mrf.mxu0
  %12414 = vmatprep.mubr.bf16.mxu0 0
  %12415 = vmatmul.mubr.bf16.gmra.mxu0 %v12255
  %v12416 = vpop.f32.mrf.mxu0
  %v12417 = vadd.f32 0.0, %v12416
  %v12418 = vpop.f32.mrf.mxu0
  %v12419 = vpop.f32.mrf.mxu0
  %v12420 = vadd.f32 0.0, %v12419
  %v12421 = vpop.f32.mrf.mxu0
  %12422 = vmatprep.mubr.bf16.mxu0 0
  %12423 = vmatmul.mubr.bf16.gmra.mxu0 %v12258
  %v12424 = vpop.f32.mrf.mxu0
  %v12425 = vadd.f32 0.0, %v12424
  %v12426 = vpop.f32.mrf.mxu0
  %v12427 = vpop.f32.mrf.mxu0
  %v12428 = vadd.f32 0.0, %v12427
  %v12429 = vpop.f32.mrf.mxu0
  %12430 = vmatprep.mubr.bf16.mxu0 0
  %12431 = vmatmul.mubr.bf16.gmra.mxu0 %v12261
  %v12432 = vpop.f32.mrf.mxu0
  %v12433 = vadd.f32 0.0, %v12432
  %v12434 = vpop.f32.mrf.mxu0
  %v12435 = vpop.f32.mrf.mxu0
  %v12436 = vadd.f32 0.0, %v12435
  %v12437 = vpop.f32.mrf.mxu0
  %12438 = vmatprep.mubr.bf16.mxu0 0
  %12439 = vmatmul.mubr.bf16.gmra.mxu0 %v12264
  %v12440 = vpop.f32.mrf.mxu0
  %v12441 = vadd.f32 0.0, %v12440
  %v12442 = vpop.f32.mrf.mxu0
  %v12443 = vpop.f32.mrf.mxu0
  %v12444 = vadd.f32 0.0, %v12443
  %v12445 = vpop.f32.mrf.mxu0
  %12446 = vmatprep.mubr.bf16.mxu0 0
  %12447 = vmatmul.mubr.bf16.gmra.mxu0 %v12267
  %v12448 = vpop.f32.mrf.mxu0
  %v12449 = vadd.f32 0.0, %v12448
  %v12450 = vpop.f32.mrf.mxu0
  %v12451 = vpop.f32.mrf.mxu0
  %v12452 = vadd.f32 0.0, %v12451
  %v12453 = vpop.f32.mrf.mxu0
  %12454 = vmatprep.mubr.bf16.mxu0 0
  %12455 = vmatmul.mubr.bf16.gmra.mxu0 %v12270
  %v12456 = vpop.f32.mrf.mxu0
  %v12457 = vadd.f32 0.0, %v12456
  %v12458 = vpop.f32.mrf.mxu0
  %v12459 = vpop.f32.mrf.mxu0
  %v12460 = vadd.f32 0.0, %v12459
  %v12461 = vpop.f32.mrf.mxu0
  %12462 = vmatprep.mubr.bf16.mxu0 0
  %12463 = vmatmul.mubr.bf16.gmra.mxu0 %v12273
  %v12464 = vpop.f32.mrf.mxu0
  %v12465 = vadd.f32 0.0, %v12464
  %v12466 = vpop.f32.mrf.mxu0
  %v12467 = vpop.f32.mrf.mxu0
  %v12468 = vadd.f32 0.0, %v12467
  %v12469 = vpop.f32.mrf.mxu0
  %12470 = vmatprep.mubr.bf16.mxu0 0
  %12471 = vmatmul.mubr.bf16.gmra.mxu0 %v12276
  %v12472 = vpop.f32.mrf.mxu0
  %v12473 = vadd.f32 0.0, %v12472
  %v12474 = vpop.f32.mrf.mxu0
  %v12475 = vpop.f32.mrf.mxu0
  %v12476 = vpop.f32.mrf.mxu0
  %12477 = vdwg.mxu0
  %v12478 = vadd.f32 %v12033, %v12313
  %v12479 = vadd.f32 %v12034, %v12316
  %v12480 = vadd.f32 %v12035, %v12321
  %v12481 = vadd.f32 %v12036, %v12324
  %v12482 = vadd.f32 %v12037, %v12329
  %v12483 = vadd.f32 %v12038, %v12332
  %v12484 = vadd.f32 %v12039, %v12337
  %v12485 = vadd.f32 %v12040, %v12340
  %v12486 = vadd.f32 %v12041, %v12345
  %v12487 = vadd.f32 %v12042, %v12348
  %v12488 = vadd.f32 %v12043, %v12353
  %v12489 = vadd.f32 %v12044, %v12356
  %v12490 = vadd.f32 %v12045, %v12361
  %v12491 = vadd.f32 %v12046, %v12364
  %v12492 = vadd.f32 %v12047, %v12369
  %v12493 = vadd.f32 %v12048, %v12372
  %v12494 = vadd.f32 %v12049, %v12377
  %v12495 = vadd.f32 %v12050, %v12380
  %v12496 = vadd.f32 %v12051, %v12385
  %v12497 = vadd.f32 %v12052, %v12388
  %v12498 = vadd.f32 %v12053, %v12393
  %v12499 = vadd.f32 %v12054, %v12396
  %v12500 = vadd.f32 %v12055, %v12401
  %v12501 = vadd.f32 %v12056, %v12404
  %v12502 = vadd.f32 %v12057, %v12409
  %v12503 = vadd.f32 %v12058, %v12412
  %v12504 = vadd.f32 %v12059, %v12417
  %v12505 = vadd.f32 %v12060, %v12420
  %v12506 = vadd.f32 %v12061, %v12425
  %v12507 = vadd.f32 %v12062, %v12428
  %v12508 = vadd.f32 %v12063, %v12433
  %v12509 = vadd.f32 %v12064, %v12436
  %v12510 = vadd.f32 %v12065, %v12441
  %v12511 = vadd.f32 %v12066, %v12444
  %v12512 = vadd.f32 %v12067, %v12449
  %v12513 = vadd.f32 %v12068, %v12452
  %v12514 = vadd.f32 %v12069, %v12457
  %v12515 = vadd.f32 %v12070, %v12460
  %v12516 = vadd.f32 %v12071, %v12465
  %v12517 = vadd.f32 %v12072, %v12468
  %v12518 = vadd.f32 %v12073, %v12473
  %v12519 = vld [vmem:[#allocation3 + $0x32] sm:$0xff]
  %v12520 = vld [vmem:[#allocation3 + $0x3a] sm:$0xff]
  %v12521 = vld [vmem:[#allocation3 + $0x42] sm:$0xff]
  %v12522 = vld [vmem:[#allocation3 + $0x4a] sm:$0xff]
  %v12523 = vld [vmem:[#allocation3 + $0x52] sm:$0xff]
  %v12524 = vld [vmem:[#allocation3 + $0x5a] sm:$0xff]
  %v12525 = vld [vmem:[#allocation3 + $0x62] sm:$0xff]
  %v12526 = vld [vmem:[#allocation3 + $0x6a] sm:$0xff]
  %v12527 = vld [vmem:[#allocation3 + $0x72] sm:$0xff]
  %v12528 = vld [vmem:[#allocation3 + $0x7a] sm:$0xff]
  %v12529 = vld [vmem:[#allocation3 + $0x82] sm:$0xff]
  %v12530 = vld [vmem:[#allocation3 + $0x8a] sm:$0xff]
  %v12531 = vld [vmem:[#allocation3 + $0x92] sm:$0xff]
  %v12532 = vld [vmem:[#allocation3 + $0x9a] sm:$0xff]
  %v12533 = vld [vmem:[#allocation3 + $0xa2] sm:$0xff]
  %v12534 = vld [vmem:[#allocation3 + $0xaa] sm:$0xff]
  %v12535 = vld [vmem:[#allocation3 + $0xb2] sm:$0xff]
  %v12536 = vld [vmem:[#allocation3 + $0xba] sm:$0xff]
  %v12537 = vld [vmem:[#allocation3 + $0xc2] sm:$0xff]
  %v12538 = vld [vmem:[#allocation3 + $0xca] sm:$0xff]
  %v12539 = vld [vmem:[#allocation3 + $0xd2] sm:$0xff]
  %v12540 = vld [vmem:[#allocation3 + $0xda] sm:$0xff]
  %v12541 = vld [vmem:[#allocation3 + $0xe2] sm:$0xff]
  %v12542 = vld [vmem:[#allocation3 + $0xea] sm:$0xff]
  %v12543 = vld [vmem:[#allocation3 + $0xf2] sm:$0xff]
  %v12544 = vld [vmem:[#allocation3 + $0xfa] sm:$0xff]
  %v12545 = vld [vmem:[#allocation3 + $0x102] sm:$0xff]
  %v12546 = vld [vmem:[#allocation3 + $0x10a] sm:$0xff]
  %v12547 = vld [vmem:[#allocation3 + $0x112] sm:$0xff]
  %v12548 = vld [vmem:[#allocation3 + $0x11a] sm:$0xff]
  %v12549 = vld [vmem:[#allocation3 + $0x122] sm:$0xff]
  %v12550 = vld [vmem:[#allocation3 + $0x12a] sm:$0xff]
  %v12551 = vld [vmem:[#allocation3 + $0x132] sm:$0xff]
  %v12552 = vld [vmem:[#allocation3 + $0x13a] sm:$0xff]
  %v12553 = vld [vmem:[#allocation3 + $0x142] sm:$0xff]
  %v12554 = vld [vmem:[#allocation3 + $0x14a] sm:$0xff]
  %v12555 = vld [vmem:[#allocation3 + $0x152] sm:$0xff]
  %v12556 = vld [vmem:[#allocation3 + $0x15a] sm:$0xff]
  %v12557 = vld [vmem:[#allocation3 + $0x162] sm:$0xff]
  %v12558 = vld [vmem:[#allocation3 + $0x16a] sm:$0xff]
  %v12559 = vld [vmem:[#allocation3 + $0x172] sm:$0xf]
  %v12560 = vpack.c.bf16 %v12520, %v12519
  %v12561 = vpack.c.bf16 %v12522, %v12521
  %v12562 = vpack.c.bf16 %v12524, %v12523
  %v12563 = vpack.c.bf16 %v12526, %v12525
  %v12564 = vpack.c.bf16 %v12528, %v12527
  %v12565 = vpack.c.bf16 %v12530, %v12529
  %v12566 = vpack.c.bf16 %v12532, %v12531
  %v12567 = vpack.c.bf16 %v12534, %v12533
  %v12568 = vpack.c.bf16 %v12536, %v12535
  %v12569 = vpack.c.bf16 %v12538, %v12537
  %v12570 = vpack.c.bf16 %v12540, %v12539
  %v12571 = vpack.c.bf16 %v12542, %v12541
  %v12572 = vpack.c.bf16 %v12544, %v12543
  %v12573 = vpack.c.bf16 %v12546, %v12545
  %v12574 = vpack.c.bf16 %v12548, %v12547
  %v12575 = vpack.c.bf16 %v12550, %v12549
  %v12576 = vpack.c.bf16 %v12552, %v12551
  %v12577 = vpack.c.bf16 %v12554, %v12553
  %v12578 = vpack.c.bf16 %v12556, %v12555
  %v12579 = vpack.c.bf16 %v12558, %v12557
  %v12580 = vpack.c.bf16 %v12559, %v12559
  %v12581 = vld [vmem:[%s8 + $0xd0] sm:$0xf]
  %v12582 = vld [vmem:[%s8 + $0xd4] sm:$0xf]
  %v12583 = vld [vmem:[%s8 + $0xd8] sm:$0xf]
  %v12584 = vld [vmem:[%s8 + $0xdc] sm:$0xf]
  %v12589 = vunpack.c.l.b16 %v12581
  %v12590 = vunpack.c.l.b16 %v12582
  %v12591 = vunpack.c.l.b16 %v12583
  %v12592 = vunpack.c.l.b16 %v12584
  %v12593 = vpack.c.b16 %v12590, %v12589
  %v12594 = vpack.c.b16 %v12592, %v12591
  %v12598 = vsel %vm1117, %v12560, 0
  %v12601 = vsel %vm1117, %v12561, 0
  %v12604 = vsel %vm1117, %v12562, 0
  %v12607 = vsel %vm1117, %v12563, 0
  %v12610 = vsel %vm1117, %v12564, 0
  %v12613 = vsel %vm1117, %v12565, 0
  %v12616 = vsel %vm1117, %v12566, 0
  %v12619 = vsel %vm1117, %v12567, 0
  %v12622 = vsel %vm1117, %v12568, 0
  %v12625 = vsel %vm1117, %v12569, 0
  %v12628 = vsel %vm1117, %v12570, 0
  %v12631 = vsel %vm1117, %v12571, 0
  %v12634 = vsel %vm1117, %v12572, 0
  %v12637 = vsel %vm1117, %v12573, 0
  %v12640 = vsel %vm1117, %v12574, 0
  %v12643 = vsel %vm1117, %v12575, 0
  %v12646 = vsel %vm1117, %v12576, 0
  %v12649 = vsel %vm1117, %v12577, 0
  %v12652 = vsel %vm1117, %v12578, 0
  %v12655 = vsel %vm1117, %v12579, 0
  %v12658 = vsel %vm1117, %v12580, 0
  %12660 = vmatprep.subr.bf16.mxu0 0
  %12661 = vmatpush1.bf16.msra.mxu0 0
  %12662 = vmatprep.subr.bf16.mxu0 0
  %12663 = vmatpush1.bf16.msra.mxu0 0
  %12664 = vmatprep.subr.bf16.mxu0 0
  %12665 = vmatpush1.bf16.msra.mxu0 0
  %12666 = vmatprep.subr.bf16.mxu0 0
  %12667 = vmatpush1.bf16.msra.mxu0 0
  %12668 = vmatprep.subr.bf16.mxu0 0
  %12669 = vmatpush1.bf16.msra.mxu0 0
  %12670 = vmatprep.subr.bf16.mxu0 0
  %12671 = vmatpush1.bf16.msra.mxu0 0
  %12672 = vmatprep.subr.bf16.mxu0 0
  %12673 = vmatpush1.bf16.msra.mxu0 %v12594
  %12674 = vmatprep.subr.bf16.mxu0 0
  %12675 = vmatpush1.bf16.msra.mxu0 %v12593
  %12676 = vmatprep.subr.bf16.mxu0 0
  %12677 = vmatpush2.bf16.msra.mxu0 0
  %12678 = vmatprep.subr.bf16.mxu0 0
  %12679 = vmatpush2.bf16.msra.mxu0 0
  %12680 = vmatprep.subr.bf16.mxu0 0
  %12681 = vmatpush2.bf16.msra.mxu0 0
  %12682 = vmatprep.subr.bf16.mxu0 0
  %12683 = vmatpush2.bf16.msra.mxu0 0
  %12684 = vmatprep.subr.bf16.mxu0 0
  %12685 = vmatpush2.bf16.msra.mxu0 0
  %12686 = vmatprep.subr.bf16.mxu0 0
  %12687 = vmatpush2.bf16.msra.mxu0 0
  %12688 = vmatprep.subr.bf16.mxu0 0
  %12689 = vmatpush2.bf16.msra.mxu0 0
  %12690 = vmatprep.subr.bf16.mxu0 0
  %12691 = vmatpush2.bf16.msra.mxu0 0
  %12692 = vmatprep.mubr.bf16.mxu0 0
  %12693 = vmatmul.mubr.bf16.gmra.mxu0 %v12598
  %v12694 = vpop.f32.mrf.mxu0
  %v12695 = vadd.f32 0.0, %v12694
  %v12696 = vpop.f32.mrf.mxu0
  %v12697 = vpop.f32.mrf.mxu0
  %v12698 = vadd.f32 0.0, %v12697
  %v12699 = vpop.f32.mrf.mxu0
  %12700 = vmatprep.mubr.bf16.mxu0 0
  %12701 = vmatmul.mubr.bf16.gmra.mxu0 %v12601
  %v12702 = vpop.f32.mrf.mxu0
  %v12703 = vadd.f32 0.0, %v12702
  %v12704 = vpop.f32.mrf.mxu0
  %v12705 = vpop.f32.mrf.mxu0
  %v12706 = vadd.f32 0.0, %v12705
  %v12707 = vpop.f32.mrf.mxu0
  %12708 = vmatprep.mubr.bf16.mxu0 0
  %12709 = vmatmul.mubr.bf16.gmra.mxu0 %v12604
  %v12710 = vpop.f32.mrf.mxu0
  %v12711 = vadd.f32 0.0, %v12710
  %v12712 = vpop.f32.mrf.mxu0
  %v12713 = vpop.f32.mrf.mxu0
  %v12714 = vadd.f32 0.0, %v12713
  %v12715 = vpop.f32.mrf.mxu0
  %12716 = vmatprep.mubr.bf16.mxu0 0
  %12717 = vmatmul.mubr.bf16.gmra.mxu0 %v12607
  %v12718 = vpop.f32.mrf.mxu0
  %v12719 = vadd.f32 0.0, %v12718
  %v12720 = vpop.f32.mrf.mxu0
  %v12721 = vpop.f32.mrf.mxu0
  %v12722 = vadd.f32 0.0, %v12721
  %v12723 = vpop.f32.mrf.mxu0
  %12724 = vmatprep.mubr.bf16.mxu0 0
  %12725 = vmatmul.mubr.bf16.gmra.mxu0 %v12610
  %v12726 = vpop.f32.mrf.mxu0
  %v12727 = vadd.f32 0.0, %v12726
  %v12728 = vpop.f32.mrf.mxu0
  %v12729 = vpop.f32.mrf.mxu0
  %v12730 = vadd.f32 0.0, %v12729
  %v12731 = vpop.f32.mrf.mxu0
  %12732 = vmatprep.mubr.bf16.mxu0 0
  %12733 = vmatmul.mubr.bf16.gmra.mxu0 %v12613
  %v12734 = vpop.f32.mrf.mxu0
  %v12735 = vadd.f32 0.0, %v12734
  %v12736 = vpop.f32.mrf.mxu0
  %v12737 = vpop.f32.mrf.mxu0
  %v12738 = vadd.f32 0.0, %v12737
  %v12739 = vpop.f32.mrf.mxu0
  %12740 = vmatprep.mubr.bf16.mxu0 0
  %12741 = vmatmul.mubr.bf16.gmra.mxu0 %v12616
  %v12742 = vpop.f32.mrf.mxu0
  %v12743 = vadd.f32 0.0, %v12742
  %v12744 = vpop.f32.mrf.mxu0
  %v12745 = vpop.f32.mrf.mxu0
  %v12746 = vadd.f32 0.0, %v12745
  %v12747 = vpop.f32.mrf.mxu0
  %12748 = vmatprep.mubr.bf16.mxu0 0
  %12749 = vmatmul.mubr.bf16.gmra.mxu0 %v12619
  %v12750 = vpop.f32.mrf.mxu0
  %v12751 = vadd.f32 0.0, %v12750
  %v12752 = vpop.f32.mrf.mxu0
  %v12753 = vpop.f32.mrf.mxu0
  %v12754 = vadd.f32 0.0, %v12753
  %v12755 = vpop.f32.mrf.mxu0
  %12756 = vmatprep.mubr.bf16.mxu0 0
  %12757 = vmatmul.mubr.bf16.gmra.mxu0 %v12622
  %v12758 = vpop.f32.mrf.mxu0
  %v12759 = vadd.f32 0.0, %v12758
  %v12760 = vpop.f32.mrf.mxu0
  %v12761 = vpop.f32.mrf.mxu0
  %v12762 = vadd.f32 0.0, %v12761
  %v12763 = vpop.f32.mrf.mxu0
  %12764 = vmatprep.mubr.bf16.mxu0 0
  %12765 = vmatmul.mubr.bf16.gmra.mxu0 %v12625
  %v12766 = vpop.f32.mrf.mxu0
  %v12767 = vadd.f32 0.0, %v12766
  %v12768 = vpop.f32.mrf.mxu0
  %v12769 = vpop.f32.mrf.mxu0
  %v12770 = vadd.f32 0.0, %v12769
  %v12771 = vpop.f32.mrf.mxu0
  %12772 = vmatprep.mubr.bf16.mxu0 0
  %12773 = vmatmul.mubr.bf16.gmra.mxu0 %v12628
  %v12774 = vpop.f32.mrf.mxu0
  %v12775 = vadd.f32 0.0, %v12774
  %v12776 = vpop.f32.mrf.mxu0
  %v12777 = vpop.f32.mrf.mxu0
  %v12778 = vadd.f32 0.0, %v12777
  %v12779 = vpop.f32.mrf.mxu0
  %12780 = vmatprep.mubr.bf16.mxu0 0
  %12781 = vmatmul.mubr.bf16.gmra.mxu0 %v12631
  %v12782 = vpop.f32.mrf.mxu0
  %v12783 = vadd.f32 0.0, %v12782
  %v12784 = vpop.f32.mrf.mxu0
  %v12785 = vpop.f32.mrf.mxu0
  %v12786 = vadd.f32 0.0, %v12785
  %v12787 = vpop.f32.mrf.mxu0
  %12788 = vmatprep.mubr.bf16.mxu0 0
  %12789 = vmatmul.mubr.bf16.gmra.mxu0 %v12634
  %v12790 = vpop.f32.mrf.mxu0
  %v12791 = vadd.f32 0.0, %v12790
  %v12792 = vpop.f32.mrf.mxu0
  %v12793 = vpop.f32.mrf.mxu0
  %v12794 = vadd.f32 0.0, %v12793
  %v12795 = vpop.f32.mrf.mxu0
  %12796 = vmatprep.mubr.bf16.mxu0 0
  %12797 = vmatmul.mubr.bf16.gmra.mxu0 %v12637
  %v12798 = vpop.f32.mrf.mxu0
  %v12799 = vadd.f32 0.0, %v12798
  %v12800 = vpop.f32.mrf.mxu0
  %v12801 = vpop.f32.mrf.mxu0
  %v12802 = vadd.f32 0.0, %v12801
  %v12803 = vpop.f32.mrf.mxu0
  %12804 = vmatprep.mubr.bf16.mxu0 0
  %12805 = vmatmul.mubr.bf16.gmra.mxu0 %v12640
  %v12806 = vpop.f32.mrf.mxu0
  %v12807 = vadd.f32 0.0, %v12806
  %v12808 = vpop.f32.mrf.mxu0
  %v12809 = vpop.f32.mrf.mxu0
  %v12810 = vadd.f32 0.0, %v12809
  %v12811 = vpop.f32.mrf.mxu0
  %12812 = vmatprep.mubr.bf16.mxu0 0
  %12813 = vmatmul.mubr.bf16.gmra.mxu0 %v12643
  %v12814 = vpop.f32.mrf.mxu0
  %v12815 = vadd.f32 0.0, %v12814
  %v12816 = vpop.f32.mrf.mxu0
  %v12817 = vpop.f32.mrf.mxu0
  %v12818 = vadd.f32 0.0, %v12817
  %v12819 = vpop.f32.mrf.mxu0
  %12820 = vmatprep.mubr.bf16.mxu0 0
  %12821 = vmatmul.mubr.bf16.gmra.mxu0 %v12646
  %v12822 = vpop.f32.mrf.mxu0
  %v12823 = vadd.f32 0.0, %v12822
  %v12824 = vpop.f32.mrf.mxu0
  %v12825 = vpop.f32.mrf.mxu0
  %v12826 = vadd.f32 0.0, %v12825
  %v12827 = vpop.f32.mrf.mxu0
  %12828 = vmatprep.mubr.bf16.mxu0 0
  %12829 = vmatmul.mubr.bf16.gmra.mxu0 %v12649
  %v12830 = vpop.f32.mrf.mxu0
  %v12831 = vadd.f32 0.0, %v12830
  %v12832 = vpop.f32.mrf.mxu0
  %v12833 = vpop.f32.mrf.mxu0
  %v12834 = vadd.f32 0.0, %v12833
  %v12835 = vpop.f32.mrf.mxu0
  %12836 = vmatprep.mubr.bf16.mxu0 0
  %12837 = vmatmul.mubr.bf16.gmra.mxu0 %v12652
  %v12838 = vpop.f32.mrf.mxu0
  %v12839 = vadd.f32 0.0, %v12838
  %v12840 = vpop.f32.mrf.mxu0
  %v12841 = vpop.f32.mrf.mxu0
  %v12842 = vadd.f32 0.0, %v12841
  %v12843 = vpop.f32.mrf.mxu0
  %12844 = vmatprep.mubr.bf16.mxu0 0
  %12845 = vmatmul.mubr.bf16.gmra.mxu0 %v12655
  %v12846 = vpop.f32.mrf.mxu0
  %v12847 = vadd.f32 0.0, %v12846
  %v12848 = vpop.f32.mrf.mxu0
  %v12849 = vpop.f32.mrf.mxu0
  %v12850 = vadd.f32 0.0, %v12849
  %v12851 = vpop.f32.mrf.mxu0
  %12852 = vmatprep.mubr.bf16.mxu0 0
  %12853 = vmatmul.mubr.bf16.gmra.mxu0 %v12658
  %v12854 = vpop.f32.mrf.mxu0
  %v12855 = vadd.f32 0.0, %v12854
  %v12856 = vpop.f32.mrf.mxu0
  %v12857 = vpop.f32.mrf.mxu0
  %v12858 = vpop.f32.mrf.mxu0
  %12859 = vdwg.mxu0
  %v12860 = vadd.f32 %v12478, %v12695
  %v12861 = vadd.f32 %v12479, %v12698
  %v12862 = vadd.f32 %v12480, %v12703
  %v12863 = vadd.f32 %v12481, %v12706
  %v12864 = vadd.f32 %v12482, %v12711
  %v12865 = vadd.f32 %v12483, %v12714
  %v12866 = vadd.f32 %v12484, %v12719
  %v12867 = vadd.f32 %v12485, %v12722
  %v12868 = vadd.f32 %v12486, %v12727
  %v12869 = vadd.f32 %v12487, %v12730
  %v12870 = vadd.f32 %v12488, %v12735
  %v12871 = vadd.f32 %v12489, %v12738
  %v12872 = vadd.f32 %v12490, %v12743
  %v12873 = vadd.f32 %v12491, %v12746
  %v12874 = vadd.f32 %v12492, %v12751
  %v12875 = vadd.f32 %v12493, %v12754
  %v12876 = vadd.f32 %v12494, %v12759
  %v12877 = vadd.f32 %v12495, %v12762
  %v12878 = vadd.f32 %v12496, %v12767
  %v12879 = vadd.f32 %v12497, %v12770
  %v12880 = vadd.f32 %v12498, %v12775
  %v12881 = vadd.f32 %v12499, %v12778
  %v12882 = vadd.f32 %v12500, %v12783
  %v12883 = vadd.f32 %v12501, %v12786
  %v12884 = vadd.f32 %v12502, %v12791
  %v12885 = vadd.f32 %v12503, %v12794
  %v12886 = vadd.f32 %v12504, %v12799
  %v12887 = vadd.f32 %v12505, %v12802
  %v12888 = vadd.f32 %v12506, %v12807
  %v12889 = vadd.f32 %v12507, %v12810
  %v12890 = vadd.f32 %v12508, %v12815
  %v12891 = vadd.f32 %v12509, %v12818
  %v12892 = vadd.f32 %v12510, %v12823
  %v12893 = vadd.f32 %v12511, %v12826
  %v12894 = vadd.f32 %v12512, %v12831
  %v12895 = vadd.f32 %v12513, %v12834
  %v12896 = vadd.f32 %v12514, %v12839
  %v12897 = vadd.f32 %v12515, %v12842
  %v12898 = vadd.f32 %v12516, %v12847
  %v12899 = vadd.f32 %v12517, %v12850
  %v12900 = vadd.f32 %v12518, %v12855
  %v12901 = vld [vmem:[%s8 + $0xe0] sm:$0xf]
  %v12902 = vld [vmem:[%s8 + $0xe4] sm:$0xf]
  %v12903 = vld [vmem:[%s8 + $0xe8] sm:$0xf]
  %v12904 = vld [vmem:[%s8 + $0xec] sm:$0xf]
  %12926 = vrot.lane.b32.xlu0 %v12560, 96
  %v12927 = vpop.permute.xlu0 %12926
  %12928 = vrot.lane.b32.xlu0 %v12561, 96
  %v12929 = vpop.permute.xlu0 %12928
  %12930 = vrot.lane.b32.xlu0 %v12562, 96
  %v12931 = vpop.permute.xlu0 %12930
  %12932 = vrot.lane.b32.xlu0 %v12563, 96
  %v12933 = vpop.permute.xlu0 %12932
  %12934 = vrot.lane.b32.xlu0 %v12564, 96
  %v12935 = vpop.permute.xlu0 %12934
  %12936 = vrot.lane.b32.xlu0 %v12565, 96
  %v12937 = vpop.permute.xlu0 %12936
  %12938 = vrot.lane.b32.xlu0 %v12566, 96
  %v12939 = vpop.permute.xlu0 %12938
  %12940 = vrot.lane.b32.xlu0 %v12567, 96
  %v12941 = vpop.permute.xlu0 %12940
  %12942 = vrot.lane.b32.xlu0 %v12568, 96
  %v12943 = vpop.permute.xlu0 %12942
  %12944 = vrot.lane.b32.xlu0 %v12569, 96
  %v12945 = vpop.permute.xlu0 %12944
  %12946 = vrot.lane.b32.xlu0 %v12570, 96
  %v12947 = vpop.permute.xlu0 %12946
  %12948 = vrot.lane.b32.xlu0 %v12571, 96
  %v12949 = vpop.permute.xlu0 %12948
  %12950 = vrot.lane.b32.xlu0 %v12572, 96
  %v12951 = vpop.permute.xlu0 %12950
  %12952 = vrot.lane.b32.xlu0 %v12573, 96
  %v12953 = vpop.permute.xlu0 %12952
  %12954 = vrot.lane.b32.xlu0 %v12574, 96
  %v12955 = vpop.permute.xlu0 %12954
  %12956 = vrot.lane.b32.xlu0 %v12575, 96
  %v12957 = vpop.permute.xlu0 %12956
  %12958 = vrot.lane.b32.xlu0 %v12576, 96
  %v12959 = vpop.permute.xlu0 %12958
  %12960 = vrot.lane.b32.xlu0 %v12577, 96
  %v12961 = vpop.permute.xlu0 %12960
  %12962 = vrot.lane.b32.xlu0 %v12578, 96
  %v12963 = vpop.permute.xlu0 %12962
  %12964 = vrot.lane.b32.xlu0 %v12579, 96
  %v12965 = vpop.permute.xlu0 %12964
  %12966 = vrot.lane.b32.xlu0 %v12580, 96
  %v12967 = vpop.permute.xlu0 %12966
  %v12972 = vunpack.c.l.b16 %v12901
  %v12973 = vunpack.c.l.b16 %v12902
  %v12974 = vunpack.c.l.b16 %v12903
  %v12975 = vunpack.c.l.b16 %v12904
  %v12976 = vpack.c.b16 %v12973, %v12972
  %v12977 = vpack.c.b16 %v12975, %v12974
  %v12981 = vsel %vm1117, %v12927, 0
  %v12984 = vsel %vm1117, %v12929, 0
  %v12987 = vsel %vm1117, %v12931, 0
  %v12990 = vsel %vm1117, %v12933, 0
  %v12993 = vsel %vm1117, %v12935, 0
  %v12996 = vsel %vm1117, %v12937, 0
  %v12999 = vsel %vm1117, %v12939, 0
  %v13002 = vsel %vm1117, %v12941, 0
  %v13005 = vsel %vm1117, %v12943, 0
  %v13008 = vsel %vm1117, %v12945, 0
  %v13011 = vsel %vm1117, %v12947, 0
  %v13014 = vsel %vm1117, %v12949, 0
  %v13017 = vsel %vm1117, %v12951, 0
  %v13020 = vsel %vm1117, %v12953, 0
  %v13023 = vsel %vm1117, %v12955, 0
  %v13026 = vsel %vm1117, %v12957, 0
  %v13029 = vsel %vm1117, %v12959, 0
  %v13032 = vsel %vm1117, %v12961, 0
  %v13035 = vsel %vm1117, %v12963, 0
  %v13038 = vsel %vm1117, %v12965, 0
  %v13041 = vsel %vm1117, %v12967, 0
  %13043 = vmatprep.subr.bf16.mxu0 0
  %13044 = vmatpush1.bf16.msra.mxu0 0
  %13045 = vmatprep.subr.bf16.mxu0 0
  %13046 = vmatpush1.bf16.msra.mxu0 0
  %13047 = vmatprep.subr.bf16.mxu0 0
  %13048 = vmatpush1.bf16.msra.mxu0 0
  %13049 = vmatprep.subr.bf16.mxu0 0
  %13050 = vmatpush1.bf16.msra.mxu0 0
  %13051 = vmatprep.subr.bf16.mxu0 0
  %13052 = vmatpush1.bf16.msra.mxu0 0
  %13053 = vmatprep.subr.bf16.mxu0 0
  %13054 = vmatpush1.bf16.msra.mxu0 0
  %13055 = vmatprep.subr.bf16.mxu0 0
  %13056 = vmatpush1.bf16.msra.mxu0 %v12977
  %13057 = vmatprep.subr.bf16.mxu0 0
  %13058 = vmatpush1.bf16.msra.mxu0 %v12976
  %13059 = vmatprep.subr.bf16.mxu0 0
  %13060 = vmatpush2.bf16.msra.mxu0 0
  %13061 = vmatprep.subr.bf16.mxu0 0
  %13062 = vmatpush2.bf16.msra.mxu0 0
  %13063 = vmatprep.subr.bf16.mxu0 0
  %13064 = vmatpush2.bf16.msra.mxu0 0
  %13065 = vmatprep.subr.bf16.mxu0 0
  %13066 = vmatpush2.bf16.msra.mxu0 0
  %13067 = vmatprep.subr.bf16.mxu0 0
  %13068 = vmatpush2.bf16.msra.mxu0 0
  %13069 = vmatprep.subr.bf16.mxu0 0
  %13070 = vmatpush2.bf16.msra.mxu0 0
  %13071 = vmatprep.subr.bf16.mxu0 0
  %13072 = vmatpush2.bf16.msra.mxu0 0
  %13073 = vmatprep.subr.bf16.mxu0 0
  %13074 = vmatpush2.bf16.msra.mxu0 0
  %13075 = vmatprep.mubr.bf16.mxu0 0
  %13076 = vmatmul.mubr.bf16.gmra.mxu0 %v12981
  %v13077 = vpop.f32.mrf.mxu0
  %v13078 = vadd.f32 0.0, %v13077
  %v13079 = vpop.f32.mrf.mxu0
  %v13080 = vpop.f32.mrf.mxu0
  %v13081 = vadd.f32 0.0, %v13080
  %v13082 = vpop.f32.mrf.mxu0
  %13083 = vmatprep.mubr.bf16.mxu0 0
  %13084 = vmatmul.mubr.bf16.gmra.mxu0 %v12984
  %v13085 = vpop.f32.mrf.mxu0
  %v13086 = vadd.f32 0.0, %v13085
  %v13087 = vpop.f32.mrf.mxu0
  %v13088 = vpop.f32.mrf.mxu0
  %v13089 = vadd.f32 0.0, %v13088
  %v13090 = vpop.f32.mrf.mxu0
  %13091 = vmatprep.mubr.bf16.mxu0 0
  %13092 = vmatmul.mubr.bf16.gmra.mxu0 %v12987
  %v13093 = vpop.f32.mrf.mxu0
  %v13094 = vadd.f32 0.0, %v13093
  %v13095 = vpop.f32.mrf.mxu0
  %v13096 = vpop.f32.mrf.mxu0
  %v13097 = vadd.f32 0.0, %v13096
  %v13098 = vpop.f32.mrf.mxu0
  %13099 = vmatprep.mubr.bf16.mxu0 0
  %13100 = vmatmul.mubr.bf16.gmra.mxu0 %v12990
  %v13101 = vpop.f32.mrf.mxu0
  %v13102 = vadd.f32 0.0, %v13101
  %v13103 = vpop.f32.mrf.mxu0
  %v13104 = vpop.f32.mrf.mxu0
  %v13105 = vadd.f32 0.0, %v13104
  %v13106 = vpop.f32.mrf.mxu0
  %13107 = vmatprep.mubr.bf16.mxu0 0
  %13108 = vmatmul.mubr.bf16.gmra.mxu0 %v12993
  %v13109 = vpop.f32.mrf.mxu0
  %v13110 = vadd.f32 0.0, %v13109
  %v13111 = vpop.f32.mrf.mxu0
  %v13112 = vpop.f32.mrf.mxu0
  %v13113 = vadd.f32 0.0, %v13112
  %v13114 = vpop.f32.mrf.mxu0
  %13115 = vmatprep.mubr.bf16.mxu0 0
  %13116 = vmatmul.mubr.bf16.gmra.mxu0 %v12996
  %v13117 = vpop.f32.mrf.mxu0
  %v13118 = vadd.f32 0.0, %v13117
  %v13119 = vpop.f32.mrf.mxu0
  %v13120 = vpop.f32.mrf.mxu0
  %v13121 = vadd.f32 0.0, %v13120
  %v13122 = vpop.f32.mrf.mxu0
  %13123 = vmatprep.mubr.bf16.mxu0 0
  %13124 = vmatmul.mubr.bf16.gmra.mxu0 %v12999
  %v13125 = vpop.f32.mrf.mxu0
  %v13126 = vadd.f32 0.0, %v13125
  %v13127 = vpop.f32.mrf.mxu0
  %v13128 = vpop.f32.mrf.mxu0
  %v13129 = vadd.f32 0.0, %v13128
  %v13130 = vpop.f32.mrf.mxu0
  %13131 = vmatprep.mubr.bf16.mxu0 0
  %13132 = vmatmul.mubr.bf16.gmra.mxu0 %v13002
  %v13133 = vpop.f32.mrf.mxu0
  %v13134 = vadd.f32 0.0, %v13133
  %v13135 = vpop.f32.mrf.mxu0
  %v13136 = vpop.f32.mrf.mxu0
  %v13137 = vadd.f32 0.0, %v13136
  %v13138 = vpop.f32.mrf.mxu0
  %13139 = vmatprep.mubr.bf16.mxu0 0
  %13140 = vmatmul.mubr.bf16.gmra.mxu0 %v13005
  %v13141 = vpop.f32.mrf.mxu0
  %v13142 = vadd.f32 0.0, %v13141
  %v13143 = vpop.f32.mrf.mxu0
  %v13144 = vpop.f32.mrf.mxu0
  %v13145 = vadd.f32 0.0, %v13144
  %v13146 = vpop.f32.mrf.mxu0
  %13147 = vmatprep.mubr.bf16.mxu0 0
  %13148 = vmatmul.mubr.bf16.gmra.mxu0 %v13008
  %v13149 = vpop.f32.mrf.mxu0
  %v13150 = vadd.f32 0.0, %v13149
  %v13151 = vpop.f32.mrf.mxu0
  %v13152 = vpop.f32.mrf.mxu0
  %v13153 = vadd.f32 0.0, %v13152
  %v13154 = vpop.f32.mrf.mxu0
  %13155 = vmatprep.mubr.bf16.mxu0 0
  %13156 = vmatmul.mubr.bf16.gmra.mxu0 %v13011
  %v13157 = vpop.f32.mrf.mxu0
  %v13158 = vadd.f32 0.0, %v13157
  %v13159 = vpop.f32.mrf.mxu0
  %v13160 = vpop.f32.mrf.mxu0
  %v13161 = vadd.f32 0.0, %v13160
  %v13162 = vpop.f32.mrf.mxu0
  %13163 = vmatprep.mubr.bf16.mxu0 0
  %13164 = vmatmul.mubr.bf16.gmra.mxu0 %v13014
  %v13165 = vpop.f32.mrf.mxu0
  %v13166 = vadd.f32 0.0, %v13165
  %v13167 = vpop.f32.mrf.mxu0
  %v13168 = vpop.f32.mrf.mxu0
  %v13169 = vadd.f32 0.0, %v13168
  %v13170 = vpop.f32.mrf.mxu0
  %13171 = vmatprep.mubr.bf16.mxu0 0
  %13172 = vmatmul.mubr.bf16.gmra.mxu0 %v13017
  %v13173 = vpop.f32.mrf.mxu0
  %v13174 = vadd.f32 0.0, %v13173
  %v13175 = vpop.f32.mrf.mxu0
  %v13176 = vpop.f32.mrf.mxu0
  %v13177 = vadd.f32 0.0, %v13176
  %v13178 = vpop.f32.mrf.mxu0
  %13179 = vmatprep.mubr.bf16.mxu0 0
  %13180 = vmatmul.mubr.bf16.gmra.mxu0 %v13020
  %v13181 = vpop.f32.mrf.mxu0
  %v13182 = vadd.f32 0.0, %v13181
  %v13183 = vpop.f32.mrf.mxu0
  %v13184 = vpop.f32.mrf.mxu0
  %v13185 = vadd.f32 0.0, %v13184
  %v13186 = vpop.f32.mrf.mxu0
  %13187 = vmatprep.mubr.bf16.mxu0 0
  %13188 = vmatmul.mubr.bf16.gmra.mxu0 %v13023
  %v13189 = vpop.f32.mrf.mxu0
  %v13190 = vadd.f32 0.0, %v13189
  %v13191 = vpop.f32.mrf.mxu0
  %v13192 = vpop.f32.mrf.mxu0
  %v13193 = vadd.f32 0.0, %v13192
  %v13194 = vpop.f32.mrf.mxu0
  %13195 = vmatprep.mubr.bf16.mxu0 0
  %13196 = vmatmul.mubr.bf16.gmra.mxu0 %v13026
  %v13197 = vpop.f32.mrf.mxu0
  %v13198 = vadd.f32 0.0, %v13197
  %v13199 = vpop.f32.mrf.mxu0
  %v13200 = vpop.f32.mrf.mxu0
  %v13201 = vadd.f32 0.0, %v13200
  %v13202 = vpop.f32.mrf.mxu0
  %13203 = vmatprep.mubr.bf16.mxu0 0
  %13204 = vmatmul.mubr.bf16.gmra.mxu0 %v13029
  %v13205 = vpop.f32.mrf.mxu0
  %v13206 = vadd.f32 0.0, %v13205
  %v13207 = vpop.f32.mrf.mxu0
  %v13208 = vpop.f32.mrf.mxu0
  %v13209 = vadd.f32 0.0, %v13208
  %v13210 = vpop.f32.mrf.mxu0
  %13211 = vmatprep.mubr.bf16.mxu0 0
  %13212 = vmatmul.mubr.bf16.gmra.mxu0 %v13032
  %v13213 = vpop.f32.mrf.mxu0
  %v13214 = vadd.f32 0.0, %v13213
  %v13215 = vpop.f32.mrf.mxu0
  %v13216 = vpop.f32.mrf.mxu0
  %v13217 = vadd.f32 0.0, %v13216
  %v13218 = vpop.f32.mrf.mxu0
  %13219 = vmatprep.mubr.bf16.mxu0 0
  %13220 = vmatmul.mubr.bf16.gmra.mxu0 %v13035
  %v13221 = vpop.f32.mrf.mxu0
  %v13222 = vadd.f32 0.0, %v13221
  %v13223 = vpop.f32.mrf.mxu0
  %v13224 = vpop.f32.mrf.mxu0
  %v13225 = vadd.f32 0.0, %v13224
  %v13226 = vpop.f32.mrf.mxu0
  %13227 = vmatprep.mubr.bf16.mxu0 0
  %13228 = vmatmul.mubr.bf16.gmra.mxu0 %v13038
  %v13229 = vpop.f32.mrf.mxu0
  %v13230 = vadd.f32 0.0, %v13229
  %v13231 = vpop.f32.mrf.mxu0
  %v13232 = vpop.f32.mrf.mxu0
  %v13233 = vadd.f32 0.0, %v13232
  %v13234 = vpop.f32.mrf.mxu0
  %13235 = vmatprep.mubr.bf16.mxu0 0
  %13236 = vmatmul.mubr.bf16.gmra.mxu0 %v13041
  %v13237 = vpop.f32.mrf.mxu0
  %v13238 = vadd.f32 0.0, %v13237
  %v13239 = vpop.f32.mrf.mxu0
  %v13240 = vpop.f32.mrf.mxu0
  %v13241 = vpop.f32.mrf.mxu0
  %13242 = vdwg.mxu0
  %v13243 = vadd.f32 %v12860, %v13078
  %v13244 = vadd.f32 %v12861, %v13081
  %v13245 = vadd.f32 %v12862, %v13086
  %v13246 = vadd.f32 %v12863, %v13089
  %v13247 = vadd.f32 %v12864, %v13094
  %v13248 = vadd.f32 %v12865, %v13097
  %v13249 = vadd.f32 %v12866, %v13102
  %v13250 = vadd.f32 %v12867, %v13105
  %v13251 = vadd.f32 %v12868, %v13110
  %v13252 = vadd.f32 %v12869, %v13113
  %v13253 = vadd.f32 %v12870, %v13118
  %v13254 = vadd.f32 %v12871, %v13121
  %v13255 = vadd.f32 %v12872, %v13126
  %v13256 = vadd.f32 %v12873, %v13129
  %v13257 = vadd.f32 %v12874, %v13134
  %v13258 = vadd.f32 %v12875, %v13137
  %v13259 = vadd.f32 %v12876, %v13142
  %v13260 = vadd.f32 %v12877, %v13145
  %v13261 = vadd.f32 %v12878, %v13150
  %v13262 = vadd.f32 %v12879, %v13153
  %v13263 = vadd.f32 %v12880, %v13158
  %v13264 = vadd.f32 %v12881, %v13161
  %v13265 = vadd.f32 %v12882, %v13166
  %v13266 = vadd.f32 %v12883, %v13169
  %v13267 = vadd.f32 %v12884, %v13174
  %v13268 = vadd.f32 %v12885, %v13177
  %v13269 = vadd.f32 %v12886, %v13182
  %v13270 = vadd.f32 %v12887, %v13185
  %v13271 = vadd.f32 %v12888, %v13190
  %v13272 = vadd.f32 %v12889, %v13193
  %v13273 = vadd.f32 %v12890, %v13198
  %v13274 = vadd.f32 %v12891, %v13201
  %v13275 = vadd.f32 %v12892, %v13206
  %v13276 = vadd.f32 %v12893, %v13209
  %v13277 = vadd.f32 %v12894, %v13214
  %v13278 = vadd.f32 %v12895, %v13217
  %v13279 = vadd.f32 %v12896, %v13222
  %v13280 = vadd.f32 %v12897, %v13225
  %v13281 = vadd.f32 %v12898, %v13230
  %v13282 = vadd.f32 %v12899, %v13233
  %v13283 = vadd.f32 %v12900, %v13238
  %v13284 = vld [vmem:[#allocation3 + $0x33] sm:$0xff]
  %v13285 = vld [vmem:[#allocation3 + $0x3b] sm:$0xff]
  %v13286 = vld [vmem:[#allocation3 + $0x43] sm:$0xff]
  %v13287 = vld [vmem:[#allocation3 + $0x4b] sm:$0xff]
  %v13288 = vld [vmem:[#allocation3 + $0x53] sm:$0xff]
  %v13289 = vld [vmem:[#allocation3 + $0x5b] sm:$0xff]
  %v13290 = vld [vmem:[#allocation3 + $0x63] sm:$0xff]
  %v13291 = vld [vmem:[#allocation3 + $0x6b] sm:$0xff]
  %v13292 = vld [vmem:[#allocation3 + $0x73] sm:$0xff]
  %v13293 = vld [vmem:[#allocation3 + $0x7b] sm:$0xff]
  %v13294 = vld [vmem:[#allocation3 + $0x83] sm:$0xff]
  %v13295 = vld [vmem:[#allocation3 + $0x8b] sm:$0xff]
  %v13296 = vld [vmem:[#allocation3 + $0x93] sm:$0xff]
  %v13297 = vld [vmem:[#allocation3 + $0x9b] sm:$0xff]
  %v13298 = vld [vmem:[#allocation3 + $0xa3] sm:$0xff]
  %v13299 = vld [vmem:[#allocation3 + $0xab] sm:$0xff]
  %v13300 = vld [vmem:[#allocation3 + $0xb3] sm:$0xff]
  %v13301 = vld [vmem:[#allocation3 + $0xbb] sm:$0xff]
  %v13302 = vld [vmem:[#allocation3 + $0xc3] sm:$0xff]
  %v13303 = vld [vmem:[#allocation3 + $0xcb] sm:$0xff]
  %v13304 = vld [vmem:[#allocation3 + $0xd3] sm:$0xff]
  %v13305 = vld [vmem:[#allocation3 + $0xdb] sm:$0xff]
  %v13306 = vld [vmem:[#allocation3 + $0xe3] sm:$0xff]
  %v13307 = vld [vmem:[#allocation3 + $0xeb] sm:$0xff]
  %v13308 = vld [vmem:[#allocation3 + $0xf3] sm:$0xff]
  %v13309 = vld [vmem:[#allocation3 + $0xfb] sm:$0xff]
  %v13310 = vld [vmem:[#allocation3 + $0x103] sm:$0xff]
  %v13311 = vld [vmem:[#allocation3 + $0x10b] sm:$0xff]
  %v13312 = vld [vmem:[#allocation3 + $0x113] sm:$0xff]
  %v13313 = vld [vmem:[#allocation3 + $0x11b] sm:$0xff]
  %v13314 = vld [vmem:[#allocation3 + $0x123] sm:$0xff]
  %v13315 = vld [vmem:[#allocation3 + $0x12b] sm:$0xff]
  %v13316 = vld [vmem:[#allocation3 + $0x133] sm:$0xff]
  %v13317 = vld [vmem:[#allocation3 + $0x13b] sm:$0xff]
  %v13318 = vld [vmem:[#allocation3 + $0x143] sm:$0xff]
  %v13319 = vld [vmem:[#allocation3 + $0x14b] sm:$0xff]
  %v13320 = vld [vmem:[#allocation3 + $0x153] sm:$0xff]
  %v13321 = vld [vmem:[#allocation3 + $0x15b] sm:$0xff]
  %v13322 = vld [vmem:[#allocation3 + $0x163] sm:$0xff]
  %v13323 = vld [vmem:[#allocation3 + $0x16b] sm:$0xff]
  %v13324 = vld [vmem:[#allocation3 + $0x173] sm:$0xf]
  %v13325 = vpack.c.bf16 %v13285, %v13284
  %v13326 = vpack.c.bf16 %v13287, %v13286
  %v13327 = vpack.c.bf16 %v13289, %v13288
  %v13328 = vpack.c.bf16 %v13291, %v13290
  %v13329 = vpack.c.bf16 %v13293, %v13292
  %v13330 = vpack.c.bf16 %v13295, %v13294
  %v13331 = vpack.c.bf16 %v13297, %v13296
  %v13332 = vpack.c.bf16 %v13299, %v13298
  %v13333 = vpack.c.bf16 %v13301, %v13300
  %v13334 = vpack.c.bf16 %v13303, %v13302
  %v13335 = vpack.c.bf16 %v13305, %v13304
  %v13336 = vpack.c.bf16 %v13307, %v13306
  %v13337 = vpack.c.bf16 %v13309, %v13308
  %v13338 = vpack.c.bf16 %v13311, %v13310
  %v13339 = vpack.c.bf16 %v13313, %v13312
  %v13340 = vpack.c.bf16 %v13315, %v13314
  %v13341 = vpack.c.bf16 %v13317, %v13316
  %v13342 = vpack.c.bf16 %v13319, %v13318
  %v13343 = vpack.c.bf16 %v13321, %v13320
  %v13344 = vpack.c.bf16 %v13323, %v13322
  %v13345 = vpack.c.bf16 %v13324, %v13324
  %v13346 = vld [vmem:[%s8 + $0xf0] sm:$0xf]
  %v13347 = vld [vmem:[%s8 + $0xf4] sm:$0xf]
  %v13348 = vld [vmem:[%s8 + $0xf8] sm:$0xf]
  %v13349 = vld [vmem:[%s8 + $0xfc] sm:$0xf]
  %v13354 = vunpack.c.l.b16 %v13346
  %v13355 = vunpack.c.l.b16 %v13347
  %v13356 = vunpack.c.l.b16 %v13348
  %v13357 = vunpack.c.l.b16 %v13349
  %v13358 = vpack.c.b16 %v13355, %v13354
  %v13359 = vpack.c.b16 %v13357, %v13356
  %v13363 = vsel %vm1117, %v13325, 0
  %v13366 = vsel %vm1117, %v13326, 0
  %v13369 = vsel %vm1117, %v13327, 0
  %v13372 = vsel %vm1117, %v13328, 0
  %v13375 = vsel %vm1117, %v13329, 0
  %v13378 = vsel %vm1117, %v13330, 0
  %v13381 = vsel %vm1117, %v13331, 0
  %v13384 = vsel %vm1117, %v13332, 0
  %v13387 = vsel %vm1117, %v13333, 0
  %v13390 = vsel %vm1117, %v13334, 0
  %v13393 = vsel %vm1117, %v13335, 0
  %v13396 = vsel %vm1117, %v13336, 0
  %v13399 = vsel %vm1117, %v13337, 0
  %v13402 = vsel %vm1117, %v13338, 0
  %v13405 = vsel %vm1117, %v13339, 0
  %v13408 = vsel %vm1117, %v13340, 0
  %v13411 = vsel %vm1117, %v13341, 0
  %v13414 = vsel %vm1117, %v13342, 0
  %v13417 = vsel %vm1117, %v13343, 0
  %v13420 = vsel %vm1117, %v13344, 0
  %v13423 = vsel %vm1117, %v13345, 0
  %13425 = vmatprep.subr.bf16.mxu0 0
  %13426 = vmatpush1.bf16.msra.mxu0 0
  %13427 = vmatprep.subr.bf16.mxu0 0
  %13428 = vmatpush1.bf16.msra.mxu0 0
  %13429 = vmatprep.subr.bf16.mxu0 0
  %13430 = vmatpush1.bf16.msra.mxu0 0
  %13431 = vmatprep.subr.bf16.mxu0 0
  %13432 = vmatpush1.bf16.msra.mxu0 0
  %13433 = vmatprep.subr.bf16.mxu0 0
  %13434 = vmatpush1.bf16.msra.mxu0 0
  %13435 = vmatprep.subr.bf16.mxu0 0
  %13436 = vmatpush1.bf16.msra.mxu0 0
  %13437 = vmatprep.subr.bf16.mxu0 0
  %13438 = vmatpush1.bf16.msra.mxu0 %v13359
  %13439 = vmatprep.subr.bf16.mxu0 0
  %13440 = vmatpush1.bf16.msra.mxu0 %v13358
  %13441 = vmatprep.subr.bf16.mxu0 0
  %13442 = vmatpush2.bf16.msra.mxu0 0
  %13443 = vmatprep.subr.bf16.mxu0 0
  %13444 = vmatpush2.bf16.msra.mxu0 0
  %13445 = vmatprep.subr.bf16.mxu0 0
  %13446 = vmatpush2.bf16.msra.mxu0 0
  %13447 = vmatprep.subr.bf16.mxu0 0
  %13448 = vmatpush2.bf16.msra.mxu0 0
  %13449 = vmatprep.subr.bf16.mxu0 0
  %13450 = vmatpush2.bf16.msra.mxu0 0
  %13451 = vmatprep.subr.bf16.mxu0 0
  %13452 = vmatpush2.bf16.msra.mxu0 0
  %13453 = vmatprep.subr.bf16.mxu0 0
  %13454 = vmatpush2.bf16.msra.mxu0 0
  %13455 = vmatprep.subr.bf16.mxu0 0
  %13456 = vmatpush2.bf16.msra.mxu0 0
  %13457 = vmatprep.mubr.bf16.mxu0 0
  %13458 = vmatmul.mubr.bf16.gmra.mxu0 %v13363
  %v13459 = vpop.f32.mrf.mxu0
  %v13460 = vadd.f32 0.0, %v13459
  %v13461 = vpop.f32.mrf.mxu0
  %v13462 = vpop.f32.mrf.mxu0
  %v13463 = vadd.f32 0.0, %v13462
  %v13464 = vpop.f32.mrf.mxu0
  %13465 = vmatprep.mubr.bf16.mxu0 0
  %13466 = vmatmul.mubr.bf16.gmra.mxu0 %v13366
  %v13467 = vpop.f32.mrf.mxu0
  %v13468 = vadd.f32 0.0, %v13467
  %v13469 = vpop.f32.mrf.mxu0
  %v13470 = vpop.f32.mrf.mxu0
  %v13471 = vadd.f32 0.0, %v13470
  %v13472 = vpop.f32.mrf.mxu0
  %13473 = vmatprep.mubr.bf16.mxu0 0
  %13474 = vmatmul.mubr.bf16.gmra.mxu0 %v13369
  %v13475 = vpop.f32.mrf.mxu0
  %v13476 = vadd.f32 0.0, %v13475
  %v13477 = vpop.f32.mrf.mxu0
  %v13478 = vpop.f32.mrf.mxu0
  %v13479 = vadd.f32 0.0, %v13478
  %v13480 = vpop.f32.mrf.mxu0
  %13481 = vmatprep.mubr.bf16.mxu0 0
  %13482 = vmatmul.mubr.bf16.gmra.mxu0 %v13372
  %v13483 = vpop.f32.mrf.mxu0
  %v13484 = vadd.f32 0.0, %v13483
  %v13485 = vpop.f32.mrf.mxu0
  %v13486 = vpop.f32.mrf.mxu0
  %v13487 = vadd.f32 0.0, %v13486
  %v13488 = vpop.f32.mrf.mxu0
  %13489 = vmatprep.mubr.bf16.mxu0 0
  %13490 = vmatmul.mubr.bf16.gmra.mxu0 %v13375
  %v13491 = vpop.f32.mrf.mxu0
  %v13492 = vadd.f32 0.0, %v13491
  %v13493 = vpop.f32.mrf.mxu0
  %v13494 = vpop.f32.mrf.mxu0
  %v13495 = vadd.f32 0.0, %v13494
  %v13496 = vpop.f32.mrf.mxu0
  %13497 = vmatprep.mubr.bf16.mxu0 0
  %13498 = vmatmul.mubr.bf16.gmra.mxu0 %v13378
  %v13499 = vpop.f32.mrf.mxu0
  %v13500 = vadd.f32 0.0, %v13499
  %v13501 = vpop.f32.mrf.mxu0
  %v13502 = vpop.f32.mrf.mxu0
  %v13503 = vadd.f32 0.0, %v13502
  %v13504 = vpop.f32.mrf.mxu0
  %13505 = vmatprep.mubr.bf16.mxu0 0
  %13506 = vmatmul.mubr.bf16.gmra.mxu0 %v13381
  %v13507 = vpop.f32.mrf.mxu0
  %v13508 = vadd.f32 0.0, %v13507
  %v13509 = vpop.f32.mrf.mxu0
  %v13510 = vpop.f32.mrf.mxu0
  %v13511 = vadd.f32 0.0, %v13510
  %v13512 = vpop.f32.mrf.mxu0
  %13513 = vmatprep.mubr.bf16.mxu0 0
  %13514 = vmatmul.mubr.bf16.gmra.mxu0 %v13384
  %v13515 = vpop.f32.mrf.mxu0
  %v13516 = vadd.f32 0.0, %v13515
  %v13517 = vpop.f32.mrf.mxu0
  %v13518 = vpop.f32.mrf.mxu0
  %v13519 = vadd.f32 0.0, %v13518
  %v13520 = vpop.f32.mrf.mxu0
  %13521 = vmatprep.mubr.bf16.mxu0 0
  %13522 = vmatmul.mubr.bf16.gmra.mxu0 %v13387
  %v13523 = vpop.f32.mrf.mxu0
  %v13524 = vadd.f32 0.0, %v13523
  %v13525 = vpop.f32.mrf.mxu0
  %v13526 = vpop.f32.mrf.mxu0
  %v13527 = vadd.f32 0.0, %v13526
  %v13528 = vpop.f32.mrf.mxu0
  %13529 = vmatprep.mubr.bf16.mxu0 0
  %13530 = vmatmul.mubr.bf16.gmra.mxu0 %v13390
  %v13531 = vpop.f32.mrf.mxu0
  %v13532 = vadd.f32 0.0, %v13531
  %v13533 = vpop.f32.mrf.mxu0
  %v13534 = vpop.f32.mrf.mxu0
  %v13535 = vadd.f32 0.0, %v13534
  %v13536 = vpop.f32.mrf.mxu0
  %13537 = vmatprep.mubr.bf16.mxu0 0
  %13538 = vmatmul.mubr.bf16.gmra.mxu0 %v13393
  %v13539 = vpop.f32.mrf.mxu0
  %v13540 = vadd.f32 0.0, %v13539
  %v13541 = vpop.f32.mrf.mxu0
  %v13542 = vpop.f32.mrf.mxu0
  %v13543 = vadd.f32 0.0, %v13542
  %v13544 = vpop.f32.mrf.mxu0
  %13545 = vmatprep.mubr.bf16.mxu0 0
  %13546 = vmatmul.mubr.bf16.gmra.mxu0 %v13396
  %v13547 = vpop.f32.mrf.mxu0
  %v13548 = vadd.f32 0.0, %v13547
  %v13549 = vpop.f32.mrf.mxu0
  %v13550 = vpop.f32.mrf.mxu0
  %v13551 = vadd.f32 0.0, %v13550
  %v13552 = vpop.f32.mrf.mxu0
  %13553 = vmatprep.mubr.bf16.mxu0 0
  %13554 = vmatmul.mubr.bf16.gmra.mxu0 %v13399
  %v13555 = vpop.f32.mrf.mxu0
  %v13556 = vadd.f32 0.0, %v13555
  %v13557 = vpop.f32.mrf.mxu0
  %v13558 = vpop.f32.mrf.mxu0
  %v13559 = vadd.f32 0.0, %v13558
  %v13560 = vpop.f32.mrf.mxu0
  %13561 = vmatprep.mubr.bf16.mxu0 0
  %13562 = vmatmul.mubr.bf16.gmra.mxu0 %v13402
  %v13563 = vpop.f32.mrf.mxu0
  %v13564 = vadd.f32 0.0, %v13563
  %v13565 = vpop.f32.mrf.mxu0
  %v13566 = vpop.f32.mrf.mxu0
  %v13567 = vadd.f32 0.0, %v13566
  %v13568 = vpop.f32.mrf.mxu0
  %13569 = vmatprep.mubr.bf16.mxu0 0
  %13570 = vmatmul.mubr.bf16.gmra.mxu0 %v13405
  %v13571 = vpop.f32.mrf.mxu0
  %v13572 = vadd.f32 0.0, %v13571
  %v13573 = vpop.f32.mrf.mxu0
  %v13574 = vpop.f32.mrf.mxu0
  %v13575 = vadd.f32 0.0, %v13574
  %v13576 = vpop.f32.mrf.mxu0
  %13577 = vmatprep.mubr.bf16.mxu0 0
  %13578 = vmatmul.mubr.bf16.gmra.mxu0 %v13408
  %v13579 = vpop.f32.mrf.mxu0
  %v13580 = vadd.f32 0.0, %v13579
  %v13581 = vpop.f32.mrf.mxu0
  %v13582 = vpop.f32.mrf.mxu0
  %v13583 = vadd.f32 0.0, %v13582
  %v13584 = vpop.f32.mrf.mxu0
  %13585 = vmatprep.mubr.bf16.mxu0 0
  %13586 = vmatmul.mubr.bf16.gmra.mxu0 %v13411
  %v13587 = vpop.f32.mrf.mxu0
  %v13588 = vadd.f32 0.0, %v13587
  %v13589 = vpop.f32.mrf.mxu0
  %v13590 = vpop.f32.mrf.mxu0
  %v13591 = vadd.f32 0.0, %v13590
  %v13592 = vpop.f32.mrf.mxu0
  %13593 = vmatprep.mubr.bf16.mxu0 0
  %13594 = vmatmul.mubr.bf16.gmra.mxu0 %v13414
  %v13595 = vpop.f32.mrf.mxu0
  %v13596 = vadd.f32 0.0, %v13595
  %v13597 = vpop.f32.mrf.mxu0
  %v13598 = vpop.f32.mrf.mxu0
  %v13599 = vadd.f32 0.0, %v13598
  %v13600 = vpop.f32.mrf.mxu0
  %13601 = vmatprep.mubr.bf16.mxu0 0
  %13602 = vmatmul.mubr.bf16.gmra.mxu0 %v13417
  %v13603 = vpop.f32.mrf.mxu0
  %v13604 = vadd.f32 0.0, %v13603
  %v13605 = vpop.f32.mrf.mxu0
  %v13606 = vpop.f32.mrf.mxu0
  %v13607 = vadd.f32 0.0, %v13606
  %v13608 = vpop.f32.mrf.mxu0
  %13609 = vmatprep.mubr.bf16.mxu0 0
  %13610 = vmatmul.mubr.bf16.gmra.mxu0 %v13420
  %v13611 = vpop.f32.mrf.mxu0
  %v13612 = vadd.f32 0.0, %v13611
  %v13613 = vpop.f32.mrf.mxu0
  %v13614 = vpop.f32.mrf.mxu0
  %v13615 = vadd.f32 0.0, %v13614
  %v13616 = vpop.f32.mrf.mxu0
  %13617 = vmatprep.mubr.bf16.mxu0 0
  %13618 = vmatmul.mubr.bf16.gmra.mxu0 %v13423
  %v13619 = vpop.f32.mrf.mxu0
  %v13620 = vadd.f32 0.0, %v13619
  %v13621 = vpop.f32.mrf.mxu0
  %v13622 = vpop.f32.mrf.mxu0
  %v13623 = vpop.f32.mrf.mxu0
  %13624 = vdwg.mxu0
  %v13625 = vadd.f32 %v13243, %v13460
  %v13626 = vadd.f32 %v13244, %v13463
  %v13627 = vadd.f32 %v13245, %v13468
  %v13628 = vadd.f32 %v13246, %v13471
  %v13629 = vadd.f32 %v13247, %v13476
  %v13630 = vadd.f32 %v13248, %v13479
  %v13631 = vadd.f32 %v13249, %v13484
  %v13632 = vadd.f32 %v13250, %v13487
  %v13633 = vadd.f32 %v13251, %v13492
  %v13634 = vadd.f32 %v13252, %v13495
  %v13635 = vadd.f32 %v13253, %v13500
  %v13636 = vadd.f32 %v13254, %v13503
  %v13637 = vadd.f32 %v13255, %v13508
  %v13638 = vadd.f32 %v13256, %v13511
  %v13639 = vadd.f32 %v13257, %v13516
  %v13640 = vadd.f32 %v13258, %v13519
  %v13641 = vadd.f32 %v13259, %v13524
  %v13642 = vadd.f32 %v13260, %v13527
  %v13643 = vadd.f32 %v13261, %v13532
  %v13644 = vadd.f32 %v13262, %v13535
  %v13645 = vadd.f32 %v13263, %v13540
  %v13646 = vadd.f32 %v13264, %v13543
  %v13647 = vadd.f32 %v13265, %v13548
  %v13648 = vadd.f32 %v13266, %v13551
  %v13649 = vadd.f32 %v13267, %v13556
  %v13650 = vadd.f32 %v13268, %v13559
  %v13651 = vadd.f32 %v13269, %v13564
  %v13652 = vadd.f32 %v13270, %v13567
  %v13653 = vadd.f32 %v13271, %v13572
  %v13654 = vadd.f32 %v13272, %v13575
  %v13655 = vadd.f32 %v13273, %v13580
  %v13656 = vadd.f32 %v13274, %v13583
  %v13657 = vadd.f32 %v13275, %v13588
  %v13658 = vadd.f32 %v13276, %v13591
  %v13659 = vadd.f32 %v13277, %v13596
  %v13660 = vadd.f32 %v13278, %v13599
  %v13661 = vadd.f32 %v13279, %v13604
  %v13662 = vadd.f32 %v13280, %v13607
  %v13663 = vadd.f32 %v13281, %v13612
  %v13664 = vadd.f32 %v13282, %v13615
  %v13665 = vadd.f32 %v13283, %v13620
  %v13666 = vld [vmem:[%s9] sm:$0x1]
  %v13668 = vlaneseq
  %v13669 = vshrl.u32 %v13668, 7
  %v13670 = vsub.s32 0, %v13669
  %v13671 = vrot.slane %v13666, %v13670
  %v13673 = vmul.f32 %v13625, %v13671
  %v13674 = vmul.f32 %v13626, %v13671
  %v13675 = vmul.f32 %v13627, %v13671
  %v13676 = vmul.f32 %v13628, %v13671
  %v13677 = vmul.f32 %v13629, %v13671
  %v13678 = vmul.f32 %v13630, %v13671
  %v13679 = vmul.f32 %v13631, %v13671
  %v13680 = vmul.f32 %v13632, %v13671
  %v13681 = vmul.f32 %v13633, %v13671
  %v13682 = vmul.f32 %v13634, %v13671
  %v13683 = vmul.f32 %v13635, %v13671
  %v13684 = vmul.f32 %v13636, %v13671
  %v13685 = vmul.f32 %v13637, %v13671
  %v13686 = vmul.f32 %v13638, %v13671
  %v13687 = vmul.f32 %v13639, %v13671
  %v13688 = vmul.f32 %v13640, %v13671
  %v13689 = vmul.f32 %v13641, %v13671
  %v13690 = vmul.f32 %v13642, %v13671
  %v13691 = vmul.f32 %v13643, %v13671
  %v13692 = vmul.f32 %v13644, %v13671
  %v13693 = vmul.f32 %v13645, %v13671
  %v13694 = vmul.f32 %v13646, %v13671
  %v13695 = vmul.f32 %v13647, %v13671
  %v13696 = vmul.f32 %v13648, %v13671
  %v13697 = vmul.f32 %v13649, %v13671
  %v13698 = vmul.f32 %v13650, %v13671
  %v13699 = vmul.f32 %v13651, %v13671
  %v13700 = vmul.f32 %v13652, %v13671
  %v13701 = vmul.f32 %v13653, %v13671
  %v13702 = vmul.f32 %v13654, %v13671
  %v13703 = vmul.f32 %v13655, %v13671
  %v13704 = vmul.f32 %v13656, %v13671
  %v13705 = vmul.f32 %v13657, %v13671
  %v13706 = vmul.f32 %v13658, %v13671
  %v13707 = vmul.f32 %v13659, %v13671
  %v13708 = vmul.f32 %v13660, %v13671
  %v13709 = vmul.f32 %v13661, %v13671
  %v13710 = vmul.f32 %v13662, %v13671
  %v13711 = vmul.f32 %v13663, %v13671
  %v13712 = vmul.f32 %v13664, %v13671
  %v13713 = vmul.f32 %v13665, %v13671
  %v13714 = vld [vmem:[%s10] sm:$0x1]
  %v13716 = vlaneseq
  %v13717 = vshrl.u32 %v13716, 7
  %v13718 = vsub.s32 0, %v13717
  %v13719 = vrot.slane %v13714, %v13718
  %v13721 = vadd.f32 %v13673, %v13719
  %v13722 = vadd.f32 %v13674, %v13719
  %v13723 = vadd.f32 %v13675, %v13719
  %v13724 = vadd.f32 %v13676, %v13719
  %v13725 = vadd.f32 %v13677, %v13719
  %v13726 = vadd.f32 %v13678, %v13719
  %v13727 = vadd.f32 %v13679, %v13719
  %v13728 = vadd.f32 %v13680, %v13719
  %v13729 = vadd.f32 %v13681, %v13719
  %v13730 = vadd.f32 %v13682, %v13719
  %v13731 = vadd.f32 %v13683, %v13719
  %v13732 = vadd.f32 %v13684, %v13719
  %v13733 = vadd.f32 %v13685, %v13719
  %v13734 = vadd.f32 %v13686, %v13719
  %v13735 = vadd.f32 %v13687, %v13719
  %v13736 = vadd.f32 %v13688, %v13719
  %v13737 = vadd.f32 %v13689, %v13719
  %v13738 = vadd.f32 %v13690, %v13719
  %v13739 = vadd.f32 %v13691, %v13719
  %v13740 = vadd.f32 %v13692, %v13719
  %v13741 = vadd.f32 %v13693, %v13719
  %v13742 = vadd.f32 %v13694, %v13719
  %v13743 = vadd.f32 %v13695, %v13719
  %v13744 = vadd.f32 %v13696, %v13719
  %v13745 = vadd.f32 %v13697, %v13719
  %v13746 = vadd.f32 %v13698, %v13719
  %v13747 = vadd.f32 %v13699, %v13719
  %v13748 = vadd.f32 %v13700, %v13719
  %v13749 = vadd.f32 %v13701, %v13719
  %v13750 = vadd.f32 %v13702, %v13719
  %v13751 = vadd.f32 %v13703, %v13719
  %v13752 = vadd.f32 %v13704, %v13719
  %v13753 = vadd.f32 %v13705, %v13719
  %v13754 = vadd.f32 %v13706, %v13719
  %v13755 = vadd.f32 %v13707, %v13719
  %v13756 = vadd.f32 %v13708, %v13719
  %v13757 = vadd.f32 %v13709, %v13719
  %v13758 = vadd.f32 %v13710, %v13719
  %v13759 = vadd.f32 %v13711, %v13719
  %v13760 = vadd.f32 %v13712, %v13719
  %v13761 = vadd.f32 %v13713, %v13719
  %v13762 = vmax.f32 %v13721, 0.0
  %v13763 = vmax.f32 %v13722, 0.0
  %v13764 = vmax.f32 %v13723, 0.0
  %v13765 = vmax.f32 %v13724, 0.0
  %v13766 = vmax.f32 %v13725, 0.0
  %v13767 = vmax.f32 %v13726, 0.0
  %v13768 = vmax.f32 %v13727, 0.0
  %v13769 = vmax.f32 %v13728, 0.0
  %v13770 = vmax.f32 %v13729, 0.0
  %v13771 = vmax.f32 %v13730, 0.0
  %v13772 = vmax.f32 %v13731, 0.0
  %v13773 = vmax.f32 %v13732, 0.0
  %v13774 = vmax.f32 %v13733, 0.0
  %v13775 = vmax.f32 %v13734, 0.0
  %v13776 = vmax.f32 %v13735, 0.0
  %v13777 = vmax.f32 %v13736, 0.0
  %v13778 = vmax.f32 %v13737, 0.0
  %v13779 = vmax.f32 %v13738, 0.0
  %v13780 = vmax.f32 %v13739, 0.0
  %v13781 = vmax.f32 %v13740, 0.0
  %v13782 = vmax.f32 %v13741, 0.0
  %v13783 = vmax.f32 %v13742, 0.0
  %v13784 = vmax.f32 %v13743, 0.0
  %v13785 = vmax.f32 %v13744, 0.0
  %v13786 = vmax.f32 %v13745, 0.0
  %v13787 = vmax.f32 %v13746, 0.0
  %v13788 = vmax.f32 %v13747, 0.0
  %v13789 = vmax.f32 %v13748, 0.0
  %v13790 = vmax.f32 %v13749, 0.0
  %v13791 = vmax.f32 %v13750, 0.0
  %v13792 = vmax.f32 %v13751, 0.0
  %v13793 = vmax.f32 %v13752, 0.0
  %v13794 = vmax.f32 %v13753, 0.0
  %v13795 = vmax.f32 %v13754, 0.0
  %v13796 = vmax.f32 %v13755, 0.0
  %v13797 = vmax.f32 %v13756, 0.0
  %v13798 = vmax.f32 %v13757, 0.0
  %v13799 = vmax.f32 %v13758, 0.0
  %v13800 = vmax.f32 %v13759, 0.0
  %v13801 = vmax.f32 %v13760, 0.0
  %v13802 = vmax.f32 %v13761, 0.0
  %v13803 = vmul.f32 %v13762, %v544
  %v13804 = vmul.f32 %v13763, %v549
  %v13805 = vmul.f32 %v13764, %v554
  %v13806 = vmul.f32 %v13765, %v559
  %v13807 = vmul.f32 %v13766, %v564
  %v13808 = vmul.f32 %v13767, %v569
  %v13809 = vmul.f32 %v13768, %v574
  %v13810 = vmul.f32 %v13769, %v579
  %v13811 = vmul.f32 %v13770, %v584
  %v13812 = vmul.f32 %v13771, %v589
  %v13813 = vmul.f32 %v13772, %v594
  %v13814 = vmul.f32 %v13773, %v599
  %v13815 = vmul.f32 %v13774, %v604
  %v13816 = vmul.f32 %v13775, %v609
  %v13817 = vmul.f32 %v13776, %v614
  %v13818 = vmul.f32 %v13777, %v619
  %v13819 = vmul.f32 %v13778, %v624
  %v13820 = vmul.f32 %v13779, %v629
  %v13821 = vmul.f32 %v13780, %v634
  %v13822 = vmul.f32 %v13781, %v639
  %v13823 = vmul.f32 %v13782, %v644
  %v13824 = vmul.f32 %v13783, %v649
  %v13825 = vmul.f32 %v13784, %v654
  %v13826 = vmul.f32 %v13785, %v659
  %v13827 = vmul.f32 %v13786, %v664
  %v13828 = vmul.f32 %v13787, %v669
  %v13829 = vmul.f32 %v13788, %v674
  %v13830 = vmul.f32 %v13789, %v679
  %v13831 = vmul.f32 %v13790, %v684
  %v13832 = vmul.f32 %v13791, %v689
  %v13833 = vmul.f32 %v13792, %v694
  %v13834 = vmul.f32 %v13793, %v699
  %v13835 = vmul.f32 %v13794, %v704
  %v13836 = vmul.f32 %v13795, %v709
  %v13837 = vmul.f32 %v13796, %v714
  %v13838 = vmul.f32 %v13797, %v719
  %v13839 = vmul.f32 %v13798, %v724
  %v13840 = vmul.f32 %v13799, %v729
  %v13841 = vmul.f32 %v13800, %v734
  %v13842 = vmul.f32 %v13801, %v739
  %v13843 = vmul.f32 %v13802, %v744
  %13844 = vst [vmem:[%s11] sm:$0xff] %v13803
  %13845 = vst [vmem:[%s11 + $0x8] sm:$0xff] %v13804
  %13846 = vst [vmem:[%s11 + $0x10] sm:$0xff] %v13805
  %13847 = vst [vmem:[%s11 + $0x18] sm:$0xff] %v13806
  %13848 = vst [vmem:[%s11 + $0x20] sm:$0xff] %v13807
  %13849 = vst [vmem:[%s11 + $0x28] sm:$0xff] %v13808
  %13850 = vst [vmem:[%s11 + $0x30] sm:$0xff] %v13809
  %13851 = vst [vmem:[%s11 + $0x38] sm:$0xff] %v13810
  %13852 = vst [vmem:[%s11 + $0x40] sm:$0xff] %v13811
  %13853 = vst [vmem:[%s11 + $0x48] sm:$0xff] %v13812
  %13854 = vst [vmem:[%s11 + $0x50] sm:$0xff] %v13813
  %13855 = vst [vmem:[%s11 + $0x58] sm:$0xff] %v13814
  %13856 = vst [vmem:[%s11 + $0x60] sm:$0xff] %v13815
  %13857 = vst [vmem:[%s11 + $0x68] sm:$0xff] %v13816
  %13858 = vst [vmem:[%s11 + $0x70] sm:$0xff] %v13817
  %13859 = vst [vmem:[%s11 + $0x78] sm:$0xff] %v13818
  %13860 = vst [vmem:[%s11 + $0x80] sm:$0xff] %v13819
  %13861 = vst [vmem:[%s11 + $0x88] sm:$0xff] %v13820
  %13862 = vst [vmem:[%s11 + $0x90] sm:$0xff] %v13821
  %13863 = vst [vmem:[%s11 + $0x98] sm:$0xff] %v13822
  %13864 = vst [vmem:[%s11 + $0xa0] sm:$0xff] %v13823
  %13865 = vst [vmem:[%s11 + $0xa8] sm:$0xff] %v13824
  %13866 = vst [vmem:[%s11 + $0xb0] sm:$0xff] %v13825
  %13867 = vst [vmem:[%s11 + $0xb8] sm:$0xff] %v13826
  %13868 = vst [vmem:[%s11 + $0xc0] sm:$0xff] %v13827
  %13869 = vst [vmem:[%s11 + $0xc8] sm:$0xff] %v13828
  %13870 = vst [vmem:[%s11 + $0xd0] sm:$0xff] %v13829
  %13871 = vst [vmem:[%s11 + $0xd8] sm:$0xff] %v13830
  %13872 = vst [vmem:[%s11 + $0xe0] sm:$0xff] %v13831
  %13873 = vst [vmem:[%s11 + $0xe8] sm:$0xff] %v13832
  %13874 = vst [vmem:[%s11 + $0xf0] sm:$0xff] %v13833
  %13875 = vst [vmem:[%s11 + $0xf8] sm:$0xff] %v13834
  %13876 = vst [vmem:[%s11 + $0x100] sm:$0xff] %v13835
  %13877 = vst [vmem:[%s11 + $0x108] sm:$0xff] %v13836
  %13878 = vst [vmem:[%s11 + $0x110] sm:$0xff] %v13837
  %13879 = vst [vmem:[%s11 + $0x118] sm:$0xff] %v13838
  %13880 = vst [vmem:[%s11 + $0x120] sm:$0xff] %v13839
  %13881 = vst [vmem:[%s11 + $0x128] sm:$0xff] %v13840
  %13882 = vst [vmem:[%s11 + $0x130] sm:$0xff] %v13841
  %13883 = vst [vmem:[%s11 + $0x138] sm:$0xff] %v13842
  %13884 = vst [vmem:[%s11 + $0x140] sm:$0xf] %v13843
  // Predicated region
  $region46: #{decoder_block_forward.1} parent=0 // pred_check
    _
  $region47: #{decoder_block_forward.1} parent=0 // pred_check_branch
    %13886 = sbr.rel (0) target = $region49
  $region48: #{decoder_block_forward.1} parent=0 // pred_region
    _
  $region49: #{decoder_block_forward.1} parent=0 // pred_fallthru
    _
  // Predicated region
  $region50: #{decoder_block_forward.1} parent=0 // pred_check
    _
  $region51: #{decoder_block_forward.1} parent=0 // pred_check_branch
    %13888 = sbr.rel (0) target = $region53
  $region52: #{decoder_block_forward.1} parent=0 // pred_region
    _
  $region53: #{decoder_block_forward.1} parent=0 // pred_fallthru
    _

</llo_original>
